<compile_context>
chip_gen: v7x
topology: tpu7x:2x2x1
jax: 0.10.0
libtpu: 0.0.40
codegen_flags: <defaults>
</compile_context>

<pallas_src>
import functools

import jax
import jax.numpy as jnp
from jax import lax
from jax.experimental import pallas as pl
from jax.experimental.pallas import tpu as pltpu


# Low-side halo along W is 8 sublanes so every in-kernel interior ref *store* lands on a
# sublane-aligned offset; the high side only needs the 1-pixel conv halo.
_W_HALO_LO = 8
_W_HALO_HI = 1
_H_HALO = 1


# ----------------------------------------------------------------------------
# Fused kernel: whole Corner_Predictor forward for one batch image, in VMEM
# ----------------------------------------------------------------------------

def _fused_corner_kernel(
        x_ref,
        w1_ref, s1_ref, t1_ref,
        w2_ref, s2_ref, t2_ref,
        w3_ref, s3_ref, t3_ref,
        w4_ref, s4_ref, t4_ref,
        w5t_ref, b5t_ref,
        coords_ref,
        o_ref,
        pad0, pad1, pad2, pad3,
        *, H, W, inv_img):
    N = H * W
    lo = _W_HALO_LO
    pads = (pad0, pad1, pad2, pad3)
    layers = ((w1_ref, s1_ref, t1_ref),
              (w2_ref, s2_ref, t2_ref),
              (w3_ref, s3_ref, t3_ref),
              (w4_ref, s4_ref, t4_ref))

    # Zero ONLY the 1-pixel halo ring actually read by the tap slices (rows 0 and H+1,
    # and the W columns lo-1 and lo+W).  Interiors are fully overwritten below, and the
    # unread filler columns (< lo-1, > lo+W) never feed any computation.
    for p in pads:
        Wp = p.shape[1]
        cin = p.shape[2]
        zrow = jnp.zeros((1, Wp, cin), jnp.float32)
        zcol = jnp.zeros((H + 2 * _H_HALO, 1, cin), jnp.float32)
        p[0:1, :, :] = zrow                        # top halo row
        p[H + 1:H + 2, :, :] = zrow                # bottom halo row
        p[:, lo - 1:lo, :] = zcol                  # left halo column
        p[:, lo + W:lo + W + 1, :] = zcol          # right halo column

    # Seed layer-1 input (one image, HWC) into the interior of the first padded buffer.
    pad0[_H_HALO:_H_HALO + H, lo:lo + W, :] = x_ref[0]

    y = None
    for li, (w_ref, sc_ref, sh_ref) in enumerate(layers):
        cin = pads[li].shape[2]
        cout = w_ref.shape[1]
        xp = pads[li][...]                                   # (H+2, W+9, cin), halo ring = 0
        # im2col: 9 shifted (N, cin) patches lane-concatenated -> ONE MXU dot per layer
        # against the host-side pre-reshaped (9*cin, cout) merged weight.
        patches = []
        for dh in range(3):
            for dw in range(3):
                patches.append(
                    xp[dh:dh + H, lo - 1 + dw:lo - 1 + dw + W, :].reshape(N, cin))
        col = jnp.concatenate(patches, axis=1)               # (N, 9*cin)
        acc = jnp.dot(col, w_ref[...], preferred_element_type=jnp.float32)
        # Folded BatchNorm(eval) + conv bias + ReLU.
        y = jnp.maximum(acc * sc_ref[...] + sh_ref[...], 0.0)  # (N, cout)
        if li + 1 < len(layers):
            pads[li + 1][_H_HALO:_H_HALO + H, lo:lo + W, :] = y.reshape(H, W, cout)

    # Final 1x1 conv, produced directly TRANSPOSED as (2, N): row 0 = tl, row 1 = br.
    # NT-form dot_general (contract both trailing channel dims) avoids any vector transpose
    # and puts the spatial axis on lanes for the softmax tail.
    st = lax.dot_general(w5t_ref[...], y, (((1,), (1,)), ((), ())),
                         preferred_element_type=jnp.float32) + b5t_ref[...]

    # Soft-argmax with N on lanes (lane-dense exp / lane reductions).  Exact softmax.
    m = jnp.max(st, axis=1, keepdims=True)                   # (2, 1)
    e = jnp.exp(st - m)
    z = jnp.sum(e, axis=1, keepdims=True)                    # (2, 1)
    prob = e / z                                             # (2, N)

    # (2, N) @ (N, 2) -> [[x_tl, y_tl], [x_br, y_br]]
    exp_xy = jnp.dot(prob, coords_ref[...], preferred_element_type=jnp.float32)
    out = jnp.concatenate([exp_xy[0:1, :], exp_xy[1:2, :]], axis=1)   # (1, 4)
    o_ref[...] = (out * inv_img).reshape(1, 1, 4)


# ----------------------------------------------------------------------------
# Forward wrapper (single pallas_call, grid over batch)
# ----------------------------------------------------------------------------

@functools.partial(jax.jit, static_argnames=("feat_sz", "stride"))
def corner_predictor_forward(x_nchw, merged, coords, *, feat_sz, stride):
    """Equivalent of Corner_Predictor.forward(x) with return_dist=False."""
    B = x_nchw.shape[0]
    H = W = feat_sz
    N = H * W
    inv_img = 1.0 / float(feat_sz * stride)

    # Tiny boundary op: NCHW -> NHWC so channels sit on the lane axis for the MXU.
    x = jnp.transpose(x_nchw, (0, 2, 3, 1)).astype(jnp.float32)
    Cin = x.shape[-1]

    w1, w2, w3, w4 = merged["w"]             # (9*cin, cout), im2col-reshaped host-side
    s1, s2, s3, s4 = merged["scale"]
    t1, t2, t3, t4 = merged["shift"]
    cins = [int(w.shape[0]) // 9 for w in merged["w"]]

    consts = (w1, s1, t1, w2, s2, t2, w3, s3, t3, w4, s4, t4,
              merged["w5t"], merged["b5t"], coords)

    kernel = functools.partial(_fused_corner_kernel, H=H, W=W, inv_img=inv_img)

    conv_flops = 2 * B * N * sum(int(w.shape[0]) * int(w.shape[1]) for w in merged["w"])
    head_flops = 2 * B * N * int(merged["w5t"].shape[1]) * 2 + 2 * B * 2 * N * 2
    bytes_accessed = 4 * (int(x.size)
                          + sum(int(a.size) for a in consts)
                          + B * 4)
    cost = pl.CostEstimate(flops=conv_flops + head_flops,
                           transcendentals=2 * B * N,
                           bytes_accessed=bytes_accessed)

    out = pl.pallas_call(
        kernel,
        out_shape=jax.ShapeDtypeStruct((B, 1, 4), jnp.float32),
        grid=(B,),
        in_specs=[pl.BlockSpec((1, H, W, Cin), lambda b: (b, 0, 0, 0))]
                 + [pl.BlockSpec(c.shape, lambda b: (0, 0)) for c in consts],
        out_specs=pl.BlockSpec((1, 1, 4), lambda b: (b, 0, 0)),
        scratch_shapes=[
            pltpu.VMEM((H + 2 * _H_HALO, W + _W_HALO_LO + _W_HALO_HI, c), jnp.float32)
            for c in cins
        ],
        compiler_params=pltpu.CompilerParams(
            dimension_semantics=("parallel",),
            vmem_limit_bytes=32 * 1024 * 1024),
        cost_estimate=cost,
    )(x, *consts)
    return out.reshape(B, 4)


# ----------------------------------------------------------------------------
# Parameters (synthetic, BN folded) + tl/br branch merging
# ----------------------------------------------------------------------------

def init_params(key, inplanes, channel):
    """Deterministic synthetic parameters (conv weights, conv bias, BN stats folded)."""
    dims = [(inplanes, channel),
            (channel, channel // 2),
            (channel // 2, channel // 4),
            (channel // 4, channel // 8)]
    eps = 1e-5
    params = {}
    for branch in ("tl", "br"):
        convs = []
        for ci, co in dims:
            key, k1, k2, k3, k4, k5, k6 = jax.random.split(key, 7)
            w = jax.random.normal(k1, (3, 3, ci, co), jnp.float32) * 0.1
            bias = jax.random.normal(k2, (co,), jnp.float32) * 0.1
            gamma = 1.0 + 0.1 * jax.random.normal(k3, (co,), jnp.float32)
            beta = 0.1 * jax.random.normal(k4, (co,), jnp.float32)
            mean = 0.1 * jax.random.normal(k5, (co,), jnp.float32)
            var = 1.0 + 0.1 * jax.random.uniform(k6, (co,), jnp.float32)
            scale = gamma / jnp.sqrt(var + eps)
            shift = beta - mean * scale + bias * scale   # fold conv bias + BN(eval)
            convs.append((w,
                          scale.reshape(1, co).astype(jnp.float32),
                          shift.reshape(1, co).astype(jnp.float32)))
        key, k1, k2 = jax.random.split(key, 3)
        w5 = jax.random.normal(k1, (channel // 8, 1), jnp.float32) * 0.1
        b5 = jax.random.normal(k2, (1, 1), jnp.float32) * 0.1
        params[branch] = {"convs": convs, "w5": w5, "b5": b5}
    return params


def merge_branch_params(params):
    """Merge tl/br weights so both branches run in one pass per layer.

    Layer 1 shares its input -> concat along Cout. Layers 2-4 and the 1x1 conv use
    block-diagonal merged weights.  3x3 weights are pre-reshaped host-side to
    (9*cin, cout) in (dh, dw, c) tap-major order, matching the in-kernel im2col concat."""
    tl, br = params["tl"], params["br"]
    w_list, s_list, t_list = [], [], []
    for li, ((w_t, s_t, t_t), (w_b, s_b, t_b)) in enumerate(zip(tl["convs"], br["convs"])):
        if li == 0:
            wm = jnp.concatenate([w_t, w_b], axis=3)                       # (3,3,ci,2co)
        else:
            top = jnp.concatenate([w_t, jnp.zeros_like(w_b)], axis=3)
            bot = jnp.concatenate([jnp.zeros_like(w_t), w_b], axis=3)
            wm = jnp.concatenate([top, bot], axis=2)                       # (3,3,2ci,2co)
        cin_m, cout_m = int(wm.shape[2]), int(wm.shape[3])
        w_list.append(wm.reshape(9 * cin_m, cout_m))                       # im2col weight
        s_list.append(jnp.concatenate([s_t, s_b], axis=1))
        t_list.append(jnp.concatenate([t_t, t_b], axis=1))
    col0 = jnp.concatenate([tl["w5"], jnp.zeros_like(br["w5"])], axis=0)
    col1 = jnp.concatenate([jnp.zeros_like(tl["w5"]), br["w5"]], axis=0)
    w5m = jnp.concatenate([col0, col1], axis=1)                            # (2*C8, 2)
    b5m = jnp.concatenate([tl["b5"], br["b5"]], axis=1)                    # (1, 2)
    return {"w": w_list, "scale": s_list, "shift": t_list,
            "w5t": jnp.transpose(w5m),                                     # (2, 2*C8)
            "b5t": jnp.transpose(b5m)}                                     # (2, 1)


def make_coords(feat_sz, stride):
    idx = jnp.arange(feat_sz, dtype=jnp.float32) * stride
    coord_x = jnp.tile(idx, feat_sz)               # (N,) varies with w (fast axis)
    coord_y = jnp.repeat(idx, feat_sz)             # (N,) varies with h (slow axis)
    return jnp.stack([coord_x, coord_y], axis=1)   # (N, 2)


# ----------------------------------------------------------------------------
# Pure-JAX reference (per-branch, unmerged) for correctness checking
# ----------------------------------------------------------------------------

def reference_forward(x_nchw, params, coords, feat_sz, stride):
    img_sz = float(feat_sz * stride)
    x = jnp.transpose(x_nchw, (0, 2, 3, 1)).astype(jnp.float32)

    def branch(h, p):
        for (w, scale, shift) in p["convs"]:
            c = lax.conv_general_dilated(
                h, w, (1, 1), "SAME", dimension_numbers=("NHWC", "HWIO", "NHWC"))
            h = jnp.maximum(c * scale.reshape(1, 1, 1, -1) + shift.reshape(1, 1, 1, -1), 0.0)
        s = jnp.einsum("bhwc,co->bhwo", h, p["w5"]) + p["b5"][0, 0]
        return s.reshape(h.shape[0], -1)

    cx = coords[:, 0]
    cy = coords[:, 1]

    def sa(s):
        prob = jax.nn.softmax(s, axis=1)
        return jnp.sum(cx * prob, axis=1), jnp.sum(cy * prob, axis=1)

    stl, sbr = branch(x, params["tl"]), branch(x, params["br"])
    xt, yt = sa(stl)
    xb, yb = sa(sbr)
    return jnp.stack([xt, yt, xb, yb], axis=1) / img_sz


# ----------------------------------------------------------------------------

if __name__ == "__main__":
    # Small synthetic config: inplanes=4, channel=16, feat_sz=16, stride=16.
    B, INPLANES, CHANNEL, FEAT_SZ, STRIDE = 2, 4, 16, 16, 16

    key = jax.random.PRNGKey(0)
    key, xkey = jax.random.split(key)
    x = jax.random.normal(xkey, (B, INPLANES, FEAT_SZ, FEAT_SZ), jnp.float32)  # NCHW

    params = init_params(key, INPLANES, CHANNEL)
    merged = merge_branch_params(params)
    coords = make_coords(FEAT_SZ, STRIDE)

    out = corner_predictor_forward(x, merged, coords, feat_sz=FEAT_SZ, stride=STRIDE)
    out = jax.block_until_ready(out)

    ref = reference_forward(x, params, coords, FEAT_SZ, STRIDE)
    assert out.shape == (B, 4)
    assert jnp.allclose(out, ref, rtol=1e-3, atol=1e-3), (out, ref)

    print("KERNEL_OK")
</pallas_src>

<mosaic_0001>
module attributes {stable_mosaic.version = 11 : i64} {
  func.func @_fused_corner_kernel(%arg0: i32, %arg1: memref<1x16x16x4xf32, #tpu.memory_space<vmem>>, %arg2: memref<36x32xf32, #tpu.memory_space<vmem>>, %arg3: memref<1x32xf32, #tpu.memory_space<vmem>>, %arg4: memref<1x32xf32, #tpu.memory_space<vmem>>, %arg5: memref<288x16xf32, #tpu.memory_space<vmem>>, %arg6: memref<1x16xf32, #tpu.memory_space<vmem>>, %arg7: memref<1x16xf32, #tpu.memory_space<vmem>>, %arg8: memref<144x8xf32, #tpu.memory_space<vmem>>, %arg9: memref<1x8xf32, #tpu.memory_space<vmem>>, %arg10: memref<1x8xf32, #tpu.memory_space<vmem>>, %arg11: memref<72x4xf32, #tpu.memory_space<vmem>>, %arg12: memref<1x4xf32, #tpu.memory_space<vmem>>, %arg13: memref<1x4xf32, #tpu.memory_space<vmem>>, %arg14: memref<2x4xf32, #tpu.memory_space<vmem>>, %arg15: memref<2x1xf32, #tpu.memory_space<vmem>>, %arg16: memref<256x2xf32, #tpu.memory_space<vmem>>, %arg17: memref<1x1x4xf32, #tpu.memory_space<vmem>>, %arg18: memref<18x25x4xf32, #tpu.memory_space<vmem>>, %arg19: memref<18x25x32xf32, #tpu.memory_space<vmem>>, %arg20: memref<18x25x16xf32, #tpu.memory_space<vmem>>, %arg21: memref<18x25x8xf32, #tpu.memory_space<vmem>>) attributes {dimension_semantics = [#tpu.dimension_semantics<parallel>], iteration_bounds = array<i64: 2>, scalar_prefetch = 0 : i64, scratch_operands = 4 : i64, tpu.core_type = #tpu.core_type<tc>, window_params = [{transform_indices = @transform_0, window_bounds = array<i64: 1, 16, 16, 4>}, {pipeline_mode = #tpu.pipeline_mode<synchronous>, transform_indices = @transform_1, window_bounds = array<i64: 36, 32>}, {pipeline_mode = #tpu.pipeline_mode<synchronous>, transform_indices = @transform_2, window_bounds = array<i64: 1, 32>}, {pipeline_mode = #tpu.pipeline_mode<synchronous>, transform_indices = @transform_3, window_bounds = array<i64: 1, 32>}, {pipeline_mode = #tpu.pipeline_mode<synchronous>, transform_indices = @transform_4, window_bounds = array<i64: 288, 16>}, {pipeline_mode = #tpu.pipeline_mode<synchronous>, transform_indices = @transform_5, window_bounds = array<i64: 1, 16>}, {pipeline_mode = #tpu.pipeline_mode<synchronous>, transform_indices = @transform_6, window_bounds = array<i64: 1, 16>}, {pipeline_mode = #tpu.pipeline_mode<synchronous>, transform_indices = @transform_7, window_bounds = array<i64: 144, 8>}, {pipeline_mode = #tpu.pipeline_mode<synchronous>, transform_indices = @transform_8, window_bounds = array<i64: 1, 8>}, {pipeline_mode = #tpu.pipeline_mode<synchronous>, transform_indices = @transform_9, window_bounds = array<i64: 1, 8>}, {pipeline_mode = #tpu.pipeline_mode<synchronous>, transform_indices = @transform_10, window_bounds = array<i64: 72, 4>}, {pipeline_mode = #tpu.pipeline_mode<synchronous>, transform_indices = @transform_11, window_bounds = array<i64: 1, 4>}, {pipeline_mode = #tpu.pipeline_mode<synchronous>, transform_indices = @transform_12, window_bounds = array<i64: 1, 4>}, {pipeline_mode = #tpu.pipeline_mode<synchronous>, transform_indices = @transform_13, window_bounds = array<i64: 2, 4>}, {pipeline_mode = #tpu.pipeline_mode<synchronous>, transform_indices = @transform_14, window_bounds = array<i64: 2, 1>}, {pipeline_mode = #tpu.pipeline_mode<synchronous>, transform_indices = @transform_15, window_bounds = array<i64: 256, 2>}, {transform_indices = @transform_16, window_bounds = array<i64: 1, 1, 4>}]} {
    %cst = arith.constant 0.000000e+00 : f32
    %0 = vector.broadcast %cst : f32 to vector<1x25x4xf32>
    %cst_0 = arith.constant 0.000000e+00 : f32
    %1 = vector.broadcast %cst_0 : f32 to vector<18x1x4xf32>
    %c0 = arith.constant 0 : index
    %c0_1 = arith.constant 0 : index
    %c0_2 = arith.constant 0 : index
    %2 = vector.load %arg18[%c0, %c0_1, %c0_2] : memref<18x25x4xf32, #tpu.memory_space<vmem>>, vector<1x25x4xf32>
    tpu.vector_store %arg18[%c0, %c0_1, %c0_2], %0 {strides = array<i32>} : memref<18x25x4xf32, #tpu.memory_space<vmem>>, vector<1x25x4xf32>,
    %c17 = arith.constant 17 : index
    %c0_3 = arith.constant 0 : index
    %c0_4 = arith.constant 0 : index
    %3 = vector.load %arg18[%c17, %c0_3, %c0_4] : memref<18x25x4xf32, #tpu.memory_space<vmem>>, vector<1x25x4xf32>
    tpu.vector_store %arg18[%c17, %c0_3, %c0_4], %0 {strides = array<i32>} : memref<18x25x4xf32, #tpu.memory_space<vmem>>, vector<1x25x4xf32>,
    %c0_5 = arith.constant 0 : index
    %c7 = arith.constant 7 : index
    %c0_6 = arith.constant 0 : index
    %4 = vector.load %arg18[%c0_5, %c7, %c0_6] : memref<18x25x4xf32, #tpu.memory_space<vmem>>, vector<18x1x4xf32>
    tpu.vector_store %arg18[%c0_5, %c7, %c0_6], %1 {strides = array<i32>} : memref<18x25x4xf32, #tpu.memory_space<vmem>>, vector<18x1x4xf32>,
    %c0_7 = arith.constant 0 : index
    %c24 = arith.constant 24 : index
    %c0_8 = arith.constant 0 : index
    %5 = vector.load %arg18[%c0_7, %c24, %c0_8] : memref<18x25x4xf32, #tpu.memory_space<vmem>>, vector<18x1x4xf32>
    tpu.vector_store %arg18[%c0_7, %c24, %c0_8], %1 {strides = array<i32>} : memref<18x25x4xf32, #tpu.memory_space<vmem>>, vector<18x1x4xf32>,
    %cst_9 = arith.constant 0.000000e+00 : f32
    %6 = vector.broadcast %cst_9 : f32 to vector<1x25x32xf32>
    %cst_10 = arith.constant 0.000000e+00 : f32
    %7 = vector.broadcast %cst_10 : f32 to vector<18x1x32xf32>
    %c0_11 = arith.constant 0 : index
    %c0_12 = arith.constant 0 : index
    %c0_13 = arith.constant 0 : index
    %8 = vector.load %arg19[%c0_11, %c0_12, %c0_13] : memref<18x25x32xf32, #tpu.memory_space<vmem>>, vector<1x25x32xf32>
    tpu.vector_store %arg19[%c0_11, %c0_12, %c0_13], %6 {strides = array<i32>} : memref<18x25x32xf32, #tpu.memory_space<vmem>>, vector<1x25x32xf32>,
    %c17_14 = arith.constant 17 : index
    %c0_15 = arith.constant 0 : index
    %c0_16 = arith.constant 0 : index
    %9 = vector.load %arg19[%c17_14, %c0_15, %c0_16] : memref<18x25x32xf32, #tpu.memory_space<vmem>>, vector<1x25x32xf32>
    tpu.vector_store %arg19[%c17_14, %c0_15, %c0_16], %6 {strides = array<i32>} : memref<18x25x32xf32, #tpu.memory_space<vmem>>, vector<1x25x32xf32>,
    %c0_17 = arith.constant 0 : index
    %c7_18 = arith.constant 7 : index
    %c0_19 = arith.constant 0 : index
    %10 = vector.load %arg19[%c0_17, %c7_18, %c0_19] : memref<18x25x32xf32, #tpu.memory_space<vmem>>, vector<18x1x32xf32>
    tpu.vector_store %arg19[%c0_17, %c7_18, %c0_19], %7 {strides = array<i32>} : memref<18x25x32xf32, #tpu.memory_space<vmem>>, vector<18x1x32xf32>,
    %c0_20 = arith.constant 0 : index
    %c24_21 = arith.constant 24 : index
    %c0_22 = arith.constant 0 : index
    %11 = vector.load %arg19[%c0_20, %c24_21, %c0_22] : memref<18x25x32xf32, #tpu.memory_space<vmem>>, vector<18x1x32xf32>
    tpu.vector_store %arg19[%c0_20, %c24_21, %c0_22], %7 {strides = array<i32>} : memref<18x25x32xf32, #tpu.memory_space<vmem>>, vector<18x1x32xf32>,
    %cst_23 = arith.constant 0.000000e+00 : f32
    %12 = vector.broadcast %cst_23 : f32 to vector<1x25x16xf32>
    %cst_24 = arith.constant 0.000000e+00 : f32
    %13 = vector.broadcast %cst_24 : f32 to vector<18x1x16xf32>
    %c0_25 = arith.constant 0 : index
    %c0_26 = arith.constant 0 : index
    %c0_27 = arith.constant 0 : index
    %14 = vector.load %arg20[%c0_25, %c0_26, %c0_27] : memref<18x25x16xf32, #tpu.memory_space<vmem>>, vector<1x25x16xf32>
    tpu.vector_store %arg20[%c0_25, %c0_26, %c0_27], %12 {strides = array<i32>} : memref<18x25x16xf32, #tpu.memory_space<vmem>>, vector<1x25x16xf32>,
    %c17_28 = arith.constant 17 : index
    %c0_29 = arith.constant 0 : index
    %c0_30 = arith.constant 0 : index
    %15 = vector.load %arg20[%c17_28, %c0_29, %c0_30] : memref<18x25x16xf32, #tpu.memory_space<vmem>>, vector<1x25x16xf32>
    tpu.vector_store %arg20[%c17_28, %c0_29, %c0_30], %12 {strides = array<i32>} : memref<18x25x16xf32, #tpu.memory_space<vmem>>, vector<1x25x16xf32>,
    %c0_31 = arith.constant 0 : index
    %c7_32 = arith.constant 7 : index
    %c0_33 = arith.constant 0 : index
    %16 = vector.load %arg20[%c0_31, %c7_32, %c0_33] : memref<18x25x16xf32, #tpu.memory_space<vmem>>, vector<18x1x16xf32>
    tpu.vector_store %arg20[%c0_31, %c7_32, %c0_33], %13 {strides = array<i32>} : memref<18x25x16xf32, #tpu.memory_space<vmem>>, vector<18x1x16xf32>,
    %c0_34 = arith.constant 0 : index
    %c24_35 = arith.constant 24 : index
    %c0_36 = arith.constant 0 : index
    %17 = vector.load %arg20[%c0_34, %c24_35, %c0_36] : memref<18x25x16xf32, #tpu.memory_space<vmem>>, vector<18x1x16xf32>
    tpu.vector_store %arg20[%c0_34, %c24_35, %c0_36], %13 {strides = array<i32>} : memref<18x25x16xf32, #tpu.memory_space<vmem>>, vector<18x1x16xf32>,
    %cst_37 = arith.constant 0.000000e+00 : f32
    %18 = vector.broadcast %cst_37 : f32 to vector<1x25x8xf32>
    %cst_38 = arith.constant 0.000000e+00 : f32
    %19 = vector.broadcast %cst_38 : f32 to vector<18x1x8xf32>
    %c0_39 = arith.constant 0 : index
    %c0_40 = arith.constant 0 : index
    %c0_41 = arith.constant 0 : index
    %20 = vector.load %arg21[%c0_39, %c0_40, %c0_41] : memref<18x25x8xf32, #tpu.memory_space<vmem>>, vector<1x25x8xf32>
    tpu.vector_store %arg21[%c0_39, %c0_40, %c0_41], %18 {strides = array<i32>} : memref<18x25x8xf32, #tpu.memory_space<vmem>>, vector<1x25x8xf32>,
    %c17_42 = arith.constant 17 : index
    %c0_43 = arith.constant 0 : index
    %c0_44 = arith.constant 0 : index
    %21 = vector.load %arg21[%c17_42, %c0_43, %c0_44] : memref<18x25x8xf32, #tpu.memory_space<vmem>>, vector<1x25x8xf32>
    tpu.vector_store %arg21[%c17_42, %c0_43, %c0_44], %18 {strides = array<i32>} : memref<18x25x8xf32, #tpu.memory_space<vmem>>, vector<1x25x8xf32>,
    %c0_45 = arith.constant 0 : index
    %c7_46 = arith.constant 7 : index
    %c0_47 = arith.constant 0 : index
    %22 = vector.load %arg21[%c0_45, %c7_46, %c0_47] : memref<18x25x8xf32, #tpu.memory_space<vmem>>, vector<18x1x8xf32>
    tpu.vector_store %arg21[%c0_45, %c7_46, %c0_47], %19 {strides = array<i32>} : memref<18x25x8xf32, #tpu.memory_space<vmem>>, vector<18x1x8xf32>,
    %c0_48 = arith.constant 0 : index
    %c24_49 = arith.constant 24 : index
    %c0_50 = arith.constant 0 : index
    %23 = vector.load %arg21[%c0_48, %c24_49, %c0_50] : memref<18x25x8xf32, #tpu.memory_space<vmem>>, vector<18x1x8xf32>
    tpu.vector_store %arg21[%c0_48, %c24_49, %c0_50], %19 {strides = array<i32>} : memref<18x25x8xf32, #tpu.memory_space<vmem>>, vector<18x1x8xf32>,
    %c0_51 = arith.constant 0 : index
    %c0_52 = arith.constant 0 : index
    %c0_53 = arith.constant 0 : index
    %c0_54 = arith.constant 0 : index
    %24 = vector.load %arg1[%c0_51, %c0_52, %c0_53, %c0_54] : memref<1x16x16x4xf32, #tpu.memory_space<vmem>>, vector<1x16x16x4xf32>
    %25 = vector.shape_cast %24 : vector<1x16x16x4xf32> to vector<16x16x4xf32>
    %c1 = arith.constant 1 : index
    %c8 = arith.constant 8 : index
    %c0_55 = arith.constant 0 : index
    %26 = vector.load %arg18[%c1, %c8, %c0_55] : memref<18x25x4xf32, #tpu.memory_space<vmem>>, vector<16x16x4xf32>
    tpu.vector_store %arg18[%c1, %c8, %c0_55], %25 {strides = array<i32>} : memref<18x25x4xf32, #tpu.memory_space<vmem>>, vector<16x16x4xf32>,
    %c0_56 = arith.constant 0 : index
    %c0_57 = arith.constant 0 : index
    %c0_58 = arith.constant 0 : index
    %27 = vector.load %arg18[%c0_56, %c0_57, %c0_58] : memref<18x25x4xf32, #tpu.memory_space<vmem>>, vector<18x25x4xf32>
    %28 = vector.extract_strided_slice %27 {offsets = [0, 7, 0], sizes = [16, 16, 4], strides = [1, 1, 1]} : vector<18x25x4xf32> to vector<16x16x4xf32>
    %29 = vector.shape_cast %28 : vector<16x16x4xf32> to vector<256x4xf32>
    %30 = vector.extract_strided_slice %27 {offsets = [0, 8, 0], sizes = [16, 16, 4], strides = [1, 1, 1]} : vector<18x25x4xf32> to vector<16x16x4xf32>
    %31 = vector.shape_cast %30 : vector<16x16x4xf32> to vector<256x4xf32>
    %32 = vector.extract_strided_slice %27 {offsets = [0, 9, 0], sizes = [16, 16, 4], strides = [1, 1, 1]} : vector<18x25x4xf32> to vector<16x16x4xf32>
    %33 = vector.shape_cast %32 : vector<16x16x4xf32> to vector<256x4xf32>
    %34 = vector.extract_strided_slice %27 {offsets = [1, 7, 0], sizes = [16, 16, 4], strides = [1, 1, 1]} : vector<18x25x4xf32> to vector<16x16x4xf32>
    %35 = vector.shape_cast %34 : vector<16x16x4xf32> to vector<256x4xf32>
    %36 = vector.extract_strided_slice %27 {offsets = [1, 8, 0], sizes = [16, 16, 4], strides = [1, 1, 1]} : vector<18x25x4xf32> to vector<16x16x4xf32>
    %37 = vector.shape_cast %36 : vector<16x16x4xf32> to vector<256x4xf32>
    %38 = vector.extract_strided_slice %27 {offsets = [1, 9, 0], sizes = [16, 16, 4], strides = [1, 1, 1]} : vector<18x25x4xf32> to vector<16x16x4xf32>
    %39 = vector.shape_cast %38 : vector<16x16x4xf32> to vector<256x4xf32>
    %40 = vector.extract_strided_slice %27 {offsets = [2, 7, 0], sizes = [16, 16, 4], strides = [1, 1, 1]} : vector<18x25x4xf32> to vector<16x16x4xf32>
    %41 = vector.shape_cast %40 : vector<16x16x4xf32> to vector<256x4xf32>
    %42 = vector.extract_strided_slice %27 {offsets = [2, 8, 0], sizes = [16, 16, 4], strides = [1, 1, 1]} : vector<18x25x4xf32> to vector<16x16x4xf32>
    %43 = vector.shape_cast %42 : vector<16x16x4xf32> to vector<256x4xf32>
    %44 = vector.extract_strided_slice %27 {offsets = [2, 9, 0], sizes = [16, 16, 4], strides = [1, 1, 1]} : vector<18x25x4xf32> to vector<16x16x4xf32>
    %45 = vector.shape_cast %44 : vector<16x16x4xf32> to vector<256x4xf32>
    %46 = tpu.concatenate %29, %31, %33, %35, %37, %39, %41, %43, %45 in 1 : vector<256x4xf32>, vector<256x4xf32>, vector<256x4xf32>, vector<256x4xf32>, vector<256x4xf32>, vector<256x4xf32>, vector<256x4xf32>, vector<256x4xf32>, vector<256x4xf32> -> vector<256x36xf32>
    %c0_59 = arith.constant 0 : index
    %c0_60 = arith.constant 0 : index
    %47 = vector.load %arg2[%c0_59, %c0_60] : memref<36x32xf32, #tpu.memory_space<vmem>>, vector<36x32xf32>
    %cst_61 = arith.constant dense<0.000000e+00> : vector<256x32xf32>
    %48 = tpu.matmul %46, %47, %cst_61 {dimension_numbers = #tpu.dot_dimension_numbers<[1], [0], [0], [1], [0, 0, 1, 1], [], []>} : vector<256x36xf32>, vector<36x32xf32>, vector<256x32xf32> -> vector<256x32xf32>
    %c0_62 = arith.constant 0 : index
    %c0_63 = arith.constant 0 : index
    %49 = vector.load %arg3[%c0_62, %c0_63] : memref<1x32xf32, #tpu.memory_space<vmem>>, vector<1x32xf32>
    %50 = vector.broadcast %49 : vector<1x32xf32> to vector<256x32xf32>
    %51 = arith.mulf %48, %50 : vector<256x32xf32>
    %c0_64 = arith.constant 0 : index
    %c0_65 = arith.constant 0 : index
    %52 = vector.load %arg4[%c0_64, %c0_65] : memref<1x32xf32, #tpu.memory_space<vmem>>, vector<1x32xf32>
    %53 = vector.broadcast %52 : vector<1x32xf32> to vector<256x32xf32>
    %54 = arith.addf %51, %53 : vector<256x32xf32>
    %cst_66 = arith.constant 0.000000e+00 : f32
    %55 = vector.broadcast %cst_66 : f32 to vector<256x32xf32>
    %56 = arith.maximumf %54, %55 : vector<256x32xf32>
    %57 = vector.shape_cast %56 : vector<256x32xf32> to vector<16x16x32xf32>
    %c1_67 = arith.constant 1 : index
    %c8_68 = arith.constant 8 : index
    %c0_69 = arith.constant 0 : index
    %58 = vector.load %arg19[%c1_67, %c8_68, %c0_69] : memref<18x25x32xf32, #tpu.memory_space<vmem>>, vector<16x16x32xf32>
    tpu.vector_store %arg19[%c1_67, %c8_68, %c0_69], %57 {strides = array<i32>} : memref<18x25x32xf32, #tpu.memory_space<vmem>>, vector<16x16x32xf32>,
    %c0_70 = arith.constant 0 : index
    %c0_71 = arith.constant 0 : index
    %c0_72 = arith.constant 0 : index
    %59 = vector.load %arg19[%c0_70, %c0_71, %c0_72] : memref<18x25x32xf32, #tpu.memory_space<vmem>>, vector<18x25x32xf32>
    %60 = vector.extract_strided_slice %59 {offsets = [0, 7, 0], sizes = [16, 16, 32], strides = [1, 1, 1]} : vector<18x25x32xf32> to vector<16x16x32xf32>
    %61 = vector.shape_cast %60 : vector<16x16x32xf32> to vector<256x32xf32>
    %62 = vector.extract_strided_slice %59 {offsets = [0, 8, 0], sizes = [16, 16, 32], strides = [1, 1, 1]} : vector<18x25x32xf32> to vector<16x16x32xf32>
    %63 = vector.shape_cast %62 : vector<16x16x32xf32> to vector<256x32xf32>
    %64 = vector.extract_strided_slice %59 {offsets = [0, 9, 0], sizes = [16, 16, 32], strides = [1, 1, 1]} : vector<18x25x32xf32> to vector<16x16x32xf32>
    %65 = vector.shape_cast %64 : vector<16x16x32xf32> to vector<256x32xf32>
    %66 = vector.extract_strided_slice %59 {offsets = [1, 7, 0], sizes = [16, 16, 32], strides = [1, 1, 1]} : vector<18x25x32xf32> to vector<16x16x32xf32>
    %67 = vector.shape_cast %66 : vector<16x16x32xf32> to vector<256x32xf32>
    %68 = vector.extract_strided_slice %59 {offsets = [1, 8, 0], sizes = [16, 16, 32], strides = [1, 1, 1]} : vector<18x25x32xf32> to vector<16x16x32xf32>
    %69 = vector.shape_cast %68 : vector<16x16x32xf32> to vector<256x32xf32>
    %70 = vector.extract_strided_slice %59 {offsets = [1, 9, 0], sizes = [16, 16, 32], strides = [1, 1, 1]} : vector<18x25x32xf32> to vector<16x16x32xf32>
    %71 = vector.shape_cast %70 : vector<16x16x32xf32> to vector<256x32xf32>
    %72 = vector.extract_strided_slice %59 {offsets = [2, 7, 0], sizes = [16, 16, 32], strides = [1, 1, 1]} : vector<18x25x32xf32> to vector<16x16x32xf32>
    %73 = vector.shape_cast %72 : vector<16x16x32xf32> to vector<256x32xf32>
    %74 = vector.extract_strided_slice %59 {offsets = [2, 8, 0], sizes = [16, 16, 32], strides = [1, 1, 1]} : vector<18x25x32xf32> to vector<16x16x32xf32>
    %75 = vector.shape_cast %74 : vector<16x16x32xf32> to vector<256x32xf32>
    %76 = vector.extract_strided_slice %59 {offsets = [2, 9, 0], sizes = [16, 16, 32], strides = [1, 1, 1]} : vector<18x25x32xf32> to vector<16x16x32xf32>
    %77 = vector.shape_cast %76 : vector<16x16x32xf32> to vector<256x32xf32>
    %78 = tpu.concatenate %61, %63, %65, %67, %69, %71, %73, %75, %77 in 1 : vector<256x32xf32>, vector<256x32xf32>, vector<256x32xf32>, vector<256x32xf32>, vector<256x32xf32>, vector<256x32xf32>, vector<256x32xf32>, vector<256x32xf32>, vector<256x32xf32> -> vector<256x288xf32>
    %c0_73 = arith.constant 0 : index
    %c0_74 = arith.constant 0 : index
    %79 = vector.load %arg5[%c0_73, %c0_74] : memref<288x16xf32, #tpu.memory_space<vmem>>, vector<288x16xf32>
    %cst_75 = arith.constant dense<0.000000e+00> : vector<256x16xf32>
    %80 = tpu.matmul %78, %79, %cst_75 {dimension_numbers = #tpu.dot_dimension_numbers<[1], [0], [0], [1], [0, 0, 1, 1], [], []>} : vector<256x288xf32>, vector<288x16xf32>, vector<256x16xf32> -> vector<256x16xf32>
    %c0_76 = arith.constant 0 : index
    %c0_77 = arith.constant 0 : index
    %81 = vector.load %arg6[%c0_76, %c0_77] : memref<1x16xf32, #tpu.memory_space<vmem>>, vector<1x16xf32>
    %82 = vector.broadcast %81 : vector<1x16xf32> to vector<256x16xf32>
    %83 = arith.mulf %80, %82 : vector<256x16xf32>
    %c0_78 = arith.constant 0 : index
    %c0_79 = arith.constant 0 : index
    %84 = vector.load %arg7[%c0_78, %c0_79] : memref<1x16xf32, #tpu.memory_space<vmem>>, vector<1x16xf32>
    %85 = vector.broadcast %84 : vector<1x16xf32> to vector<256x16xf32>
    %86 = arith.addf %83, %85 : vector<256x16xf32>
    %cst_80 = arith.constant 0.000000e+00 : f32
    %87 = vector.broadcast %cst_80 : f32 to vector<256x16xf32>
    %88 = arith.maximumf %86, %87 : vector<256x16xf32>
    %89 = vector.shape_cast %88 : vector<256x16xf32> to vector<16x16x16xf32>
    %c1_81 = arith.constant 1 : index
    %c8_82 = arith.constant 8 : index
    %c0_83 = arith.constant 0 : index
    %90 = vector.load %arg20[%c1_81, %c8_82, %c0_83] : memref<18x25x16xf32, #tpu.memory_space<vmem>>, vector<16x16x16xf32>
    tpu.vector_store %arg20[%c1_81, %c8_82, %c0_83], %89 {strides = array<i32>} : memref<18x25x16xf32, #tpu.memory_space<vmem>>, vector<16x16x16xf32>,
    %c0_84 = arith.constant 0 : index
    %c0_85 = arith.constant 0 : index
    %c0_86 = arith.constant 0 : index
    %91 = vector.load %arg20[%c0_84, %c0_85, %c0_86] : memref<18x25x16xf32, #tpu.memory_space<vmem>>, vector<18x25x16xf32>
    %92 = vector.extract_strided_slice %91 {offsets = [0, 7, 0], sizes = [16, 16, 16], strides = [1, 1, 1]} : vector<18x25x16xf32> to vector<16x16x16xf32>
    %93 = vector.shape_cast %92 : vector<16x16x16xf32> to vector<256x16xf32>
    %94 = vector.extract_strided_slice %91 {offsets = [0, 8, 0], sizes = [16, 16, 16], strides = [1, 1, 1]} : vector<18x25x16xf32> to vector<16x16x16xf32>
    %95 = vector.shape_cast %94 : vector<16x16x16xf32> to vector<256x16xf32>
    %96 = vector.extract_strided_slice %91 {offsets = [0, 9, 0], sizes = [16, 16, 16], strides = [1, 1, 1]} : vector<18x25x16xf32> to vector<16x16x16xf32>
    %97 = vector.shape_cast %96 : vector<16x16x16xf32> to vector<256x16xf32>
    %98 = vector.extract_strided_slice %91 {offsets = [1, 7, 0], sizes = [16, 16, 16], strides = [1, 1, 1]} : vector<18x25x16xf32> to vector<16x16x16xf32>
    %99 = vector.shape_cast %98 : vector<16x16x16xf32> to vector<256x16xf32>
    %100 = vector.extract_strided_slice %91 {offsets = [1, 8, 0], sizes = [16, 16, 16], strides = [1, 1, 1]} : vector<18x25x16xf32> to vector<16x16x16xf32>
    %101 = vector.shape_cast %100 : vector<16x16x16xf32> to vector<256x16xf32>
    %102 = vector.extract_strided_slice %91 {offsets = [1, 9, 0], sizes = [16, 16, 16], strides = [1, 1, 1]} : vector<18x25x16xf32> to vector<16x16x16xf32>
    %103 = vector.shape_cast %102 : vector<16x16x16xf32> to vector<256x16xf32>
    %104 = vector.extract_strided_slice %91 {offsets = [2, 7, 0], sizes = [16, 16, 16], strides = [1, 1, 1]} : vector<18x25x16xf32> to vector<16x16x16xf32>
    %105 = vector.shape_cast %104 : vector<16x16x16xf32> to vector<256x16xf32>
    %106 = vector.extract_strided_slice %91 {offsets = [2, 8, 0], sizes = [16, 16, 16], strides = [1, 1, 1]} : vector<18x25x16xf32> to vector<16x16x16xf32>
    %107 = vector.shape_cast %106 : vector<16x16x16xf32> to vector<256x16xf32>
    %108 = vector.extract_strided_slice %91 {offsets = [2, 9, 0], sizes = [16, 16, 16], strides = [1, 1, 1]} : vector<18x25x16xf32> to vector<16x16x16xf32>
    %109 = vector.shape_cast %108 : vector<16x16x16xf32> to vector<256x16xf32>
    %110 = tpu.concatenate %93, %95, %97, %99, %101, %103, %105, %107, %109 in 1 : vector<256x16xf32>, vector<256x16xf32>, vector<256x16xf32>, vector<256x16xf32>, vector<256x16xf32>, vector<256x16xf32>, vector<256x16xf32>, vector<256x16xf32>, vector<256x16xf32> -> vector<256x144xf32>
    %c0_87 = arith.constant 0 : index
    %c0_88 = arith.constant 0 : index
    %111 = vector.load %arg8[%c0_87, %c0_88] : memref<144x8xf32, #tpu.memory_space<vmem>>, vector<144x8xf32>
    %cst_89 = arith.constant dense<0.000000e+00> : vector<256x8xf32>
    %112 = tpu.matmul %110, %111, %cst_89 {dimension_numbers = #tpu.dot_dimension_numbers<[1], [0], [0], [1], [0, 0, 1, 1], [], []>} : vector<256x144xf32>, vector<144x8xf32>, vector<256x8xf32> -> vector<256x8xf32>
    %c0_90 = arith.constant 0 : index
    %c0_91 = arith.constant 0 : index
    %113 = vector.load %arg9[%c0_90, %c0_91] : memref<1x8xf32, #tpu.memory_space<vmem>>, vector<1x8xf32>
    %114 = vector.broadcast %113 : vector<1x8xf32> to vector<256x8xf32>
    %115 = arith.mulf %112, %114 : vector<256x8xf32>
    %c0_92 = arith.constant 0 : index
    %c0_93 = arith.constant 0 : index
    %116 = vector.load %arg10[%c0_92, %c0_93] : memref<1x8xf32, #tpu.memory_space<vmem>>, vector<1x8xf32>
    %117 = vector.broadcast %116 : vector<1x8xf32> to vector<256x8xf32>
    %118 = arith.addf %115, %117 : vector<256x8xf32>
    %cst_94 = arith.constant 0.000000e+00 : f32
    %119 = vector.broadcast %cst_94 : f32 to vector<256x8xf32>
    %120 = arith.maximumf %118, %119 : vector<256x8xf32>
    %121 = vector.shape_cast %120 : vector<256x8xf32> to vector<16x16x8xf32>
    %c1_95 = arith.constant 1 : index
    %c8_96 = arith.constant 8 : index
    %c0_97 = arith.constant 0 : index
    %122 = vector.load %arg21[%c1_95, %c8_96, %c0_97] : memref<18x25x8xf32, #tpu.memory_space<vmem>>, vector<16x16x8xf32>
    tpu.vector_store %arg21[%c1_95, %c8_96, %c0_97], %121 {strides = array<i32>} : memref<18x25x8xf32, #tpu.memory_space<vmem>>, vector<16x16x8xf32>,
    %c0_98 = arith.constant 0 : index
    %c0_99 = arith.constant 0 : index
    %c0_100 = arith.constant 0 : index
    %123 = vector.load %arg21[%c0_98, %c0_99, %c0_100] : memref<18x25x8xf32, #tpu.memory_space<vmem>>, vector<18x25x8xf32>
    %124 = vector.extract_strided_slice %123 {offsets = [0, 7, 0], sizes = [16, 16, 8], strides = [1, 1, 1]} : vector<18x25x8xf32> to vector<16x16x8xf32>
    %125 = vector.shape_cast %124 : vector<16x16x8xf32> to vector<256x8xf32>
    %126 = vector.extract_strided_slice %123 {offsets = [0, 8, 0], sizes = [16, 16, 8], strides = [1, 1, 1]} : vector<18x25x8xf32> to vector<16x16x8xf32>
    %127 = vector.shape_cast %126 : vector<16x16x8xf32> to vector<256x8xf32>
    %128 = vector.extract_strided_slice %123 {offsets = [0, 9, 0], sizes = [16, 16, 8], strides = [1, 1, 1]} : vector<18x25x8xf32> to vector<16x16x8xf32>
    %129 = vector.shape_cast %128 : vector<16x16x8xf32> to vector<256x8xf32>
    %130 = vector.extract_strided_slice %123 {offsets = [1, 7, 0], sizes = [16, 16, 8], strides = [1, 1, 1]} : vector<18x25x8xf32> to vector<16x16x8xf32>
    %131 = vector.shape_cast %130 : vector<16x16x8xf32> to vector<256x8xf32>
    %132 = vector.extract_strided_slice %123 {offsets = [1, 8, 0], sizes = [16, 16, 8], strides = [1, 1, 1]} : vector<18x25x8xf32> to vector<16x16x8xf32>
    %133 = vector.shape_cast %132 : vector<16x16x8xf32> to vector<256x8xf32>
    %134 = vector.extract_strided_slice %123 {offsets = [1, 9, 0], sizes = [16, 16, 8], strides = [1, 1, 1]} : vector<18x25x8xf32> to vector<16x16x8xf32>
    %135 = vector.shape_cast %134 : vector<16x16x8xf32> to vector<256x8xf32>
    %136 = vector.extract_strided_slice %123 {offsets = [2, 7, 0], sizes = [16, 16, 8], strides = [1, 1, 1]} : vector<18x25x8xf32> to vector<16x16x8xf32>
    %137 = vector.shape_cast %136 : vector<16x16x8xf32> to vector<256x8xf32>
    %138 = vector.extract_strided_slice %123 {offsets = [2, 8, 0], sizes = [16, 16, 8], strides = [1, 1, 1]} : vector<18x25x8xf32> to vector<16x16x8xf32>
    %139 = vector.shape_cast %138 : vector<16x16x8xf32> to vector<256x8xf32>
    %140 = vector.extract_strided_slice %123 {offsets = [2, 9, 0], sizes = [16, 16, 8], strides = [1, 1, 1]} : vector<18x25x8xf32> to vector<16x16x8xf32>
    %141 = vector.shape_cast %140 : vector<16x16x8xf32> to vector<256x8xf32>
    %142 = tpu.concatenate %125, %127, %129, %131, %133, %135, %137, %139, %141 in 1 : vector<256x8xf32>, vector<256x8xf32>, vector<256x8xf32>, vector<256x8xf32>, vector<256x8xf32>, vector<256x8xf32>, vector<256x8xf32>, vector<256x8xf32>, vector<256x8xf32> -> vector<256x72xf32>
    %c0_101 = arith.constant 0 : index
    %c0_102 = arith.constant 0 : index
    %143 = vector.load %arg11[%c0_101, %c0_102] : memref<72x4xf32, #tpu.memory_space<vmem>>, vector<72x4xf32>
    %cst_103 = arith.constant dense<0.000000e+00> : vector<256x4xf32>
    %144 = tpu.matmul %142, %143, %cst_103 {dimension_numbers = #tpu.dot_dimension_numbers<[1], [0], [0], [1], [0, 0, 1, 1], [], []>} : vector<256x72xf32>, vector<72x4xf32>, vector<256x4xf32> -> vector<256x4xf32>
    %c0_104 = arith.constant 0 : index
    %c0_105 = arith.constant 0 : index
    %145 = vector.load %arg12[%c0_104, %c0_105] : memref<1x4xf32, #tpu.memory_space<vmem>>, vector<1x4xf32>
    %146 = vector.broadcast %145 : vector<1x4xf32> to vector<256x4xf32>
    %147 = arith.mulf %144, %146 : vector<256x4xf32>
    %c0_106 = arith.constant 0 : index
    %c0_107 = arith.constant 0 : index
    %148 = vector.load %arg13[%c0_106, %c0_107] : memref<1x4xf32, #tpu.memory_space<vmem>>, vector<1x4xf32>
    %149 = vector.broadcast %148 : vector<1x4xf32> to vector<256x4xf32>
    %150 = arith.addf %147, %149 : vector<256x4xf32>
    %cst_108 = arith.constant 0.000000e+00 : f32
    %151 = vector.broadcast %cst_108 : f32 to vector<256x4xf32>
    %152 = arith.maximumf %150, %151 : vector<256x4xf32>
    %c0_109 = arith.constant 0 : index
    %c0_110 = arith.constant 0 : index
    %153 = vector.load %arg14[%c0_109, %c0_110] : memref<2x4xf32, #tpu.memory_space<vmem>>, vector<2x4xf32>
    %cst_111 = arith.constant dense<0.000000e+00> : vector<2x256xf32>
    %154 = tpu.matmul %153, %152, %cst_111 {dimension_numbers = #tpu.dot_dimension_numbers<[1], [1], [0], [0], [0, 0, 1, 0], [], []>} : vector<2x4xf32>, vector<256x4xf32>, vector<2x256xf32> -> vector<2x256xf32>
    %c0_112 = arith.constant 0 : index
    %c0_113 = arith.constant 0 : index
    %155 = vector.load %arg15[%c0_112, %c0_113] : memref<2x1xf32, #tpu.memory_space<vmem>>, vector<2x1xf32>
    %156 = vector.broadcast %155 : vector<2x1xf32> to vector<2x256xf32>
    %157 = arith.addf %154, %156 : vector<2x256xf32>
    %cst_114 = arith.constant dense<0xFF800000> : vector<2xf32>
    %158 = vector.multi_reduction <maximumf>, %157, %cst_114 [1] : vector<2x256xf32> to vector<2xf32>
    %159 = vector.shape_cast %158 : vector<2xf32> to vector<2x1xf32>
    %160 = vector.broadcast %159 : vector<2x1xf32> to vector<2x256xf32>
    %161 = arith.subf %157, %160 : vector<2x256xf32>
    %162 = math.exp %161 : vector<2x256xf32>
    %cst_115 = arith.constant dense<0.000000e+00> : vector<2xf32>
    %163 = vector.multi_reduction <add>, %162, %cst_115 [1] : vector<2x256xf32> to vector<2xf32>
    %164 = vector.shape_cast %163 : vector<2xf32> to vector<2x1xf32>
    %165 = vector.broadcast %164 : vector<2x1xf32> to vector<2x256xf32>
    %166 = arith.divf %162, %165 : vector<2x256xf32>
    %c0_116 = arith.constant 0 : index
    %c0_117 = arith.constant 0 : index
    %167 = vector.load %arg16[%c0_116, %c0_117] : memref<256x2xf32, #tpu.memory_space<vmem>>, vector<256x2xf32>
    %cst_118 = arith.constant dense<0.000000e+00> : vector<2x2xf32>
    %168 = tpu.matmul %166, %167, %cst_118 {dimension_numbers = #tpu.dot_dimension_numbers<[1], [0], [0], [1], [0, 0, 1, 1], [], []>} : vector<2x256xf32>, vector<256x2xf32>, vector<2x2xf32> -> vector<2x2xf32>
    %169 = vector.extract_strided_slice %168 {offsets = [0, 0], sizes = [1, 2], strides = [1, 1]} : vector<2x2xf32> to vector<1x2xf32>
    %170 = vector.extract_strided_slice %168 {offsets = [1, 0], sizes = [1, 2], strides = [1, 1]} : vector<2x2xf32> to vector<1x2xf32>
    %171 = tpu.concatenate %169, %170 in 1 : vector<1x2xf32>, vector<1x2xf32> -> vector<1x4xf32>
    %cst_119 = arith.constant 3.906250e-03 : f32
    %172 = vector.broadcast %cst_119 : f32 to vector<1x4xf32>
    %173 = arith.mulf %171, %172 : vector<1x4xf32>
    %174 = vector.shape_cast %173 : vector<1x4xf32> to vector<1x1x4xf32>
    %c0_120 = arith.constant 0 : index
    %c0_121 = arith.constant 0 : index
    %c0_122 = arith.constant 0 : index
    %175 = vector.load %arg17[%c0_120, %c0_121, %c0_122] : memref<1x1x4xf32, #tpu.memory_space<vmem>>, vector<1x1x4xf32>
    tpu.vector_store %arg17[%c0_120, %c0_121, %c0_122], %174 {strides = array<i32>} : memref<1x1x4xf32, #tpu.memory_space<vmem>>, vector<1x1x4xf32>,
    return
  }
  func.func @transform_0(%arg0: i32) -> (i32, i32, i32, i32) {
    %c0_i32 = arith.constant 0 : i32
    %c0_i32_0 = arith.constant 0 : i32
    %c0_i32_1 = arith.constant 0 : i32
    %c0_i32_2 = arith.constant 0 : i32
    return %arg0, %c0_i32, %c0_i32_0, %c0_i32_1 : i32, i32, i32, i32
  }
  func.func @transform_1(%arg0: i32) -> (i32, i32) {
    %c0_i32 = arith.constant 0 : i32
    %c0_i32_0 = arith.constant 0 : i32
    %c0_i32_1 = arith.constant 0 : i32
    return %c0_i32, %c0_i32_0 : i32, i32
  }
  func.func @transform_2(%arg0: i32) -> (i32, i32) {
    %c0_i32 = arith.constant 0 : i32
    %c0_i32_0 = arith.constant 0 : i32
    %c0_i32_1 = arith.constant 0 : i32
    return %c0_i32, %c0_i32_0 : i32, i32
  }
  func.func @transform_3(%arg0: i32) -> (i32, i32) {
    %c0_i32 = arith.constant 0 : i32
    %c0_i32_0 = arith.constant 0 : i32
    %c0_i32_1 = arith.constant 0 : i32
    return %c0_i32, %c0_i32_0 : i32, i32
  }
  func.func @transform_4(%arg0: i32) -> (i32, i32) {
    %c0_i32 = arith.constant 0 : i32
    %c0_i32_0 = arith.constant 0 : i32
    %c0_i32_1 = arith.constant 0 : i32
    return %c0_i32, %c0_i32_0 : i32, i32
  }
  func.func @transform_5(%arg0: i32) -> (i32, i32) {
    %c0_i32 = arith.constant 0 : i32
    %c0_i32_0 = arith.constant 0 : i32
    %c0_i32_1 = arith.constant 0 : i32
    return %c0_i32, %c0_i32_0 : i32, i32
  }
  func.func @transform_6(%arg0: i32) -> (i32, i32) {
    %c0_i32 = arith.constant 0 : i32
    %c0_i32_0 = arith.constant 0 : i32
    %c0_i32_1 = arith.constant 0 : i32
    return %c0_i32, %c0_i32_0 : i32, i32
  }
  func.func @transform_7(%arg0: i32) -> (i32, i32) {
    %c0_i32 = arith.constant 0 : i32
    %c0_i32_0 = arith.constant 0 : i32
    %c0_i32_1 = arith.constant 0 : i32
    return %c0_i32, %c0_i32_0 : i32, i32
  }
  func.func @transform_8(%arg0: i32) -> (i32, i32) {
    %c0_i32 = arith.constant 0 : i32
    %c0_i32_0 = arith.constant 0 : i32
    %c0_i32_1 = arith.constant 0 : i32
    return %c0_i32, %c0_i32_0 : i32, i32
  }
  func.func @transform_9(%arg0: i32) -> (i32, i32) {
    %c0_i32 = arith.constant 0 : i32
    %c0_i32_0 = arith.constant 0 : i32
    %c0_i32_1 = arith.constant 0 : i32
    return %c0_i32, %c0_i32_0 : i32, i32
  }
  func.func @transform_10(%arg0: i32) -> (i32, i32) {
    %c0_i32 = arith.constant 0 : i32
    %c0_i32_0 = arith.constant 0 : i32
    %c0_i32_1 = arith.constant 0 : i32
    return %c0_i32, %c0_i32_0 : i32, i32
  }
  func.func @transform_11(%arg0: i32) -> (i32, i32) {
    %c0_i32 = arith.constant 0 : i32
    %c0_i32_0 = arith.constant 0 : i32
    %c0_i32_1 = arith.constant 0 : i32
    return %c0_i32, %c0_i32_0 : i32, i32
  }
  func.func @transform_12(%arg0: i32) -> (i32, i32) {
    %c0_i32 = arith.constant 0 : i32
    %c0_i32_0 = arith.constant 0 : i32
    %c0_i32_1 = arith.constant 0 : i32
    return %c0_i32, %c0_i32_0 : i32, i32
  }
  func.func @transform_13(%arg0: i32) -> (i32, i32) {
    %c0_i32 = arith.constant 0 : i32
    %c0_i32_0 = arith.constant 0 : i32
    %c0_i32_1 = arith.constant 0 : i32
    return %c0_i32, %c0_i32_0 : i32, i32
  }
  func.func @transform_14(%arg0: i32) -> (i32, i32) {
    %c0_i32 = arith.constant 0 : i32
    %c0_i32_0 = arith.constant 0 : i32
    %c0_i32_1 = arith.constant 0 : i32
    return %c0_i32, %c0_i32_0 : i32, i32
  }
  func.func @transform_15(%arg0: i32) -> (i32, i32) {
    %c0_i32 = arith.constant 0 : i32
    %c0_i32_0 = arith.constant 0 : i32
    %c0_i32_1 = arith.constant 0 : i32
    return %c0_i32, %c0_i32_0 : i32, i32
  }
  func.func @transform_16(%arg0: i32) -> (i32, i32, i32) {
    %c0_i32 = arith.constant 0 : i32
    %c0_i32_0 = arith.constant 0 : i32
    %c0_i32_1 = arith.constant 0 : i32
    return %arg0, %c0_i32, %c0_i32_0 : i32, i32, i32
  }
}

</mosaic_0001>

<llo_original>
// kernel: corner_predictor_forward.1
$region0: #{corner_predictor_forward.1}
  #allocation0 [shape = 'u32[]', space=smem, size = 0x4, offset = 0x4, fixed_abs, tag = 'smem constant byte address 0x4 - core index']
  #allocation1 [shape = 'u32[144,128]{1,0:T(1,128)}', space=vmem, size = 0x12000, scoped, tag = 'internal scratch']
  #allocation2 [shape = 'f32[18,25,4]{2,1,0:T(8,128)}', space=vmem, size = 0x48000, scoped, tag = 'scratch operand']
  #allocation3 [shape = 'f32[18,25,32]{2,1,0:T(8,128)}', space=vmem, size = 0x48000, scoped, tag = 'scratch operand']
  #allocation4 [shape = 'f32[18,25,16]{2,1,0:T(8,128)}', space=vmem, size = 0x48000, scoped, tag = 'scratch operand']
  #allocation5 [shape = 'f32[18,25,8]{2,1,0:T(8,128)}', space=vmem, size = 0x48000, scoped, tag = 'scratch operand']
  %s0 = inlined_call_operand.vmem [shape: f32[2,16,16,4], index: 0, kind: input, shape index: {}]
  %s1 = inlined_call_operand.vmem [shape: f32[36,32], index: 1, kind: input, shape index: {}]
  %s2 = inlined_call_operand.vmem [shape: f32[1,32], index: 2, kind: input, shape index: {}]
  %s3 = inlined_call_operand.vmem [shape: f32[1,32], index: 3, kind: input, shape index: {}]
  %s4 = inlined_call_operand.vmem [shape: f32[288,16], index: 4, kind: input, shape index: {}]
  %s5 = inlined_call_operand.vmem [shape: f32[1,16], index: 5, kind: input, shape index: {}]
  %s6 = inlined_call_operand.vmem [shape: f32[1,16], index: 6, kind: input, shape index: {}]
  %s7 = inlined_call_operand.vmem [shape: f32[144,8], index: 7, kind: input, shape index: {}]
  %s8 = inlined_call_operand.vmem [shape: f32[1,8], index: 8, kind: input, shape index: {}]
  %s9 = inlined_call_operand.vmem [shape: f32[1,8], index: 9, kind: input, shape index: {}]
  %s10 = inlined_call_operand.vmem [shape: f32[72,4], index: 10, kind: input, shape index: {}]
  %s11 = inlined_call_operand.vmem [shape: f32[1,4], index: 11, kind: input, shape index: {}]
  %s12 = inlined_call_operand.vmem [shape: f32[1,4], index: 12, kind: input, shape index: {}]
  %s13 = inlined_call_operand.vmem [shape: f32[2,4], index: 13, kind: input, shape index: {}]
  %s14 = inlined_call_operand.vmem [shape: f32[2,1], index: 14, kind: input, shape index: {}]
  %s15 = inlined_call_operand.vmem [shape: f32[256,2], index: 15, kind: input, shape index: {}]
  %s16 = inlined_call_operand.hbm [shape: f32[2,1,4], index: 16, kind: output, shape index: {}]
  %s17 = sld [smem:[#allocation0]]
  $region97: #{corner_predictor_forward.1} parent=0
    _
  %s19 = ssub.s32 1, %s17
  %s20 = scalar_select 0, %s19, %s17
  $region1: #{corner_predictor_forward.1} parent=0
    #allocation6 [shape = 'u8[1024]{0}', space=vmem, size = 0x400, scoped, tag = 'output window, operand 0']
    #allocation7 [shape = 's32[2]{0}', space=sflag, size = 0x8, scoped, tag = 'scoped memory for corner_predictor_forward.1']
    %21 = vsyncpa [#allocation7], 0
    %s22 = scalar_lea.sflag [#allocation7], 1
    %23 = vsyncpa %s22, 0
    loop: start=0, step=1, limit=4
    $region2: #{corner_predictor_forward.1} parent=1 // loop_pre_header
      _
    $region3: #{corner_predictor_forward.1} parent=1 // loop_header
      %s25 = sphi 0, %s29
      %p26 = scmp.ge.s32.totalorder %s25, 4
      %s35 = sphi 0, %s37
      %s38 = sphi 0, %s35
      %s39 = sphi 0, %s38
      %s55 = sphi 0, %s39
      %s59 = sphi 0, %s59
      %s61 = sphi 0, %s59
      %s62 = sphi 0, %s61
      %s76 = sphi 0, %s62
      %s80 = sphi 0, %s80
      %s82 = sphi 0, %s80
      %s83 = sphi 0, %s82
      %s97 = sphi 0, %s83
      %s101 = sphi 0, %s101
      %s103 = sphi 0, %s101
      %s104 = sphi 0, %s103
      %s118 = sphi 0, %s104
      %s122 = sphi 0, %s122
      %s124 = sphi 0, %s122
      %s125 = sphi 0, %s124
      %s139 = sphi 0, %s125
      %s143 = sphi 0, %s143
      %s145 = sphi 0, %s143
      %s146 = sphi 0, %s145
      %s160 = sphi 0, %s146
      %s164 = sphi 0, %s164
      %s166 = sphi 0, %s164
      %s167 = sphi 0, %s166
      %s181 = sphi 0, %s167
      %s185 = sphi 0, %s185
      %s187 = sphi 0, %s185
      %s188 = sphi 0, %s187
      %s202 = sphi 0, %s188
      %s206 = sphi 0, %s206
      %s208 = sphi 0, %s206
      %s209 = sphi 0, %s208
      %s223 = sphi 0, %s209
      %s227 = sphi 0, %s227
      %s229 = sphi 0, %s227
      %s230 = sphi 0, %s229
      %s244 = sphi 0, %s230
      %s248 = sphi 0, %s248
      %s250 = sphi 0, %s248
      %s251 = sphi 0, %s250
      %s265 = sphi 0, %s251
      %s269 = sphi 0, %s269
      %s271 = sphi 0, %s269
      %s272 = sphi 0, %s271
      %s286 = sphi 0, %s272
      %s290 = sphi 0, %s290
      %s292 = sphi 0, %s290
      %s293 = sphi 0, %s292
      %s307 = sphi 0, %s293
      %s311 = sphi 0, %s311
      %s313 = sphi 0, %s311
      %s314 = sphi 0, %s313
      %s328 = sphi 0, %s314
      %s332 = sphi 0, %s332
      %s334 = sphi 0, %s332
      %s335 = sphi 0, %s334
      %s349 = sphi 0, %s335
      %s353 = sphi 0, %s353
      %s355 = sphi 0, %s353
      %s356 = sphi 0, %s355
      %s370 = sphi 0, %s356
      %s376 = sphi 0, %s378
      %s379 = sphi 0, %s376
      %s380 = sphi 0, %s379
      %s396 = sphi 0, %s380
    $region4: #{corner_predictor_forward.1} parent=1 // loop_header_branch
      %28 = sbr.rel (%p26) target = $region8
    $region5: #{corner_predictor_forward.1} parent=1 // loop_body
      %s30 = ssub.s32 %s25, 1
      %s31 = ssub.s32 %s25, 2
      %s32 = sadd.s32 %s25, 1
      %s33 = ssub.s32 %s25, %s32
      %p34 = scmp.eq.s32.totalorder %s33, 0
      %s36 = sadd.s32 %s35, 1
      %s37 = scalar_select %p34, %s35, %s36
      %p40 = pneg %p34
      %p41 = scmp.eq.s32.totalorder %s25, 1
      %p42 = por %p40, %p41
      %p43 = scmp.ne.s32.totalorder %s35, %s38
      %p44 = scmp.eq.s32.totalorder %s25, 0
      %p45 = por %p43, %p44
      %p46 = scmp.ne.s32.totalorder %s35, %s38
      %p47 = scmp.eq.s32.totalorder %s30, 1
      %p48 = por %p46, %p47
      %p49 = scmp.ne.s32.totalorder %s38, %s39
      %p50 = scmp.eq.s32.totalorder %s30, 0
      %p51 = por %p49, %p50
      %p52 = scmp.ne.s32.totalorder %s38, %s39
      %p53 = scmp.eq.s32.totalorder %s31, 1
      %p54 = por %p52, %p53
      %p56 = scmp.ne.s32.totalorder %s39, %s55
      %p57 = scmp.eq.s32.totalorder %s31, 0
      %p58 = por %p56, %p57
      %s60 = sadd.s32 %s59, 1
      %p63 = scmp.eq.s32.totalorder %s25, 1
      %p64 = scmp.ne.s32.totalorder %s59, %s61
      %p65 = scmp.eq.s32.totalorder %s25, 0
      %p66 = por %p64, %p65
      %p67 = scmp.ne.s32.totalorder %s59, %s61
      %p68 = scmp.eq.s32.totalorder %s30, 1
      %p69 = por %p67, %p68
      %p70 = scmp.ne.s32.totalorder %s61, %s62
      %p71 = scmp.eq.s32.totalorder %s30, 0
      %p72 = por %p70, %p71
      %p73 = scmp.ne.s32.totalorder %s61, %s62
      %p74 = scmp.eq.s32.totalorder %s31, 1
      %p75 = por %p73, %p74
      %p77 = scmp.ne.s32.totalorder %s62, %s76
      %p78 = scmp.eq.s32.totalorder %s31, 0
      %p79 = por %p77, %p78
      %s81 = sadd.s32 %s80, 1
      %p84 = scmp.eq.s32.totalorder %s25, 1
      %p85 = scmp.ne.s32.totalorder %s80, %s82
      %p86 = scmp.eq.s32.totalorder %s25, 0
      %p87 = por %p85, %p86
      %p88 = scmp.ne.s32.totalorder %s80, %s82
      %p89 = scmp.eq.s32.totalorder %s30, 1
      %p90 = por %p88, %p89
      %p91 = scmp.ne.s32.totalorder %s82, %s83
      %p92 = scmp.eq.s32.totalorder %s30, 0
      %p93 = por %p91, %p92
      %p94 = scmp.ne.s32.totalorder %s82, %s83
      %p95 = scmp.eq.s32.totalorder %s31, 1
      %p96 = por %p94, %p95
      %p98 = scmp.ne.s32.totalorder %s83, %s97
      %p99 = scmp.eq.s32.totalorder %s31, 0
      %p100 = por %p98, %p99
      %s102 = sadd.s32 %s101, 1
      %p105 = scmp.eq.s32.totalorder %s25, 1
      %p106 = scmp.ne.s32.totalorder %s101, %s103
      %p107 = scmp.eq.s32.totalorder %s25, 0
      %p108 = por %p106, %p107
      %p109 = scmp.ne.s32.totalorder %s101, %s103
      %p110 = scmp.eq.s32.totalorder %s30, 1
      %p111 = por %p109, %p110
      %p112 = scmp.ne.s32.totalorder %s103, %s104
      %p113 = scmp.eq.s32.totalorder %s30, 0
      %p114 = por %p112, %p113
      %p115 = scmp.ne.s32.totalorder %s103, %s104
      %p116 = scmp.eq.s32.totalorder %s31, 1
      %p117 = por %p115, %p116
      %p119 = scmp.ne.s32.totalorder %s104, %s118
      %p120 = scmp.eq.s32.totalorder %s31, 0
      %p121 = por %p119, %p120
      %s123 = sadd.s32 %s122, 1
      %p126 = scmp.eq.s32.totalorder %s25, 1
      %p127 = scmp.ne.s32.totalorder %s122, %s124
      %p128 = scmp.eq.s32.totalorder %s25, 0
      %p129 = por %p127, %p128
      %p130 = scmp.ne.s32.totalorder %s122, %s124
      %p131 = scmp.eq.s32.totalorder %s30, 1
      %p132 = por %p130, %p131
      %p133 = scmp.ne.s32.totalorder %s124, %s125
      %p134 = scmp.eq.s32.totalorder %s30, 0
      %p135 = por %p133, %p134
      %p136 = scmp.ne.s32.totalorder %s124, %s125
      %p137 = scmp.eq.s32.totalorder %s31, 1
      %p138 = por %p136, %p137
      %p140 = scmp.ne.s32.totalorder %s125, %s139
      %p141 = scmp.eq.s32.totalorder %s31, 0
      %p142 = por %p140, %p141
      %s144 = sadd.s32 %s143, 1
      %p147 = scmp.eq.s32.totalorder %s25, 1
      %p148 = scmp.ne.s32.totalorder %s143, %s145
      %p149 = scmp.eq.s32.totalorder %s25, 0
      %p150 = por %p148, %p149
      %p151 = scmp.ne.s32.totalorder %s143, %s145
      %p152 = scmp.eq.s32.totalorder %s30, 1
      %p153 = por %p151, %p152
      %p154 = scmp.ne.s32.totalorder %s145, %s146
      %p155 = scmp.eq.s32.totalorder %s30, 0
      %p156 = por %p154, %p155
      %p157 = scmp.ne.s32.totalorder %s145, %s146
      %p158 = scmp.eq.s32.totalorder %s31, 1
      %p159 = por %p157, %p158
      %p161 = scmp.ne.s32.totalorder %s146, %s160
      %p162 = scmp.eq.s32.totalorder %s31, 0
      %p163 = por %p161, %p162
      %s165 = sadd.s32 %s164, 1
      %p168 = scmp.eq.s32.totalorder %s25, 1
      %p169 = scmp.ne.s32.totalorder %s164, %s166
      %p170 = scmp.eq.s32.totalorder %s25, 0
      %p171 = por %p169, %p170
      %p172 = scmp.ne.s32.totalorder %s164, %s166
      %p173 = scmp.eq.s32.totalorder %s30, 1
      %p174 = por %p172, %p173
      %p175 = scmp.ne.s32.totalorder %s166, %s167
      %p176 = scmp.eq.s32.totalorder %s30, 0
      %p177 = por %p175, %p176
      %p178 = scmp.ne.s32.totalorder %s166, %s167
      %p179 = scmp.eq.s32.totalorder %s31, 1
      %p180 = por %p178, %p179
      %p182 = scmp.ne.s32.totalorder %s167, %s181
      %p183 = scmp.eq.s32.totalorder %s31, 0
      %p184 = por %p182, %p183
      %s186 = sadd.s32 %s185, 1
      %p189 = scmp.eq.s32.totalorder %s25, 1
      %p190 = scmp.ne.s32.totalorder %s185, %s187
      %p191 = scmp.eq.s32.totalorder %s25, 0
      %p192 = por %p190, %p191
      %p193 = scmp.ne.s32.totalorder %s185, %s187
      %p194 = scmp.eq.s32.totalorder %s30, 1
      %p195 = por %p193, %p194
      %p196 = scmp.ne.s32.totalorder %s187, %s188
      %p197 = scmp.eq.s32.totalorder %s30, 0
      %p198 = por %p196, %p197
      %p199 = scmp.ne.s32.totalorder %s187, %s188
      %p200 = scmp.eq.s32.totalorder %s31, 1
      %p201 = por %p199, %p200
      %p203 = scmp.ne.s32.totalorder %s188, %s202
      %p204 = scmp.eq.s32.totalorder %s31, 0
      %p205 = por %p203, %p204
      %s207 = sadd.s32 %s206, 1
      %p210 = scmp.eq.s32.totalorder %s25, 1
      %p211 = scmp.ne.s32.totalorder %s206, %s208
      %p212 = scmp.eq.s32.totalorder %s25, 0
      %p213 = por %p211, %p212
      %p214 = scmp.ne.s32.totalorder %s206, %s208
      %p215 = scmp.eq.s32.totalorder %s30, 1
      %p216 = por %p214, %p215
      %p217 = scmp.ne.s32.totalorder %s208, %s209
      %p218 = scmp.eq.s32.totalorder %s30, 0
      %p219 = por %p217, %p218
      %p220 = scmp.ne.s32.totalorder %s208, %s209
      %p221 = scmp.eq.s32.totalorder %s31, 1
      %p222 = por %p220, %p221
      %p224 = scmp.ne.s32.totalorder %s209, %s223
      %p225 = scmp.eq.s32.totalorder %s31, 0
      %p226 = por %p224, %p225
      %s228 = sadd.s32 %s227, 1
      %p231 = scmp.eq.s32.totalorder %s25, 1
      %p232 = scmp.ne.s32.totalorder %s227, %s229
      %p233 = scmp.eq.s32.totalorder %s25, 0
      %p234 = por %p232, %p233
      %p235 = scmp.ne.s32.totalorder %s227, %s229
      %p236 = scmp.eq.s32.totalorder %s30, 1
      %p237 = por %p235, %p236
      %p238 = scmp.ne.s32.totalorder %s229, %s230
      %p239 = scmp.eq.s32.totalorder %s30, 0
      %p240 = por %p238, %p239
      %p241 = scmp.ne.s32.totalorder %s229, %s230
      %p242 = scmp.eq.s32.totalorder %s31, 1
      %p243 = por %p241, %p242
      %p245 = scmp.ne.s32.totalorder %s230, %s244
      %p246 = scmp.eq.s32.totalorder %s31, 0
      %p247 = por %p245, %p246
      %s249 = sadd.s32 %s248, 1
      %p252 = scmp.eq.s32.totalorder %s25, 1
      %p253 = scmp.ne.s32.totalorder %s248, %s250
      %p254 = scmp.eq.s32.totalorder %s25, 0
      %p255 = por %p253, %p254
      %p256 = scmp.ne.s32.totalorder %s248, %s250
      %p257 = scmp.eq.s32.totalorder %s30, 1
      %p258 = por %p256, %p257
      %p259 = scmp.ne.s32.totalorder %s250, %s251
      %p260 = scmp.eq.s32.totalorder %s30, 0
      %p261 = por %p259, %p260
      %p262 = scmp.ne.s32.totalorder %s250, %s251
      %p263 = scmp.eq.s32.totalorder %s31, 1
      %p264 = por %p262, %p263
      %p266 = scmp.ne.s32.totalorder %s251, %s265
      %p267 = scmp.eq.s32.totalorder %s31, 0
      %p268 = por %p266, %p267
      %s270 = sadd.s32 %s269, 1
      %p273 = scmp.eq.s32.totalorder %s25, 1
      %p274 = scmp.ne.s32.totalorder %s269, %s271
      %p275 = scmp.eq.s32.totalorder %s25, 0
      %p276 = por %p274, %p275
      %p277 = scmp.ne.s32.totalorder %s269, %s271
      %p278 = scmp.eq.s32.totalorder %s30, 1
      %p279 = por %p277, %p278
      %p280 = scmp.ne.s32.totalorder %s271, %s272
      %p281 = scmp.eq.s32.totalorder %s30, 0
      %p282 = por %p280, %p281
      %p283 = scmp.ne.s32.totalorder %s271, %s272
      %p284 = scmp.eq.s32.totalorder %s31, 1
      %p285 = por %p283, %p284
      %p287 = scmp.ne.s32.totalorder %s272, %s286
      %p288 = scmp.eq.s32.totalorder %s31, 0
      %p289 = por %p287, %p288
      %s291 = sadd.s32 %s290, 1
      %p294 = scmp.eq.s32.totalorder %s25, 1
      %p295 = scmp.ne.s32.totalorder %s290, %s292
      %p296 = scmp.eq.s32.totalorder %s25, 0
      %p297 = por %p295, %p296
      %p298 = scmp.ne.s32.totalorder %s290, %s292
      %p299 = scmp.eq.s32.totalorder %s30, 1
      %p300 = por %p298, %p299
      %p301 = scmp.ne.s32.totalorder %s292, %s293
      %p302 = scmp.eq.s32.totalorder %s30, 0
      %p303 = por %p301, %p302
      %p304 = scmp.ne.s32.totalorder %s292, %s293
      %p305 = scmp.eq.s32.totalorder %s31, 1
      %p306 = por %p304, %p305
      %p308 = scmp.ne.s32.totalorder %s293, %s307
      %p309 = scmp.eq.s32.totalorder %s31, 0
      %p310 = por %p308, %p309
      %s312 = sadd.s32 %s311, 1
      %p315 = scmp.eq.s32.totalorder %s25, 1
      %p316 = scmp.ne.s32.totalorder %s311, %s313
      %p317 = scmp.eq.s32.totalorder %s25, 0
      %p318 = por %p316, %p317
      %p319 = scmp.ne.s32.totalorder %s311, %s313
      %p320 = scmp.eq.s32.totalorder %s30, 1
      %p321 = por %p319, %p320
      %p322 = scmp.ne.s32.totalorder %s313, %s314
      %p323 = scmp.eq.s32.totalorder %s30, 0
      %p324 = por %p322, %p323
      %p325 = scmp.ne.s32.totalorder %s313, %s314
      %p326 = scmp.eq.s32.totalorder %s31, 1
      %p327 = por %p325, %p326
      %p329 = scmp.ne.s32.totalorder %s314, %s328
      %p330 = scmp.eq.s32.totalorder %s31, 0
      %p331 = por %p329, %p330
      %s333 = sadd.s32 %s332, 1
      %p336 = scmp.eq.s32.totalorder %s25, 1
      %p337 = scmp.ne.s32.totalorder %s332, %s334
      %p338 = scmp.eq.s32.totalorder %s25, 0
      %p339 = por %p337, %p338
      %p340 = scmp.ne.s32.totalorder %s332, %s334
      %p341 = scmp.eq.s32.totalorder %s30, 1
      %p342 = por %p340, %p341
      %p343 = scmp.ne.s32.totalorder %s334, %s335
      %p344 = scmp.eq.s32.totalorder %s30, 0
      %p345 = por %p343, %p344
      %p346 = scmp.ne.s32.totalorder %s334, %s335
      %p347 = scmp.eq.s32.totalorder %s31, 1
      %p348 = por %p346, %p347
      %p350 = scmp.ne.s32.totalorder %s335, %s349
      %p351 = scmp.eq.s32.totalorder %s31, 0
      %p352 = por %p350, %p351
      %s354 = sadd.s32 %s353, 1
      %p357 = scmp.eq.s32.totalorder %s25, 1
      %p358 = scmp.ne.s32.totalorder %s353, %s355
      %p359 = scmp.eq.s32.totalorder %s25, 0
      %p360 = por %p358, %p359
      %p361 = scmp.ne.s32.totalorder %s353, %s355
      %p362 = scmp.eq.s32.totalorder %s30, 1
      %p363 = por %p361, %p362
      %p364 = scmp.ne.s32.totalorder %s355, %s356
      %p365 = scmp.eq.s32.totalorder %s30, 0
      %p366 = por %p364, %p365
      %p367 = scmp.ne.s32.totalorder %s355, %s356
      %p368 = scmp.eq.s32.totalorder %s31, 1
      %p369 = por %p367, %p368
      %p371 = scmp.ne.s32.totalorder %s356, %s370
      %p372 = scmp.eq.s32.totalorder %s31, 0
      %p373 = por %p371, %p372
      %s374 = ssub.s32 %s25, %s32
      %p375 = scmp.eq.s32.totalorder %s374, 0
      %s377 = sadd.s32 %s376, 1
      %s378 = scalar_select %p375, %s376, %s377
      %p381 = pneg %p375
      %p382 = scmp.eq.s32.totalorder %s25, 1
      %p383 = por %p381, %p382
      %p384 = scmp.ne.s32.totalorder %s376, %s379
      %p385 = scmp.eq.s32.totalorder %s25, 0
      %p386 = por %p384, %p385
      %p387 = scmp.ne.s32.totalorder %s376, %s379
      %p388 = scmp.eq.s32.totalorder %s30, 1
      %p389 = por %p387, %p388
      %p390 = scmp.ne.s32.totalorder %s379, %s380
      %p391 = scmp.eq.s32.totalorder %s30, 0
      %p392 = por %p390, %p391
      %p393 = scmp.ne.s32.totalorder %s379, %s380
      %p394 = scmp.eq.s32.totalorder %s31, 1
      %p395 = por %p393, %p394
      %p397 = scmp.ne.s32.totalorder %s380, %s396
      %p398 = scmp.eq.s32.totalorder %s31, 0
      %p399 = por %p397, %p398
      %p400 = scmp.le.s32.totalorder 1, %s25
      %p401 = scmp.lt.s32.totalorder %s25, 3
      %p402 = pnand %p400, %p401
      %p403 = pneg %p402
      // Predicated region
      $region9: #{corner_predictor_forward.1} parent=5 // pred_check
        _
      $region10: #{corner_predictor_forward.1} parent=5 // pred_check_branch
        %405 = sbr.rel (%p402) target = $region12
      $region11: #{corner_predictor_forward.1} parent=5 // pred_region
        %s406 = ssub.s32 %s25, 1
        // Predicated region
        $region13: #{corner_predictor_forward.1} parent=11 // pred_check
          %p407 = pneg %p72
        $region14: #{corner_predictor_forward.1} parent=11 // pred_check_branch
          %409 = sbr.rel (%p407) target = $region16
        $region15: #{corner_predictor_forward.1} parent=11 // pred_region
          _
        $region16: #{corner_predictor_forward.1} parent=11 // pred_fallthru
          _
        // Predicated region
        $region17: #{corner_predictor_forward.1} parent=11 // pred_check
          %p410 = pneg %p93
        $region18: #{corner_predictor_forward.1} parent=11 // pred_check_branch
          %412 = sbr.rel (%p410) target = $region20
        $region19: #{corner_predictor_forward.1} parent=11 // pred_region
          _
        $region20: #{corner_predictor_forward.1} parent=11 // pred_fallthru
          _
        // Predicated region
        $region21: #{corner_predictor_forward.1} parent=11 // pred_check
          %p413 = pneg %p114
        $region22: #{corner_predictor_forward.1} parent=11 // pred_check_branch
          %415 = sbr.rel (%p413) target = $region24
        $region23: #{corner_predictor_forward.1} parent=11 // pred_region
          _
        $region24: #{corner_predictor_forward.1} parent=11 // pred_fallthru
          _
        // Predicated region
        $region25: #{corner_predictor_forward.1} parent=11 // pred_check
          %p416 = pneg %p135
        $region26: #{corner_predictor_forward.1} parent=11 // pred_check_branch
          %418 = sbr.rel (%p416) target = $region28
        $region27: #{corner_predictor_forward.1} parent=11 // pred_region
          _
        $region28: #{corner_predictor_forward.1} parent=11 // pred_fallthru
          _
        // Predicated region
        $region29: #{corner_predictor_forward.1} parent=11 // pred_check
          %p419 = pneg %p156
        $region30: #{corner_predictor_forward.1} parent=11 // pred_check_branch
          %421 = sbr.rel (%p419) target = $region32
        $region31: #{corner_predictor_forward.1} parent=11 // pred_region
          _
        $region32: #{corner_predictor_forward.1} parent=11 // pred_fallthru
          _
        // Predicated region
        $region33: #{corner_predictor_forward.1} parent=11 // pred_check
          %p422 = pneg %p177
        $region34: #{corner_predictor_forward.1} parent=11 // pred_check_branch
          %424 = sbr.rel (%p422) target = $region36
        $region35: #{corner_predictor_forward.1} parent=11 // pred_region
          _
        $region36: #{corner_predictor_forward.1} parent=11 // pred_fallthru
          _
        // Predicated region
        $region37: #{corner_predictor_forward.1} parent=11 // pred_check
          %p425 = pneg %p198
        $region38: #{corner_predictor_forward.1} parent=11 // pred_check_branch
          %427 = sbr.rel (%p425) target = $region40
        $region39: #{corner_predictor_forward.1} parent=11 // pred_region
          _
        $region40: #{corner_predictor_forward.1} parent=11 // pred_fallthru
          _
        // Predicated region
        $region41: #{corner_predictor_forward.1} parent=11 // pred_check
          %p428 = pneg %p219
        $region42: #{corner_predictor_forward.1} parent=11 // pred_check_branch
          %430 = sbr.rel (%p428) target = $region44
        $region43: #{corner_predictor_forward.1} parent=11 // pred_region
          _
        $region44: #{corner_predictor_forward.1} parent=11 // pred_fallthru
          _
        // Predicated region
        $region45: #{corner_predictor_forward.1} parent=11 // pred_check
          %p431 = pneg %p240
        $region46: #{corner_predictor_forward.1} parent=11 // pred_check_branch
          %433 = sbr.rel (%p431) target = $region48
        $region47: #{corner_predictor_forward.1} parent=11 // pred_region
          _
        $region48: #{corner_predictor_forward.1} parent=11 // pred_fallthru
          _
        // Predicated region
        $region49: #{corner_predictor_forward.1} parent=11 // pred_check
          %p434 = pneg %p261
        $region50: #{corner_predictor_forward.1} parent=11 // pred_check_branch
          %436 = sbr.rel (%p434) target = $region52
        $region51: #{corner_predictor_forward.1} parent=11 // pred_region
          _
        $region52: #{corner_predictor_forward.1} parent=11 // pred_fallthru
          _
        // Predicated region
        $region53: #{corner_predictor_forward.1} parent=11 // pred_check
          %p437 = pneg %p282
        $region54: #{corner_predictor_forward.1} parent=11 // pred_check_branch
          %439 = sbr.rel (%p437) target = $region56
        $region55: #{corner_predictor_forward.1} parent=11 // pred_region
          _
        $region56: #{corner_predictor_forward.1} parent=11 // pred_fallthru
          _
        // Predicated region
        $region57: #{corner_predictor_forward.1} parent=11 // pred_check
          %p440 = pneg %p303
        $region58: #{corner_predictor_forward.1} parent=11 // pred_check_branch
          %442 = sbr.rel (%p440) target = $region60
        $region59: #{corner_predictor_forward.1} parent=11 // pred_region
          _
        $region60: #{corner_predictor_forward.1} parent=11 // pred_fallthru
          _
        // Predicated region
        $region61: #{corner_predictor_forward.1} parent=11 // pred_check
          %p443 = pneg %p324
        $region62: #{corner_predictor_forward.1} parent=11 // pred_check_branch
          %445 = sbr.rel (%p443) target = $region64
        $region63: #{corner_predictor_forward.1} parent=11 // pred_region
          _
        $region64: #{corner_predictor_forward.1} parent=11 // pred_fallthru
          _
        // Predicated region
        $region65: #{corner_predictor_forward.1} parent=11 // pred_check
          %p446 = pneg %p345
        $region66: #{corner_predictor_forward.1} parent=11 // pred_check_branch
          %448 = sbr.rel (%p446) target = $region68
        $region67: #{corner_predictor_forward.1} parent=11 // pred_region
          _
        $region68: #{corner_predictor_forward.1} parent=11 // pred_fallthru
          _
        // Predicated region
        $region69: #{corner_predictor_forward.1} parent=11 // pred_check
          %p449 = pneg %p366
        $region70: #{corner_predictor_forward.1} parent=11 // pred_check_branch
          %451 = sbr.rel (%p449) target = $region72
        $region71: #{corner_predictor_forward.1} parent=11 // pred_region
          _
        $region72: #{corner_predictor_forward.1} parent=11 // pred_fallthru
          _
      $region12: #{corner_predictor_forward.1} parent=5 // pred_fallthru
        _
      %p452 = scmp.lt.s32.totalorder %s25, 2
      // Predicated region
      $region73: #{corner_predictor_forward.1} parent=5 // pred_check
        %p453 = pneg %p452
      $region74: #{corner_predictor_forward.1} parent=5 // pred_check_branch
        %455 = sbr.rel (%p453) target = $region76
      $region75: #{corner_predictor_forward.1} parent=5 // pred_region
        // Predicated region
        $region77: #{corner_predictor_forward.1} parent=75 // pred_check
          %p456 = pneg %p45
        $region78: #{corner_predictor_forward.1} parent=75 // pred_check_branch
          %458 = sbr.rel (%p456) target = $region80
        $region79: #{corner_predictor_forward.1} parent=75 // pred_region
          %p459 = scmp.lt.s32.totalorder %s25, 1
          %s460 = scalar_select %p459, %s25, 1
          %s461 = smul.addr %s460, 32
          %s462 = smul.addr %s461, 8
          %s463 = scalar_lea.vmem %s0, %s462
        $region80: #{corner_predictor_forward.1} parent=75 // pred_fallthru
          _
      $region76: #{corner_predictor_forward.1} parent=5 // pred_fallthru
        _
      %p464 = scmp.le.s32.totalorder 1, %s25
      %p465 = scmp.lt.s32.totalorder %s25, 3
      %p466 = pnand %p464, %p465
      %p467 = pneg %p466
      // Predicated region
      $region81: #{corner_predictor_forward.1} parent=5 // pred_check
        _
      $region82: #{corner_predictor_forward.1} parent=5 // pred_check_branch
        %469 = sbr.rel (%p466) target = $region84
      $region83: #{corner_predictor_forward.1} parent=5 // pred_region
        %s470 = ssub.s32 %s25, 1
        %p471 = scmp.lt.s32.totalorder %s30, 1
        %s472 = scalar_select %p471, %s30, 1
        %s473 = smul.addr %s472, 32
        %s474 = smul.addr %s473, 8
        %s475 = scalar_lea.vmem %s0, %s474
        %p476 = pneg %p51
        %p477 = pneg %p48
        %p478 = pneg %p72
        %p479 = pneg %p69
        %p480 = pneg %p93
        %p481 = pneg %p90
        %p482 = pneg %p114
        %p483 = pneg %p111
        %p484 = pneg %p135
        %p485 = pneg %p132
        %p486 = pneg %p156
        %p487 = pneg %p153
        %p488 = pneg %p177
        %p489 = pneg %p174
        %p490 = pneg %p198
        %p491 = pneg %p195
        %p492 = pneg %p219
        %p493 = pneg %p216
        %p494 = pneg %p240
        %p495 = pneg %p237
        %p496 = pneg %p261
        %p497 = pneg %p258
        %p498 = pneg %p282
        %p499 = pneg %p279
        %p500 = pneg %p303
        %p501 = pneg %p300
        %p502 = pneg %p324
        %p503 = pneg %p321
        %p504 = pneg %p345
        %p505 = pneg %p342
        %p506 = pneg %p366
        %p507 = pneg %p363
        %p508 = pneg %p392
        %p509 = pneg %p389
        %s510 = sand.u32 %s379, 1
        %s511 = scalar_lea.sflag [#allocation7], %s510
        %s512 = sand.u32 %s379, 1
        %s513 = scalar_lea.vmem [#allocation6], %s512
        %p514 = scmp.lt.s32.totalorder %s30, 1
        %s515 = scalar_select %p514, %s30, 1
        %s516 = smul.addr %s515, 32
        %s517 = smul.addr %s516, 8
        %s518 = scalar_lea.vmem %s0, %s517
        %vm519 = vcmask 31744
        %520 = vst.msk [vmem:[#allocation2] sm:$0xff] %vm519, 0.0
        %521 = vst.msk [vmem:[#allocation2 + $0x8] sm:$0xff] %vm519, 0.0
        %522 = vst.msk [vmem:[#allocation2 + $0x10] sm:$0xff] %vm519, 0.0
        %vm523 = vcmask 24576
        %524 = vst.msk [vmem:[#allocation2 + $0x18] sm:$0x1] %vm523, 0.0
        %s525 = scalar_lea.vmem [#allocation2], 544
        %526 = vst.msk [vmem:[%s525] sm:$0xff] %vm519, 0.0
        %527 = vst.msk [vmem:[%s525 + $0x8] sm:$0xff] %vm519, 0.0
        %528 = vst.msk [vmem:[%s525 + $0x10] sm:$0xff] %vm519, 0.0
        %529 = vst.msk [vmem:[%s525 + $0x18] sm:$0x1] %vm523, 0.0
        %530 = vst.msk [vmem:[#allocation2 + $0x7] sm:$0x1] %vm523, 0.0
        %531 = vst.msk [vmem:[#allocation2 + $0x27] sm:$0x1] %vm523, 0.0
        %532 = vst.msk [vmem:[#allocation2 + $0x47] sm:$0x1] %vm523, 0.0
        %533 = vst.msk [vmem:[#allocation2 + $0x67] sm:$0x1] %vm523, 0.0
        %534 = vst.msk [vmem:[#allocation2 + $0x87] sm:$0x1] %vm523, 0.0
        %535 = vst.msk [vmem:[#allocation2 + $0xa7] sm:$0x1] %vm523, 0.0
        %536 = vst.msk [vmem:[#allocation2 + $0xc7] sm:$0x1] %vm523, 0.0
        %537 = vst.msk [vmem:[#allocation2 + $0xe7] sm:$0x1] %vm523, 0.0
        %538 = vst.msk [vmem:[#allocation2 + $0x107] sm:$0x1] %vm523, 0.0
        %539 = vst.msk [vmem:[#allocation2 + $0x127] sm:$0x1] %vm523, 0.0
        %540 = vst.msk [vmem:[#allocation2 + $0x147] sm:$0x1] %vm523, 0.0
        %541 = vst.msk [vmem:[#allocation2 + $0x167] sm:$0x1] %vm523, 0.0
        %542 = vst.msk [vmem:[#allocation2 + $0x187] sm:$0x1] %vm523, 0.0
        %543 = vst.msk [vmem:[#allocation2 + $0x1a7] sm:$0x1] %vm523, 0.0
        %544 = vst.msk [vmem:[#allocation2 + $0x1c7] sm:$0x1] %vm523, 0.0
        %545 = vst.msk [vmem:[#allocation2 + $0x1e7] sm:$0x1] %vm523, 0.0
        %546 = vst.msk [vmem:[#allocation2 + $0x207] sm:$0x1] %vm523, 0.0
        %547 = vst.msk [vmem:[#allocation2 + $0x227] sm:$0x1] %vm523, 0.0
        %548 = vst.msk [vmem:[#allocation2 + $0x18] sm:$0x1] %vm523, 0.0
        %549 = vst.msk [vmem:[#allocation2 + $0x38] sm:$0x1] %vm523, 0.0
        %550 = vst.msk [vmem:[#allocation2 + $0x58] sm:$0x1] %vm523, 0.0
        %551 = vst.msk [vmem:[#allocation2 + $0x78] sm:$0x1] %vm523, 0.0
        %552 = vst.msk [vmem:[#allocation2 + $0x98] sm:$0x1] %vm523, 0.0
        %553 = vst.msk [vmem:[#allocation2 + $0xb8] sm:$0x1] %vm523, 0.0
        %554 = vst.msk [vmem:[#allocation2 + $0xd8] sm:$0x1] %vm523, 0.0
        %555 = vst.msk [vmem:[#allocation2 + $0xf8] sm:$0x1] %vm523, 0.0
        %556 = vst.msk [vmem:[#allocation2 + $0x118] sm:$0x1] %vm523, 0.0
        %557 = vst.msk [vmem:[#allocation2 + $0x138] sm:$0x1] %vm523, 0.0
        %558 = vst.msk [vmem:[#allocation2 + $0x158] sm:$0x1] %vm523, 0.0
        %559 = vst.msk [vmem:[#allocation2 + $0x178] sm:$0x1] %vm523, 0.0
        %560 = vst.msk [vmem:[#allocation2 + $0x198] sm:$0x1] %vm523, 0.0
        %561 = vst.msk [vmem:[#allocation2 + $0x1b8] sm:$0x1] %vm523, 0.0
        %562 = vst.msk [vmem:[#allocation2 + $0x1d8] sm:$0x1] %vm523, 0.0
        %563 = vst.msk [vmem:[#allocation2 + $0x1f8] sm:$0x1] %vm523, 0.0
        %564 = vst.msk [vmem:[#allocation2 + $0x218] sm:$0x1] %vm523, 0.0
        %565 = vst.msk [vmem:[#allocation2 + $0x238] sm:$0x1] %vm523, 0.0
        %vm566 = vcmask 261120
        %567 = vst.msk [vmem:[#allocation3] sm:$0xff] %vm566, 0.0
        %568 = vst.msk [vmem:[#allocation3 + $0x8] sm:$0xff] %vm566, 0.0
        %569 = vst.msk [vmem:[#allocation3 + $0x10] sm:$0xff] %vm566, 0.0
        %vm570 = vcmask 253952
        %571 = vst.msk [vmem:[#allocation3 + $0x18] sm:$0x1] %vm570, 0.0
        %s572 = scalar_lea.vmem [#allocation3], 544
        %573 = vst.msk [vmem:[%s572] sm:$0xff] %vm566, 0.0
        %574 = vst.msk [vmem:[%s572 + $0x8] sm:$0xff] %vm566, 0.0
        %575 = vst.msk [vmem:[%s572 + $0x10] sm:$0xff] %vm566, 0.0
        %576 = vst.msk [vmem:[%s572 + $0x18] sm:$0x1] %vm570, 0.0
        %577 = vst.msk [vmem:[#allocation3 + $0x7] sm:$0x1] %vm570, 0.0
        %578 = vst.msk [vmem:[#allocation3 + $0x27] sm:$0x1] %vm570, 0.0
        %579 = vst.msk [vmem:[#allocation3 + $0x47] sm:$0x1] %vm570, 0.0
        %580 = vst.msk [vmem:[#allocation3 + $0x67] sm:$0x1] %vm570, 0.0
        %581 = vst.msk [vmem:[#allocation3 + $0x87] sm:$0x1] %vm570, 0.0
        %582 = vst.msk [vmem:[#allocation3 + $0xa7] sm:$0x1] %vm570, 0.0
        %583 = vst.msk [vmem:[#allocation3 + $0xc7] sm:$0x1] %vm570, 0.0
        %584 = vst.msk [vmem:[#allocation3 + $0xe7] sm:$0x1] %vm570, 0.0
        %585 = vst.msk [vmem:[#allocation3 + $0x107] sm:$0x1] %vm570, 0.0
        %586 = vst.msk [vmem:[#allocation3 + $0x127] sm:$0x1] %vm570, 0.0
        %587 = vst.msk [vmem:[#allocation3 + $0x147] sm:$0x1] %vm570, 0.0
        %588 = vst.msk [vmem:[#allocation3 + $0x167] sm:$0x1] %vm570, 0.0
        %589 = vst.msk [vmem:[#allocation3 + $0x187] sm:$0x1] %vm570, 0.0
        %590 = vst.msk [vmem:[#allocation3 + $0x1a7] sm:$0x1] %vm570, 0.0
        %591 = vst.msk [vmem:[#allocation3 + $0x1c7] sm:$0x1] %vm570, 0.0
        %592 = vst.msk [vmem:[#allocation3 + $0x1e7] sm:$0x1] %vm570, 0.0
        %593 = vst.msk [vmem:[#allocation3 + $0x207] sm:$0x1] %vm570, 0.0
        %594 = vst.msk [vmem:[#allocation3 + $0x227] sm:$0x1] %vm570, 0.0
        %595 = vst.msk [vmem:[#allocation3 + $0x18] sm:$0x1] %vm570, 0.0
        %596 = vst.msk [vmem:[#allocation3 + $0x38] sm:$0x1] %vm570, 0.0
        %597 = vst.msk [vmem:[#allocation3 + $0x58] sm:$0x1] %vm570, 0.0
        %598 = vst.msk [vmem:[#allocation3 + $0x78] sm:$0x1] %vm570, 0.0
        %599 = vst.msk [vmem:[#allocation3 + $0x98] sm:$0x1] %vm570, 0.0
        %600 = vst.msk [vmem:[#allocation3 + $0xb8] sm:$0x1] %vm570, 0.0
        %601 = vst.msk [vmem:[#allocation3 + $0xd8] sm:$0x1] %vm570, 0.0
        %602 = vst.msk [vmem:[#allocation3 + $0xf8] sm:$0x1] %vm570, 0.0
        %603 = vst.msk [vmem:[#allocation3 + $0x118] sm:$0x1] %vm570, 0.0
        %604 = vst.msk [vmem:[#allocation3 + $0x138] sm:$0x1] %vm570, 0.0
        %605 = vst.msk [vmem:[#allocation3 + $0x158] sm:$0x1] %vm570, 0.0
        %606 = vst.msk [vmem:[#allocation3 + $0x178] sm:$0x1] %vm570, 0.0
        %607 = vst.msk [vmem:[#allocation3 + $0x198] sm:$0x1] %vm570, 0.0
        %608 = vst.msk [vmem:[#allocation3 + $0x1b8] sm:$0x1] %vm570, 0.0
        %609 = vst.msk [vmem:[#allocation3 + $0x1d8] sm:$0x1] %vm570, 0.0
        %610 = vst.msk [vmem:[#allocation3 + $0x1f8] sm:$0x1] %vm570, 0.0
        %611 = vst.msk [vmem:[#allocation3 + $0x218] sm:$0x1] %vm570, 0.0
        %612 = vst.msk [vmem:[#allocation3 + $0x238] sm:$0x1] %vm570, 0.0
        %vm613 = vcmask 130048
        %614 = vst.msk [vmem:[#allocation4] sm:$0xff] %vm613, 0.0
        %615 = vst.msk [vmem:[#allocation4 + $0x8] sm:$0xff] %vm613, 0.0
        %616 = vst.msk [vmem:[#allocation4 + $0x10] sm:$0xff] %vm613, 0.0
        %vm617 = vcmask 122880
        %618 = vst.msk [vmem:[#allocation4 + $0x18] sm:$0x1] %vm617, 0.0
        %s619 = scalar_lea.vmem [#allocation4], 544
        %620 = vst.msk [vmem:[%s619] sm:$0xff] %vm613, 0.0
        %621 = vst.msk [vmem:[%s619 + $0x8] sm:$0xff] %vm613, 0.0
        %622 = vst.msk [vmem:[%s619 + $0x10] sm:$0xff] %vm613, 0.0
        %623 = vst.msk [vmem:[%s619 + $0x18] sm:$0x1] %vm617, 0.0
        %624 = vst.msk [vmem:[#allocation4 + $0x7] sm:$0x1] %vm617, 0.0
        %625 = vst.msk [vmem:[#allocation4 + $0x27] sm:$0x1] %vm617, 0.0
        %626 = vst.msk [vmem:[#allocation4 + $0x47] sm:$0x1] %vm617, 0.0
        %627 = vst.msk [vmem:[#allocation4 + $0x67] sm:$0x1] %vm617, 0.0
        %628 = vst.msk [vmem:[#allocation4 + $0x87] sm:$0x1] %vm617, 0.0
        %629 = vst.msk [vmem:[#allocation4 + $0xa7] sm:$0x1] %vm617, 0.0
        %630 = vst.msk [vmem:[#allocation4 + $0xc7] sm:$0x1] %vm617, 0.0
        %631 = vst.msk [vmem:[#allocation4 + $0xe7] sm:$0x1] %vm617, 0.0
        %632 = vst.msk [vmem:[#allocation4 + $0x107] sm:$0x1] %vm617, 0.0
        %633 = vst.msk [vmem:[#allocation4 + $0x127] sm:$0x1] %vm617, 0.0
        %634 = vst.msk [vmem:[#allocation4 + $0x147] sm:$0x1] %vm617, 0.0
        %635 = vst.msk [vmem:[#allocation4 + $0x167] sm:$0x1] %vm617, 0.0
        %636 = vst.msk [vmem:[#allocation4 + $0x187] sm:$0x1] %vm617, 0.0
        %637 = vst.msk [vmem:[#allocation4 + $0x1a7] sm:$0x1] %vm617, 0.0
        %638 = vst.msk [vmem:[#allocation4 + $0x1c7] sm:$0x1] %vm617, 0.0
        %639 = vst.msk [vmem:[#allocation4 + $0x1e7] sm:$0x1] %vm617, 0.0
        %640 = vst.msk [vmem:[#allocation4 + $0x207] sm:$0x1] %vm617, 0.0
        %641 = vst.msk [vmem:[#allocation4 + $0x227] sm:$0x1] %vm617, 0.0
        %642 = vst.msk [vmem:[#allocation4 + $0x18] sm:$0x1] %vm617, 0.0
        %643 = vst.msk [vmem:[#allocation4 + $0x38] sm:$0x1] %vm617, 0.0
        %644 = vst.msk [vmem:[#allocation4 + $0x58] sm:$0x1] %vm617, 0.0
        %645 = vst.msk [vmem:[#allocation4 + $0x78] sm:$0x1] %vm617, 0.0
        %646 = vst.msk [vmem:[#allocation4 + $0x98] sm:$0x1] %vm617, 0.0
        %647 = vst.msk [vmem:[#allocation4 + $0xb8] sm:$0x1] %vm617, 0.0
        %648 = vst.msk [vmem:[#allocation4 + $0xd8] sm:$0x1] %vm617, 0.0
        %649 = vst.msk [vmem:[#allocation4 + $0xf8] sm:$0x1] %vm617, 0.0
        %650 = vst.msk [vmem:[#allocation4 + $0x118] sm:$0x1] %vm617, 0.0
        %651 = vst.msk [vmem:[#allocation4 + $0x138] sm:$0x1] %vm617, 0.0
        %652 = vst.msk [vmem:[#allocation4 + $0x158] sm:$0x1] %vm617, 0.0
        %653 = vst.msk [vmem:[#allocation4 + $0x178] sm:$0x1] %vm617, 0.0
        %654 = vst.msk [vmem:[#allocation4 + $0x198] sm:$0x1] %vm617, 0.0
        %655 = vst.msk [vmem:[#allocation4 + $0x1b8] sm:$0x1] %vm617, 0.0
        %656 = vst.msk [vmem:[#allocation4 + $0x1d8] sm:$0x1] %vm617, 0.0
        %657 = vst.msk [vmem:[#allocation4 + $0x1f8] sm:$0x1] %vm617, 0.0
        %658 = vst.msk [vmem:[#allocation4 + $0x218] sm:$0x1] %vm617, 0.0
        %659 = vst.msk [vmem:[#allocation4 + $0x238] sm:$0x1] %vm617, 0.0
        %vm660 = vcmask 64512
        %661 = vst.msk [vmem:[#allocation5] sm:$0xff] %vm660, 0.0
        %662 = vst.msk [vmem:[#allocation5 + $0x8] sm:$0xff] %vm660, 0.0
        %663 = vst.msk [vmem:[#allocation5 + $0x10] sm:$0xff] %vm660, 0.0
        %vm664 = vcmask 57344
        %665 = vst.msk [vmem:[#allocation5 + $0x18] sm:$0x1] %vm664, 0.0
        %s666 = scalar_lea.vmem [#allocation5], 544
        %667 = vst.msk [vmem:[%s666] sm:$0xff] %vm660, 0.0
        %668 = vst.msk [vmem:[%s666 + $0x8] sm:$0xff] %vm660, 0.0
        %669 = vst.msk [vmem:[%s666 + $0x10] sm:$0xff] %vm660, 0.0
        %670 = vst.msk [vmem:[%s666 + $0x18] sm:$0x1] %vm664, 0.0
        %671 = vst.msk [vmem:[#allocation5 + $0x7] sm:$0x1] %vm664, 0.0
        %672 = vst.msk [vmem:[#allocation5 + $0x27] sm:$0x1] %vm664, 0.0
        %673 = vst.msk [vmem:[#allocation5 + $0x47] sm:$0x1] %vm664, 0.0
        %674 = vst.msk [vmem:[#allocation5 + $0x67] sm:$0x1] %vm664, 0.0
        %675 = vst.msk [vmem:[#allocation5 + $0x87] sm:$0x1] %vm664, 0.0
        %676 = vst.msk [vmem:[#allocation5 + $0xa7] sm:$0x1] %vm664, 0.0
        %677 = vst.msk [vmem:[#allocation5 + $0xc7] sm:$0x1] %vm664, 0.0
        %678 = vst.msk [vmem:[#allocation5 + $0xe7] sm:$0x1] %vm664, 0.0
        %679 = vst.msk [vmem:[#allocation5 + $0x107] sm:$0x1] %vm664, 0.0
        %680 = vst.msk [vmem:[#allocation5 + $0x127] sm:$0x1] %vm664, 0.0
        %681 = vst.msk [vmem:[#allocation5 + $0x147] sm:$0x1] %vm664, 0.0
        %682 = vst.msk [vmem:[#allocation5 + $0x167] sm:$0x1] %vm664, 0.0
        %683 = vst.msk [vmem:[#allocation5 + $0x187] sm:$0x1] %vm664, 0.0
        %684 = vst.msk [vmem:[#allocation5 + $0x1a7] sm:$0x1] %vm664, 0.0
        %685 = vst.msk [vmem:[#allocation5 + $0x1c7] sm:$0x1] %vm664, 0.0
        %686 = vst.msk [vmem:[#allocation5 + $0x1e7] sm:$0x1] %vm664, 0.0
        %687 = vst.msk [vmem:[#allocation5 + $0x207] sm:$0x1] %vm664, 0.0
        %688 = vst.msk [vmem:[#allocation5 + $0x227] sm:$0x1] %vm664, 0.0
        %689 = vst.msk [vmem:[#allocation5 + $0x18] sm:$0x1] %vm664, 0.0
        %690 = vst.msk [vmem:[#allocation5 + $0x38] sm:$0x1] %vm664, 0.0
        %691 = vst.msk [vmem:[#allocation5 + $0x58] sm:$0x1] %vm664, 0.0
        %692 = vst.msk [vmem:[#allocation5 + $0x78] sm:$0x1] %vm664, 0.0
        %693 = vst.msk [vmem:[#allocation5 + $0x98] sm:$0x1] %vm664, 0.0
        %694 = vst.msk [vmem:[#allocation5 + $0xb8] sm:$0x1] %vm664, 0.0
        %695 = vst.msk [vmem:[#allocation5 + $0xd8] sm:$0x1] %vm664, 0.0
        %696 = vst.msk [vmem:[#allocation5 + $0xf8] sm:$0x1] %vm664, 0.0
        %697 = vst.msk [vmem:[#allocation5 + $0x118] sm:$0x1] %vm664, 0.0
        %698 = vst.msk [vmem:[#allocation5 + $0x138] sm:$0x1] %vm664, 0.0
        %699 = vst.msk [vmem:[#allocation5 + $0x158] sm:$0x1] %vm664, 0.0
        %700 = vst.msk [vmem:[#allocation5 + $0x178] sm:$0x1] %vm664, 0.0
        %701 = vst.msk [vmem:[#allocation5 + $0x198] sm:$0x1] %vm664, 0.0
        %702 = vst.msk [vmem:[#allocation5 + $0x1b8] sm:$0x1] %vm664, 0.0
        %703 = vst.msk [vmem:[#allocation5 + $0x1d8] sm:$0x1] %vm664, 0.0
        %704 = vst.msk [vmem:[#allocation5 + $0x1f8] sm:$0x1] %vm664, 0.0
        %705 = vst.msk [vmem:[#allocation5 + $0x218] sm:$0x1] %vm664, 0.0
        %706 = vst.msk [vmem:[#allocation5 + $0x238] sm:$0x1] %vm664, 0.0
        %v707 = vld [vmem:[%s518] sm:$0xff]
        %v708 = vld [vmem:[%s518 + $0x8] sm:$0xff]
        %v709 = vld [vmem:[%s518 + $0x10] sm:$0xff]
        %v710 = vld [vmem:[%s518 + $0x18] sm:$0xff]
        %v711 = vld [vmem:[%s518 + $0x20] sm:$0xff]
        %v712 = vld [vmem:[%s518 + $0x28] sm:$0xff]
        %v713 = vld [vmem:[%s518 + $0x30] sm:$0xff]
        %v714 = vld [vmem:[%s518 + $0x38] sm:$0xff]
        %v715 = vld [vmem:[%s518 + $0x40] sm:$0xff]
        %v716 = vld [vmem:[%s518 + $0x48] sm:$0xff]
        %v717 = vld [vmem:[%s518 + $0x50] sm:$0xff]
        %v718 = vld [vmem:[%s518 + $0x58] sm:$0xff]
        %v719 = vld [vmem:[%s518 + $0x60] sm:$0xff]
        %v720 = vld [vmem:[%s518 + $0x68] sm:$0xff]
        %v721 = vld [vmem:[%s518 + $0x70] sm:$0xff]
        %v722 = vld [vmem:[%s518 + $0x78] sm:$0xff]
        %v723 = vld [vmem:[%s518 + $0x80] sm:$0xff]
        %v724 = vld [vmem:[%s518 + $0x88] sm:$0xff]
        %v725 = vld [vmem:[%s518 + $0x90] sm:$0xff]
        %v726 = vld [vmem:[%s518 + $0x98] sm:$0xff]
        %v727 = vld [vmem:[%s518 + $0xa0] sm:$0xff]
        %v728 = vld [vmem:[%s518 + $0xa8] sm:$0xff]
        %v729 = vld [vmem:[%s518 + $0xb0] sm:$0xff]
        %v730 = vld [vmem:[%s518 + $0xb8] sm:$0xff]
        %v731 = vld [vmem:[%s518 + $0xc0] sm:$0xff]
        %v732 = vld [vmem:[%s518 + $0xc8] sm:$0xff]
        %v733 = vld [vmem:[%s518 + $0xd0] sm:$0xff]
        %v734 = vld [vmem:[%s518 + $0xd8] sm:$0xff]
        %v735 = vld [vmem:[%s518 + $0xe0] sm:$0xff]
        %v736 = vld [vmem:[%s518 + $0xe8] sm:$0xff]
        %v737 = vld [vmem:[%s518 + $0xf0] sm:$0xff]
        %v738 = vld [vmem:[%s518 + $0xf8] sm:$0xff]
        %s739 = scalar_lea.vmem [#allocation2], 32
        %740 = vst.msk [vmem:[%s739 + $0x8] sm:$0xff] %vm519, %v707
        %741 = vst.msk [vmem:[%s739 + $0x10] sm:$0xff] %vm519, %v708
        %742 = vst.msk [vmem:[%s739 + $0x28] sm:$0xff] %vm519, %v709
        %743 = vst.msk [vmem:[%s739 + $0x30] sm:$0xff] %vm519, %v710
        %744 = vst.msk [vmem:[%s739 + $0x48] sm:$0xff] %vm519, %v711
        %745 = vst.msk [vmem:[%s739 + $0x50] sm:$0xff] %vm519, %v712
        %746 = vst.msk [vmem:[%s739 + $0x68] sm:$0xff] %vm519, %v713
        %747 = vst.msk [vmem:[%s739 + $0x70] sm:$0xff] %vm519, %v714
        %748 = vst.msk [vmem:[%s739 + $0x88] sm:$0xff] %vm519, %v715
        %749 = vst.msk [vmem:[%s739 + $0x90] sm:$0xff] %vm519, %v716
        %750 = vst.msk [vmem:[%s739 + $0xa8] sm:$0xff] %vm519, %v717
        %751 = vst.msk [vmem:[%s739 + $0xb0] sm:$0xff] %vm519, %v718
        %752 = vst.msk [vmem:[%s739 + $0xc8] sm:$0xff] %vm519, %v719
        %753 = vst.msk [vmem:[%s739 + $0xd0] sm:$0xff] %vm519, %v720
        %754 = vst.msk [vmem:[%s739 + $0xe8] sm:$0xff] %vm519, %v721
        %755 = vst.msk [vmem:[%s739 + $0xf0] sm:$0xff] %vm519, %v722
        %756 = vst.msk [vmem:[%s739 + $0x108] sm:$0xff] %vm519, %v723
        %757 = vst.msk [vmem:[%s739 + $0x110] sm:$0xff] %vm519, %v724
        %758 = vst.msk [vmem:[%s739 + $0x128] sm:$0xff] %vm519, %v725
        %759 = vst.msk [vmem:[%s739 + $0x130] sm:$0xff] %vm519, %v726
        %760 = vst.msk [vmem:[%s739 + $0x148] sm:$0xff] %vm519, %v727
        %761 = vst.msk [vmem:[%s739 + $0x150] sm:$0xff] %vm519, %v728
        %762 = vst.msk [vmem:[%s739 + $0x168] sm:$0xff] %vm519, %v729
        %763 = vst.msk [vmem:[%s739 + $0x170] sm:$0xff] %vm519, %v730
        %764 = vst.msk [vmem:[%s739 + $0x188] sm:$0xff] %vm519, %v731
        %765 = vst.msk [vmem:[%s739 + $0x190] sm:$0xff] %vm519, %v732
        %766 = vst.msk [vmem:[%s739 + $0x1a8] sm:$0xff] %vm519, %v733
        %767 = vst.msk [vmem:[%s739 + $0x1b0] sm:$0xff] %vm519, %v734
        %768 = vst.msk [vmem:[%s739 + $0x1c8] sm:$0xff] %vm519, %v735
        %769 = vst.msk [vmem:[%s739 + $0x1d0] sm:$0xff] %vm519, %v736
        %770 = vst.msk [vmem:[%s739 + $0x1e8] sm:$0xff] %vm519, %v737
        %771 = vst.msk [vmem:[%s739 + $0x1f0] sm:$0xff] %vm519, %v738
        %v772 = vld [vmem:[#allocation2] sm:$0xff]
        %v773 = vld [vmem:[#allocation2 + $0x8] sm:$0xff]
        %v774 = vld [vmem:[#allocation2 + $0x10] sm:$0xff]
        %v775 = vld [vmem:[#allocation2 + $0x18] sm:$0x1]
        %v776 = vld [vmem:[#allocation2 + $0x20] sm:$0xff]
        %v777 = vld [vmem:[#allocation2 + $0x28] sm:$0xff]
        %v778 = vld [vmem:[#allocation2 + $0x30] sm:$0xff]
        %v779 = vld [vmem:[#allocation2 + $0x38] sm:$0x1]
        %v780 = vld [vmem:[#allocation2 + $0x40] sm:$0xff]
        %v781 = vld [vmem:[#allocation2 + $0x48] sm:$0xff]
        %v782 = vld [vmem:[#allocation2 + $0x50] sm:$0xff]
        %v783 = vld [vmem:[#allocation2 + $0x58] sm:$0x1]
        %v784 = vld [vmem:[#allocation2 + $0x60] sm:$0xff]
        %v785 = vld [vmem:[#allocation2 + $0x68] sm:$0xff]
        %v786 = vld [vmem:[#allocation2 + $0x70] sm:$0xff]
        %v787 = vld [vmem:[#allocation2 + $0x78] sm:$0x1]
        %v788 = vld [vmem:[#allocation2 + $0x80] sm:$0xff]
        %v789 = vld [vmem:[#allocation2 + $0x88] sm:$0xff]
        %v790 = vld [vmem:[#allocation2 + $0x90] sm:$0xff]
        %v791 = vld [vmem:[#allocation2 + $0x98] sm:$0x1]
        %v792 = vld [vmem:[#allocation2 + $0xa0] sm:$0xff]
        %v793 = vld [vmem:[#allocation2 + $0xa8] sm:$0xff]
        %v794 = vld [vmem:[#allocation2 + $0xb0] sm:$0xff]
        %v795 = vld [vmem:[#allocation2 + $0xb8] sm:$0x1]
        %v796 = vld [vmem:[#allocation2 + $0xc0] sm:$0xff]
        %v797 = vld [vmem:[#allocation2 + $0xc8] sm:$0xff]
        %v798 = vld [vmem:[#allocation2 + $0xd0] sm:$0xff]
        %v799 = vld [vmem:[#allocation2 + $0xd8] sm:$0x1]
        %v800 = vld [vmem:[#allocation2 + $0xe0] sm:$0xff]
        %v801 = vld [vmem:[#allocation2 + $0xe8] sm:$0xff]
        %v802 = vld [vmem:[#allocation2 + $0xf0] sm:$0xff]
        %v803 = vld [vmem:[#allocation2 + $0xf8] sm:$0x1]
        %v804 = vld [vmem:[#allocation2 + $0x100] sm:$0xff]
        %v805 = vld [vmem:[#allocation2 + $0x108] sm:$0xff]
        %v806 = vld [vmem:[#allocation2 + $0x110] sm:$0xff]
        %v807 = vld [vmem:[#allocation2 + $0x118] sm:$0x1]
        %v808 = vld [vmem:[#allocation2 + $0x120] sm:$0xff]
        %v809 = vld [vmem:[#allocation2 + $0x128] sm:$0xff]
        %v810 = vld [vmem:[#allocation2 + $0x130] sm:$0xff]
        %v811 = vld [vmem:[#allocation2 + $0x138] sm:$0x1]
        %v812 = vld [vmem:[#allocation2 + $0x140] sm:$0xff]
        %v813 = vld [vmem:[#allocation2 + $0x148] sm:$0xff]
        %v814 = vld [vmem:[#allocation2 + $0x150] sm:$0xff]
        %v815 = vld [vmem:[#allocation2 + $0x158] sm:$0x1]
        %v816 = vld [vmem:[#allocation2 + $0x160] sm:$0xff]
        %v817 = vld [vmem:[#allocation2 + $0x168] sm:$0xff]
        %v818 = vld [vmem:[#allocation2 + $0x170] sm:$0xff]
        %v819 = vld [vmem:[#allocation2 + $0x178] sm:$0x1]
        %v820 = vld [vmem:[#allocation2 + $0x180] sm:$0xff]
        %v821 = vld [vmem:[#allocation2 + $0x188] sm:$0xff]
        %v822 = vld [vmem:[#allocation2 + $0x190] sm:$0xff]
        %v823 = vld [vmem:[#allocation2 + $0x198] sm:$0x1]
        %v824 = vld [vmem:[#allocation2 + $0x1a0] sm:$0xff]
        %v825 = vld [vmem:[#allocation2 + $0x1a8] sm:$0xff]
        %v826 = vld [vmem:[#allocation2 + $0x1b0] sm:$0xff]
        %v827 = vld [vmem:[#allocation2 + $0x1b8] sm:$0x1]
        %v828 = vld [vmem:[#allocation2 + $0x1c0] sm:$0xff]
        %v829 = vld [vmem:[#allocation2 + $0x1c8] sm:$0xff]
        %v830 = vld [vmem:[#allocation2 + $0x1d0] sm:$0xff]
        %v831 = vld [vmem:[#allocation2 + $0x1d8] sm:$0x1]
        %v832 = vld [vmem:[#allocation2 + $0x1e0] sm:$0xff]
        %v833 = vld [vmem:[#allocation2 + $0x1e8] sm:$0xff]
        %v834 = vld [vmem:[#allocation2 + $0x1f0] sm:$0xff]
        %v835 = vld [vmem:[#allocation2 + $0x1f8] sm:$0x1]
        %v836 = vld [vmem:[#allocation2 + $0x200] sm:$0xff]
        %v837 = vld [vmem:[#allocation2 + $0x208] sm:$0xff]
        %v838 = vld [vmem:[#allocation2 + $0x210] sm:$0xff]
        %v839 = vld [vmem:[#allocation2 + $0x218] sm:$0x1]
        %v840 = vld [vmem:[#allocation2 + $0x220] sm:$0xff]
        %v841 = vld [vmem:[#allocation2 + $0x228] sm:$0xff]
        %v842 = vld [vmem:[#allocation2 + $0x230] sm:$0xff]
        %v843 = vld [vmem:[#allocation2 + $0x238] sm:$0x1]
        %vm892 = vcmask 1040384
        %v893 = vrot.slane %v772, 7
        %v894 = vrot.slane %v773, 7
        %v895 = vsel %vm892, %v893, %v894
        %v896 = vrot.slane %v774, 7
        %v897 = vsel %vm892, %v894, %v896
        %v898 = vrot.slane %v776, 7
        %v899 = vrot.slane %v777, 7
        %v900 = vsel %vm892, %v898, %v899
        %v901 = vrot.slane %v778, 7
        %v902 = vsel %vm892, %v899, %v901
        %v903 = vrot.slane %v780, 7
        %v904 = vrot.slane %v781, 7
        %v905 = vsel %vm892, %v903, %v904
        %v906 = vrot.slane %v782, 7
        %v907 = vsel %vm892, %v904, %v906
        %v908 = vrot.slane %v784, 7
        %v909 = vrot.slane %v785, 7
        %v910 = vsel %vm892, %v908, %v909
        %v911 = vrot.slane %v786, 7
        %v912 = vsel %vm892, %v909, %v911
        %v913 = vrot.slane %v788, 7
        %v914 = vrot.slane %v789, 7
        %v915 = vsel %vm892, %v913, %v914
        %v916 = vrot.slane %v790, 7
        %v917 = vsel %vm892, %v914, %v916
        %v918 = vrot.slane %v792, 7
        %v919 = vrot.slane %v793, 7
        %v920 = vsel %vm892, %v918, %v919
        %v921 = vrot.slane %v794, 7
        %v922 = vsel %vm892, %v919, %v921
        %v923 = vrot.slane %v796, 7
        %v924 = vrot.slane %v797, 7
        %v925 = vsel %vm892, %v923, %v924
        %v926 = vrot.slane %v798, 7
        %v927 = vsel %vm892, %v924, %v926
        %v928 = vrot.slane %v800, 7
        %v929 = vrot.slane %v801, 7
        %v930 = vsel %vm892, %v928, %v929
        %v931 = vrot.slane %v802, 7
        %v932 = vsel %vm892, %v929, %v931
        %v933 = vrot.slane %v804, 7
        %v934 = vrot.slane %v805, 7
        %v935 = vsel %vm892, %v933, %v934
        %v936 = vrot.slane %v806, 7
        %v937 = vsel %vm892, %v934, %v936
        %v938 = vrot.slane %v808, 7
        %v939 = vrot.slane %v809, 7
        %v940 = vsel %vm892, %v938, %v939
        %v941 = vrot.slane %v810, 7
        %v942 = vsel %vm892, %v939, %v941
        %v943 = vrot.slane %v812, 7
        %v944 = vrot.slane %v813, 7
        %v945 = vsel %vm892, %v943, %v944
        %v946 = vrot.slane %v814, 7
        %v947 = vsel %vm892, %v944, %v946
        %v948 = vrot.slane %v816, 7
        %v949 = vrot.slane %v817, 7
        %v950 = vsel %vm892, %v948, %v949
        %v951 = vrot.slane %v818, 7
        %v952 = vsel %vm892, %v949, %v951
        %v953 = vrot.slane %v820, 7
        %v954 = vrot.slane %v821, 7
        %v955 = vsel %vm892, %v953, %v954
        %v956 = vrot.slane %v822, 7
        %v957 = vsel %vm892, %v954, %v956
        %v958 = vrot.slane %v824, 7
        %v959 = vrot.slane %v825, 7
        %v960 = vsel %vm892, %v958, %v959
        %v961 = vrot.slane %v826, 7
        %v962 = vsel %vm892, %v959, %v961
        %v963 = vrot.slane %v828, 7
        %v964 = vrot.slane %v829, 7
        %v965 = vsel %vm892, %v963, %v964
        %v966 = vrot.slane %v830, 7
        %v967 = vsel %vm892, %v964, %v966
        %v968 = vrot.slane %v832, 7
        %v969 = vrot.slane %v833, 7
        %v970 = vsel %vm892, %v968, %v969
        %v971 = vrot.slane %v834, 7
        %v972 = vsel %vm892, %v969, %v971
        %vm1021 = vcmask 1046528
        %v1022 = vrot.slane %v773, 1
        %v1023 = vrot.slane %v774, 1
        %v1024 = vsel %vm1021, %v1022, %v1023
        %v1025 = vrot.slane %v775, 1
        %v1026 = vsel %vm1021, %v1023, %v1025
        %v1027 = vrot.slane %v777, 1
        %v1028 = vrot.slane %v778, 1
        %v1029 = vsel %vm1021, %v1027, %v1028
        %v1030 = vrot.slane %v779, 1
        %v1031 = vsel %vm1021, %v1028, %v1030
        %v1032 = vrot.slane %v781, 1
        %v1033 = vrot.slane %v782, 1
        %v1034 = vsel %vm1021, %v1032, %v1033
        %v1035 = vrot.slane %v783, 1
        %v1036 = vsel %vm1021, %v1033, %v1035
        %v1037 = vrot.slane %v785, 1
        %v1038 = vrot.slane %v786, 1
        %v1039 = vsel %vm1021, %v1037, %v1038
        %v1040 = vrot.slane %v787, 1
        %v1041 = vsel %vm1021, %v1038, %v1040
        %v1042 = vrot.slane %v789, 1
        %v1043 = vrot.slane %v790, 1
        %v1044 = vsel %vm1021, %v1042, %v1043
        %v1045 = vrot.slane %v791, 1
        %v1046 = vsel %vm1021, %v1043, %v1045
        %v1047 = vrot.slane %v793, 1
        %v1048 = vrot.slane %v794, 1
        %v1049 = vsel %vm1021, %v1047, %v1048
        %v1050 = vrot.slane %v795, 1
        %v1051 = vsel %vm1021, %v1048, %v1050
        %v1052 = vrot.slane %v797, 1
        %v1053 = vrot.slane %v798, 1
        %v1054 = vsel %vm1021, %v1052, %v1053
        %v1055 = vrot.slane %v799, 1
        %v1056 = vsel %vm1021, %v1053, %v1055
        %v1057 = vrot.slane %v801, 1
        %v1058 = vrot.slane %v802, 1
        %v1059 = vsel %vm1021, %v1057, %v1058
        %v1060 = vrot.slane %v803, 1
        %v1061 = vsel %vm1021, %v1058, %v1060
        %v1062 = vrot.slane %v805, 1
        %v1063 = vrot.slane %v806, 1
        %v1064 = vsel %vm1021, %v1062, %v1063
        %v1065 = vrot.slane %v807, 1
        %v1066 = vsel %vm1021, %v1063, %v1065
        %v1067 = vrot.slane %v809, 1
        %v1068 = vrot.slane %v810, 1
        %v1069 = vsel %vm1021, %v1067, %v1068
        %v1070 = vrot.slane %v811, 1
        %v1071 = vsel %vm1021, %v1068, %v1070
        %v1072 = vrot.slane %v813, 1
        %v1073 = vrot.slane %v814, 1
        %v1074 = vsel %vm1021, %v1072, %v1073
        %v1075 = vrot.slane %v815, 1
        %v1076 = vsel %vm1021, %v1073, %v1075
        %v1077 = vrot.slane %v817, 1
        %v1078 = vrot.slane %v818, 1
        %v1079 = vsel %vm1021, %v1077, %v1078
        %v1080 = vrot.slane %v819, 1
        %v1081 = vsel %vm1021, %v1078, %v1080
        %v1082 = vrot.slane %v821, 1
        %v1083 = vrot.slane %v822, 1
        %v1084 = vsel %vm1021, %v1082, %v1083
        %v1085 = vrot.slane %v823, 1
        %v1086 = vsel %vm1021, %v1083, %v1085
        %v1087 = vrot.slane %v825, 1
        %v1088 = vrot.slane %v826, 1
        %v1089 = vsel %vm1021, %v1087, %v1088
        %v1090 = vrot.slane %v827, 1
        %v1091 = vsel %vm1021, %v1088, %v1090
        %v1092 = vrot.slane %v829, 1
        %v1093 = vrot.slane %v830, 1
        %v1094 = vsel %vm1021, %v1092, %v1093
        %v1095 = vrot.slane %v831, 1
        %v1096 = vsel %vm1021, %v1093, %v1095
        %v1097 = vrot.slane %v833, 1
        %v1098 = vrot.slane %v834, 1
        %v1099 = vsel %vm1021, %v1097, %v1098
        %v1100 = vrot.slane %v835, 1
        %v1101 = vsel %vm1021, %v1098, %v1100
        %v1105 = vrot.slane %v836, 7
        %v1106 = vrot.slane %v837, 7
        %v1107 = vsel %vm892, %v1105, %v1106
        %v1108 = vrot.slane %v838, 7
        %v1109 = vsel %vm892, %v1106, %v1108
        %v1111 = vrot.slane %v837, 1
        %v1112 = vrot.slane %v838, 1
        %v1113 = vsel %vm1021, %v1111, %v1112
        %v1114 = vrot.slane %v839, 1
        %v1115 = vsel %vm1021, %v1112, %v1114
        %v1119 = vrot.slane %v840, 7
        %v1120 = vrot.slane %v841, 7
        %v1121 = vsel %vm892, %v1119, %v1120
        %v1122 = vrot.slane %v842, 7
        %v1123 = vsel %vm892, %v1120, %v1122
        %v1125 = vrot.slane %v841, 1
        %v1126 = vrot.slane %v842, 1
        %v1127 = vsel %vm1021, %v1125, %v1126
        %v1128 = vrot.slane %v843, 1
        %v1129 = vsel %vm1021, %v1126, %v1128
        %1130 = vrot.lane.b32.xlu0 %v773, 4
        %v1131 = vpop.permute.xlu0 %1130
        %1132 = vrot.lane.b32.xlu0 %v774, 4
        %v1133 = vpop.permute.xlu0 %1132
        %1134 = vrot.lane.b32.xlu0 %v777, 4
        %v1135 = vpop.permute.xlu0 %1134
        %1136 = vrot.lane.b32.xlu0 %v778, 4
        %v1137 = vpop.permute.xlu0 %1136
        %1138 = vrot.lane.b32.xlu0 %v781, 4
        %v1139 = vpop.permute.xlu0 %1138
        %1140 = vrot.lane.b32.xlu0 %v782, 4
        %v1141 = vpop.permute.xlu0 %1140
        %1142 = vrot.lane.b32.xlu0 %v785, 4
        %v1143 = vpop.permute.xlu0 %1142
        %1144 = vrot.lane.b32.xlu0 %v786, 4
        %v1145 = vpop.permute.xlu0 %1144
        %1146 = vrot.lane.b32.xlu0 %v789, 4
        %v1147 = vpop.permute.xlu0 %1146
        %1148 = vrot.lane.b32.xlu0 %v790, 4
        %v1149 = vpop.permute.xlu0 %1148
        %1150 = vrot.lane.b32.xlu0 %v793, 4
        %v1151 = vpop.permute.xlu0 %1150
        %1152 = vrot.lane.b32.xlu0 %v794, 4
        %v1153 = vpop.permute.xlu0 %1152
        %1154 = vrot.lane.b32.xlu0 %v797, 4
        %v1155 = vpop.permute.xlu0 %1154
        %1156 = vrot.lane.b32.xlu0 %v798, 4
        %v1157 = vpop.permute.xlu0 %1156
        %1158 = vrot.lane.b32.xlu0 %v801, 4
        %v1159 = vpop.permute.xlu0 %1158
        %1160 = vrot.lane.b32.xlu0 %v802, 4
        %v1161 = vpop.permute.xlu0 %1160
        %1162 = vrot.lane.b32.xlu0 %v805, 4
        %v1163 = vpop.permute.xlu0 %1162
        %1164 = vrot.lane.b32.xlu0 %v806, 4
        %v1165 = vpop.permute.xlu0 %1164
        %1166 = vrot.lane.b32.xlu0 %v809, 4
        %v1167 = vpop.permute.xlu0 %1166
        %1168 = vrot.lane.b32.xlu0 %v810, 4
        %v1169 = vpop.permute.xlu0 %1168
        %1170 = vrot.lane.b32.xlu0 %v813, 4
        %v1171 = vpop.permute.xlu0 %1170
        %1172 = vrot.lane.b32.xlu0 %v814, 4
        %v1173 = vpop.permute.xlu0 %1172
        %1174 = vrot.lane.b32.xlu0 %v817, 4
        %v1175 = vpop.permute.xlu0 %1174
        %1176 = vrot.lane.b32.xlu0 %v818, 4
        %v1177 = vpop.permute.xlu0 %1176
        %1178 = vrot.lane.b32.xlu0 %v821, 4
        %v1179 = vpop.permute.xlu0 %1178
        %1180 = vrot.lane.b32.xlu0 %v822, 4
        %v1181 = vpop.permute.xlu0 %1180
        %1182 = vrot.lane.b32.xlu0 %v825, 4
        %v1183 = vpop.permute.xlu0 %1182
        %1184 = vrot.lane.b32.xlu0 %v826, 4
        %v1185 = vpop.permute.xlu0 %1184
        %1186 = vrot.lane.b32.xlu0 %v829, 4
        %v1187 = vpop.permute.xlu0 %1186
        %1188 = vrot.lane.b32.xlu0 %v830, 4
        %v1189 = vpop.permute.xlu0 %1188
        %1190 = vrot.lane.b32.xlu0 %v833, 4
        %v1191 = vpop.permute.xlu0 %1190
        %1192 = vrot.lane.b32.xlu0 %v834, 4
        %v1193 = vpop.permute.xlu0 %1192
        %1226 = vrot.lane.b32.xlu0 %v1024, 8
        %v1227 = vpop.permute.xlu0 %1226
        %1228 = vrot.lane.b32.xlu0 %v1026, 8
        %v1229 = vpop.permute.xlu0 %1228
        %1230 = vrot.lane.b32.xlu0 %v1029, 8
        %v1231 = vpop.permute.xlu0 %1230
        %1232 = vrot.lane.b32.xlu0 %v1031, 8
        %v1233 = vpop.permute.xlu0 %1232
        %1234 = vrot.lane.b32.xlu0 %v1034, 8
        %v1235 = vpop.permute.xlu0 %1234
        %1236 = vrot.lane.b32.xlu0 %v1036, 8
        %v1237 = vpop.permute.xlu0 %1236
        %1238 = vrot.lane.b32.xlu0 %v1039, 8
        %v1239 = vpop.permute.xlu0 %1238
        %1240 = vrot.lane.b32.xlu0 %v1041, 8
        %v1241 = vpop.permute.xlu0 %1240
        %1242 = vrot.lane.b32.xlu0 %v1044, 8
        %v1243 = vpop.permute.xlu0 %1242
        %1244 = vrot.lane.b32.xlu0 %v1046, 8
        %v1245 = vpop.permute.xlu0 %1244
        %1246 = vrot.lane.b32.xlu0 %v1049, 8
        %v1247 = vpop.permute.xlu0 %1246
        %1248 = vrot.lane.b32.xlu0 %v1051, 8
        %v1249 = vpop.permute.xlu0 %1248
        %1250 = vrot.lane.b32.xlu0 %v1054, 8
        %v1251 = vpop.permute.xlu0 %1250
        %1252 = vrot.lane.b32.xlu0 %v1056, 8
        %v1253 = vpop.permute.xlu0 %1252
        %1254 = vrot.lane.b32.xlu0 %v1059, 8
        %v1255 = vpop.permute.xlu0 %1254
        %1256 = vrot.lane.b32.xlu0 %v1061, 8
        %v1257 = vpop.permute.xlu0 %1256
        %1258 = vrot.lane.b32.xlu0 %v1064, 8
        %v1259 = vpop.permute.xlu0 %1258
        %1260 = vrot.lane.b32.xlu0 %v1066, 8
        %v1261 = vpop.permute.xlu0 %1260
        %1262 = vrot.lane.b32.xlu0 %v1069, 8
        %v1263 = vpop.permute.xlu0 %1262
        %1264 = vrot.lane.b32.xlu0 %v1071, 8
        %v1265 = vpop.permute.xlu0 %1264
        %1266 = vrot.lane.b32.xlu0 %v1074, 8
        %v1267 = vpop.permute.xlu0 %1266
        %1268 = vrot.lane.b32.xlu0 %v1076, 8
        %v1269 = vpop.permute.xlu0 %1268
        %1270 = vrot.lane.b32.xlu0 %v1079, 8
        %v1271 = vpop.permute.xlu0 %1270
        %1272 = vrot.lane.b32.xlu0 %v1081, 8
        %v1273 = vpop.permute.xlu0 %1272
        %1274 = vrot.lane.b32.xlu0 %v1084, 8
        %v1275 = vpop.permute.xlu0 %1274
        %1276 = vrot.lane.b32.xlu0 %v1086, 8
        %v1277 = vpop.permute.xlu0 %1276
        %1278 = vrot.lane.b32.xlu0 %v1089, 8
        %v1279 = vpop.permute.xlu0 %1278
        %1280 = vrot.lane.b32.xlu0 %v1091, 8
        %v1281 = vpop.permute.xlu0 %1280
        %1282 = vrot.lane.b32.xlu0 %v1094, 8
        %v1283 = vpop.permute.xlu0 %1282
        %1284 = vrot.lane.b32.xlu0 %v1096, 8
        %v1285 = vpop.permute.xlu0 %1284
        %1286 = vrot.lane.b32.xlu0 %v1099, 8
        %v1287 = vpop.permute.xlu0 %1286
        %1288 = vrot.lane.b32.xlu0 %v1101, 8
        %v1289 = vpop.permute.xlu0 %1288
        %1322 = vrot.lane.b32.xlu0 %v900, 12
        %v1323 = vpop.permute.xlu0 %1322
        %1324 = vrot.lane.b32.xlu0 %v902, 12
        %v1325 = vpop.permute.xlu0 %1324
        %1326 = vrot.lane.b32.xlu0 %v905, 12
        %v1327 = vpop.permute.xlu0 %1326
        %1328 = vrot.lane.b32.xlu0 %v907, 12
        %v1329 = vpop.permute.xlu0 %1328
        %1330 = vrot.lane.b32.xlu0 %v910, 12
        %v1331 = vpop.permute.xlu0 %1330
        %1332 = vrot.lane.b32.xlu0 %v912, 12
        %v1333 = vpop.permute.xlu0 %1332
        %1334 = vrot.lane.b32.xlu0 %v915, 12
        %v1335 = vpop.permute.xlu0 %1334
        %1336 = vrot.lane.b32.xlu0 %v917, 12
        %v1337 = vpop.permute.xlu0 %1336
        %1338 = vrot.lane.b32.xlu0 %v920, 12
        %v1339 = vpop.permute.xlu0 %1338
        %1340 = vrot.lane.b32.xlu0 %v922, 12
        %v1341 = vpop.permute.xlu0 %1340
        %1342 = vrot.lane.b32.xlu0 %v925, 12
        %v1343 = vpop.permute.xlu0 %1342
        %1344 = vrot.lane.b32.xlu0 %v927, 12
        %v1345 = vpop.permute.xlu0 %1344
        %1346 = vrot.lane.b32.xlu0 %v930, 12
        %v1347 = vpop.permute.xlu0 %1346
        %1348 = vrot.lane.b32.xlu0 %v932, 12
        %v1349 = vpop.permute.xlu0 %1348
        %1350 = vrot.lane.b32.xlu0 %v935, 12
        %v1351 = vpop.permute.xlu0 %1350
        %1352 = vrot.lane.b32.xlu0 %v937, 12
        %v1353 = vpop.permute.xlu0 %1352
        %1354 = vrot.lane.b32.xlu0 %v940, 12
        %v1355 = vpop.permute.xlu0 %1354
        %1356 = vrot.lane.b32.xlu0 %v942, 12
        %v1357 = vpop.permute.xlu0 %1356
        %1358 = vrot.lane.b32.xlu0 %v945, 12
        %v1359 = vpop.permute.xlu0 %1358
        %1360 = vrot.lane.b32.xlu0 %v947, 12
        %v1361 = vpop.permute.xlu0 %1360
        %1362 = vrot.lane.b32.xlu0 %v950, 12
        %v1363 = vpop.permute.xlu0 %1362
        %1364 = vrot.lane.b32.xlu0 %v952, 12
        %v1365 = vpop.permute.xlu0 %1364
        %1366 = vrot.lane.b32.xlu0 %v955, 12
        %v1367 = vpop.permute.xlu0 %1366
        %1368 = vrot.lane.b32.xlu0 %v957, 12
        %v1369 = vpop.permute.xlu0 %1368
        %1370 = vrot.lane.b32.xlu0 %v960, 12
        %v1371 = vpop.permute.xlu0 %1370
        %1372 = vrot.lane.b32.xlu0 %v962, 12
        %v1373 = vpop.permute.xlu0 %1372
        %1374 = vrot.lane.b32.xlu0 %v965, 12
        %v1375 = vpop.permute.xlu0 %1374
        %1376 = vrot.lane.b32.xlu0 %v967, 12
        %v1377 = vpop.permute.xlu0 %1376
        %1378 = vrot.lane.b32.xlu0 %v970, 12
        %v1379 = vpop.permute.xlu0 %1378
        %1380 = vrot.lane.b32.xlu0 %v972, 12
        %v1381 = vpop.permute.xlu0 %1380
        %1382 = vrot.lane.b32.xlu0 %v1107, 12
        %v1383 = vpop.permute.xlu0 %1382
        %1384 = vrot.lane.b32.xlu0 %v1109, 12
        %v1385 = vpop.permute.xlu0 %1384
        %1418 = vrot.lane.b32.xlu0 %v777, 16
        %v1419 = vpop.permute.xlu0 %1418
        %1420 = vrot.lane.b32.xlu0 %v778, 16
        %v1421 = vpop.permute.xlu0 %1420
        %1422 = vrot.lane.b32.xlu0 %v781, 16
        %v1423 = vpop.permute.xlu0 %1422
        %1424 = vrot.lane.b32.xlu0 %v782, 16
        %v1425 = vpop.permute.xlu0 %1424
        %1426 = vrot.lane.b32.xlu0 %v785, 16
        %v1427 = vpop.permute.xlu0 %1426
        %1428 = vrot.lane.b32.xlu0 %v786, 16
        %v1429 = vpop.permute.xlu0 %1428
        %1430 = vrot.lane.b32.xlu0 %v789, 16
        %v1431 = vpop.permute.xlu0 %1430
        %1432 = vrot.lane.b32.xlu0 %v790, 16
        %v1433 = vpop.permute.xlu0 %1432
        %1434 = vrot.lane.b32.xlu0 %v793, 16
        %v1435 = vpop.permute.xlu0 %1434
        %1436 = vrot.lane.b32.xlu0 %v794, 16
        %v1437 = vpop.permute.xlu0 %1436
        %1438 = vrot.lane.b32.xlu0 %v797, 16
        %v1439 = vpop.permute.xlu0 %1438
        %1440 = vrot.lane.b32.xlu0 %v798, 16
        %v1441 = vpop.permute.xlu0 %1440
        %1442 = vrot.lane.b32.xlu0 %v801, 16
        %v1443 = vpop.permute.xlu0 %1442
        %1444 = vrot.lane.b32.xlu0 %v802, 16
        %v1445 = vpop.permute.xlu0 %1444
        %1446 = vrot.lane.b32.xlu0 %v805, 16
        %v1447 = vpop.permute.xlu0 %1446
        %1448 = vrot.lane.b32.xlu0 %v806, 16
        %v1449 = vpop.permute.xlu0 %1448
        %1450 = vrot.lane.b32.xlu0 %v809, 16
        %v1451 = vpop.permute.xlu0 %1450
        %1452 = vrot.lane.b32.xlu0 %v810, 16
        %v1453 = vpop.permute.xlu0 %1452
        %1454 = vrot.lane.b32.xlu0 %v813, 16
        %v1455 = vpop.permute.xlu0 %1454
        %1456 = vrot.lane.b32.xlu0 %v814, 16
        %v1457 = vpop.permute.xlu0 %1456
        %1458 = vrot.lane.b32.xlu0 %v817, 16
        %v1459 = vpop.permute.xlu0 %1458
        %1460 = vrot.lane.b32.xlu0 %v818, 16
        %v1461 = vpop.permute.xlu0 %1460
        %1462 = vrot.lane.b32.xlu0 %v821, 16
        %v1463 = vpop.permute.xlu0 %1462
        %1464 = vrot.lane.b32.xlu0 %v822, 16
        %v1465 = vpop.permute.xlu0 %1464
        %1466 = vrot.lane.b32.xlu0 %v825, 16
        %v1467 = vpop.permute.xlu0 %1466
        %1468 = vrot.lane.b32.xlu0 %v826, 16
        %v1469 = vpop.permute.xlu0 %1468
        %1470 = vrot.lane.b32.xlu0 %v829, 16
        %v1471 = vpop.permute.xlu0 %1470
        %1472 = vrot.lane.b32.xlu0 %v830, 16
        %v1473 = vpop.permute.xlu0 %1472
        %1474 = vrot.lane.b32.xlu0 %v833, 16
        %v1475 = vpop.permute.xlu0 %1474
        %1476 = vrot.lane.b32.xlu0 %v834, 16
        %v1477 = vpop.permute.xlu0 %1476
        %1478 = vrot.lane.b32.xlu0 %v837, 16
        %v1479 = vpop.permute.xlu0 %1478
        %1480 = vrot.lane.b32.xlu0 %v838, 16
        %v1481 = vpop.permute.xlu0 %1480
        %1514 = vrot.lane.b32.xlu0 %v1029, 20
        %v1515 = vpop.permute.xlu0 %1514
        %1516 = vrot.lane.b32.xlu0 %v1031, 20
        %v1517 = vpop.permute.xlu0 %1516
        %1518 = vrot.lane.b32.xlu0 %v1034, 20
        %v1519 = vpop.permute.xlu0 %1518
        %1520 = vrot.lane.b32.xlu0 %v1036, 20
        %v1521 = vpop.permute.xlu0 %1520
        %1522 = vrot.lane.b32.xlu0 %v1039, 20
        %v1523 = vpop.permute.xlu0 %1522
        %1524 = vrot.lane.b32.xlu0 %v1041, 20
        %v1525 = vpop.permute.xlu0 %1524
        %1526 = vrot.lane.b32.xlu0 %v1044, 20
        %v1527 = vpop.permute.xlu0 %1526
        %1528 = vrot.lane.b32.xlu0 %v1046, 20
        %v1529 = vpop.permute.xlu0 %1528
        %1530 = vrot.lane.b32.xlu0 %v1049, 20
        %v1531 = vpop.permute.xlu0 %1530
        %1532 = vrot.lane.b32.xlu0 %v1051, 20
        %v1533 = vpop.permute.xlu0 %1532
        %1534 = vrot.lane.b32.xlu0 %v1054, 20
        %v1535 = vpop.permute.xlu0 %1534
        %1536 = vrot.lane.b32.xlu0 %v1056, 20
        %v1537 = vpop.permute.xlu0 %1536
        %1538 = vrot.lane.b32.xlu0 %v1059, 20
        %v1539 = vpop.permute.xlu0 %1538
        %1540 = vrot.lane.b32.xlu0 %v1061, 20
        %v1541 = vpop.permute.xlu0 %1540
        %1542 = vrot.lane.b32.xlu0 %v1064, 20
        %v1543 = vpop.permute.xlu0 %1542
        %1544 = vrot.lane.b32.xlu0 %v1066, 20
        %v1545 = vpop.permute.xlu0 %1544
        %1546 = vrot.lane.b32.xlu0 %v1069, 20
        %v1547 = vpop.permute.xlu0 %1546
        %1548 = vrot.lane.b32.xlu0 %v1071, 20
        %v1549 = vpop.permute.xlu0 %1548
        %1550 = vrot.lane.b32.xlu0 %v1074, 20
        %v1551 = vpop.permute.xlu0 %1550
        %1552 = vrot.lane.b32.xlu0 %v1076, 20
        %v1553 = vpop.permute.xlu0 %1552
        %1554 = vrot.lane.b32.xlu0 %v1079, 20
        %v1555 = vpop.permute.xlu0 %1554
        %1556 = vrot.lane.b32.xlu0 %v1081, 20
        %v1557 = vpop.permute.xlu0 %1556
        %1558 = vrot.lane.b32.xlu0 %v1084, 20
        %v1559 = vpop.permute.xlu0 %1558
        %1560 = vrot.lane.b32.xlu0 %v1086, 20
        %v1561 = vpop.permute.xlu0 %1560
        %1562 = vrot.lane.b32.xlu0 %v1089, 20
        %v1563 = vpop.permute.xlu0 %1562
        %1564 = vrot.lane.b32.xlu0 %v1091, 20
        %v1565 = vpop.permute.xlu0 %1564
        %1566 = vrot.lane.b32.xlu0 %v1094, 20
        %v1567 = vpop.permute.xlu0 %1566
        %1568 = vrot.lane.b32.xlu0 %v1096, 20
        %v1569 = vpop.permute.xlu0 %1568
        %1570 = vrot.lane.b32.xlu0 %v1099, 20
        %v1571 = vpop.permute.xlu0 %1570
        %1572 = vrot.lane.b32.xlu0 %v1101, 20
        %v1573 = vpop.permute.xlu0 %1572
        %1574 = vrot.lane.b32.xlu0 %v1113, 20
        %v1575 = vpop.permute.xlu0 %1574
        %1576 = vrot.lane.b32.xlu0 %v1115, 20
        %v1577 = vpop.permute.xlu0 %1576
        %1610 = vrot.lane.b32.xlu0 %v905, 24
        %v1611 = vpop.permute.xlu0 %1610
        %1612 = vrot.lane.b32.xlu0 %v907, 24
        %v1613 = vpop.permute.xlu0 %1612
        %1614 = vrot.lane.b32.xlu0 %v910, 24
        %v1615 = vpop.permute.xlu0 %1614
        %1616 = vrot.lane.b32.xlu0 %v912, 24
        %v1617 = vpop.permute.xlu0 %1616
        %1618 = vrot.lane.b32.xlu0 %v915, 24
        %v1619 = vpop.permute.xlu0 %1618
        %1620 = vrot.lane.b32.xlu0 %v917, 24
        %v1621 = vpop.permute.xlu0 %1620
        %1622 = vrot.lane.b32.xlu0 %v920, 24
        %v1623 = vpop.permute.xlu0 %1622
        %1624 = vrot.lane.b32.xlu0 %v922, 24
        %v1625 = vpop.permute.xlu0 %1624
        %1626 = vrot.lane.b32.xlu0 %v925, 24
        %v1627 = vpop.permute.xlu0 %1626
        %1628 = vrot.lane.b32.xlu0 %v927, 24
        %v1629 = vpop.permute.xlu0 %1628
        %1630 = vrot.lane.b32.xlu0 %v930, 24
        %v1631 = vpop.permute.xlu0 %1630
        %1632 = vrot.lane.b32.xlu0 %v932, 24
        %v1633 = vpop.permute.xlu0 %1632
        %1634 = vrot.lane.b32.xlu0 %v935, 24
        %v1635 = vpop.permute.xlu0 %1634
        %1636 = vrot.lane.b32.xlu0 %v937, 24
        %v1637 = vpop.permute.xlu0 %1636
        %1638 = vrot.lane.b32.xlu0 %v940, 24
        %v1639 = vpop.permute.xlu0 %1638
        %1640 = vrot.lane.b32.xlu0 %v942, 24
        %v1641 = vpop.permute.xlu0 %1640
        %1642 = vrot.lane.b32.xlu0 %v945, 24
        %v1643 = vpop.permute.xlu0 %1642
        %1644 = vrot.lane.b32.xlu0 %v947, 24
        %v1645 = vpop.permute.xlu0 %1644
        %1646 = vrot.lane.b32.xlu0 %v950, 24
        %v1647 = vpop.permute.xlu0 %1646
        %1648 = vrot.lane.b32.xlu0 %v952, 24
        %v1649 = vpop.permute.xlu0 %1648
        %1650 = vrot.lane.b32.xlu0 %v955, 24
        %v1651 = vpop.permute.xlu0 %1650
        %1652 = vrot.lane.b32.xlu0 %v957, 24
        %v1653 = vpop.permute.xlu0 %1652
        %1654 = vrot.lane.b32.xlu0 %v960, 24
        %v1655 = vpop.permute.xlu0 %1654
        %1656 = vrot.lane.b32.xlu0 %v962, 24
        %v1657 = vpop.permute.xlu0 %1656
        %1658 = vrot.lane.b32.xlu0 %v965, 24
        %v1659 = vpop.permute.xlu0 %1658
        %1660 = vrot.lane.b32.xlu0 %v967, 24
        %v1661 = vpop.permute.xlu0 %1660
        %1662 = vrot.lane.b32.xlu0 %v970, 24
        %v1663 = vpop.permute.xlu0 %1662
        %1664 = vrot.lane.b32.xlu0 %v972, 24
        %v1665 = vpop.permute.xlu0 %1664
        %1666 = vrot.lane.b32.xlu0 %v1107, 24
        %v1667 = vpop.permute.xlu0 %1666
        %1668 = vrot.lane.b32.xlu0 %v1109, 24
        %v1669 = vpop.permute.xlu0 %1668
        %1670 = vrot.lane.b32.xlu0 %v1121, 24
        %v1671 = vpop.permute.xlu0 %1670
        %1672 = vrot.lane.b32.xlu0 %v1123, 24
        %v1673 = vpop.permute.xlu0 %1672
        %1706 = vrot.lane.b32.xlu0 %v781, 28
        %v1707 = vpop.permute.xlu0 %1706
        %1708 = vrot.lane.b32.xlu0 %v782, 28
        %v1709 = vpop.permute.xlu0 %1708
        %1710 = vrot.lane.b32.xlu0 %v785, 28
        %v1711 = vpop.permute.xlu0 %1710
        %1712 = vrot.lane.b32.xlu0 %v786, 28
        %v1713 = vpop.permute.xlu0 %1712
        %1714 = vrot.lane.b32.xlu0 %v789, 28
        %v1715 = vpop.permute.xlu0 %1714
        %1716 = vrot.lane.b32.xlu0 %v790, 28
        %v1717 = vpop.permute.xlu0 %1716
        %1718 = vrot.lane.b32.xlu0 %v793, 28
        %v1719 = vpop.permute.xlu0 %1718
        %1720 = vrot.lane.b32.xlu0 %v794, 28
        %v1721 = vpop.permute.xlu0 %1720
        %1722 = vrot.lane.b32.xlu0 %v797, 28
        %v1723 = vpop.permute.xlu0 %1722
        %1724 = vrot.lane.b32.xlu0 %v798, 28
        %v1725 = vpop.permute.xlu0 %1724
        %1726 = vrot.lane.b32.xlu0 %v801, 28
        %v1727 = vpop.permute.xlu0 %1726
        %1728 = vrot.lane.b32.xlu0 %v802, 28
        %v1729 = vpop.permute.xlu0 %1728
        %1730 = vrot.lane.b32.xlu0 %v805, 28
        %v1731 = vpop.permute.xlu0 %1730
        %1732 = vrot.lane.b32.xlu0 %v806, 28
        %v1733 = vpop.permute.xlu0 %1732
        %1734 = vrot.lane.b32.xlu0 %v809, 28
        %v1735 = vpop.permute.xlu0 %1734
        %1736 = vrot.lane.b32.xlu0 %v810, 28
        %v1737 = vpop.permute.xlu0 %1736
        %1738 = vrot.lane.b32.xlu0 %v813, 28
        %v1739 = vpop.permute.xlu0 %1738
        %1740 = vrot.lane.b32.xlu0 %v814, 28
        %v1741 = vpop.permute.xlu0 %1740
        %1742 = vrot.lane.b32.xlu0 %v817, 28
        %v1743 = vpop.permute.xlu0 %1742
        %1744 = vrot.lane.b32.xlu0 %v818, 28
        %v1745 = vpop.permute.xlu0 %1744
        %1746 = vrot.lane.b32.xlu0 %v821, 28
        %v1747 = vpop.permute.xlu0 %1746
        %1748 = vrot.lane.b32.xlu0 %v822, 28
        %v1749 = vpop.permute.xlu0 %1748
        %1750 = vrot.lane.b32.xlu0 %v825, 28
        %v1751 = vpop.permute.xlu0 %1750
        %1752 = vrot.lane.b32.xlu0 %v826, 28
        %v1753 = vpop.permute.xlu0 %1752
        %1754 = vrot.lane.b32.xlu0 %v829, 28
        %v1755 = vpop.permute.xlu0 %1754
        %1756 = vrot.lane.b32.xlu0 %v830, 28
        %v1757 = vpop.permute.xlu0 %1756
        %1758 = vrot.lane.b32.xlu0 %v833, 28
        %v1759 = vpop.permute.xlu0 %1758
        %1760 = vrot.lane.b32.xlu0 %v834, 28
        %v1761 = vpop.permute.xlu0 %1760
        %1762 = vrot.lane.b32.xlu0 %v837, 28
        %v1763 = vpop.permute.xlu0 %1762
        %1764 = vrot.lane.b32.xlu0 %v838, 28
        %v1765 = vpop.permute.xlu0 %1764
        %1766 = vrot.lane.b32.xlu0 %v841, 28
        %v1767 = vpop.permute.xlu0 %1766
        %1768 = vrot.lane.b32.xlu0 %v842, 28
        %v1769 = vpop.permute.xlu0 %1768
        %1802 = vrot.lane.b32.xlu0 %v1034, 32
        %v1803 = vpop.permute.xlu0 %1802
        %1804 = vrot.lane.b32.xlu0 %v1036, 32
        %v1805 = vpop.permute.xlu0 %1804
        %1806 = vrot.lane.b32.xlu0 %v1039, 32
        %v1807 = vpop.permute.xlu0 %1806
        %1808 = vrot.lane.b32.xlu0 %v1041, 32
        %v1809 = vpop.permute.xlu0 %1808
        %1810 = vrot.lane.b32.xlu0 %v1044, 32
        %v1811 = vpop.permute.xlu0 %1810
        %1812 = vrot.lane.b32.xlu0 %v1046, 32
        %v1813 = vpop.permute.xlu0 %1812
        %1814 = vrot.lane.b32.xlu0 %v1049, 32
        %v1815 = vpop.permute.xlu0 %1814
        %1816 = vrot.lane.b32.xlu0 %v1051, 32
        %v1817 = vpop.permute.xlu0 %1816
        %1818 = vrot.lane.b32.xlu0 %v1054, 32
        %v1819 = vpop.permute.xlu0 %1818
        %1820 = vrot.lane.b32.xlu0 %v1056, 32
        %v1821 = vpop.permute.xlu0 %1820
        %1822 = vrot.lane.b32.xlu0 %v1059, 32
        %v1823 = vpop.permute.xlu0 %1822
        %1824 = vrot.lane.b32.xlu0 %v1061, 32
        %v1825 = vpop.permute.xlu0 %1824
        %1826 = vrot.lane.b32.xlu0 %v1064, 32
        %v1827 = vpop.permute.xlu0 %1826
        %1828 = vrot.lane.b32.xlu0 %v1066, 32
        %v1829 = vpop.permute.xlu0 %1828
        %1830 = vrot.lane.b32.xlu0 %v1069, 32
        %v1831 = vpop.permute.xlu0 %1830
        %1832 = vrot.lane.b32.xlu0 %v1071, 32
        %v1833 = vpop.permute.xlu0 %1832
        %1834 = vrot.lane.b32.xlu0 %v1074, 32
        %v1835 = vpop.permute.xlu0 %1834
        %1836 = vrot.lane.b32.xlu0 %v1076, 32
        %v1837 = vpop.permute.xlu0 %1836
        %1838 = vrot.lane.b32.xlu0 %v1079, 32
        %v1839 = vpop.permute.xlu0 %1838
        %1840 = vrot.lane.b32.xlu0 %v1081, 32
        %v1841 = vpop.permute.xlu0 %1840
        %1842 = vrot.lane.b32.xlu0 %v1084, 32
        %v1843 = vpop.permute.xlu0 %1842
        %1844 = vrot.lane.b32.xlu0 %v1086, 32
        %v1845 = vpop.permute.xlu0 %1844
        %1846 = vrot.lane.b32.xlu0 %v1089, 32
        %v1847 = vpop.permute.xlu0 %1846
        %1848 = vrot.lane.b32.xlu0 %v1091, 32
        %v1849 = vpop.permute.xlu0 %1848
        %1850 = vrot.lane.b32.xlu0 %v1094, 32
        %v1851 = vpop.permute.xlu0 %1850
        %1852 = vrot.lane.b32.xlu0 %v1096, 32
        %v1853 = vpop.permute.xlu0 %1852
        %1854 = vrot.lane.b32.xlu0 %v1099, 32
        %v1855 = vpop.permute.xlu0 %1854
        %1856 = vrot.lane.b32.xlu0 %v1101, 32
        %v1857 = vpop.permute.xlu0 %1856
        %1858 = vrot.lane.b32.xlu0 %v1113, 32
        %v1859 = vpop.permute.xlu0 %1858
        %1860 = vrot.lane.b32.xlu0 %v1115, 32
        %v1861 = vpop.permute.xlu0 %1860
        %1862 = vrot.lane.b32.xlu0 %v1127, 32
        %v1863 = vpop.permute.xlu0 %1862
        %1864 = vrot.lane.b32.xlu0 %v1129, 32
        %v1865 = vpop.permute.xlu0 %1864
        %v1898 = vsel %vm519, %v895, %v1131
        %v1899 = vsel %vm519, %v897, %v1133
        %v1900 = vsel %vm519, %v900, %v1135
        %v1901 = vsel %vm519, %v902, %v1137
        %v1902 = vsel %vm519, %v905, %v1139
        %v1903 = vsel %vm519, %v907, %v1141
        %v1904 = vsel %vm519, %v910, %v1143
        %v1905 = vsel %vm519, %v912, %v1145
        %v1906 = vsel %vm519, %v915, %v1147
        %v1907 = vsel %vm519, %v917, %v1149
        %v1908 = vsel %vm519, %v920, %v1151
        %v1909 = vsel %vm519, %v922, %v1153
        %v1910 = vsel %vm519, %v925, %v1155
        %v1911 = vsel %vm519, %v927, %v1157
        %v1912 = vsel %vm519, %v930, %v1159
        %v1913 = vsel %vm519, %v932, %v1161
        %v1914 = vsel %vm519, %v935, %v1163
        %v1915 = vsel %vm519, %v937, %v1165
        %v1916 = vsel %vm519, %v940, %v1167
        %v1917 = vsel %vm519, %v942, %v1169
        %v1918 = vsel %vm519, %v945, %v1171
        %v1919 = vsel %vm519, %v947, %v1173
        %v1920 = vsel %vm519, %v950, %v1175
        %v1921 = vsel %vm519, %v952, %v1177
        %v1922 = vsel %vm519, %v955, %v1179
        %v1923 = vsel %vm519, %v957, %v1181
        %v1924 = vsel %vm519, %v960, %v1183
        %v1925 = vsel %vm519, %v962, %v1185
        %v1926 = vsel %vm519, %v965, %v1187
        %v1927 = vsel %vm519, %v967, %v1189
        %v1928 = vsel %vm519, %v970, %v1191
        %v1929 = vsel %vm519, %v972, %v1193
        %v1930 = vsel %vm660, %v1898, %v1227
        %v1931 = vsel %vm660, %v1899, %v1229
        %v1932 = vsel %vm660, %v1900, %v1231
        %v1933 = vsel %vm660, %v1901, %v1233
        %v1934 = vsel %vm660, %v1902, %v1235
        %v1935 = vsel %vm660, %v1903, %v1237
        %v1936 = vsel %vm660, %v1904, %v1239
        %v1937 = vsel %vm660, %v1905, %v1241
        %v1938 = vsel %vm660, %v1906, %v1243
        %v1939 = vsel %vm660, %v1907, %v1245
        %v1940 = vsel %vm660, %v1908, %v1247
        %v1941 = vsel %vm660, %v1909, %v1249
        %v1942 = vsel %vm660, %v1910, %v1251
        %v1943 = vsel %vm660, %v1911, %v1253
        %v1944 = vsel %vm660, %v1912, %v1255
        %v1945 = vsel %vm660, %v1913, %v1257
        %v1946 = vsel %vm660, %v1914, %v1259
        %v1947 = vsel %vm660, %v1915, %v1261
        %v1948 = vsel %vm660, %v1916, %v1263
        %v1949 = vsel %vm660, %v1917, %v1265
        %v1950 = vsel %vm660, %v1918, %v1267
        %v1951 = vsel %vm660, %v1919, %v1269
        %v1952 = vsel %vm660, %v1920, %v1271
        %v1953 = vsel %vm660, %v1921, %v1273
        %v1954 = vsel %vm660, %v1922, %v1275
        %v1955 = vsel %vm660, %v1923, %v1277
        %v1956 = vsel %vm660, %v1924, %v1279
        %v1957 = vsel %vm660, %v1925, %v1281
        %v1958 = vsel %vm660, %v1926, %v1283
        %v1959 = vsel %vm660, %v1927, %v1285
        %v1960 = vsel %vm660, %v1928, %v1287
        %v1961 = vsel %vm660, %v1929, %v1289
        %vm1962 = vcmask 97280
        %v1963 = vsel %vm1962, %v1930, %v1323
        %v1964 = vsel %vm1962, %v1931, %v1325
        %v1965 = vsel %vm1962, %v1932, %v1327
        %v1966 = vsel %vm1962, %v1933, %v1329
        %v1967 = vsel %vm1962, %v1934, %v1331
        %v1968 = vsel %vm1962, %v1935, %v1333
        %v1969 = vsel %vm1962, %v1936, %v1335
        %v1970 = vsel %vm1962, %v1937, %v1337
        %v1971 = vsel %vm1962, %v1938, %v1339
        %v1972 = vsel %vm1962, %v1939, %v1341
        %v1973 = vsel %vm1962, %v1940, %v1343
        %v1974 = vsel %vm1962, %v1941, %v1345
        %v1975 = vsel %vm1962, %v1942, %v1347
        %v1976 = vsel %vm1962, %v1943, %v1349
        %v1977 = vsel %vm1962, %v1944, %v1351
        %v1978 = vsel %vm1962, %v1945, %v1353
        %v1979 = vsel %vm1962, %v1946, %v1355
        %v1980 = vsel %vm1962, %v1947, %v1357
        %v1981 = vsel %vm1962, %v1948, %v1359
        %v1982 = vsel %vm1962, %v1949, %v1361
        %v1983 = vsel %vm1962, %v1950, %v1363
        %v1984 = vsel %vm1962, %v1951, %v1365
        %v1985 = vsel %vm1962, %v1952, %v1367
        %v1986 = vsel %vm1962, %v1953, %v1369
        %v1987 = vsel %vm1962, %v1954, %v1371
        %v1988 = vsel %vm1962, %v1955, %v1373
        %v1989 = vsel %vm1962, %v1956, %v1375
        %v1990 = vsel %vm1962, %v1957, %v1377
        %v1991 = vsel %vm1962, %v1958, %v1379
        %v1992 = vsel %vm1962, %v1959, %v1381
        %v1993 = vsel %vm1962, %v1960, %v1383
        %v1994 = vsel %vm1962, %v1961, %v1385
        %v1995 = vsel %vm613, %v1963, %v1419
        %v1996 = vsel %vm613, %v1964, %v1421
        %v1997 = vsel %vm613, %v1965, %v1423
        %v1998 = vsel %vm613, %v1966, %v1425
        %v1999 = vsel %vm613, %v1967, %v1427
        %v2000 = vsel %vm613, %v1968, %v1429
        %v2001 = vsel %vm613, %v1969, %v1431
        %v2002 = vsel %vm613, %v1970, %v1433
        %v2003 = vsel %vm613, %v1971, %v1435
        %v2004 = vsel %vm613, %v1972, %v1437
        %v2005 = vsel %vm613, %v1973, %v1439
        %v2006 = vsel %vm613, %v1974, %v1441
        %v2007 = vsel %vm613, %v1975, %v1443
        %v2008 = vsel %vm613, %v1976, %v1445
        %v2009 = vsel %vm613, %v1977, %v1447
        %v2010 = vsel %vm613, %v1978, %v1449
        %v2011 = vsel %vm613, %v1979, %v1451
        %v2012 = vsel %vm613, %v1980, %v1453
        %v2013 = vsel %vm613, %v1981, %v1455
        %v2014 = vsel %vm613, %v1982, %v1457
        %v2015 = vsel %vm613, %v1983, %v1459
        %v2016 = vsel %vm613, %v1984, %v1461
        %v2017 = vsel %vm613, %v1985, %v1463
        %v2018 = vsel %vm613, %v1986, %v1465
        %v2019 = vsel %vm613, %v1987, %v1467
        %v2020 = vsel %vm613, %v1988, %v1469
        %v2021 = vsel %vm613, %v1989, %v1471
        %v2022 = vsel %vm613, %v1990, %v1473
        %v2023 = vsel %vm613, %v1991, %v1475
        %v2024 = vsel %vm613, %v1992, %v1477
        %v2025 = vsel %vm613, %v1993, %v1479
        %v2026 = vsel %vm613, %v1994, %v1481
        %vm2027 = vcmask 162816
        %v2028 = vsel %vm2027, %v1995, %v1515
        %v2029 = vsel %vm2027, %v1996, %v1517
        %v2030 = vsel %vm2027, %v1997, %v1519
        %v2031 = vsel %vm2027, %v1998, %v1521
        %v2032 = vsel %vm2027, %v1999, %v1523
        %v2033 = vsel %vm2027, %v2000, %v1525
        %v2034 = vsel %vm2027, %v2001, %v1527
        %v2035 = vsel %vm2027, %v2002, %v1529
        %v2036 = vsel %vm2027, %v2003, %v1531
        %v2037 = vsel %vm2027, %v2004, %v1533
        %v2038 = vsel %vm2027, %v2005, %v1535
        %v2039 = vsel %vm2027, %v2006, %v1537
        %v2040 = vsel %vm2027, %v2007, %v1539
        %v2041 = vsel %vm2027, %v2008, %v1541
        %v2042 = vsel %vm2027, %v2009, %v1543
        %v2043 = vsel %vm2027, %v2010, %v1545
        %v2044 = vsel %vm2027, %v2011, %v1547
        %v2045 = vsel %vm2027, %v2012, %v1549
        %v2046 = vsel %vm2027, %v2013, %v1551
        %v2047 = vsel %vm2027, %v2014, %v1553
        %v2048 = vsel %vm2027, %v2015, %v1555
        %v2049 = vsel %vm2027, %v2016, %v1557
        %v2050 = vsel %vm2027, %v2017, %v1559
        %v2051 = vsel %vm2027, %v2018, %v1561
        %v2052 = vsel %vm2027, %v2019, %v1563
        %v2053 = vsel %vm2027, %v2020, %v1565
        %v2054 = vsel %vm2027, %v2021, %v1567
        %v2055 = vsel %vm2027, %v2022, %v1569
        %v2056 = vsel %vm2027, %v2023, %v1571
        %v2057 = vsel %vm2027, %v2024, %v1573
        %v2058 = vsel %vm2027, %v2025, %v1575
        %v2059 = vsel %vm2027, %v2026, %v1577
        %vm2060 = vcmask 195584
        %v2061 = vsel %vm2060, %v2028, %v1611
        %v2062 = vsel %vm2060, %v2029, %v1613
        %v2063 = vsel %vm2060, %v2030, %v1615
        %v2064 = vsel %vm2060, %v2031, %v1617
        %v2065 = vsel %vm2060, %v2032, %v1619
        %v2066 = vsel %vm2060, %v2033, %v1621
        %v2067 = vsel %vm2060, %v2034, %v1623
        %v2068 = vsel %vm2060, %v2035, %v1625
        %v2069 = vsel %vm2060, %v2036, %v1627
        %v2070 = vsel %vm2060, %v2037, %v1629
        %v2071 = vsel %vm2060, %v2038, %v1631
        %v2072 = vsel %vm2060, %v2039, %v1633
        %v2073 = vsel %vm2060, %v2040, %v1635
        %v2074 = vsel %vm2060, %v2041, %v1637
        %v2075 = vsel %vm2060, %v2042, %v1639
        %v2076 = vsel %vm2060, %v2043, %v1641
        %v2077 = vsel %vm2060, %v2044, %v1643
        %v2078 = vsel %vm2060, %v2045, %v1645
        %v2079 = vsel %vm2060, %v2046, %v1647
        %v2080 = vsel %vm2060, %v2047, %v1649
        %v2081 = vsel %vm2060, %v2048, %v1651
        %v2082 = vsel %vm2060, %v2049, %v1653
        %v2083 = vsel %vm2060, %v2050, %v1655
        %v2084 = vsel %vm2060, %v2051, %v1657
        %v2085 = vsel %vm2060, %v2052, %v1659
        %v2086 = vsel %vm2060, %v2053, %v1661
        %v2087 = vsel %vm2060, %v2054, %v1663
        %v2088 = vsel %vm2060, %v2055, %v1665
        %v2089 = vsel %vm2060, %v2056, %v1667
        %v2090 = vsel %vm2060, %v2057, %v1669
        %v2091 = vsel %vm2060, %v2058, %v1671
        %v2092 = vsel %vm2060, %v2059, %v1673
        %vm2093 = vcmask 228352
        %v2094 = vsel %vm2093, %v2061, %v1707
        %v2095 = vsel %vm2093, %v2062, %v1709
        %v2096 = vsel %vm2093, %v2063, %v1711
        %v2097 = vsel %vm2093, %v2064, %v1713
        %v2098 = vsel %vm2093, %v2065, %v1715
        %v2099 = vsel %vm2093, %v2066, %v1717
        %v2100 = vsel %vm2093, %v2067, %v1719
        %v2101 = vsel %vm2093, %v2068, %v1721
        %v2102 = vsel %vm2093, %v2069, %v1723
        %v2103 = vsel %vm2093, %v2070, %v1725
        %v2104 = vsel %vm2093, %v2071, %v1727
        %v2105 = vsel %vm2093, %v2072, %v1729
        %v2106 = vsel %vm2093, %v2073, %v1731
        %v2107 = vsel %vm2093, %v2074, %v1733
        %v2108 = vsel %vm2093, %v2075, %v1735
        %v2109 = vsel %vm2093, %v2076, %v1737
        %v2110 = vsel %vm2093, %v2077, %v1739
        %v2111 = vsel %vm2093, %v2078, %v1741
        %v2112 = vsel %vm2093, %v2079, %v1743
        %v2113 = vsel %vm2093, %v2080, %v1745
        %v2114 = vsel %vm2093, %v2081, %v1747
        %v2115 = vsel %vm2093, %v2082, %v1749
        %v2116 = vsel %vm2093, %v2083, %v1751
        %v2117 = vsel %vm2093, %v2084, %v1753
        %v2118 = vsel %vm2093, %v2085, %v1755
        %v2119 = vsel %vm2093, %v2086, %v1757
        %v2120 = vsel %vm2093, %v2087, %v1759
        %v2121 = vsel %vm2093, %v2088, %v1761
        %v2122 = vsel %vm2093, %v2089, %v1763
        %v2123 = vsel %vm2093, %v2090, %v1765
        %v2124 = vsel %vm2093, %v2091, %v1767
        %v2125 = vsel %vm2093, %v2092, %v1769
        %v2126 = vsel %vm566, %v2094, %v1803
        %v2127 = vsel %vm566, %v2095, %v1805
        %v2128 = vsel %vm566, %v2096, %v1807
        %v2129 = vsel %vm566, %v2097, %v1809
        %v2130 = vsel %vm566, %v2098, %v1811
        %v2131 = vsel %vm566, %v2099, %v1813
        %v2132 = vsel %vm566, %v2100, %v1815
        %v2133 = vsel %vm566, %v2101, %v1817
        %v2134 = vsel %vm566, %v2102, %v1819
        %v2135 = vsel %vm566, %v2103, %v1821
        %v2136 = vsel %vm566, %v2104, %v1823
        %v2137 = vsel %vm566, %v2105, %v1825
        %v2138 = vsel %vm566, %v2106, %v1827
        %v2139 = vsel %vm566, %v2107, %v1829
        %v2140 = vsel %vm566, %v2108, %v1831
        %v2141 = vsel %vm566, %v2109, %v1833
        %v2142 = vsel %vm566, %v2110, %v1835
        %v2143 = vsel %vm566, %v2111, %v1837
        %v2144 = vsel %vm566, %v2112, %v1839
        %v2145 = vsel %vm566, %v2113, %v1841
        %v2146 = vsel %vm566, %v2114, %v1843
        %v2147 = vsel %vm566, %v2115, %v1845
        %v2148 = vsel %vm566, %v2116, %v1847
        %v2149 = vsel %vm566, %v2117, %v1849
        %v2150 = vsel %vm566, %v2118, %v1851
        %v2151 = vsel %vm566, %v2119, %v1853
        %v2152 = vsel %vm566, %v2120, %v1855
        %v2153 = vsel %vm566, %v2121, %v1857
        %v2154 = vsel %vm566, %v2122, %v1859
        %v2155 = vsel %vm566, %v2123, %v1861
        %v2156 = vsel %vm566, %v2124, %v1863
        %v2157 = vsel %vm566, %v2125, %v1865
        %v2158 = vld [vmem:[%s1] sm:$0xff]
        %v2159 = vld [vmem:[%s1 + $0x8] sm:$0xff]
        %v2160 = vld [vmem:[%s1 + $0x10] sm:$0xff]
        %v2161 = vld [vmem:[%s1 + $0x18] sm:$0xff]
        %v2162 = vld [vmem:[%s1 + $0x20] sm:$0xf]
        %vm2163 = vcmask 293888
        %v2165 = vsel %vm2163, %v2126, 0
        %v2168 = vsel %vm2163, %v2127, 0
        %v2171 = vsel %vm2163, %v2128, 0
        %v2174 = vsel %vm2163, %v2129, 0
        %v2177 = vsel %vm2163, %v2130, 0
        %v2180 = vsel %vm2163, %v2131, 0
        %v2183 = vsel %vm2163, %v2132, 0
        %v2186 = vsel %vm2163, %v2133, 0
        %v2189 = vsel %vm2163, %v2134, 0
        %v2192 = vsel %vm2163, %v2135, 0
        %v2195 = vsel %vm2163, %v2136, 0
        %v2198 = vsel %vm2163, %v2137, 0
        %v2201 = vsel %vm2163, %v2138, 0
        %v2204 = vsel %vm2163, %v2139, 0
        %v2207 = vsel %vm2163, %v2140, 0
        %v2210 = vsel %vm2163, %v2141, 0
        %v2213 = vsel %vm2163, %v2142, 0
        %v2216 = vsel %vm2163, %v2143, 0
        %v2219 = vsel %vm2163, %v2144, 0
        %v2222 = vsel %vm2163, %v2145, 0
        %v2225 = vsel %vm2163, %v2146, 0
        %v2228 = vsel %vm2163, %v2147, 0
        %v2231 = vsel %vm2163, %v2148, 0
        %v2234 = vsel %vm2163, %v2149, 0
        %v2237 = vsel %vm2163, %v2150, 0
        %v2240 = vsel %vm2163, %v2151, 0
        %v2243 = vsel %vm2163, %v2152, 0
        %v2246 = vsel %vm2163, %v2153, 0
        %v2249 = vsel %vm2163, %v2154, 0
        %v2252 = vsel %vm2163, %v2155, 0
        %v2255 = vsel %vm2163, %v2156, 0
        %v2258 = vsel %vm2163, %v2157, 0
        %vm2260 = vcmask 1043456
        %v2262 = vsel %vm2260, %v2162, 0
        %2264 = vmatprep.subr.mxu0 0.0
        %2265 = vmatpush1.msra.mxu0 %v2158
        %2266 = vmatprep.subr.mxu0 0.0
        %2267 = vmatpush1.msra.mxu0 %v2159
        %2268 = vmatprep.subr.mxu0 0.0
        %2269 = vmatpush1.msra.mxu0 %v2160
        %2270 = vmatprep.subr.mxu0 0.0
        %2271 = vmatpush1.msra.mxu0 %v2161
        %2272 = vmatprep.subr.mxu0 0.0
        %2273 = vmatpush1.msra.mxu0 %v2262
        %2274 = vmatprep.subr.mxu0 0.0
        %2275 = vmatpush1.msra.mxu0 0.0
        %2276 = vmatprep.subr.mxu0 0.0
        %2277 = vmatpush1.msra.mxu0 0.0
        %2278 = vmatprep.subr.mxu0 0.0
        %2279 = vmatpush1.msra.mxu0 0.0
        %2280 = vmatprep.subr.mxu0 0.0
        %2281 = vmatpush1.msra.mxu0 0.0
        %2282 = vmatprep.subr.mxu0 0.0
        %2283 = vmatpush1.msra.mxu0 0.0
        %2284 = vmatprep.subr.mxu0 0.0
        %2285 = vmatpush1.msra.mxu0 0.0
        %2286 = vmatprep.subr.mxu0 0.0
        %2287 = vmatpush1.msra.mxu0 0.0
        %2288 = vmatprep.subr.mxu0 0.0
        %2289 = vmatpush1.msra.mxu0 0.0
        %2290 = vmatprep.subr.mxu0 0.0
        %2291 = vmatpush1.msra.mxu0 0.0
        %2292 = vmatprep.subr.mxu0 0.0
        %2293 = vmatpush1.msra.mxu0 0.0
        %2294 = vmatprep.subr.mxu0 0.0
        %2295 = vmatpush1.msra.mxu0 0.0
        %2296 = vmatprep.subr.mxu0 0.0
        %2297 = vmatpush1.msra.mxu0 0.0
        %2298 = vmatprep.subr.mxu0 0.0
        %2299 = vmatpush1.msra.mxu0 0.0
        %2300 = vmatprep.subr.mxu0 0.0
        %2301 = vmatpush1.msra.mxu0 0.0
        %2302 = vmatprep.subr.mxu0 0.0
        %2303 = vmatpush1.msra.mxu0 0.0
        %2304 = vmatprep.subr.mxu0 0.0
        %2305 = vmatpush1.msra.mxu0 0.0
        %2306 = vmatprep.subr.mxu0 0.0
        %2307 = vmatpush1.msra.mxu0 0.0
        %2308 = vmatprep.subr.mxu0 0.0
        %2309 = vmatpush1.msra.mxu0 0.0
        %2310 = vmatprep.subr.mxu0 0.0
        %2311 = vmatpush1.msra.mxu0 0.0
        %2312 = vmatprep.subr.mxu0 0.0
        %2313 = vmatpush1.msra.mxu0 0.0
        %2314 = vmatprep.subr.mxu0 0.0
        %2315 = vmatpush1.msra.mxu0 0.0
        %2316 = vmatprep.subr.mxu0 0.0
        %2317 = vmatpush1.msra.mxu0 0.0
        %2318 = vmatprep.subr.mxu0 0.0
        %2319 = vmatpush1.msra.mxu0 0.0
        %2320 = vmatprep.subr.mxu0 0.0
        %2321 = vmatpush1.msra.mxu0 0.0
        %2322 = vmatprep.subr.mxu0 0.0
        %2323 = vmatpush1.msra.mxu0 0.0
        %2324 = vmatprep.subr.mxu0 0.0
        %2325 = vmatpush1.msra.mxu0 0.0
        %2326 = vmatprep.subr.mxu0 0.0
        %2327 = vmatpush1.msra.mxu0 0.0
        %2328 = vmatprep.mubr.f32.mxu0 0.0
        %2329 = vmatmul.mubr.f32.gmra.mrb[0].mxu0 %v2165
        %v2330 = vpop.f32.mrb[0].mxu0
        %v2331 = vadd.f32 0.0, %v2330
        %v2332 = vpop.f32.mrb[0].mxu0
        %2333 = vmatprep.mubr.f32.mxu0 0.0
        %2334 = vmatmul.mubr.f32.gmra.mrb[0].mxu0 %v2168
        %v2335 = vpop.f32.mrb[0].mxu0
        %v2336 = vadd.f32 0.0, %v2335
        %v2337 = vpop.f32.mrb[0].mxu0
        %2338 = vmatprep.mubr.f32.mxu0 0.0
        %2339 = vmatmul.mubr.f32.gmra.mrb[0].mxu0 %v2171
        %v2340 = vpop.f32.mrb[0].mxu0
        %v2341 = vadd.f32 0.0, %v2340
        %v2342 = vpop.f32.mrb[0].mxu0
        %2343 = vmatprep.mubr.f32.mxu0 0.0
        %2344 = vmatmul.mubr.f32.gmra.mrb[0].mxu0 %v2174
        %v2345 = vpop.f32.mrb[0].mxu0
        %v2346 = vadd.f32 0.0, %v2345
        %v2347 = vpop.f32.mrb[0].mxu0
        %2348 = vmatprep.mubr.f32.mxu0 0.0
        %2349 = vmatmul.mubr.f32.gmra.mrb[0].mxu0 %v2177
        %v2350 = vpop.f32.mrb[0].mxu0
        %v2351 = vadd.f32 0.0, %v2350
        %v2352 = vpop.f32.mrb[0].mxu0
        %2353 = vmatprep.mubr.f32.mxu0 0.0
        %2354 = vmatmul.mubr.f32.gmra.mrb[0].mxu0 %v2180
        %v2355 = vpop.f32.mrb[0].mxu0
        %v2356 = vadd.f32 0.0, %v2355
        %v2357 = vpop.f32.mrb[0].mxu0
        %2358 = vmatprep.mubr.f32.mxu0 0.0
        %2359 = vmatmul.mubr.f32.gmra.mrb[0].mxu0 %v2183
        %v2360 = vpop.f32.mrb[0].mxu0
        %v2361 = vadd.f32 0.0, %v2360
        %v2362 = vpop.f32.mrb[0].mxu0
        %2363 = vmatprep.mubr.f32.mxu0 0.0
        %2364 = vmatmul.mubr.f32.gmra.mrb[0].mxu0 %v2186
        %v2365 = vpop.f32.mrb[0].mxu0
        %v2366 = vadd.f32 0.0, %v2365
        %v2367 = vpop.f32.mrb[0].mxu0
        %2368 = vmatprep.mubr.f32.mxu0 0.0
        %2369 = vmatmul.mubr.f32.gmra.mrb[0].mxu0 %v2189
        %v2370 = vpop.f32.mrb[0].mxu0
        %v2371 = vadd.f32 0.0, %v2370
        %v2372 = vpop.f32.mrb[0].mxu0
        %2373 = vmatprep.mubr.f32.mxu0 0.0
        %2374 = vmatmul.mubr.f32.gmra.mrb[0].mxu0 %v2192
        %v2375 = vpop.f32.mrb[0].mxu0
        %v2376 = vadd.f32 0.0, %v2375
        %v2377 = vpop.f32.mrb[0].mxu0
        %2378 = vmatprep.mubr.f32.mxu0 0.0
        %2379 = vmatmul.mubr.f32.gmra.mrb[0].mxu0 %v2195
        %v2380 = vpop.f32.mrb[0].mxu0
        %v2381 = vadd.f32 0.0, %v2380
        %v2382 = vpop.f32.mrb[0].mxu0
        %2383 = vmatprep.mubr.f32.mxu0 0.0
        %2384 = vmatmul.mubr.f32.gmra.mrb[0].mxu0 %v2198
        %v2385 = vpop.f32.mrb[0].mxu0
        %v2386 = vadd.f32 0.0, %v2385
        %v2387 = vpop.f32.mrb[0].mxu0
        %2388 = vmatprep.mubr.f32.mxu0 0.0
        %2389 = vmatmul.mubr.f32.gmra.mrb[0].mxu0 %v2201
        %v2390 = vpop.f32.mrb[0].mxu0
        %v2391 = vadd.f32 0.0, %v2390
        %v2392 = vpop.f32.mrb[0].mxu0
        %2393 = vmatprep.mubr.f32.mxu0 0.0
        %2394 = vmatmul.mubr.f32.gmra.mrb[0].mxu0 %v2204
        %v2395 = vpop.f32.mrb[0].mxu0
        %v2396 = vadd.f32 0.0, %v2395
        %v2397 = vpop.f32.mrb[0].mxu0
        %2398 = vmatprep.mubr.f32.mxu0 0.0
        %2399 = vmatmul.mubr.f32.gmra.mrb[0].mxu0 %v2207
        %v2400 = vpop.f32.mrb[0].mxu0
        %v2401 = vadd.f32 0.0, %v2400
        %v2402 = vpop.f32.mrb[0].mxu0
        %2403 = vmatprep.mubr.f32.mxu0 0.0
        %2404 = vmatmul.mubr.f32.gmra.mrb[0].mxu0 %v2210
        %v2405 = vpop.f32.mrb[0].mxu0
        %v2406 = vadd.f32 0.0, %v2405
        %v2407 = vpop.f32.mrb[0].mxu0
        %2408 = vmatprep.mubr.f32.mxu0 0.0
        %2409 = vmatmul.mubr.f32.gmra.mrb[0].mxu0 %v2213
        %v2410 = vpop.f32.mrb[0].mxu0
        %v2411 = vadd.f32 0.0, %v2410
        %v2412 = vpop.f32.mrb[0].mxu0
        %2413 = vmatprep.mubr.f32.mxu0 0.0
        %2414 = vmatmul.mubr.f32.gmra.mrb[0].mxu0 %v2216
        %v2415 = vpop.f32.mrb[0].mxu0
        %v2416 = vadd.f32 0.0, %v2415
        %v2417 = vpop.f32.mrb[0].mxu0
        %2418 = vmatprep.mubr.f32.mxu0 0.0
        %2419 = vmatmul.mubr.f32.gmra.mrb[0].mxu0 %v2219
        %v2420 = vpop.f32.mrb[0].mxu0
        %v2421 = vadd.f32 0.0, %v2420
        %v2422 = vpop.f32.mrb[0].mxu0
        %2423 = vmatprep.mubr.f32.mxu0 0.0
        %2424 = vmatmul.mubr.f32.gmra.mrb[0].mxu0 %v2222
        %v2425 = vpop.f32.mrb[0].mxu0
        %v2426 = vadd.f32 0.0, %v2425
        %v2427 = vpop.f32.mrb[0].mxu0
        %2428 = vmatprep.mubr.f32.mxu0 0.0
        %2429 = vmatmul.mubr.f32.gmra.mrb[0].mxu0 %v2225
        %v2430 = vpop.f32.mrb[0].mxu0
        %v2431 = vadd.f32 0.0, %v2430
        %v2432 = vpop.f32.mrb[0].mxu0
        %2433 = vmatprep.mubr.f32.mxu0 0.0
        %2434 = vmatmul.mubr.f32.gmra.mrb[0].mxu0 %v2228
        %v2435 = vpop.f32.mrb[0].mxu0
        %v2436 = vadd.f32 0.0, %v2435
        %v2437 = vpop.f32.mrb[0].mxu0
        %2438 = vmatprep.mubr.f32.mxu0 0.0
        %2439 = vmatmul.mubr.f32.gmra.mrb[0].mxu0 %v2231
        %v2440 = vpop.f32.mrb[0].mxu0
        %v2441 = vadd.f32 0.0, %v2440
        %v2442 = vpop.f32.mrb[0].mxu0
        %2443 = vmatprep.mubr.f32.mxu0 0.0
        %2444 = vmatmul.mubr.f32.gmra.mrb[0].mxu0 %v2234
        %v2445 = vpop.f32.mrb[0].mxu0
        %v2446 = vadd.f32 0.0, %v2445
        %v2447 = vpop.f32.mrb[0].mxu0
        %2448 = vmatprep.mubr.f32.mxu0 0.0
        %2449 = vmatmul.mubr.f32.gmra.mrb[0].mxu0 %v2237
        %v2450 = vpop.f32.mrb[0].mxu0
        %v2451 = vadd.f32 0.0, %v2450
        %v2452 = vpop.f32.mrb[0].mxu0
        %2453 = vmatprep.mubr.f32.mxu0 0.0
        %2454 = vmatmul.mubr.f32.gmra.mrb[0].mxu0 %v2240
        %v2455 = vpop.f32.mrb[0].mxu0
        %v2456 = vadd.f32 0.0, %v2455
        %v2457 = vpop.f32.mrb[0].mxu0
        %2458 = vmatprep.mubr.f32.mxu0 0.0
        %2459 = vmatmul.mubr.f32.gmra.mrb[0].mxu0 %v2243
        %v2460 = vpop.f32.mrb[0].mxu0
        %v2461 = vadd.f32 0.0, %v2460
        %v2462 = vpop.f32.mrb[0].mxu0
        %2463 = vmatprep.mubr.f32.mxu0 0.0
        %2464 = vmatmul.mubr.f32.gmra.mrb[0].mxu0 %v2246
        %v2465 = vpop.f32.mrb[0].mxu0
        %v2466 = vadd.f32 0.0, %v2465
        %v2467 = vpop.f32.mrb[0].mxu0
        %2468 = vmatprep.mubr.f32.mxu0 0.0
        %2469 = vmatmul.mubr.f32.gmra.mrb[0].mxu0 %v2249
        %v2470 = vpop.f32.mrb[0].mxu0
        %v2471 = vadd.f32 0.0, %v2470
        %v2472 = vpop.f32.mrb[0].mxu0
        %2473 = vmatprep.mubr.f32.mxu0 0.0
        %2474 = vmatmul.mubr.f32.gmra.mrb[0].mxu0 %v2252
        %v2475 = vpop.f32.mrb[0].mxu0
        %v2476 = vadd.f32 0.0, %v2475
        %v2477 = vpop.f32.mrb[0].mxu0
        %2478 = vmatprep.mubr.f32.mxu0 0.0
        %2479 = vmatmul.mubr.f32.gmra.mrb[0].mxu0 %v2255
        %v2480 = vpop.f32.mrb[0].mxu0
        %v2481 = vadd.f32 0.0, %v2480
        %v2482 = vpop.f32.mrb[0].mxu0
        %2483 = vmatprep.mubr.f32.mxu0 0.0
        %2484 = vmatmul.mubr.f32.gmra.mrb[0].mxu0 %v2258
        %v2485 = vpop.f32.mrb[0].mxu0
        %v2486 = vadd.f32 0.0, %v2485
        %v2487 = vpop.f32.mrb[0].mxu0
        %2488 = vdwg.mxu0
        %v2489 = vld [vmem:[%s2] sm:$0x1]
        %v2491 = vlaneseq
        %v2492 = vshrl.u32 %v2491, 7
        %v2493 = vsub.s32 0, %v2492
        %v2494 = vrot.slane %v2489, %v2493
        %v2496 = vmul.f32 %v2331, %v2494
        %v2497 = vmul.f32 %v2336, %v2494
        %v2498 = vmul.f32 %v2341, %v2494
        %v2499 = vmul.f32 %v2346, %v2494
        %v2500 = vmul.f32 %v2351, %v2494
        %v2501 = vmul.f32 %v2356, %v2494
        %v2502 = vmul.f32 %v2361, %v2494
        %v2503 = vmul.f32 %v2366, %v2494
        %v2504 = vmul.f32 %v2371, %v2494
        %v2505 = vmul.f32 %v2376, %v2494
        %v2506 = vmul.f32 %v2381, %v2494
        %v2507 = vmul.f32 %v2386, %v2494
        %v2508 = vmul.f32 %v2391, %v2494
        %v2509 = vmul.f32 %v2396, %v2494
        %v2510 = vmul.f32 %v2401, %v2494
        %v2511 = vmul.f32 %v2406, %v2494
        %v2512 = vmul.f32 %v2411, %v2494
        %v2513 = vmul.f32 %v2416, %v2494
        %v2514 = vmul.f32 %v2421, %v2494
        %v2515 = vmul.f32 %v2426, %v2494
        %v2516 = vmul.f32 %v2431, %v2494
        %v2517 = vmul.f32 %v2436, %v2494
        %v2518 = vmul.f32 %v2441, %v2494
        %v2519 = vmul.f32 %v2446, %v2494
        %v2520 = vmul.f32 %v2451, %v2494
        %v2521 = vmul.f32 %v2456, %v2494
        %v2522 = vmul.f32 %v2461, %v2494
        %v2523 = vmul.f32 %v2466, %v2494
        %v2524 = vmul.f32 %v2471, %v2494
        %v2525 = vmul.f32 %v2476, %v2494
        %v2526 = vmul.f32 %v2481, %v2494
        %v2527 = vmul.f32 %v2486, %v2494
        %v2528 = vld [vmem:[%s3] sm:$0x1]
        %v2530 = vlaneseq
        %v2531 = vshrl.u32 %v2530, 7
        %v2532 = vsub.s32 0, %v2531
        %v2533 = vrot.slane %v2528, %v2532
        %v2535 = vadd.f32 %v2496, %v2533
        %v2536 = vadd.f32 %v2497, %v2533
        %v2537 = vadd.f32 %v2498, %v2533
        %v2538 = vadd.f32 %v2499, %v2533
        %v2539 = vadd.f32 %v2500, %v2533
        %v2540 = vadd.f32 %v2501, %v2533
        %v2541 = vadd.f32 %v2502, %v2533
        %v2542 = vadd.f32 %v2503, %v2533
        %v2543 = vadd.f32 %v2504, %v2533
        %v2544 = vadd.f32 %v2505, %v2533
        %v2545 = vadd.f32 %v2506, %v2533
        %v2546 = vadd.f32 %v2507, %v2533
        %v2547 = vadd.f32 %v2508, %v2533
        %v2548 = vadd.f32 %v2509, %v2533
        %v2549 = vadd.f32 %v2510, %v2533
        %v2550 = vadd.f32 %v2511, %v2533
        %v2551 = vadd.f32 %v2512, %v2533
        %v2552 = vadd.f32 %v2513, %v2533
        %v2553 = vadd.f32 %v2514, %v2533
        %v2554 = vadd.f32 %v2515, %v2533
        %v2555 = vadd.f32 %v2516, %v2533
        %v2556 = vadd.f32 %v2517, %v2533
        %v2557 = vadd.f32 %v2518, %v2533
        %v2558 = vadd.f32 %v2519, %v2533
        %v2559 = vadd.f32 %v2520, %v2533
        %v2560 = vadd.f32 %v2521, %v2533
        %v2561 = vadd.f32 %v2522, %v2533
        %v2562 = vadd.f32 %v2523, %v2533
        %v2563 = vadd.f32 %v2524, %v2533
        %v2564 = vadd.f32 %v2525, %v2533
        %v2565 = vadd.f32 %v2526, %v2533
        %v2566 = vadd.f32 %v2527, %v2533
        %v2567 = vmax.f32 %v2535, 0.0
        %v2568 = vmax.f32 %v2536, 0.0
        %v2569 = vmax.f32 %v2537, 0.0
        %v2570 = vmax.f32 %v2538, 0.0
        %v2571 = vmax.f32 %v2539, 0.0
        %v2572 = vmax.f32 %v2540, 0.0
        %v2573 = vmax.f32 %v2541, 0.0
        %v2574 = vmax.f32 %v2542, 0.0
        %v2575 = vmax.f32 %v2543, 0.0
        %v2576 = vmax.f32 %v2544, 0.0
        %v2577 = vmax.f32 %v2545, 0.0
        %v2578 = vmax.f32 %v2546, 0.0
        %v2579 = vmax.f32 %v2547, 0.0
        %v2580 = vmax.f32 %v2548, 0.0
        %v2581 = vmax.f32 %v2549, 0.0
        %v2582 = vmax.f32 %v2550, 0.0
        %v2583 = vmax.f32 %v2551, 0.0
        %v2584 = vmax.f32 %v2552, 0.0
        %v2585 = vmax.f32 %v2553, 0.0
        %v2586 = vmax.f32 %v2554, 0.0
        %v2587 = vmax.f32 %v2555, 0.0
        %v2588 = vmax.f32 %v2556, 0.0
        %v2589 = vmax.f32 %v2557, 0.0
        %v2590 = vmax.f32 %v2558, 0.0
        %v2591 = vmax.f32 %v2559, 0.0
        %v2592 = vmax.f32 %v2560, 0.0
        %v2593 = vmax.f32 %v2561, 0.0
        %v2594 = vmax.f32 %v2562, 0.0
        %v2595 = vmax.f32 %v2563, 0.0
        %v2596 = vmax.f32 %v2564, 0.0
        %v2597 = vmax.f32 %v2565, 0.0
        %v2598 = vmax.f32 %v2566, 0.0
        %s2599 = scalar_lea.vmem [#allocation3], 32
        %2600 = vst.msk [vmem:[%s2599 + $0x8] sm:$0xff] %vm566, %v2567
        %2601 = vst.msk [vmem:[%s2599 + $0x10] sm:$0xff] %vm566, %v2568
        %2602 = vst.msk [vmem:[%s2599 + $0x28] sm:$0xff] %vm566, %v2569
        %2603 = vst.msk [vmem:[%s2599 + $0x30] sm:$0xff] %vm566, %v2570
        %2604 = vst.msk [vmem:[%s2599 + $0x48] sm:$0xff] %vm566, %v2571
        %2605 = vst.msk [vmem:[%s2599 + $0x50] sm:$0xff] %vm566, %v2572
        %2606 = vst.msk [vmem:[%s2599 + $0x68] sm:$0xff] %vm566, %v2573
        %2607 = vst.msk [vmem:[%s2599 + $0x70] sm:$0xff] %vm566, %v2574
        %2608 = vst.msk [vmem:[%s2599 + $0x88] sm:$0xff] %vm566, %v2575
        %2609 = vst.msk [vmem:[%s2599 + $0x90] sm:$0xff] %vm566, %v2576
        %2610 = vst.msk [vmem:[%s2599 + $0xa8] sm:$0xff] %vm566, %v2577
        %2611 = vst.msk [vmem:[%s2599 + $0xb0] sm:$0xff] %vm566, %v2578
        %2612 = vst.msk [vmem:[%s2599 + $0xc8] sm:$0xff] %vm566, %v2579
        %2613 = vst.msk [vmem:[%s2599 + $0xd0] sm:$0xff] %vm566, %v2580
        %2614 = vst.msk [vmem:[%s2599 + $0xe8] sm:$0xff] %vm566, %v2581
        %2615 = vst.msk [vmem:[%s2599 + $0xf0] sm:$0xff] %vm566, %v2582
        %2616 = vst.msk [vmem:[%s2599 + $0x108] sm:$0xff] %vm566, %v2583
        %2617 = vst.msk [vmem:[%s2599 + $0x110] sm:$0xff] %vm566, %v2584
        %2618 = vst.msk [vmem:[%s2599 + $0x128] sm:$0xff] %vm566, %v2585
        %2619 = vst.msk [vmem:[%s2599 + $0x130] sm:$0xff] %vm566, %v2586
        %2620 = vst.msk [vmem:[%s2599 + $0x148] sm:$0xff] %vm566, %v2587
        %2621 = vst.msk [vmem:[%s2599 + $0x150] sm:$0xff] %vm566, %v2588
        %2622 = vst.msk [vmem:[%s2599 + $0x168] sm:$0xff] %vm566, %v2589
        %2623 = vst.msk [vmem:[%s2599 + $0x170] sm:$0xff] %vm566, %v2590
        %2624 = vst.msk [vmem:[%s2599 + $0x188] sm:$0xff] %vm566, %v2591
        %2625 = vst.msk [vmem:[%s2599 + $0x190] sm:$0xff] %vm566, %v2592
        %2626 = vst.msk [vmem:[%s2599 + $0x1a8] sm:$0xff] %vm566, %v2593
        %2627 = vst.msk [vmem:[%s2599 + $0x1b0] sm:$0xff] %vm566, %v2594
        %2628 = vst.msk [vmem:[%s2599 + $0x1c8] sm:$0xff] %vm566, %v2595
        %2629 = vst.msk [vmem:[%s2599 + $0x1d0] sm:$0xff] %vm566, %v2596
        %2630 = vst.msk [vmem:[%s2599 + $0x1e8] sm:$0xff] %vm566, %v2597
        %2631 = vst.msk [vmem:[%s2599 + $0x1f0] sm:$0xff] %vm566, %v2598
        %v2632 = vld [vmem:[#allocation3] sm:$0xff]
        %v2633 = vld [vmem:[#allocation3 + $0x8] sm:$0xff]
        %v2634 = vld [vmem:[#allocation3 + $0x10] sm:$0xff]
        %v2635 = vld [vmem:[#allocation3 + $0x18] sm:$0x1]
        %v2636 = vld [vmem:[#allocation3 + $0x20] sm:$0xff]
        %v2637 = vld [vmem:[#allocation3 + $0x28] sm:$0xff]
        %v2638 = vld [vmem:[#allocation3 + $0x30] sm:$0xff]
        %v2639 = vld [vmem:[#allocation3 + $0x38] sm:$0x1]
        %v2640 = vld [vmem:[#allocation3 + $0x40] sm:$0xff]
        %v2641 = vld [vmem:[#allocation3 + $0x48] sm:$0xff]
        %v2642 = vld [vmem:[#allocation3 + $0x50] sm:$0xff]
        %v2643 = vld [vmem:[#allocation3 + $0x58] sm:$0x1]
        %v2644 = vld [vmem:[#allocation3 + $0x60] sm:$0xff]
        %v2645 = vld [vmem:[#allocation3 + $0x68] sm:$0xff]
        %v2646 = vld [vmem:[#allocation3 + $0x70] sm:$0xff]
        %v2647 = vld [vmem:[#allocation3 + $0x78] sm:$0x1]
        %v2648 = vld [vmem:[#allocation3 + $0x80] sm:$0xff]
        %v2649 = vld [vmem:[#allocation3 + $0x88] sm:$0xff]
        %v2650 = vld [vmem:[#allocation3 + $0x90] sm:$0xff]
        %v2651 = vld [vmem:[#allocation3 + $0x98] sm:$0x1]
        %v2652 = vld [vmem:[#allocation3 + $0xa0] sm:$0xff]
        %v2653 = vld [vmem:[#allocation3 + $0xa8] sm:$0xff]
        %v2654 = vld [vmem:[#allocation3 + $0xb0] sm:$0xff]
        %v2655 = vld [vmem:[#allocation3 + $0xb8] sm:$0x1]
        %v2656 = vld [vmem:[#allocation3 + $0xc0] sm:$0xff]
        %v2657 = vld [vmem:[#allocation3 + $0xc8] sm:$0xff]
        %v2658 = vld [vmem:[#allocation3 + $0xd0] sm:$0xff]
        %v2659 = vld [vmem:[#allocation3 + $0xd8] sm:$0x1]
        %v2660 = vld [vmem:[#allocation3 + $0xe0] sm:$0xff]
        %v2661 = vld [vmem:[#allocation3 + $0xe8] sm:$0xff]
        %v2662 = vld [vmem:[#allocation3 + $0xf0] sm:$0xff]
        %v2663 = vld [vmem:[#allocation3 + $0xf8] sm:$0x1]
        %v2664 = vld [vmem:[#allocation3 + $0x100] sm:$0xff]
        %v2665 = vld [vmem:[#allocation3 + $0x108] sm:$0xff]
        %v2666 = vld [vmem:[#allocation3 + $0x110] sm:$0xff]
        %v2667 = vld [vmem:[#allocation3 + $0x118] sm:$0x1]
        %v2668 = vld [vmem:[#allocation3 + $0x120] sm:$0xff]
        %v2669 = vld [vmem:[#allocation3 + $0x128] sm:$0xff]
        %v2670 = vld [vmem:[#allocation3 + $0x130] sm:$0xff]
        %v2671 = vld [vmem:[#allocation3 + $0x138] sm:$0x1]
        %v2672 = vld [vmem:[#allocation3 + $0x140] sm:$0xff]
        %v2673 = vld [vmem:[#allocation3 + $0x148] sm:$0xff]
        %v2674 = vld [vmem:[#allocation3 + $0x150] sm:$0xff]
        %v2675 = vld [vmem:[#allocation3 + $0x158] sm:$0x1]
        %v2676 = vld [vmem:[#allocation3 + $0x160] sm:$0xff]
        %v2677 = vld [vmem:[#allocation3 + $0x168] sm:$0xff]
        %v2678 = vld [vmem:[#allocation3 + $0x170] sm:$0xff]
        %v2679 = vld [vmem:[#allocation3 + $0x178] sm:$0x1]
        %v2680 = vld [vmem:[#allocation3 + $0x180] sm:$0xff]
        %v2681 = vld [vmem:[#allocation3 + $0x188] sm:$0xff]
        %v2682 = vld [vmem:[#allocation3 + $0x190] sm:$0xff]
        %v2683 = vld [vmem:[#allocation3 + $0x198] sm:$0x1]
        %v2684 = vld [vmem:[#allocation3 + $0x1a0] sm:$0xff]
        %v2685 = vld [vmem:[#allocation3 + $0x1a8] sm:$0xff]
        %v2686 = vld [vmem:[#allocation3 + $0x1b0] sm:$0xff]
        %v2687 = vld [vmem:[#allocation3 + $0x1b8] sm:$0x1]
        %v2688 = vld [vmem:[#allocation3 + $0x1c0] sm:$0xff]
        %v2689 = vld [vmem:[#allocation3 + $0x1c8] sm:$0xff]
        %v2690 = vld [vmem:[#allocation3 + $0x1d0] sm:$0xff]
        %v2691 = vld [vmem:[#allocation3 + $0x1d8] sm:$0x1]
        %v2692 = vld [vmem:[#allocation3 + $0x1e0] sm:$0xff]
        %v2693 = vld [vmem:[#allocation3 + $0x1e8] sm:$0xff]
        %v2694 = vld [vmem:[#allocation3 + $0x1f0] sm:$0xff]
        %v2695 = vld [vmem:[#allocation3 + $0x1f8] sm:$0x1]
        %v2696 = vld [vmem:[#allocation3 + $0x200] sm:$0xff]
        %v2697 = vld [vmem:[#allocation3 + $0x208] sm:$0xff]
        %v2698 = vld [vmem:[#allocation3 + $0x210] sm:$0xff]
        %v2699 = vld [vmem:[#allocation3 + $0x218] sm:$0x1]
        %v2700 = vld [vmem:[#allocation3 + $0x220] sm:$0xff]
        %v2701 = vld [vmem:[#allocation3 + $0x228] sm:$0xff]
        %v2702 = vld [vmem:[#allocation3 + $0x230] sm:$0xff]
        %v2703 = vld [vmem:[#allocation3 + $0x238] sm:$0x1]
        %v2752 = vrot.slane %v2632, 7
        %v2753 = vrot.slane %v2633, 7
        %v2754 = vsel %vm892, %v2752, %v2753
        %v2755 = vrot.slane %v2634, 7
        %v2756 = vsel %vm892, %v2753, %v2755
        %v2757 = vrot.slane %v2636, 7
        %v2758 = vrot.slane %v2637, 7
        %v2759 = vsel %vm892, %v2757, %v2758
        %v2760 = vrot.slane %v2638, 7
        %v2761 = vsel %vm892, %v2758, %v2760
        %v2762 = vrot.slane %v2640, 7
        %v2763 = vrot.slane %v2641, 7
        %v2764 = vsel %vm892, %v2762, %v2763
        %v2765 = vrot.slane %v2642, 7
        %v2766 = vsel %vm892, %v2763, %v2765
        %v2767 = vrot.slane %v2644, 7
        %v2768 = vrot.slane %v2645, 7
        %v2769 = vsel %vm892, %v2767, %v2768
        %v2770 = vrot.slane %v2646, 7
        %v2771 = vsel %vm892, %v2768, %v2770
        %v2772 = vrot.slane %v2648, 7
        %v2773 = vrot.slane %v2649, 7
        %v2774 = vsel %vm892, %v2772, %v2773
        %v2775 = vrot.slane %v2650, 7
        %v2776 = vsel %vm892, %v2773, %v2775
        %v2777 = vrot.slane %v2652, 7
        %v2778 = vrot.slane %v2653, 7
        %v2779 = vsel %vm892, %v2777, %v2778
        %v2780 = vrot.slane %v2654, 7
        %v2781 = vsel %vm892, %v2778, %v2780
        %v2782 = vrot.slane %v2656, 7
        %v2783 = vrot.slane %v2657, 7
        %v2784 = vsel %vm892, %v2782, %v2783
        %v2785 = vrot.slane %v2658, 7
        %v2786 = vsel %vm892, %v2783, %v2785
        %v2787 = vrot.slane %v2660, 7
        %v2788 = vrot.slane %v2661, 7
        %v2789 = vsel %vm892, %v2787, %v2788
        %v2790 = vrot.slane %v2662, 7
        %v2791 = vsel %vm892, %v2788, %v2790
        %v2792 = vrot.slane %v2664, 7
        %v2793 = vrot.slane %v2665, 7
        %v2794 = vsel %vm892, %v2792, %v2793
        %v2795 = vrot.slane %v2666, 7
        %v2796 = vsel %vm892, %v2793, %v2795
        %v2797 = vrot.slane %v2668, 7
        %v2798 = vrot.slane %v2669, 7
        %v2799 = vsel %vm892, %v2797, %v2798
        %v2800 = vrot.slane %v2670, 7
        %v2801 = vsel %vm892, %v2798, %v2800
        %v2802 = vrot.slane %v2672, 7
        %v2803 = vrot.slane %v2673, 7
        %v2804 = vsel %vm892, %v2802, %v2803
        %v2805 = vrot.slane %v2674, 7
        %v2806 = vsel %vm892, %v2803, %v2805
        %v2807 = vrot.slane %v2676, 7
        %v2808 = vrot.slane %v2677, 7
        %v2809 = vsel %vm892, %v2807, %v2808
        %v2810 = vrot.slane %v2678, 7
        %v2811 = vsel %vm892, %v2808, %v2810
        %v2812 = vrot.slane %v2680, 7
        %v2813 = vrot.slane %v2681, 7
        %v2814 = vsel %vm892, %v2812, %v2813
        %v2815 = vrot.slane %v2682, 7
        %v2816 = vsel %vm892, %v2813, %v2815
        %v2817 = vrot.slane %v2684, 7
        %v2818 = vrot.slane %v2685, 7
        %v2819 = vsel %vm892, %v2817, %v2818
        %v2820 = vrot.slane %v2686, 7
        %v2821 = vsel %vm892, %v2818, %v2820
        %v2822 = vrot.slane %v2688, 7
        %v2823 = vrot.slane %v2689, 7
        %v2824 = vsel %vm892, %v2822, %v2823
        %v2825 = vrot.slane %v2690, 7
        %v2826 = vsel %vm892, %v2823, %v2825
        %v2827 = vrot.slane %v2692, 7
        %v2828 = vrot.slane %v2693, 7
        %v2829 = vsel %vm892, %v2827, %v2828
        %v2830 = vrot.slane %v2694, 7
        %v2831 = vsel %vm892, %v2828, %v2830
        %v2880 = vrot.slane %v2633, 1
        %v2881 = vrot.slane %v2634, 1
        %v2882 = vsel %vm1021, %v2880, %v2881
        %v2883 = vrot.slane %v2635, 1
        %v2884 = vsel %vm1021, %v2881, %v2883
        %v2885 = vrot.slane %v2637, 1
        %v2886 = vrot.slane %v2638, 1
        %v2887 = vsel %vm1021, %v2885, %v2886
        %v2888 = vrot.slane %v2639, 1
        %v2889 = vsel %vm1021, %v2886, %v2888
        %v2890 = vrot.slane %v2641, 1
        %v2891 = vrot.slane %v2642, 1
        %v2892 = vsel %vm1021, %v2890, %v2891
        %v2893 = vrot.slane %v2643, 1
        %v2894 = vsel %vm1021, %v2891, %v2893
        %v2895 = vrot.slane %v2645, 1
        %v2896 = vrot.slane %v2646, 1
        %v2897 = vsel %vm1021, %v2895, %v2896
        %v2898 = vrot.slane %v2647, 1
        %v2899 = vsel %vm1021, %v2896, %v2898
        %v2900 = vrot.slane %v2649, 1
        %v2901 = vrot.slane %v2650, 1
        %v2902 = vsel %vm1021, %v2900, %v2901
        %v2903 = vrot.slane %v2651, 1
        %v2904 = vsel %vm1021, %v2901, %v2903
        %v2905 = vrot.slane %v2653, 1
        %v2906 = vrot.slane %v2654, 1
        %v2907 = vsel %vm1021, %v2905, %v2906
        %v2908 = vrot.slane %v2655, 1
        %v2909 = vsel %vm1021, %v2906, %v2908
        %v2910 = vrot.slane %v2657, 1
        %v2911 = vrot.slane %v2658, 1
        %v2912 = vsel %vm1021, %v2910, %v2911
        %v2913 = vrot.slane %v2659, 1
        %v2914 = vsel %vm1021, %v2911, %v2913
        %v2915 = vrot.slane %v2661, 1
        %v2916 = vrot.slane %v2662, 1
        %v2917 = vsel %vm1021, %v2915, %v2916
        %v2918 = vrot.slane %v2663, 1
        %v2919 = vsel %vm1021, %v2916, %v2918
        %v2920 = vrot.slane %v2665, 1
        %v2921 = vrot.slane %v2666, 1
        %v2922 = vsel %vm1021, %v2920, %v2921
        %v2923 = vrot.slane %v2667, 1
        %v2924 = vsel %vm1021, %v2921, %v2923
        %v2925 = vrot.slane %v2669, 1
        %v2926 = vrot.slane %v2670, 1
        %v2927 = vsel %vm1021, %v2925, %v2926
        %v2928 = vrot.slane %v2671, 1
        %v2929 = vsel %vm1021, %v2926, %v2928
        %v2930 = vrot.slane %v2673, 1
        %v2931 = vrot.slane %v2674, 1
        %v2932 = vsel %vm1021, %v2930, %v2931
        %v2933 = vrot.slane %v2675, 1
        %v2934 = vsel %vm1021, %v2931, %v2933
        %v2935 = vrot.slane %v2677, 1
        %v2936 = vrot.slane %v2678, 1
        %v2937 = vsel %vm1021, %v2935, %v2936
        %v2938 = vrot.slane %v2679, 1
        %v2939 = vsel %vm1021, %v2936, %v2938
        %v2940 = vrot.slane %v2681, 1
        %v2941 = vrot.slane %v2682, 1
        %v2942 = vsel %vm1021, %v2940, %v2941
        %v2943 = vrot.slane %v2683, 1
        %v2944 = vsel %vm1021, %v2941, %v2943
        %v2945 = vrot.slane %v2685, 1
        %v2946 = vrot.slane %v2686, 1
        %v2947 = vsel %vm1021, %v2945, %v2946
        %v2948 = vrot.slane %v2687, 1
        %v2949 = vsel %vm1021, %v2946, %v2948
        %v2950 = vrot.slane %v2689, 1
        %v2951 = vrot.slane %v2690, 1
        %v2952 = vsel %vm1021, %v2950, %v2951
        %v2953 = vrot.slane %v2691, 1
        %v2954 = vsel %vm1021, %v2951, %v2953
        %v2955 = vrot.slane %v2693, 1
        %v2956 = vrot.slane %v2694, 1
        %v2957 = vsel %vm1021, %v2955, %v2956
        %v2958 = vrot.slane %v2695, 1
        %v2959 = vsel %vm1021, %v2956, %v2958
        %v2963 = vrot.slane %v2696, 7
        %v2964 = vrot.slane %v2697, 7
        %v2965 = vsel %vm892, %v2963, %v2964
        %v2966 = vrot.slane %v2698, 7
        %v2967 = vsel %vm892, %v2964, %v2966
        %v2969 = vrot.slane %v2697, 1
        %v2970 = vrot.slane %v2698, 1
        %v2971 = vsel %vm1021, %v2969, %v2970
        %v2972 = vrot.slane %v2699, 1
        %v2973 = vsel %vm1021, %v2970, %v2972
        %v2977 = vrot.slane %v2700, 7
        %v2978 = vrot.slane %v2701, 7
        %v2979 = vsel %vm892, %v2977, %v2978
        %v2980 = vrot.slane %v2702, 7
        %v2981 = vsel %vm892, %v2978, %v2980
        %v2983 = vrot.slane %v2701, 1
        %v2984 = vrot.slane %v2702, 1
        %v2985 = vsel %vm1021, %v2983, %v2984
        %v2986 = vrot.slane %v2703, 1
        %v2987 = vsel %vm1021, %v2984, %v2986
        %2988 = vrot.lane.b32.xlu0 %v2633, 32
        %v2989 = vpop.permute.xlu0 %2988
        %2990 = vrot.lane.b32.xlu0 %v2634, 32
        %v2991 = vpop.permute.xlu0 %2990
        %2992 = vrot.lane.b32.xlu0 %v2637, 32
        %v2993 = vpop.permute.xlu0 %2992
        %2994 = vrot.lane.b32.xlu0 %v2638, 32
        %v2995 = vpop.permute.xlu0 %2994
        %2996 = vrot.lane.b32.xlu0 %v2641, 32
        %v2997 = vpop.permute.xlu0 %2996
        %2998 = vrot.lane.b32.xlu0 %v2642, 32
        %v2999 = vpop.permute.xlu0 %2998
        %3000 = vrot.lane.b32.xlu0 %v2645, 32
        %v3001 = vpop.permute.xlu0 %3000
        %3002 = vrot.lane.b32.xlu0 %v2646, 32
        %v3003 = vpop.permute.xlu0 %3002
        %3004 = vrot.lane.b32.xlu0 %v2649, 32
        %v3005 = vpop.permute.xlu0 %3004
        %3006 = vrot.lane.b32.xlu0 %v2650, 32
        %v3007 = vpop.permute.xlu0 %3006
        %3008 = vrot.lane.b32.xlu0 %v2653, 32
        %v3009 = vpop.permute.xlu0 %3008
        %3010 = vrot.lane.b32.xlu0 %v2654, 32
        %v3011 = vpop.permute.xlu0 %3010
        %3012 = vrot.lane.b32.xlu0 %v2657, 32
        %v3013 = vpop.permute.xlu0 %3012
        %3014 = vrot.lane.b32.xlu0 %v2658, 32
        %v3015 = vpop.permute.xlu0 %3014
        %3016 = vrot.lane.b32.xlu0 %v2661, 32
        %v3017 = vpop.permute.xlu0 %3016
        %3018 = vrot.lane.b32.xlu0 %v2662, 32
        %v3019 = vpop.permute.xlu0 %3018
        %3020 = vrot.lane.b32.xlu0 %v2665, 32
        %v3021 = vpop.permute.xlu0 %3020
        %3022 = vrot.lane.b32.xlu0 %v2666, 32
        %v3023 = vpop.permute.xlu0 %3022
        %3024 = vrot.lane.b32.xlu0 %v2669, 32
        %v3025 = vpop.permute.xlu0 %3024
        %3026 = vrot.lane.b32.xlu0 %v2670, 32
        %v3027 = vpop.permute.xlu0 %3026
        %3028 = vrot.lane.b32.xlu0 %v2673, 32
        %v3029 = vpop.permute.xlu0 %3028
        %3030 = vrot.lane.b32.xlu0 %v2674, 32
        %v3031 = vpop.permute.xlu0 %3030
        %3032 = vrot.lane.b32.xlu0 %v2677, 32
        %v3033 = vpop.permute.xlu0 %3032
        %3034 = vrot.lane.b32.xlu0 %v2678, 32
        %v3035 = vpop.permute.xlu0 %3034
        %3036 = vrot.lane.b32.xlu0 %v2681, 32
        %v3037 = vpop.permute.xlu0 %3036
        %3038 = vrot.lane.b32.xlu0 %v2682, 32
        %v3039 = vpop.permute.xlu0 %3038
        %3040 = vrot.lane.b32.xlu0 %v2685, 32
        %v3041 = vpop.permute.xlu0 %3040
        %3042 = vrot.lane.b32.xlu0 %v2686, 32
        %v3043 = vpop.permute.xlu0 %3042
        %3044 = vrot.lane.b32.xlu0 %v2689, 32
        %v3045 = vpop.permute.xlu0 %3044
        %3046 = vrot.lane.b32.xlu0 %v2690, 32
        %v3047 = vpop.permute.xlu0 %3046
        %3048 = vrot.lane.b32.xlu0 %v2693, 32
        %v3049 = vpop.permute.xlu0 %3048
        %3050 = vrot.lane.b32.xlu0 %v2694, 32
        %v3051 = vpop.permute.xlu0 %3050
        %3084 = vrot.lane.b32.xlu0 %v2882, 64
        %v3085 = vpop.permute.xlu0 %3084
        %3086 = vrot.lane.b32.xlu0 %v2884, 64
        %v3087 = vpop.permute.xlu0 %3086
        %3088 = vrot.lane.b32.xlu0 %v2887, 64
        %v3089 = vpop.permute.xlu0 %3088
        %3090 = vrot.lane.b32.xlu0 %v2889, 64
        %v3091 = vpop.permute.xlu0 %3090
        %3092 = vrot.lane.b32.xlu0 %v2892, 64
        %v3093 = vpop.permute.xlu0 %3092
        %3094 = vrot.lane.b32.xlu0 %v2894, 64
        %v3095 = vpop.permute.xlu0 %3094
        %3096 = vrot.lane.b32.xlu0 %v2897, 64
        %v3097 = vpop.permute.xlu0 %3096
        %3098 = vrot.lane.b32.xlu0 %v2899, 64
        %v3099 = vpop.permute.xlu0 %3098
        %3100 = vrot.lane.b32.xlu0 %v2902, 64
        %v3101 = vpop.permute.xlu0 %3100
        %3102 = vrot.lane.b32.xlu0 %v2904, 64
        %v3103 = vpop.permute.xlu0 %3102
        %3104 = vrot.lane.b32.xlu0 %v2907, 64
        %v3105 = vpop.permute.xlu0 %3104
        %3106 = vrot.lane.b32.xlu0 %v2909, 64
        %v3107 = vpop.permute.xlu0 %3106
        %3108 = vrot.lane.b32.xlu0 %v2912, 64
        %v3109 = vpop.permute.xlu0 %3108
        %3110 = vrot.lane.b32.xlu0 %v2914, 64
        %v3111 = vpop.permute.xlu0 %3110
        %3112 = vrot.lane.b32.xlu0 %v2917, 64
        %v3113 = vpop.permute.xlu0 %3112
        %3114 = vrot.lane.b32.xlu0 %v2919, 64
        %v3115 = vpop.permute.xlu0 %3114
        %3116 = vrot.lane.b32.xlu0 %v2922, 64
        %v3117 = vpop.permute.xlu0 %3116
        %3118 = vrot.lane.b32.xlu0 %v2924, 64
        %v3119 = vpop.permute.xlu0 %3118
        %3120 = vrot.lane.b32.xlu0 %v2927, 64
        %v3121 = vpop.permute.xlu0 %3120
        %3122 = vrot.lane.b32.xlu0 %v2929, 64
        %v3123 = vpop.permute.xlu0 %3122
        %3124 = vrot.lane.b32.xlu0 %v2932, 64
        %v3125 = vpop.permute.xlu0 %3124
        %3126 = vrot.lane.b32.xlu0 %v2934, 64
        %v3127 = vpop.permute.xlu0 %3126
        %3128 = vrot.lane.b32.xlu0 %v2937, 64
        %v3129 = vpop.permute.xlu0 %3128
        %3130 = vrot.lane.b32.xlu0 %v2939, 64
        %v3131 = vpop.permute.xlu0 %3130
        %3132 = vrot.lane.b32.xlu0 %v2942, 64
        %v3133 = vpop.permute.xlu0 %3132
        %3134 = vrot.lane.b32.xlu0 %v2944, 64
        %v3135 = vpop.permute.xlu0 %3134
        %3136 = vrot.lane.b32.xlu0 %v2947, 64
        %v3137 = vpop.permute.xlu0 %3136
        %3138 = vrot.lane.b32.xlu0 %v2949, 64
        %v3139 = vpop.permute.xlu0 %3138
        %3140 = vrot.lane.b32.xlu0 %v2952, 64
        %v3141 = vpop.permute.xlu0 %3140
        %3142 = vrot.lane.b32.xlu0 %v2954, 64
        %v3143 = vpop.permute.xlu0 %3142
        %3144 = vrot.lane.b32.xlu0 %v2957, 64
        %v3145 = vpop.permute.xlu0 %3144
        %3146 = vrot.lane.b32.xlu0 %v2959, 64
        %v3147 = vpop.permute.xlu0 %3146
        %3180 = vrot.lane.b32.xlu0 %v2759, 96
        %v3181 = vpop.permute.xlu0 %3180
        %3182 = vrot.lane.b32.xlu0 %v2761, 96
        %v3183 = vpop.permute.xlu0 %3182
        %3184 = vrot.lane.b32.xlu0 %v2764, 96
        %v3185 = vpop.permute.xlu0 %3184
        %3186 = vrot.lane.b32.xlu0 %v2766, 96
        %v3187 = vpop.permute.xlu0 %3186
        %3188 = vrot.lane.b32.xlu0 %v2769, 96
        %v3189 = vpop.permute.xlu0 %3188
        %3190 = vrot.lane.b32.xlu0 %v2771, 96
        %v3191 = vpop.permute.xlu0 %3190
        %3192 = vrot.lane.b32.xlu0 %v2774, 96
        %v3193 = vpop.permute.xlu0 %3192
        %3194 = vrot.lane.b32.xlu0 %v2776, 96
        %v3195 = vpop.permute.xlu0 %3194
        %3196 = vrot.lane.b32.xlu0 %v2779, 96
        %v3197 = vpop.permute.xlu0 %3196
        %3198 = vrot.lane.b32.xlu0 %v2781, 96
        %v3199 = vpop.permute.xlu0 %3198
        %3200 = vrot.lane.b32.xlu0 %v2784, 96
        %v3201 = vpop.permute.xlu0 %3200
        %3202 = vrot.lane.b32.xlu0 %v2786, 96
        %v3203 = vpop.permute.xlu0 %3202
        %3204 = vrot.lane.b32.xlu0 %v2789, 96
        %v3205 = vpop.permute.xlu0 %3204
        %3206 = vrot.lane.b32.xlu0 %v2791, 96
        %v3207 = vpop.permute.xlu0 %3206
        %3208 = vrot.lane.b32.xlu0 %v2794, 96
        %v3209 = vpop.permute.xlu0 %3208
        %3210 = vrot.lane.b32.xlu0 %v2796, 96
        %v3211 = vpop.permute.xlu0 %3210
        %3212 = vrot.lane.b32.xlu0 %v2799, 96
        %v3213 = vpop.permute.xlu0 %3212
        %3214 = vrot.lane.b32.xlu0 %v2801, 96
        %v3215 = vpop.permute.xlu0 %3214
        %3216 = vrot.lane.b32.xlu0 %v2804, 96
        %v3217 = vpop.permute.xlu0 %3216
        %3218 = vrot.lane.b32.xlu0 %v2806, 96
        %v3219 = vpop.permute.xlu0 %3218
        %3220 = vrot.lane.b32.xlu0 %v2809, 96
        %v3221 = vpop.permute.xlu0 %3220
        %3222 = vrot.lane.b32.xlu0 %v2811, 96
        %v3223 = vpop.permute.xlu0 %3222
        %3224 = vrot.lane.b32.xlu0 %v2814, 96
        %v3225 = vpop.permute.xlu0 %3224
        %3226 = vrot.lane.b32.xlu0 %v2816, 96
        %v3227 = vpop.permute.xlu0 %3226
        %3228 = vrot.lane.b32.xlu0 %v2819, 96
        %v3229 = vpop.permute.xlu0 %3228
        %3230 = vrot.lane.b32.xlu0 %v2821, 96
        %v3231 = vpop.permute.xlu0 %3230
        %3232 = vrot.lane.b32.xlu0 %v2824, 96
        %v3233 = vpop.permute.xlu0 %3232
        %3234 = vrot.lane.b32.xlu0 %v2826, 96
        %v3235 = vpop.permute.xlu0 %3234
        %3236 = vrot.lane.b32.xlu0 %v2829, 96
        %v3237 = vpop.permute.xlu0 %3236
        %3238 = vrot.lane.b32.xlu0 %v2831, 96
        %v3239 = vpop.permute.xlu0 %3238
        %3240 = vrot.lane.b32.xlu0 %v2965, 96
        %v3241 = vpop.permute.xlu0 %3240
        %3242 = vrot.lane.b32.xlu0 %v2967, 96
        %v3243 = vpop.permute.xlu0 %3242
        %3276 = vrot.lane.b32.xlu0 %v2887, 32
        %v3277 = vpop.permute.xlu0 %3276
        %3278 = vrot.lane.b32.xlu0 %v2889, 32
        %v3279 = vpop.permute.xlu0 %3278
        %3280 = vrot.lane.b32.xlu0 %v2892, 32
        %v3281 = vpop.permute.xlu0 %3280
        %3282 = vrot.lane.b32.xlu0 %v2894, 32
        %v3283 = vpop.permute.xlu0 %3282
        %3284 = vrot.lane.b32.xlu0 %v2897, 32
        %v3285 = vpop.permute.xlu0 %3284
        %3286 = vrot.lane.b32.xlu0 %v2899, 32
        %v3287 = vpop.permute.xlu0 %3286
        %3288 = vrot.lane.b32.xlu0 %v2902, 32
        %v3289 = vpop.permute.xlu0 %3288
        %3290 = vrot.lane.b32.xlu0 %v2904, 32
        %v3291 = vpop.permute.xlu0 %3290
        %3292 = vrot.lane.b32.xlu0 %v2907, 32
        %v3293 = vpop.permute.xlu0 %3292
        %3294 = vrot.lane.b32.xlu0 %v2909, 32
        %v3295 = vpop.permute.xlu0 %3294
        %3296 = vrot.lane.b32.xlu0 %v2912, 32
        %v3297 = vpop.permute.xlu0 %3296
        %3298 = vrot.lane.b32.xlu0 %v2914, 32
        %v3299 = vpop.permute.xlu0 %3298
        %3300 = vrot.lane.b32.xlu0 %v2917, 32
        %v3301 = vpop.permute.xlu0 %3300
        %3302 = vrot.lane.b32.xlu0 %v2919, 32
        %v3303 = vpop.permute.xlu0 %3302
        %3304 = vrot.lane.b32.xlu0 %v2922, 32
        %v3305 = vpop.permute.xlu0 %3304
        %3306 = vrot.lane.b32.xlu0 %v2924, 32
        %v3307 = vpop.permute.xlu0 %3306
        %3308 = vrot.lane.b32.xlu0 %v2927, 32
        %v3309 = vpop.permute.xlu0 %3308
        %3310 = vrot.lane.b32.xlu0 %v2929, 32
        %v3311 = vpop.permute.xlu0 %3310
        %3312 = vrot.lane.b32.xlu0 %v2932, 32
        %v3313 = vpop.permute.xlu0 %3312
        %3314 = vrot.lane.b32.xlu0 %v2934, 32
        %v3315 = vpop.permute.xlu0 %3314
        %3316 = vrot.lane.b32.xlu0 %v2937, 32
        %v3317 = vpop.permute.xlu0 %3316
        %3318 = vrot.lane.b32.xlu0 %v2939, 32
        %v3319 = vpop.permute.xlu0 %3318
        %3320 = vrot.lane.b32.xlu0 %v2942, 32
        %v3321 = vpop.permute.xlu0 %3320
        %3322 = vrot.lane.b32.xlu0 %v2944, 32
        %v3323 = vpop.permute.xlu0 %3322
        %3324 = vrot.lane.b32.xlu0 %v2947, 32
        %v3325 = vpop.permute.xlu0 %3324
        %3326 = vrot.lane.b32.xlu0 %v2949, 32
        %v3327 = vpop.permute.xlu0 %3326
        %3328 = vrot.lane.b32.xlu0 %v2952, 32
        %v3329 = vpop.permute.xlu0 %3328
        %3330 = vrot.lane.b32.xlu0 %v2954, 32
        %v3331 = vpop.permute.xlu0 %3330
        %3332 = vrot.lane.b32.xlu0 %v2957, 32
        %v3333 = vpop.permute.xlu0 %3332
        %3334 = vrot.lane.b32.xlu0 %v2959, 32
        %v3335 = vpop.permute.xlu0 %3334
        %3336 = vrot.lane.b32.xlu0 %v2971, 32
        %v3337 = vpop.permute.xlu0 %3336
        %3338 = vrot.lane.b32.xlu0 %v2973, 32
        %v3339 = vpop.permute.xlu0 %3338
        %3372 = vrot.lane.b32.xlu0 %v2764, 64
        %v3373 = vpop.permute.xlu0 %3372
        %3374 = vrot.lane.b32.xlu0 %v2766, 64
        %v3375 = vpop.permute.xlu0 %3374
        %3376 = vrot.lane.b32.xlu0 %v2769, 64
        %v3377 = vpop.permute.xlu0 %3376
        %3378 = vrot.lane.b32.xlu0 %v2771, 64
        %v3379 = vpop.permute.xlu0 %3378
        %3380 = vrot.lane.b32.xlu0 %v2774, 64
        %v3381 = vpop.permute.xlu0 %3380
        %3382 = vrot.lane.b32.xlu0 %v2776, 64
        %v3383 = vpop.permute.xlu0 %3382
        %3384 = vrot.lane.b32.xlu0 %v2779, 64
        %v3385 = vpop.permute.xlu0 %3384
        %3386 = vrot.lane.b32.xlu0 %v2781, 64
        %v3387 = vpop.permute.xlu0 %3386
        %3388 = vrot.lane.b32.xlu0 %v2784, 64
        %v3389 = vpop.permute.xlu0 %3388
        %3390 = vrot.lane.b32.xlu0 %v2786, 64
        %v3391 = vpop.permute.xlu0 %3390
        %3392 = vrot.lane.b32.xlu0 %v2789, 64
        %v3393 = vpop.permute.xlu0 %3392
        %3394 = vrot.lane.b32.xlu0 %v2791, 64
        %v3395 = vpop.permute.xlu0 %3394
        %3396 = vrot.lane.b32.xlu0 %v2794, 64
        %v3397 = vpop.permute.xlu0 %3396
        %3398 = vrot.lane.b32.xlu0 %v2796, 64
        %v3399 = vpop.permute.xlu0 %3398
        %3400 = vrot.lane.b32.xlu0 %v2799, 64
        %v3401 = vpop.permute.xlu0 %3400
        %3402 = vrot.lane.b32.xlu0 %v2801, 64
        %v3403 = vpop.permute.xlu0 %3402
        %3404 = vrot.lane.b32.xlu0 %v2804, 64
        %v3405 = vpop.permute.xlu0 %3404
        %3406 = vrot.lane.b32.xlu0 %v2806, 64
        %v3407 = vpop.permute.xlu0 %3406
        %3408 = vrot.lane.b32.xlu0 %v2809, 64
        %v3409 = vpop.permute.xlu0 %3408
        %3410 = vrot.lane.b32.xlu0 %v2811, 64
        %v3411 = vpop.permute.xlu0 %3410
        %3412 = vrot.lane.b32.xlu0 %v2814, 64
        %v3413 = vpop.permute.xlu0 %3412
        %3414 = vrot.lane.b32.xlu0 %v2816, 64
        %v3415 = vpop.permute.xlu0 %3414
        %3416 = vrot.lane.b32.xlu0 %v2819, 64
        %v3417 = vpop.permute.xlu0 %3416
        %3418 = vrot.lane.b32.xlu0 %v2821, 64
        %v3419 = vpop.permute.xlu0 %3418
        %3420 = vrot.lane.b32.xlu0 %v2824, 64
        %v3421 = vpop.permute.xlu0 %3420
        %3422 = vrot.lane.b32.xlu0 %v2826, 64
        %v3423 = vpop.permute.xlu0 %3422
        %3424 = vrot.lane.b32.xlu0 %v2829, 64
        %v3425 = vpop.permute.xlu0 %3424
        %3426 = vrot.lane.b32.xlu0 %v2831, 64
        %v3427 = vpop.permute.xlu0 %3426
        %3428 = vrot.lane.b32.xlu0 %v2965, 64
        %v3429 = vpop.permute.xlu0 %3428
        %3430 = vrot.lane.b32.xlu0 %v2967, 64
        %v3431 = vpop.permute.xlu0 %3430
        %3432 = vrot.lane.b32.xlu0 %v2979, 64
        %v3433 = vpop.permute.xlu0 %3432
        %3434 = vrot.lane.b32.xlu0 %v2981, 64
        %v3435 = vpop.permute.xlu0 %3434
        %3468 = vrot.lane.b32.xlu0 %v2641, 96
        %v3469 = vpop.permute.xlu0 %3468
        %3470 = vrot.lane.b32.xlu0 %v2642, 96
        %v3471 = vpop.permute.xlu0 %3470
        %3472 = vrot.lane.b32.xlu0 %v2645, 96
        %v3473 = vpop.permute.xlu0 %3472
        %3474 = vrot.lane.b32.xlu0 %v2646, 96
        %v3475 = vpop.permute.xlu0 %3474
        %3476 = vrot.lane.b32.xlu0 %v2649, 96
        %v3477 = vpop.permute.xlu0 %3476
        %3478 = vrot.lane.b32.xlu0 %v2650, 96
        %v3479 = vpop.permute.xlu0 %3478
        %3480 = vrot.lane.b32.xlu0 %v2653, 96
        %v3481 = vpop.permute.xlu0 %3480
        %3482 = vrot.lane.b32.xlu0 %v2654, 96
        %v3483 = vpop.permute.xlu0 %3482
        %3484 = vrot.lane.b32.xlu0 %v2657, 96
        %v3485 = vpop.permute.xlu0 %3484
        %3486 = vrot.lane.b32.xlu0 %v2658, 96
        %v3487 = vpop.permute.xlu0 %3486
        %3488 = vrot.lane.b32.xlu0 %v2661, 96
        %v3489 = vpop.permute.xlu0 %3488
        %3490 = vrot.lane.b32.xlu0 %v2662, 96
        %v3491 = vpop.permute.xlu0 %3490
        %3492 = vrot.lane.b32.xlu0 %v2665, 96
        %v3493 = vpop.permute.xlu0 %3492
        %3494 = vrot.lane.b32.xlu0 %v2666, 96
        %v3495 = vpop.permute.xlu0 %3494
        %3496 = vrot.lane.b32.xlu0 %v2669, 96
        %v3497 = vpop.permute.xlu0 %3496
        %3498 = vrot.lane.b32.xlu0 %v2670, 96
        %v3499 = vpop.permute.xlu0 %3498
        %3500 = vrot.lane.b32.xlu0 %v2673, 96
        %v3501 = vpop.permute.xlu0 %3500
        %3502 = vrot.lane.b32.xlu0 %v2674, 96
        %v3503 = vpop.permute.xlu0 %3502
        %3504 = vrot.lane.b32.xlu0 %v2677, 96
        %v3505 = vpop.permute.xlu0 %3504
        %3506 = vrot.lane.b32.xlu0 %v2678, 96
        %v3507 = vpop.permute.xlu0 %3506
        %3508 = vrot.lane.b32.xlu0 %v2681, 96
        %v3509 = vpop.permute.xlu0 %3508
        %3510 = vrot.lane.b32.xlu0 %v2682, 96
        %v3511 = vpop.permute.xlu0 %3510
        %3512 = vrot.lane.b32.xlu0 %v2685, 96
        %v3513 = vpop.permute.xlu0 %3512
        %3514 = vrot.lane.b32.xlu0 %v2686, 96
        %v3515 = vpop.permute.xlu0 %3514
        %3516 = vrot.lane.b32.xlu0 %v2689, 96
        %v3517 = vpop.permute.xlu0 %3516
        %3518 = vrot.lane.b32.xlu0 %v2690, 96
        %v3519 = vpop.permute.xlu0 %3518
        %3520 = vrot.lane.b32.xlu0 %v2693, 96
        %v3521 = vpop.permute.xlu0 %3520
        %3522 = vrot.lane.b32.xlu0 %v2694, 96
        %v3523 = vpop.permute.xlu0 %3522
        %3524 = vrot.lane.b32.xlu0 %v2697, 96
        %v3525 = vpop.permute.xlu0 %3524
        %3526 = vrot.lane.b32.xlu0 %v2698, 96
        %v3527 = vpop.permute.xlu0 %3526
        %3528 = vrot.lane.b32.xlu0 %v2701, 96
        %v3529 = vpop.permute.xlu0 %3528
        %3530 = vrot.lane.b32.xlu0 %v2702, 96
        %v3531 = vpop.permute.xlu0 %3530
        %v3564 = vsel %vm566, %v2754, %v2989
        %v3565 = vsel %vm566, %v2756, %v2991
        %v3566 = vsel %vm566, %v2759, %v2993
        %v3567 = vsel %vm566, %v2761, %v2995
        %v3568 = vsel %vm566, %v2764, %v2997
        %v3569 = vsel %vm566, %v2766, %v2999
        %v3570 = vsel %vm566, %v2769, %v3001
        %v3571 = vsel %vm566, %v2771, %v3003
        %v3572 = vsel %vm566, %v2774, %v3005
        %v3573 = vsel %vm566, %v2776, %v3007
        %v3574 = vsel %vm566, %v2779, %v3009
        %v3575 = vsel %vm566, %v2781, %v3011
        %v3576 = vsel %vm566, %v2784, %v3013
        %v3577 = vsel %vm566, %v2786, %v3015
        %v3578 = vsel %vm566, %v2789, %v3017
        %v3579 = vsel %vm566, %v2791, %v3019
        %v3580 = vsel %vm566, %v2794, %v3021
        %v3581 = vsel %vm566, %v2796, %v3023
        %v3582 = vsel %vm566, %v2799, %v3025
        %v3583 = vsel %vm566, %v2801, %v3027
        %v3584 = vsel %vm566, %v2804, %v3029
        %v3585 = vsel %vm566, %v2806, %v3031
        %v3586 = vsel %vm566, %v2809, %v3033
        %v3587 = vsel %vm566, %v2811, %v3035
        %v3588 = vsel %vm566, %v2814, %v3037
        %v3589 = vsel %vm566, %v2816, %v3039
        %v3590 = vsel %vm566, %v2819, %v3041
        %v3591 = vsel %vm566, %v2821, %v3043
        %v3592 = vsel %vm566, %v2824, %v3045
        %v3593 = vsel %vm566, %v2826, %v3047
        %v3594 = vsel %vm566, %v2829, %v3049
        %v3595 = vsel %vm566, %v2831, %v3051
        %vm3596 = vcmask 523264
        %v3597 = vsel %vm3596, %v3564, %v3085
        %v3598 = vsel %vm3596, %v3565, %v3087
        %v3599 = vsel %vm3596, %v3566, %v3089
        %v3600 = vsel %vm3596, %v3567, %v3091
        %v3601 = vsel %vm3596, %v3568, %v3093
        %v3602 = vsel %vm3596, %v3569, %v3095
        %v3603 = vsel %vm3596, %v3570, %v3097
        %v3604 = vsel %vm3596, %v3571, %v3099
        %v3605 = vsel %vm3596, %v3572, %v3101
        %v3606 = vsel %vm3596, %v3573, %v3103
        %v3607 = vsel %vm3596, %v3574, %v3105
        %v3608 = vsel %vm3596, %v3575, %v3107
        %v3609 = vsel %vm3596, %v3576, %v3109
        %v3610 = vsel %vm3596, %v3577, %v3111
        %v3611 = vsel %vm3596, %v3578, %v3113
        %v3612 = vsel %vm3596, %v3579, %v3115
        %v3613 = vsel %vm3596, %v3580, %v3117
        %v3614 = vsel %vm3596, %v3581, %v3119
        %v3615 = vsel %vm3596, %v3582, %v3121
        %v3616 = vsel %vm3596, %v3583, %v3123
        %v3617 = vsel %vm3596, %v3584, %v3125
        %v3618 = vsel %vm3596, %v3585, %v3127
        %v3619 = vsel %vm3596, %v3586, %v3129
        %v3620 = vsel %vm3596, %v3587, %v3131
        %v3621 = vsel %vm3596, %v3588, %v3133
        %v3622 = vsel %vm3596, %v3589, %v3135
        %v3623 = vsel %vm3596, %v3590, %v3137
        %v3624 = vsel %vm3596, %v3591, %v3139
        %v3625 = vsel %vm3596, %v3592, %v3141
        %v3626 = vsel %vm3596, %v3593, %v3143
        %v3627 = vsel %vm3596, %v3594, %v3145
        %v3628 = vsel %vm3596, %v3595, %v3147
        %vm3629 = vcmask 785408
        %v3630 = vsel %vm3629, %v3597, %v3181
        %v3631 = vsel %vm3629, %v3598, %v3183
        %v3632 = vsel %vm3629, %v3599, %v3185
        %v3633 = vsel %vm3629, %v3600, %v3187
        %v3634 = vsel %vm3629, %v3601, %v3189
        %v3635 = vsel %vm3629, %v3602, %v3191
        %v3636 = vsel %vm3629, %v3603, %v3193
        %v3637 = vsel %vm3629, %v3604, %v3195
        %v3638 = vsel %vm3629, %v3605, %v3197
        %v3639 = vsel %vm3629, %v3606, %v3199
        %v3640 = vsel %vm3629, %v3607, %v3201
        %v3641 = vsel %vm3629, %v3608, %v3203
        %v3642 = vsel %vm3629, %v3609, %v3205
        %v3643 = vsel %vm3629, %v3610, %v3207
        %v3644 = vsel %vm3629, %v3611, %v3209
        %v3645 = vsel %vm3629, %v3612, %v3211
        %v3646 = vsel %vm3629, %v3613, %v3213
        %v3647 = vsel %vm3629, %v3614, %v3215
        %v3648 = vsel %vm3629, %v3615, %v3217
        %v3649 = vsel %vm3629, %v3616, %v3219
        %v3650 = vsel %vm3629, %v3617, %v3221
        %v3651 = vsel %vm3629, %v3618, %v3223
        %v3652 = vsel %vm3629, %v3619, %v3225
        %v3653 = vsel %vm3629, %v3620, %v3227
        %v3654 = vsel %vm3629, %v3621, %v3229
        %v3655 = vsel %vm3629, %v3622, %v3231
        %v3656 = vsel %vm3629, %v3623, %v3233
        %v3657 = vsel %vm3629, %v3624, %v3235
        %v3658 = vsel %vm3629, %v3625, %v3237
        %v3659 = vsel %vm3629, %v3626, %v3239
        %v3660 = vsel %vm3629, %v3627, %v3241
        %v3661 = vsel %vm3629, %v3628, %v3243
        %v3662 = vsel %vm566, %v2637, %v3277
        %v3663 = vsel %vm566, %v2638, %v3279
        %v3664 = vsel %vm566, %v2641, %v3281
        %v3665 = vsel %vm566, %v2642, %v3283
        %v3666 = vsel %vm566, %v2645, %v3285
        %v3667 = vsel %vm566, %v2646, %v3287
        %v3668 = vsel %vm566, %v2649, %v3289
        %v3669 = vsel %vm566, %v2650, %v3291
        %v3670 = vsel %vm566, %v2653, %v3293
        %v3671 = vsel %vm566, %v2654, %v3295
        %v3672 = vsel %vm566, %v2657, %v3297
        %v3673 = vsel %vm566, %v2658, %v3299
        %v3674 = vsel %vm566, %v2661, %v3301
        %v3675 = vsel %vm566, %v2662, %v3303
        %v3676 = vsel %vm566, %v2665, %v3305
        %v3677 = vsel %vm566, %v2666, %v3307
        %v3678 = vsel %vm566, %v2669, %v3309
        %v3679 = vsel %vm566, %v2670, %v3311
        %v3680 = vsel %vm566, %v2673, %v3313
        %v3681 = vsel %vm566, %v2674, %v3315
        %v3682 = vsel %vm566, %v2677, %v3317
        %v3683 = vsel %vm566, %v2678, %v3319
        %v3684 = vsel %vm566, %v2681, %v3321
        %v3685 = vsel %vm566, %v2682, %v3323
        %v3686 = vsel %vm566, %v2685, %v3325
        %v3687 = vsel %vm566, %v2686, %v3327
        %v3688 = vsel %vm566, %v2689, %v3329
        %v3689 = vsel %vm566, %v2690, %v3331
        %v3690 = vsel %vm566, %v2693, %v3333
        %v3691 = vsel %vm566, %v2694, %v3335
        %v3692 = vsel %vm566, %v2697, %v3337
        %v3693 = vsel %vm566, %v2698, %v3339
        %v3694 = vsel %vm3596, %v3662, %v3373
        %v3695 = vsel %vm3596, %v3663, %v3375
        %v3696 = vsel %vm3596, %v3664, %v3377
        %v3697 = vsel %vm3596, %v3665, %v3379
        %v3698 = vsel %vm3596, %v3666, %v3381
        %v3699 = vsel %vm3596, %v3667, %v3383
        %v3700 = vsel %vm3596, %v3668, %v3385
        %v3701 = vsel %vm3596, %v3669, %v3387
        %v3702 = vsel %vm3596, %v3670, %v3389
        %v3703 = vsel %vm3596, %v3671, %v3391
        %v3704 = vsel %vm3596, %v3672, %v3393
        %v3705 = vsel %vm3596, %v3673, %v3395
        %v3706 = vsel %vm3596, %v3674, %v3397
        %v3707 = vsel %vm3596, %v3675, %v3399
        %v3708 = vsel %vm3596, %v3676, %v3401
        %v3709 = vsel %vm3596, %v3677, %v3403
        %v3710 = vsel %vm3596, %v3678, %v3405
        %v3711 = vsel %vm3596, %v3679, %v3407
        %v3712 = vsel %vm3596, %v3680, %v3409
        %v3713 = vsel %vm3596, %v3681, %v3411
        %v3714 = vsel %vm3596, %v3682, %v3413
        %v3715 = vsel %vm3596, %v3683, %v3415
        %v3716 = vsel %vm3596, %v3684, %v3417
        %v3717 = vsel %vm3596, %v3685, %v3419
        %v3718 = vsel %vm3596, %v3686, %v3421
        %v3719 = vsel %vm3596, %v3687, %v3423
        %v3720 = vsel %vm3596, %v3688, %v3425
        %v3721 = vsel %vm3596, %v3689, %v3427
        %v3722 = vsel %vm3596, %v3690, %v3429
        %v3723 = vsel %vm3596, %v3691, %v3431
        %v3724 = vsel %vm3596, %v3692, %v3433
        %v3725 = vsel %vm3596, %v3693, %v3435
        %v3726 = vsel %vm3629, %v3694, %v3469
        %v3727 = vsel %vm3629, %v3695, %v3471
        %v3728 = vsel %vm3629, %v3696, %v3473
        %v3729 = vsel %vm3629, %v3697, %v3475
        %v3730 = vsel %vm3629, %v3698, %v3477
        %v3731 = vsel %vm3629, %v3699, %v3479
        %v3732 = vsel %vm3629, %v3700, %v3481
        %v3733 = vsel %vm3629, %v3701, %v3483
        %v3734 = vsel %vm3629, %v3702, %v3485
        %v3735 = vsel %vm3629, %v3703, %v3487
        %v3736 = vsel %vm3629, %v3704, %v3489
        %v3737 = vsel %vm3629, %v3705, %v3491
        %v3738 = vsel %vm3629, %v3706, %v3493
        %v3739 = vsel %vm3629, %v3707, %v3495
        %v3740 = vsel %vm3629, %v3708, %v3497
        %v3741 = vsel %vm3629, %v3709, %v3499
        %v3742 = vsel %vm3629, %v3710, %v3501
        %v3743 = vsel %vm3629, %v3711, %v3503
        %v3744 = vsel %vm3629, %v3712, %v3505
        %v3745 = vsel %vm3629, %v3713, %v3507
        %v3746 = vsel %vm3629, %v3714, %v3509
        %v3747 = vsel %vm3629, %v3715, %v3511
        %v3748 = vsel %vm3629, %v3716, %v3513
        %v3749 = vsel %vm3629, %v3717, %v3515
        %v3750 = vsel %vm3629, %v3718, %v3517
        %v3751 = vsel %vm3629, %v3719, %v3519
        %v3752 = vsel %vm3629, %v3720, %v3521
        %v3753 = vsel %vm3629, %v3721, %v3523
        %v3754 = vsel %vm3629, %v3722, %v3525
        %v3755 = vsel %vm3629, %v3723, %v3527
        %v3756 = vsel %vm3629, %v3724, %v3529
        %v3757 = vsel %vm3629, %v3725, %v3531
        %v3758 = vld [vmem:[%s4] sm:$0xff]
        %v3759 = vld [vmem:[%s4 + $0x8] sm:$0xff]
        %v3760 = vld [vmem:[%s4 + $0x10] sm:$0xff]
        %v3761 = vld [vmem:[%s4 + $0x18] sm:$0xff]
        %v3762 = vld [vmem:[%s4 + $0x20] sm:$0xff]
        %v3763 = vld [vmem:[%s4 + $0x28] sm:$0xff]
        %v3764 = vld [vmem:[%s4 + $0x30] sm:$0xff]
        %v3765 = vld [vmem:[%s4 + $0x38] sm:$0xff]
        %v3766 = vld [vmem:[%s4 + $0x40] sm:$0xff]
        %v3767 = vld [vmem:[%s4 + $0x48] sm:$0xff]
        %v3768 = vld [vmem:[%s4 + $0x50] sm:$0xff]
        %v3769 = vld [vmem:[%s4 + $0x58] sm:$0xff]
        %v3770 = vld [vmem:[%s4 + $0x60] sm:$0xff]
        %v3771 = vld [vmem:[%s4 + $0x68] sm:$0xff]
        %v3772 = vld [vmem:[%s4 + $0x70] sm:$0xff]
        %v3773 = vld [vmem:[%s4 + $0x78] sm:$0xff]
        %v3774 = vld [vmem:[%s4 + $0x80] sm:$0xff]
        %v3775 = vld [vmem:[%s4 + $0x88] sm:$0xff]
        %v3776 = vld [vmem:[%s4 + $0x90] sm:$0xff]
        %v3777 = vld [vmem:[%s4 + $0x98] sm:$0xff]
        %v3778 = vld [vmem:[%s4 + $0xa0] sm:$0xff]
        %v3779 = vld [vmem:[%s4 + $0xa8] sm:$0xff]
        %v3780 = vld [vmem:[%s4 + $0xb0] sm:$0xff]
        %v3781 = vld [vmem:[%s4 + $0xb8] sm:$0xff]
        %v3782 = vld [vmem:[%s4 + $0xc0] sm:$0xff]
        %v3783 = vld [vmem:[%s4 + $0xc8] sm:$0xff]
        %v3784 = vld [vmem:[%s4 + $0xd0] sm:$0xff]
        %v3785 = vld [vmem:[%s4 + $0xd8] sm:$0xff]
        %v3786 = vld [vmem:[%s4 + $0xe0] sm:$0xff]
        %v3787 = vld [vmem:[%s4 + $0xe8] sm:$0xff]
        %v3788 = vld [vmem:[%s4 + $0xf0] sm:$0xff]
        %v3789 = vld [vmem:[%s4 + $0xf8] sm:$0xff]
        %v3790 = vld [vmem:[%s4 + $0x100] sm:$0xff]
        %v3791 = vld [vmem:[%s4 + $0x108] sm:$0xff]
        %v3792 = vld [vmem:[%s4 + $0x110] sm:$0xff]
        %v3793 = vld [vmem:[%s4 + $0x118] sm:$0xff]
        %v3794 = vsel %vm566, %v2892, 0
        %v3796 = vsel %vm566, %v2894, 0
        %v3798 = vsel %vm566, %v2897, 0
        %v3800 = vsel %vm566, %v2899, 0
        %v3802 = vsel %vm566, %v2902, 0
        %v3804 = vsel %vm566, %v2904, 0
        %v3806 = vsel %vm566, %v2907, 0
        %v3808 = vsel %vm566, %v2909, 0
        %v3810 = vsel %vm566, %v2912, 0
        %v3812 = vsel %vm566, %v2914, 0
        %v3814 = vsel %vm566, %v2917, 0
        %v3816 = vsel %vm566, %v2919, 0
        %v3818 = vsel %vm566, %v2922, 0
        %v3820 = vsel %vm566, %v2924, 0
        %v3822 = vsel %vm566, %v2927, 0
        %v3824 = vsel %vm566, %v2929, 0
        %v3826 = vsel %vm566, %v2932, 0
        %v3828 = vsel %vm566, %v2934, 0
        %v3830 = vsel %vm566, %v2937, 0
        %v3832 = vsel %vm566, %v2939, 0
        %v3834 = vsel %vm566, %v2942, 0
        %v3836 = vsel %vm566, %v2944, 0
        %v3838 = vsel %vm566, %v2947, 0
        %v3840 = vsel %vm566, %v2949, 0
        %v3842 = vsel %vm566, %v2952, 0
        %v3844 = vsel %vm566, %v2954, 0
        %v3846 = vsel %vm566, %v2957, 0
        %v3848 = vsel %vm566, %v2959, 0
        %v3850 = vsel %vm566, %v2971, 0
        %v3852 = vsel %vm566, %v2973, 0
        %v3854 = vsel %vm566, %v2985, 0
        %v3856 = vsel %vm566, %v2987, 0
        %3858 = vmatprep.subr.mxu0 0.0
        %3859 = vmatpush1.msra.mxu0 %v3758
        %3860 = vmatprep.subr.mxu0 0.0
        %3861 = vmatpush1.msra.mxu0 %v3759
        %3862 = vmatprep.subr.mxu0 0.0
        %3863 = vmatpush1.msra.mxu0 %v3760
        %3864 = vmatprep.subr.mxu0 0.0
        %3865 = vmatpush1.msra.mxu0 %v3761
        %3866 = vmatprep.subr.mxu0 0.0
        %3867 = vmatpush1.msra.mxu0 %v3762
        %3868 = vmatprep.subr.mxu0 0.0
        %3869 = vmatpush1.msra.mxu0 %v3763
        %3870 = vmatprep.subr.mxu0 0.0
        %3871 = vmatpush1.msra.mxu0 %v3764
        %3872 = vmatprep.subr.mxu0 0.0
        %3873 = vmatpush1.msra.mxu0 %v3765
        %3874 = vmatprep.subr.mxu0 0.0
        %3875 = vmatpush1.msra.mxu0 %v3766
        %3876 = vmatprep.subr.mxu0 0.0
        %3877 = vmatpush1.msra.mxu0 %v3767
        %3878 = vmatprep.subr.mxu0 0.0
        %3879 = vmatpush1.msra.mxu0 %v3768
        %3880 = vmatprep.subr.mxu0 0.0
        %3881 = vmatpush1.msra.mxu0 %v3769
        %3882 = vmatprep.subr.mxu0 0.0
        %3883 = vmatpush1.msra.mxu0 %v3770
        %3884 = vmatprep.subr.mxu0 0.0
        %3885 = vmatpush1.msra.mxu0 %v3771
        %3886 = vmatprep.subr.mxu0 0.0
        %3887 = vmatpush1.msra.mxu0 %v3772
        %3888 = vmatprep.subr.mxu0 0.0
        %3889 = vmatpush1.msra.mxu0 %v3773
        %3890 = vmatprep.subr.mxu0 0.0
        %3891 = vmatpush1.msra.mxu0 %v3774
        %3892 = vmatprep.subr.mxu0 0.0
        %3893 = vmatpush1.msra.mxu0 %v3775
        %3894 = vmatprep.subr.mxu0 0.0
        %3895 = vmatpush1.msra.mxu0 %v3776
        %3896 = vmatprep.subr.mxu0 0.0
        %3897 = vmatpush1.msra.mxu0 %v3777
        %3898 = vmatprep.subr.mxu0 0.0
        %3899 = vmatpush1.msra.mxu0 %v3778
        %3900 = vmatprep.subr.mxu0 0.0
        %3901 = vmatpush1.msra.mxu0 %v3779
        %3902 = vmatprep.subr.mxu0 0.0
        %3903 = vmatpush1.msra.mxu0 %v3780
        %3904 = vmatprep.subr.mxu0 0.0
        %3905 = vmatpush1.msra.mxu0 %v3781
        %3906 = vmatprep.subr.mxu0 0.0
        %3907 = vmatpush1.msra.mxu0 %v3782
        %3908 = vmatprep.subr.mxu0 0.0
        %3909 = vmatpush1.msra.mxu0 %v3783
        %3910 = vmatprep.subr.mxu0 0.0
        %3911 = vmatpush1.msra.mxu0 %v3784
        %3912 = vmatprep.subr.mxu0 0.0
        %3913 = vmatpush1.msra.mxu0 %v3785
        %3914 = vmatprep.subr.mxu0 0.0
        %3915 = vmatpush1.msra.mxu0 %v3786
        %3916 = vmatprep.subr.mxu0 0.0
        %3917 = vmatpush1.msra.mxu0 %v3787
        %3918 = vmatprep.subr.mxu0 0.0
        %3919 = vmatpush1.msra.mxu0 %v3788
        %3920 = vmatprep.subr.mxu0 0.0
        %3921 = vmatpush1.msra.mxu0 %v3789
        %3922 = vmatprep.mubr.f32.mxu0 %v3726
        %3923 = vmatmul.mubr.f32.gmra.mrb[0].mxu0 %v3630
        %v3924 = vpop.f32.mrb[0].mxu0
        %v3925 = vadd.f32 0.0, %v3924
        %v3926 = vpop.f32.mrb[0].mxu0
        %3927 = vmatprep.mubr.f32.mxu0 %v3727
        %3928 = vmatmul.mubr.f32.gmra.mrb[0].mxu0 %v3631
        %v3929 = vpop.f32.mrb[0].mxu0
        %v3930 = vadd.f32 0.0, %v3929
        %v3931 = vpop.f32.mrb[0].mxu0
        %3932 = vmatprep.mubr.f32.mxu0 %v3728
        %3933 = vmatmul.mubr.f32.gmra.mrb[0].mxu0 %v3632
        %v3934 = vpop.f32.mrb[0].mxu0
        %v3935 = vadd.f32 0.0, %v3934
        %v3936 = vpop.f32.mrb[0].mxu0
        %3937 = vmatprep.mubr.f32.mxu0 %v3729
        %3938 = vmatmul.mubr.f32.gmra.mrb[0].mxu0 %v3633
        %v3939 = vpop.f32.mrb[0].mxu0
        %v3940 = vadd.f32 0.0, %v3939
        %v3941 = vpop.f32.mrb[0].mxu0
        %3942 = vmatprep.mubr.f32.mxu0 %v3730
        %3943 = vmatmul.mubr.f32.gmra.mrb[0].mxu0 %v3634
        %v3944 = vpop.f32.mrb[0].mxu0
        %v3945 = vadd.f32 0.0, %v3944
        %v3946 = vpop.f32.mrb[0].mxu0
        %3947 = vmatprep.mubr.f32.mxu0 %v3731
        %3948 = vmatmul.mubr.f32.gmra.mrb[0].mxu0 %v3635
        %v3949 = vpop.f32.mrb[0].mxu0
        %v3950 = vadd.f32 0.0, %v3949
        %v3951 = vpop.f32.mrb[0].mxu0
        %3952 = vmatprep.mubr.f32.mxu0 %v3732
        %3953 = vmatmul.mubr.f32.gmra.mrb[0].mxu0 %v3636
        %v3954 = vpop.f32.mrb[0].mxu0
        %v3955 = vadd.f32 0.0, %v3954
        %v3956 = vpop.f32.mrb[0].mxu0
        %3957 = vmatprep.mubr.f32.mxu0 %v3733
        %3958 = vmatmul.mubr.f32.gmra.mrb[0].mxu0 %v3637
        %v3959 = vpop.f32.mrb[0].mxu0
        %v3960 = vadd.f32 0.0, %v3959
        %v3961 = vpop.f32.mrb[0].mxu0
        %3962 = vmatprep.mubr.f32.mxu0 %v3734
        %3963 = vmatmul.mubr.f32.gmra.mrb[0].mxu0 %v3638
        %v3964 = vpop.f32.mrb[0].mxu0
        %v3965 = vadd.f32 0.0, %v3964
        %v3966 = vpop.f32.mrb[0].mxu0
        %3967 = vmatprep.mubr.f32.mxu0 %v3735
        %3968 = vmatmul.mubr.f32.gmra.mrb[0].mxu0 %v3639
        %v3969 = vpop.f32.mrb[0].mxu0
        %v3970 = vadd.f32 0.0, %v3969
        %v3971 = vpop.f32.mrb[0].mxu0
        %3972 = vmatprep.mubr.f32.mxu0 %v3736
        %3973 = vmatmul.mubr.f32.gmra.mrb[0].mxu0 %v3640
        %v3974 = vpop.f32.mrb[0].mxu0
        %v3975 = vadd.f32 0.0, %v3974
        %v3976 = vpop.f32.mrb[0].mxu0
        %3977 = vmatprep.mubr.f32.mxu0 %v3737
        %3978 = vmatmul.mubr.f32.gmra.mrb[0].mxu0 %v3641
        %v3979 = vpop.f32.mrb[0].mxu0
        %v3980 = vadd.f32 0.0, %v3979
        %v3981 = vpop.f32.mrb[0].mxu0
        %3982 = vmatprep.mubr.f32.mxu0 %v3738
        %3983 = vmatmul.mubr.f32.gmra.mrb[0].mxu0 %v3642
        %v3984 = vpop.f32.mrb[0].mxu0
        %v3985 = vadd.f32 0.0, %v3984
        %v3986 = vpop.f32.mrb[0].mxu0
        %3987 = vmatprep.mubr.f32.mxu0 %v3739
        %3988 = vmatmul.mubr.f32.gmra.mrb[0].mxu0 %v3643
        %v3989 = vpop.f32.mrb[0].mxu0
        %v3990 = vadd.f32 0.0, %v3989
        %v3991 = vpop.f32.mrb[0].mxu0
        %3992 = vmatprep.mubr.f32.mxu0 %v3740
        %3993 = vmatmul.mubr.f32.gmra.mrb[0].mxu0 %v3644
        %v3994 = vpop.f32.mrb[0].mxu0
        %v3995 = vadd.f32 0.0, %v3994
        %v3996 = vpop.f32.mrb[0].mxu0
        %3997 = vmatprep.mubr.f32.mxu0 %v3741
        %3998 = vmatmul.mubr.f32.gmra.mrb[0].mxu0 %v3645
        %v3999 = vpop.f32.mrb[0].mxu0
        %v4000 = vadd.f32 0.0, %v3999
        %v4001 = vpop.f32.mrb[0].mxu0
        %4002 = vmatprep.mubr.f32.mxu0 %v3742
        %4003 = vmatmul.mubr.f32.gmra.mrb[0].mxu0 %v3646
        %v4004 = vpop.f32.mrb[0].mxu0
        %v4005 = vadd.f32 0.0, %v4004
        %v4006 = vpop.f32.mrb[0].mxu0
        %4007 = vmatprep.mubr.f32.mxu0 %v3743
        %4008 = vmatmul.mubr.f32.gmra.mrb[0].mxu0 %v3647
        %v4009 = vpop.f32.mrb[0].mxu0
        %v4010 = vadd.f32 0.0, %v4009
        %v4011 = vpop.f32.mrb[0].mxu0
        %4012 = vmatprep.mubr.f32.mxu0 %v3744
        %4013 = vmatmul.mubr.f32.gmra.mrb[0].mxu0 %v3648
        %v4014 = vpop.f32.mrb[0].mxu0
        %v4015 = vadd.f32 0.0, %v4014
        %v4016 = vpop.f32.mrb[0].mxu0
        %4017 = vmatprep.mubr.f32.mxu0 %v3745
        %4018 = vmatmul.mubr.f32.gmra.mrb[0].mxu0 %v3649
        %v4019 = vpop.f32.mrb[0].mxu0
        %v4020 = vadd.f32 0.0, %v4019
        %v4021 = vpop.f32.mrb[0].mxu0
        %4022 = vmatprep.mubr.f32.mxu0 %v3746
        %4023 = vmatmul.mubr.f32.gmra.mrb[0].mxu0 %v3650
        %v4024 = vpop.f32.mrb[0].mxu0
        %v4025 = vadd.f32 0.0, %v4024
        %v4026 = vpop.f32.mrb[0].mxu0
        %4027 = vmatprep.mubr.f32.mxu0 %v3747
        %4028 = vmatmul.mubr.f32.gmra.mrb[0].mxu0 %v3651
        %v4029 = vpop.f32.mrb[0].mxu0
        %v4030 = vadd.f32 0.0, %v4029
        %v4031 = vpop.f32.mrb[0].mxu0
        %4032 = vmatprep.mubr.f32.mxu0 %v3748
        %4033 = vmatmul.mubr.f32.gmra.mrb[0].mxu0 %v3652
        %v4034 = vpop.f32.mrb[0].mxu0
        %v4035 = vadd.f32 0.0, %v4034
        %v4036 = vpop.f32.mrb[0].mxu0
        %4037 = vmatprep.mubr.f32.mxu0 %v3749
        %4038 = vmatmul.mubr.f32.gmra.mrb[0].mxu0 %v3653
        %v4039 = vpop.f32.mrb[0].mxu0
        %v4040 = vadd.f32 0.0, %v4039
        %v4041 = vpop.f32.mrb[0].mxu0
        %4042 = vmatprep.mubr.f32.mxu0 %v3750
        %4043 = vmatmul.mubr.f32.gmra.mrb[0].mxu0 %v3654
        %v4044 = vpop.f32.mrb[0].mxu0
        %v4045 = vadd.f32 0.0, %v4044
        %v4046 = vpop.f32.mrb[0].mxu0
        %4047 = vmatprep.mubr.f32.mxu0 %v3751
        %4048 = vmatmul.mubr.f32.gmra.mrb[0].mxu0 %v3655
        %v4049 = vpop.f32.mrb[0].mxu0
        %v4050 = vadd.f32 0.0, %v4049
        %v4051 = vpop.f32.mrb[0].mxu0
        %4052 = vmatprep.mubr.f32.mxu0 %v3752
        %4053 = vmatmul.mubr.f32.gmra.mrb[0].mxu0 %v3656
        %v4054 = vpop.f32.mrb[0].mxu0
        %v4055 = vadd.f32 0.0, %v4054
        %v4056 = vpop.f32.mrb[0].mxu0
        %4057 = vmatprep.mubr.f32.mxu0 %v3753
        %4058 = vmatmul.mubr.f32.gmra.mrb[0].mxu0 %v3657
        %v4059 = vpop.f32.mrb[0].mxu0
        %v4060 = vadd.f32 0.0, %v4059
        %v4061 = vpop.f32.mrb[0].mxu0
        %4062 = vmatprep.mubr.f32.mxu0 %v3754
        %4063 = vmatmul.mubr.f32.gmra.mrb[0].mxu0 %v3658
        %v4064 = vpop.f32.mrb[0].mxu0
        %v4065 = vadd.f32 0.0, %v4064
        %v4066 = vpop.f32.mrb[0].mxu0
        %4067 = vmatprep.mubr.f32.mxu0 %v3755
        %4068 = vmatmul.mubr.f32.gmra.mrb[0].mxu0 %v3659
        %v4069 = vpop.f32.mrb[0].mxu0
        %v4070 = vadd.f32 0.0, %v4069
        %v4071 = vpop.f32.mrb[0].mxu0
        %4072 = vmatprep.mubr.f32.mxu0 %v3756
        %4073 = vmatmul.mubr.f32.gmra.mrb[0].mxu0 %v3660
        %v4074 = vpop.f32.mrb[0].mxu0
        %v4075 = vadd.f32 0.0, %v4074
        %v4076 = vpop.f32.mrb[0].mxu0
        %4077 = vmatprep.mubr.f32.mxu0 %v3757
        %4078 = vmatmul.mubr.f32.gmra.mrb[0].mxu0 %v3661
        %v4079 = vpop.f32.mrb[0].mxu0
        %v4080 = vadd.f32 0.0, %v4079
        %v4081 = vpop.f32.mrb[0].mxu0
        %4082 = vdwg.mxu0
        %4083 = vmatprep.subr.mxu0 0.0
        %4084 = vmatpush1.msra.mxu0 %v3790
        %4085 = vmatprep.subr.mxu0 0.0
        %4086 = vmatpush1.msra.mxu0 %v3791
        %4087 = vmatprep.subr.mxu0 0.0
        %4088 = vmatpush1.msra.mxu0 %v3792
        %4089 = vmatprep.subr.mxu0 0.0
        %4090 = vmatpush1.msra.mxu0 %v3793
        %4091 = vmatprep.subr.mxu0 0.0
        %4092 = vmatpush1.msra.mxu0 0.0
        %4093 = vmatprep.subr.mxu0 0.0
        %4094 = vmatpush1.msra.mxu0 0.0
        %4095 = vmatprep.subr.mxu0 0.0
        %4096 = vmatpush1.msra.mxu0 0.0
        %4097 = vmatprep.subr.mxu0 0.0
        %4098 = vmatpush1.msra.mxu0 0.0
        %4099 = vmatprep.subr.mxu0 0.0
        %4100 = vmatpush1.msra.mxu0 0.0
        %4101 = vmatprep.subr.mxu0 0.0
        %4102 = vmatpush1.msra.mxu0 0.0
        %4103 = vmatprep.subr.mxu0 0.0
        %4104 = vmatpush1.msra.mxu0 0.0
        %4105 = vmatprep.subr.mxu0 0.0
        %4106 = vmatpush1.msra.mxu0 0.0
        %4107 = vmatprep.subr.mxu0 0.0
        %4108 = vmatpush1.msra.mxu0 0.0
        %4109 = vmatprep.subr.mxu0 0.0
        %4110 = vmatpush1.msra.mxu0 0.0
        %4111 = vmatprep.subr.mxu0 0.0
        %4112 = vmatpush1.msra.mxu0 0.0
        %4113 = vmatprep.subr.mxu0 0.0
        %4114 = vmatpush1.msra.mxu0 0.0
        %4115 = vmatprep.subr.mxu0 0.0
        %4116 = vmatpush1.msra.mxu0 0.0
        %4117 = vmatprep.subr.mxu0 0.0
        %4118 = vmatpush1.msra.mxu0 0.0
        %4119 = vmatprep.subr.mxu0 0.0
        %4120 = vmatpush1.msra.mxu0 0.0
        %4121 = vmatprep.subr.mxu0 0.0
        %4122 = vmatpush1.msra.mxu0 0.0
        %4123 = vmatprep.subr.mxu0 0.0
        %4124 = vmatpush1.msra.mxu0 0.0
        %4125 = vmatprep.subr.mxu0 0.0
        %4126 = vmatpush1.msra.mxu0 0.0
        %4127 = vmatprep.subr.mxu0 0.0
        %4128 = vmatpush1.msra.mxu0 0.0
        %4129 = vmatprep.subr.mxu0 0.0
        %4130 = vmatpush1.msra.mxu0 0.0
        %4131 = vmatprep.subr.mxu0 0.0
        %4132 = vmatpush1.msra.mxu0 0.0
        %4133 = vmatprep.subr.mxu0 0.0
        %4134 = vmatpush1.msra.mxu0 0.0
        %4135 = vmatprep.subr.mxu0 0.0
        %4136 = vmatpush1.msra.mxu0 0.0
        %4137 = vmatprep.subr.mxu0 0.0
        %4138 = vmatpush1.msra.mxu0 0.0
        %4139 = vmatprep.subr.mxu0 0.0
        %4140 = vmatpush1.msra.mxu0 0.0
        %4141 = vmatprep.subr.mxu0 0.0
        %4142 = vmatpush1.msra.mxu0 0.0
        %4143 = vmatprep.subr.mxu0 0.0
        %4144 = vmatpush1.msra.mxu0 0.0
        %4145 = vmatprep.subr.mxu0 0.0
        %4146 = vmatpush1.msra.mxu0 0.0
        %4147 = vmatprep.mubr.f32.mxu0 0.0
        %4148 = vmatmul.mubr.f32.gmra.mrb[0].mxu0 %v3794
        %v4149 = vpop.f32.mrb[0].mxu0
        %v4150 = vadd.f32 %v3925, %v4149
        %v4151 = vpop.f32.mrb[0].mxu0
        %4152 = vmatprep.mubr.f32.mxu0 0.0
        %4153 = vmatmul.mubr.f32.gmra.mrb[0].mxu0 %v3796
        %v4154 = vpop.f32.mrb[0].mxu0
        %v4155 = vadd.f32 %v3930, %v4154
        %v4156 = vpop.f32.mrb[0].mxu0
        %4157 = vmatprep.mubr.f32.mxu0 0.0
        %4158 = vmatmul.mubr.f32.gmra.mrb[0].mxu0 %v3798
        %v4159 = vpop.f32.mrb[0].mxu0
        %v4160 = vadd.f32 %v3935, %v4159
        %v4161 = vpop.f32.mrb[0].mxu0
        %4162 = vmatprep.mubr.f32.mxu0 0.0
        %4163 = vmatmul.mubr.f32.gmra.mrb[0].mxu0 %v3800
        %v4164 = vpop.f32.mrb[0].mxu0
        %v4165 = vadd.f32 %v3940, %v4164
        %v4166 = vpop.f32.mrb[0].mxu0
        %4167 = vmatprep.mubr.f32.mxu0 0.0
        %4168 = vmatmul.mubr.f32.gmra.mrb[0].mxu0 %v3802
        %v4169 = vpop.f32.mrb[0].mxu0
        %v4170 = vadd.f32 %v3945, %v4169
        %v4171 = vpop.f32.mrb[0].mxu0
        %4172 = vmatprep.mubr.f32.mxu0 0.0
        %4173 = vmatmul.mubr.f32.gmra.mrb[0].mxu0 %v3804
        %v4174 = vpop.f32.mrb[0].mxu0
        %v4175 = vadd.f32 %v3950, %v4174
        %v4176 = vpop.f32.mrb[0].mxu0
        %4177 = vmatprep.mubr.f32.mxu0 0.0
        %4178 = vmatmul.mubr.f32.gmra.mrb[0].mxu0 %v3806
        %v4179 = vpop.f32.mrb[0].mxu0
        %v4180 = vadd.f32 %v3955, %v4179
        %v4181 = vpop.f32.mrb[0].mxu0
        %4182 = vmatprep.mubr.f32.mxu0 0.0
        %4183 = vmatmul.mubr.f32.gmra.mrb[0].mxu0 %v3808
        %v4184 = vpop.f32.mrb[0].mxu0
        %v4185 = vadd.f32 %v3960, %v4184
        %v4186 = vpop.f32.mrb[0].mxu0
        %4187 = vmatprep.mubr.f32.mxu0 0.0
        %4188 = vmatmul.mubr.f32.gmra.mrb[0].mxu0 %v3810
        %v4189 = vpop.f32.mrb[0].mxu0
        %v4190 = vadd.f32 %v3965, %v4189
        %v4191 = vpop.f32.mrb[0].mxu0
        %4192 = vmatprep.mubr.f32.mxu0 0.0
        %4193 = vmatmul.mubr.f32.gmra.mrb[0].mxu0 %v3812
        %v4194 = vpop.f32.mrb[0].mxu0
        %v4195 = vadd.f32 %v3970, %v4194
        %v4196 = vpop.f32.mrb[0].mxu0
        %4197 = vmatprep.mubr.f32.mxu0 0.0
        %4198 = vmatmul.mubr.f32.gmra.mrb[0].mxu0 %v3814
        %v4199 = vpop.f32.mrb[0].mxu0
        %v4200 = vadd.f32 %v3975, %v4199
        %v4201 = vpop.f32.mrb[0].mxu0
        %4202 = vmatprep.mubr.f32.mxu0 0.0
        %4203 = vmatmul.mubr.f32.gmra.mrb[0].mxu0 %v3816
        %v4204 = vpop.f32.mrb[0].mxu0
        %v4205 = vadd.f32 %v3980, %v4204
        %v4206 = vpop.f32.mrb[0].mxu0
        %4207 = vmatprep.mubr.f32.mxu0 0.0
        %4208 = vmatmul.mubr.f32.gmra.mrb[0].mxu0 %v3818
        %v4209 = vpop.f32.mrb[0].mxu0
        %v4210 = vadd.f32 %v3985, %v4209
        %v4211 = vpop.f32.mrb[0].mxu0
        %4212 = vmatprep.mubr.f32.mxu0 0.0
        %4213 = vmatmul.mubr.f32.gmra.mrb[0].mxu0 %v3820
        %v4214 = vpop.f32.mrb[0].mxu0
        %v4215 = vadd.f32 %v3990, %v4214
        %v4216 = vpop.f32.mrb[0].mxu0
        %4217 = vmatprep.mubr.f32.mxu0 0.0
        %4218 = vmatmul.mubr.f32.gmra.mrb[0].mxu0 %v3822
        %v4219 = vpop.f32.mrb[0].mxu0
        %v4220 = vadd.f32 %v3995, %v4219
        %v4221 = vpop.f32.mrb[0].mxu0
        %4222 = vmatprep.mubr.f32.mxu0 0.0
        %4223 = vmatmul.mubr.f32.gmra.mrb[0].mxu0 %v3824
        %v4224 = vpop.f32.mrb[0].mxu0
        %v4225 = vadd.f32 %v4000, %v4224
        %v4226 = vpop.f32.mrb[0].mxu0
        %4227 = vmatprep.mubr.f32.mxu0 0.0
        %4228 = vmatmul.mubr.f32.gmra.mrb[0].mxu0 %v3826
        %v4229 = vpop.f32.mrb[0].mxu0
        %v4230 = vadd.f32 %v4005, %v4229
        %v4231 = vpop.f32.mrb[0].mxu0
        %4232 = vmatprep.mubr.f32.mxu0 0.0
        %4233 = vmatmul.mubr.f32.gmra.mrb[0].mxu0 %v3828
        %v4234 = vpop.f32.mrb[0].mxu0
        %v4235 = vadd.f32 %v4010, %v4234
        %v4236 = vpop.f32.mrb[0].mxu0
        %4237 = vmatprep.mubr.f32.mxu0 0.0
        %4238 = vmatmul.mubr.f32.gmra.mrb[0].mxu0 %v3830
        %v4239 = vpop.f32.mrb[0].mxu0
        %v4240 = vadd.f32 %v4015, %v4239
        %v4241 = vpop.f32.mrb[0].mxu0
        %4242 = vmatprep.mubr.f32.mxu0 0.0
        %4243 = vmatmul.mubr.f32.gmra.mrb[0].mxu0 %v3832
        %v4244 = vpop.f32.mrb[0].mxu0
        %v4245 = vadd.f32 %v4020, %v4244
        %v4246 = vpop.f32.mrb[0].mxu0
        %4247 = vmatprep.mubr.f32.mxu0 0.0
        %4248 = vmatmul.mubr.f32.gmra.mrb[0].mxu0 %v3834
        %v4249 = vpop.f32.mrb[0].mxu0
        %v4250 = vadd.f32 %v4025, %v4249
        %v4251 = vpop.f32.mrb[0].mxu0
        %4252 = vmatprep.mubr.f32.mxu0 0.0
        %4253 = vmatmul.mubr.f32.gmra.mrb[0].mxu0 %v3836
        %v4254 = vpop.f32.mrb[0].mxu0
        %v4255 = vadd.f32 %v4030, %v4254
        %v4256 = vpop.f32.mrb[0].mxu0
        %4257 = vmatprep.mubr.f32.mxu0 0.0
        %4258 = vmatmul.mubr.f32.gmra.mrb[0].mxu0 %v3838
        %v4259 = vpop.f32.mrb[0].mxu0
        %v4260 = vadd.f32 %v4035, %v4259
        %v4261 = vpop.f32.mrb[0].mxu0
        %4262 = vmatprep.mubr.f32.mxu0 0.0
        %4263 = vmatmul.mubr.f32.gmra.mrb[0].mxu0 %v3840
        %v4264 = vpop.f32.mrb[0].mxu0
        %v4265 = vadd.f32 %v4040, %v4264
        %v4266 = vpop.f32.mrb[0].mxu0
        %4267 = vmatprep.mubr.f32.mxu0 0.0
        %4268 = vmatmul.mubr.f32.gmra.mrb[0].mxu0 %v3842
        %v4269 = vpop.f32.mrb[0].mxu0
        %v4270 = vadd.f32 %v4045, %v4269
        %v4271 = vpop.f32.mrb[0].mxu0
        %4272 = vmatprep.mubr.f32.mxu0 0.0
        %4273 = vmatmul.mubr.f32.gmra.mrb[0].mxu0 %v3844
        %v4274 = vpop.f32.mrb[0].mxu0
        %v4275 = vadd.f32 %v4050, %v4274
        %v4276 = vpop.f32.mrb[0].mxu0
        %4277 = vmatprep.mubr.f32.mxu0 0.0
        %4278 = vmatmul.mubr.f32.gmra.mrb[0].mxu0 %v3846
        %v4279 = vpop.f32.mrb[0].mxu0
        %v4280 = vadd.f32 %v4055, %v4279
        %v4281 = vpop.f32.mrb[0].mxu0
        %4282 = vmatprep.mubr.f32.mxu0 0.0
        %4283 = vmatmul.mubr.f32.gmra.mrb[0].mxu0 %v3848
        %v4284 = vpop.f32.mrb[0].mxu0
        %v4285 = vadd.f32 %v4060, %v4284
        %v4286 = vpop.f32.mrb[0].mxu0
        %4287 = vmatprep.mubr.f32.mxu0 0.0
        %4288 = vmatmul.mubr.f32.gmra.mrb[0].mxu0 %v3850
        %v4289 = vpop.f32.mrb[0].mxu0
        %v4290 = vadd.f32 %v4065, %v4289
        %v4291 = vpop.f32.mrb[0].mxu0
        %4292 = vmatprep.mubr.f32.mxu0 0.0
        %4293 = vmatmul.mubr.f32.gmra.mrb[0].mxu0 %v3852
        %v4294 = vpop.f32.mrb[0].mxu0
        %v4295 = vadd.f32 %v4070, %v4294
        %v4296 = vpop.f32.mrb[0].mxu0
        %4297 = vmatprep.mubr.f32.mxu0 0.0
        %4298 = vmatmul.mubr.f32.gmra.mrb[0].mxu0 %v3854
        %v4299 = vpop.f32.mrb[0].mxu0
        %v4300 = vadd.f32 %v4075, %v4299
        %v4301 = vpop.f32.mrb[0].mxu0
        %4302 = vmatprep.mubr.f32.mxu0 0.0
        %4303 = vmatmul.mubr.f32.gmra.mrb[0].mxu0 %v3856
        %v4304 = vpop.f32.mrb[0].mxu0
        %v4305 = vadd.f32 %v4080, %v4304
        %v4306 = vpop.f32.mrb[0].mxu0
        %4307 = vdwg.mxu0
        %v4308 = vld [vmem:[%s5] sm:$0x1]
        %v4310 = vlaneseq
        %v4311 = vshrl.u32 %v4310, 7
        %v4312 = vsub.s32 0, %v4311
        %v4313 = vrot.slane %v4308, %v4312
        %v4315 = vmul.f32 %v4150, %v4313
        %v4316 = vmul.f32 %v4155, %v4313
        %v4317 = vmul.f32 %v4160, %v4313
        %v4318 = vmul.f32 %v4165, %v4313
        %v4319 = vmul.f32 %v4170, %v4313
        %v4320 = vmul.f32 %v4175, %v4313
        %v4321 = vmul.f32 %v4180, %v4313
        %v4322 = vmul.f32 %v4185, %v4313
        %v4323 = vmul.f32 %v4190, %v4313
        %v4324 = vmul.f32 %v4195, %v4313
        %v4325 = vmul.f32 %v4200, %v4313
        %v4326 = vmul.f32 %v4205, %v4313
        %v4327 = vmul.f32 %v4210, %v4313
        %v4328 = vmul.f32 %v4215, %v4313
        %v4329 = vmul.f32 %v4220, %v4313
        %v4330 = vmul.f32 %v4225, %v4313
        %v4331 = vmul.f32 %v4230, %v4313
        %v4332 = vmul.f32 %v4235, %v4313
        %v4333 = vmul.f32 %v4240, %v4313
        %v4334 = vmul.f32 %v4245, %v4313
        %v4335 = vmul.f32 %v4250, %v4313
        %v4336 = vmul.f32 %v4255, %v4313
        %v4337 = vmul.f32 %v4260, %v4313
        %v4338 = vmul.f32 %v4265, %v4313
        %v4339 = vmul.f32 %v4270, %v4313
        %v4340 = vmul.f32 %v4275, %v4313
        %v4341 = vmul.f32 %v4280, %v4313
        %v4342 = vmul.f32 %v4285, %v4313
        %v4343 = vmul.f32 %v4290, %v4313
        %v4344 = vmul.f32 %v4295, %v4313
        %v4345 = vmul.f32 %v4300, %v4313
        %v4346 = vmul.f32 %v4305, %v4313
        %v4347 = vld [vmem:[%s6] sm:$0x1]
        %v4349 = vlaneseq
        %v4350 = vshrl.u32 %v4349, 7
        %v4351 = vsub.s32 0, %v4350
        %v4352 = vrot.slane %v4347, %v4351
        %v4354 = vadd.f32 %v4315, %v4352
        %v4355 = vadd.f32 %v4316, %v4352
        %v4356 = vadd.f32 %v4317, %v4352
        %v4357 = vadd.f32 %v4318, %v4352
        %v4358 = vadd.f32 %v4319, %v4352
        %v4359 = vadd.f32 %v4320, %v4352
        %v4360 = vadd.f32 %v4321, %v4352
        %v4361 = vadd.f32 %v4322, %v4352
        %v4362 = vadd.f32 %v4323, %v4352
        %v4363 = vadd.f32 %v4324, %v4352
        %v4364 = vadd.f32 %v4325, %v4352
        %v4365 = vadd.f32 %v4326, %v4352
        %v4366 = vadd.f32 %v4327, %v4352
        %v4367 = vadd.f32 %v4328, %v4352
        %v4368 = vadd.f32 %v4329, %v4352
        %v4369 = vadd.f32 %v4330, %v4352
        %v4370 = vadd.f32 %v4331, %v4352
        %v4371 = vadd.f32 %v4332, %v4352
        %v4372 = vadd.f32 %v4333, %v4352
        %v4373 = vadd.f32 %v4334, %v4352
        %v4374 = vadd.f32 %v4335, %v4352
        %v4375 = vadd.f32 %v4336, %v4352
        %v4376 = vadd.f32 %v4337, %v4352
        %v4377 = vadd.f32 %v4338, %v4352
        %v4378 = vadd.f32 %v4339, %v4352
        %v4379 = vadd.f32 %v4340, %v4352
        %v4380 = vadd.f32 %v4341, %v4352
        %v4381 = vadd.f32 %v4342, %v4352
        %v4382 = vadd.f32 %v4343, %v4352
        %v4383 = vadd.f32 %v4344, %v4352
        %v4384 = vadd.f32 %v4345, %v4352
        %v4385 = vadd.f32 %v4346, %v4352
        %v4386 = vmax.f32 %v4354, 0.0
        %v4387 = vmax.f32 %v4355, 0.0
        %v4388 = vmax.f32 %v4356, 0.0
        %v4389 = vmax.f32 %v4357, 0.0
        %v4390 = vmax.f32 %v4358, 0.0
        %v4391 = vmax.f32 %v4359, 0.0
        %v4392 = vmax.f32 %v4360, 0.0
        %v4393 = vmax.f32 %v4361, 0.0
        %v4394 = vmax.f32 %v4362, 0.0
        %v4395 = vmax.f32 %v4363, 0.0
        %v4396 = vmax.f32 %v4364, 0.0
        %v4397 = vmax.f32 %v4365, 0.0
        %v4398 = vmax.f32 %v4366, 0.0
        %v4399 = vmax.f32 %v4367, 0.0
        %v4400 = vmax.f32 %v4368, 0.0
        %v4401 = vmax.f32 %v4369, 0.0
        %v4402 = vmax.f32 %v4370, 0.0
        %v4403 = vmax.f32 %v4371, 0.0
        %v4404 = vmax.f32 %v4372, 0.0
        %v4405 = vmax.f32 %v4373, 0.0
        %v4406 = vmax.f32 %v4374, 0.0
        %v4407 = vmax.f32 %v4375, 0.0
        %v4408 = vmax.f32 %v4376, 0.0
        %v4409 = vmax.f32 %v4377, 0.0
        %v4410 = vmax.f32 %v4378, 0.0
        %v4411 = vmax.f32 %v4379, 0.0
        %v4412 = vmax.f32 %v4380, 0.0
        %v4413 = vmax.f32 %v4381, 0.0
        %v4414 = vmax.f32 %v4382, 0.0
        %v4415 = vmax.f32 %v4383, 0.0
        %v4416 = vmax.f32 %v4384, 0.0
        %v4417 = vmax.f32 %v4385, 0.0
        %s4418 = scalar_lea.vmem [#allocation4], 32
        %4419 = vst.msk [vmem:[%s4418 + $0x8] sm:$0xff] %vm613, %v4386
        %4420 = vst.msk [vmem:[%s4418 + $0x10] sm:$0xff] %vm613, %v4387
        %4421 = vst.msk [vmem:[%s4418 + $0x28] sm:$0xff] %vm613, %v4388
        %4422 = vst.msk [vmem:[%s4418 + $0x30] sm:$0xff] %vm613, %v4389
        %4423 = vst.msk [vmem:[%s4418 + $0x48] sm:$0xff] %vm613, %v4390
        %4424 = vst.msk [vmem:[%s4418 + $0x50] sm:$0xff] %vm613, %v4391
        %4425 = vst.msk [vmem:[%s4418 + $0x68] sm:$0xff] %vm613, %v4392
        %4426 = vst.msk [vmem:[%s4418 + $0x70] sm:$0xff] %vm613, %v4393
        %4427 = vst.msk [vmem:[%s4418 + $0x88] sm:$0xff] %vm613, %v4394
        %4428 = vst.msk [vmem:[%s4418 + $0x90] sm:$0xff] %vm613, %v4395
        %4429 = vst.msk [vmem:[%s4418 + $0xa8] sm:$0xff] %vm613, %v4396
        %4430 = vst.msk [vmem:[%s4418 + $0xb0] sm:$0xff] %vm613, %v4397
        %4431 = vst.msk [vmem:[%s4418 + $0xc8] sm:$0xff] %vm613, %v4398
        %4432 = vst.msk [vmem:[%s4418 + $0xd0] sm:$0xff] %vm613, %v4399
        %4433 = vst.msk [vmem:[%s4418 + $0xe8] sm:$0xff] %vm613, %v4400
        %4434 = vst.msk [vmem:[%s4418 + $0xf0] sm:$0xff] %vm613, %v4401
        %4435 = vst.msk [vmem:[%s4418 + $0x108] sm:$0xff] %vm613, %v4402
        %4436 = vst.msk [vmem:[%s4418 + $0x110] sm:$0xff] %vm613, %v4403
        %4437 = vst.msk [vmem:[%s4418 + $0x128] sm:$0xff] %vm613, %v4404
        %4438 = vst.msk [vmem:[%s4418 + $0x130] sm:$0xff] %vm613, %v4405
        %4439 = vst.msk [vmem:[%s4418 + $0x148] sm:$0xff] %vm613, %v4406
        %4440 = vst.msk [vmem:[%s4418 + $0x150] sm:$0xff] %vm613, %v4407
        %4441 = vst.msk [vmem:[%s4418 + $0x168] sm:$0xff] %vm613, %v4408
        %4442 = vst.msk [vmem:[%s4418 + $0x170] sm:$0xff] %vm613, %v4409
        %4443 = vst.msk [vmem:[%s4418 + $0x188] sm:$0xff] %vm613, %v4410
        %4444 = vst.msk [vmem:[%s4418 + $0x190] sm:$0xff] %vm613, %v4411
        %4445 = vst.msk [vmem:[%s4418 + $0x1a8] sm:$0xff] %vm613, %v4412
        %4446 = vst.msk [vmem:[%s4418 + $0x1b0] sm:$0xff] %vm613, %v4413
        %4447 = vst.msk [vmem:[%s4418 + $0x1c8] sm:$0xff] %vm613, %v4414
        %4448 = vst.msk [vmem:[%s4418 + $0x1d0] sm:$0xff] %vm613, %v4415
        %4449 = vst.msk [vmem:[%s4418 + $0x1e8] sm:$0xff] %vm613, %v4416
        %4450 = vst.msk [vmem:[%s4418 + $0x1f0] sm:$0xff] %vm613, %v4417
        %v4451 = vld [vmem:[#allocation4] sm:$0xff]
        %v4452 = vld [vmem:[#allocation4 + $0x8] sm:$0xff]
        %v4453 = vld [vmem:[#allocation4 + $0x10] sm:$0xff]
        %v4454 = vld [vmem:[#allocation4 + $0x18] sm:$0x1]
        %v4455 = vld [vmem:[#allocation4 + $0x20] sm:$0xff]
        %v4456 = vld [vmem:[#allocation4 + $0x28] sm:$0xff]
        %v4457 = vld [vmem:[#allocation4 + $0x30] sm:$0xff]
        %v4458 = vld [vmem:[#allocation4 + $0x38] sm:$0x1]
        %v4459 = vld [vmem:[#allocation4 + $0x40] sm:$0xff]
        %v4460 = vld [vmem:[#allocation4 + $0x48] sm:$0xff]
        %v4461 = vld [vmem:[#allocation4 + $0x50] sm:$0xff]
        %v4462 = vld [vmem:[#allocation4 + $0x58] sm:$0x1]
        %v4463 = vld [vmem:[#allocation4 + $0x60] sm:$0xff]
        %v4464 = vld [vmem:[#allocation4 + $0x68] sm:$0xff]
        %v4465 = vld [vmem:[#allocation4 + $0x70] sm:$0xff]
        %v4466 = vld [vmem:[#allocation4 + $0x78] sm:$0x1]
        %v4467 = vld [vmem:[#allocation4 + $0x80] sm:$0xff]
        %v4468 = vld [vmem:[#allocation4 + $0x88] sm:$0xff]
        %v4469 = vld [vmem:[#allocation4 + $0x90] sm:$0xff]
        %v4470 = vld [vmem:[#allocation4 + $0x98] sm:$0x1]
        %v4471 = vld [vmem:[#allocation4 + $0xa0] sm:$0xff]
        %v4472 = vld [vmem:[#allocation4 + $0xa8] sm:$0xff]
        %v4473 = vld [vmem:[#allocation4 + $0xb0] sm:$0xff]
        %v4474 = vld [vmem:[#allocation4 + $0xb8] sm:$0x1]
        %v4475 = vld [vmem:[#allocation4 + $0xc0] sm:$0xff]
        %v4476 = vld [vmem:[#allocation4 + $0xc8] sm:$0xff]
        %v4477 = vld [vmem:[#allocation4 + $0xd0] sm:$0xff]
        %v4478 = vld [vmem:[#allocation4 + $0xd8] sm:$0x1]
        %v4479 = vld [vmem:[#allocation4 + $0xe0] sm:$0xff]
        %v4480 = vld [vmem:[#allocation4 + $0xe8] sm:$0xff]
        %v4481 = vld [vmem:[#allocation4 + $0xf0] sm:$0xff]
        %v4482 = vld [vmem:[#allocation4 + $0xf8] sm:$0x1]
        %v4483 = vld [vmem:[#allocation4 + $0x100] sm:$0xff]
        %v4484 = vld [vmem:[#allocation4 + $0x108] sm:$0xff]
        %v4485 = vld [vmem:[#allocation4 + $0x110] sm:$0xff]
        %v4486 = vld [vmem:[#allocation4 + $0x118] sm:$0x1]
        %v4487 = vld [vmem:[#allocation4 + $0x120] sm:$0xff]
        %v4488 = vld [vmem:[#allocation4 + $0x128] sm:$0xff]
        %v4489 = vld [vmem:[#allocation4 + $0x130] sm:$0xff]
        %v4490 = vld [vmem:[#allocation4 + $0x138] sm:$0x1]
        %v4491 = vld [vmem:[#allocation4 + $0x140] sm:$0xff]
        %v4492 = vld [vmem:[#allocation4 + $0x148] sm:$0xff]
        %v4493 = vld [vmem:[#allocation4 + $0x150] sm:$0xff]
        %v4494 = vld [vmem:[#allocation4 + $0x158] sm:$0x1]
        %v4495 = vld [vmem:[#allocation4 + $0x160] sm:$0xff]
        %v4496 = vld [vmem:[#allocation4 + $0x168] sm:$0xff]
        %v4497 = vld [vmem:[#allocation4 + $0x170] sm:$0xff]
        %v4498 = vld [vmem:[#allocation4 + $0x178] sm:$0x1]
        %v4499 = vld [vmem:[#allocation4 + $0x180] sm:$0xff]
        %v4500 = vld [vmem:[#allocation4 + $0x188] sm:$0xff]
        %v4501 = vld [vmem:[#allocation4 + $0x190] sm:$0xff]
        %v4502 = vld [vmem:[#allocation4 + $0x198] sm:$0x1]
        %v4503 = vld [vmem:[#allocation4 + $0x1a0] sm:$0xff]
        %v4504 = vld [vmem:[#allocation4 + $0x1a8] sm:$0xff]
        %v4505 = vld [vmem:[#allocation4 + $0x1b0] sm:$0xff]
        %v4506 = vld [vmem:[#allocation4 + $0x1b8] sm:$0x1]
        %v4507 = vld [vmem:[#allocation4 + $0x1c0] sm:$0xff]
        %v4508 = vld [vmem:[#allocation4 + $0x1c8] sm:$0xff]
        %v4509 = vld [vmem:[#allocation4 + $0x1d0] sm:$0xff]
        %v4510 = vld [vmem:[#allocation4 + $0x1d8] sm:$0x1]
        %v4511 = vld [vmem:[#allocation4 + $0x1e0] sm:$0xff]
        %v4512 = vld [vmem:[#allocation4 + $0x1e8] sm:$0xff]
        %v4513 = vld [vmem:[#allocation4 + $0x1f0] sm:$0xff]
        %v4514 = vld [vmem:[#allocation4 + $0x1f8] sm:$0x1]
        %v4515 = vld [vmem:[#allocation4 + $0x200] sm:$0xff]
        %v4516 = vld [vmem:[#allocation4 + $0x208] sm:$0xff]
        %v4517 = vld [vmem:[#allocation4 + $0x210] sm:$0xff]
        %v4518 = vld [vmem:[#allocation4 + $0x218] sm:$0x1]
        %v4519 = vld [vmem:[#allocation4 + $0x220] sm:$0xff]
        %v4520 = vld [vmem:[#allocation4 + $0x228] sm:$0xff]
        %v4521 = vld [vmem:[#allocation4 + $0x230] sm:$0xff]
        %v4522 = vld [vmem:[#allocation4 + $0x238] sm:$0x1]
        %v4571 = vrot.slane %v4451, 7
        %v4572 = vrot.slane %v4452, 7
        %v4573 = vsel %vm892, %v4571, %v4572
        %v4574 = vrot.slane %v4453, 7
        %v4575 = vsel %vm892, %v4572, %v4574
        %v4576 = vrot.slane %v4455, 7
        %v4577 = vrot.slane %v4456, 7
        %v4578 = vsel %vm892, %v4576, %v4577
        %v4579 = vrot.slane %v4457, 7
        %v4580 = vsel %vm892, %v4577, %v4579
        %v4581 = vrot.slane %v4459, 7
        %v4582 = vrot.slane %v4460, 7
        %v4583 = vsel %vm892, %v4581, %v4582
        %v4584 = vrot.slane %v4461, 7
        %v4585 = vsel %vm892, %v4582, %v4584
        %v4586 = vrot.slane %v4463, 7
        %v4587 = vrot.slane %v4464, 7
        %v4588 = vsel %vm892, %v4586, %v4587
        %v4589 = vrot.slane %v4465, 7
        %v4590 = vsel %vm892, %v4587, %v4589
        %v4591 = vrot.slane %v4467, 7
        %v4592 = vrot.slane %v4468, 7
        %v4593 = vsel %vm892, %v4591, %v4592
        %v4594 = vrot.slane %v4469, 7
        %v4595 = vsel %vm892, %v4592, %v4594
        %v4596 = vrot.slane %v4471, 7
        %v4597 = vrot.slane %v4472, 7
        %v4598 = vsel %vm892, %v4596, %v4597
        %v4599 = vrot.slane %v4473, 7
        %v4600 = vsel %vm892, %v4597, %v4599
        %v4601 = vrot.slane %v4475, 7
        %v4602 = vrot.slane %v4476, 7
        %v4603 = vsel %vm892, %v4601, %v4602
        %v4604 = vrot.slane %v4477, 7
        %v4605 = vsel %vm892, %v4602, %v4604
        %v4606 = vrot.slane %v4479, 7
        %v4607 = vrot.slane %v4480, 7
        %v4608 = vsel %vm892, %v4606, %v4607
        %v4609 = vrot.slane %v4481, 7
        %v4610 = vsel %vm892, %v4607, %v4609
        %v4611 = vrot.slane %v4483, 7
        %v4612 = vrot.slane %v4484, 7
        %v4613 = vsel %vm892, %v4611, %v4612
        %v4614 = vrot.slane %v4485, 7
        %v4615 = vsel %vm892, %v4612, %v4614
        %v4616 = vrot.slane %v4487, 7
        %v4617 = vrot.slane %v4488, 7
        %v4618 = vsel %vm892, %v4616, %v4617
        %v4619 = vrot.slane %v4489, 7
        %v4620 = vsel %vm892, %v4617, %v4619
        %v4621 = vrot.slane %v4491, 7
        %v4622 = vrot.slane %v4492, 7
        %v4623 = vsel %vm892, %v4621, %v4622
        %v4624 = vrot.slane %v4493, 7
        %v4625 = vsel %vm892, %v4622, %v4624
        %v4626 = vrot.slane %v4495, 7
        %v4627 = vrot.slane %v4496, 7
        %v4628 = vsel %vm892, %v4626, %v4627
        %v4629 = vrot.slane %v4497, 7
        %v4630 = vsel %vm892, %v4627, %v4629
        %v4631 = vrot.slane %v4499, 7
        %v4632 = vrot.slane %v4500, 7
        %v4633 = vsel %vm892, %v4631, %v4632
        %v4634 = vrot.slane %v4501, 7
        %v4635 = vsel %vm892, %v4632, %v4634
        %v4636 = vrot.slane %v4503, 7
        %v4637 = vrot.slane %v4504, 7
        %v4638 = vsel %vm892, %v4636, %v4637
        %v4639 = vrot.slane %v4505, 7
        %v4640 = vsel %vm892, %v4637, %v4639
        %v4641 = vrot.slane %v4507, 7
        %v4642 = vrot.slane %v4508, 7
        %v4643 = vsel %vm892, %v4641, %v4642
        %v4644 = vrot.slane %v4509, 7
        %v4645 = vsel %vm892, %v4642, %v4644
        %v4646 = vrot.slane %v4511, 7
        %v4647 = vrot.slane %v4512, 7
        %v4648 = vsel %vm892, %v4646, %v4647
        %v4649 = vrot.slane %v4513, 7
        %v4650 = vsel %vm892, %v4647, %v4649
        %v4699 = vrot.slane %v4452, 1
        %v4700 = vrot.slane %v4453, 1
        %v4701 = vsel %vm1021, %v4699, %v4700
        %v4702 = vrot.slane %v4454, 1
        %v4703 = vsel %vm1021, %v4700, %v4702
        %v4704 = vrot.slane %v4456, 1
        %v4705 = vrot.slane %v4457, 1
        %v4706 = vsel %vm1021, %v4704, %v4705
        %v4707 = vrot.slane %v4458, 1
        %v4708 = vsel %vm1021, %v4705, %v4707
        %v4709 = vrot.slane %v4460, 1
        %v4710 = vrot.slane %v4461, 1
        %v4711 = vsel %vm1021, %v4709, %v4710
        %v4712 = vrot.slane %v4462, 1
        %v4713 = vsel %vm1021, %v4710, %v4712
        %v4714 = vrot.slane %v4464, 1
        %v4715 = vrot.slane %v4465, 1
        %v4716 = vsel %vm1021, %v4714, %v4715
        %v4717 = vrot.slane %v4466, 1
        %v4718 = vsel %vm1021, %v4715, %v4717
        %v4719 = vrot.slane %v4468, 1
        %v4720 = vrot.slane %v4469, 1
        %v4721 = vsel %vm1021, %v4719, %v4720
        %v4722 = vrot.slane %v4470, 1
        %v4723 = vsel %vm1021, %v4720, %v4722
        %v4724 = vrot.slane %v4472, 1
        %v4725 = vrot.slane %v4473, 1
        %v4726 = vsel %vm1021, %v4724, %v4725
        %v4727 = vrot.slane %v4474, 1
        %v4728 = vsel %vm1021, %v4725, %v4727
        %v4729 = vrot.slane %v4476, 1
        %v4730 = vrot.slane %v4477, 1
        %v4731 = vsel %vm1021, %v4729, %v4730
        %v4732 = vrot.slane %v4478, 1
        %v4733 = vsel %vm1021, %v4730, %v4732
        %v4734 = vrot.slane %v4480, 1
        %v4735 = vrot.slane %v4481, 1
        %v4736 = vsel %vm1021, %v4734, %v4735
        %v4737 = vrot.slane %v4482, 1
        %v4738 = vsel %vm1021, %v4735, %v4737
        %v4739 = vrot.slane %v4484, 1
        %v4740 = vrot.slane %v4485, 1
        %v4741 = vsel %vm1021, %v4739, %v4740
        %v4742 = vrot.slane %v4486, 1
        %v4743 = vsel %vm1021, %v4740, %v4742
        %v4744 = vrot.slane %v4488, 1
        %v4745 = vrot.slane %v4489, 1
        %v4746 = vsel %vm1021, %v4744, %v4745
        %v4747 = vrot.slane %v4490, 1
        %v4748 = vsel %vm1021, %v4745, %v4747
        %v4749 = vrot.slane %v4492, 1
        %v4750 = vrot.slane %v4493, 1
        %v4751 = vsel %vm1021, %v4749, %v4750
        %v4752 = vrot.slane %v4494, 1
        %v4753 = vsel %vm1021, %v4750, %v4752
        %v4754 = vrot.slane %v4496, 1
        %v4755 = vrot.slane %v4497, 1
        %v4756 = vsel %vm1021, %v4754, %v4755
        %v4757 = vrot.slane %v4498, 1
        %v4758 = vsel %vm1021, %v4755, %v4757
        %v4759 = vrot.slane %v4500, 1
        %v4760 = vrot.slane %v4501, 1
        %v4761 = vsel %vm1021, %v4759, %v4760
        %v4762 = vrot.slane %v4502, 1
        %v4763 = vsel %vm1021, %v4760, %v4762
        %v4764 = vrot.slane %v4504, 1
        %v4765 = vrot.slane %v4505, 1
        %v4766 = vsel %vm1021, %v4764, %v4765
        %v4767 = vrot.slane %v4506, 1
        %v4768 = vsel %vm1021, %v4765, %v4767
        %v4769 = vrot.slane %v4508, 1
        %v4770 = vrot.slane %v4509, 1
        %v4771 = vsel %vm1021, %v4769, %v4770
        %v4772 = vrot.slane %v4510, 1
        %v4773 = vsel %vm1021, %v4770, %v4772
        %v4774 = vrot.slane %v4512, 1
        %v4775 = vrot.slane %v4513, 1
        %v4776 = vsel %vm1021, %v4774, %v4775
        %v4777 = vrot.slane %v4514, 1
        %v4778 = vsel %vm1021, %v4775, %v4777
        %v4782 = vrot.slane %v4515, 7
        %v4783 = vrot.slane %v4516, 7
        %v4784 = vsel %vm892, %v4782, %v4783
        %v4785 = vrot.slane %v4517, 7
        %v4786 = vsel %vm892, %v4783, %v4785
        %v4788 = vrot.slane %v4516, 1
        %v4789 = vrot.slane %v4517, 1
        %v4790 = vsel %vm1021, %v4788, %v4789
        %v4791 = vrot.slane %v4518, 1
        %v4792 = vsel %vm1021, %v4789, %v4791
        %v4796 = vrot.slane %v4519, 7
        %v4797 = vrot.slane %v4520, 7
        %v4798 = vsel %vm892, %v4796, %v4797
        %v4799 = vrot.slane %v4521, 7
        %v4800 = vsel %vm892, %v4797, %v4799
        %v4802 = vrot.slane %v4520, 1
        %v4803 = vrot.slane %v4521, 1
        %v4804 = vsel %vm1021, %v4802, %v4803
        %v4805 = vrot.slane %v4522, 1
        %v4806 = vsel %vm1021, %v4803, %v4805
        %4807 = vrot.lane.b32.xlu0 %v4452, 16
        %v4808 = vpop.permute.xlu0 %4807
        %4809 = vrot.lane.b32.xlu0 %v4453, 16
        %v4810 = vpop.permute.xlu0 %4809
        %4811 = vrot.lane.b32.xlu0 %v4456, 16
        %v4812 = vpop.permute.xlu0 %4811
        %4813 = vrot.lane.b32.xlu0 %v4457, 16
        %v4814 = vpop.permute.xlu0 %4813
        %4815 = vrot.lane.b32.xlu0 %v4460, 16
        %v4816 = vpop.permute.xlu0 %4815
        %4817 = vrot.lane.b32.xlu0 %v4461, 16
        %v4818 = vpop.permute.xlu0 %4817
        %4819 = vrot.lane.b32.xlu0 %v4464, 16
        %v4820 = vpop.permute.xlu0 %4819
        %4821 = vrot.lane.b32.xlu0 %v4465, 16
        %v4822 = vpop.permute.xlu0 %4821
        %4823 = vrot.lane.b32.xlu0 %v4468, 16
        %v4824 = vpop.permute.xlu0 %4823
        %4825 = vrot.lane.b32.xlu0 %v4469, 16
        %v4826 = vpop.permute.xlu0 %4825
        %4827 = vrot.lane.b32.xlu0 %v4472, 16
        %v4828 = vpop.permute.xlu0 %4827
        %4829 = vrot.lane.b32.xlu0 %v4473, 16
        %v4830 = vpop.permute.xlu0 %4829
        %4831 = vrot.lane.b32.xlu0 %v4476, 16
        %v4832 = vpop.permute.xlu0 %4831
        %4833 = vrot.lane.b32.xlu0 %v4477, 16
        %v4834 = vpop.permute.xlu0 %4833
        %4835 = vrot.lane.b32.xlu0 %v4480, 16
        %v4836 = vpop.permute.xlu0 %4835
        %4837 = vrot.lane.b32.xlu0 %v4481, 16
        %v4838 = vpop.permute.xlu0 %4837
        %4839 = vrot.lane.b32.xlu0 %v4484, 16
        %v4840 = vpop.permute.xlu0 %4839
        %4841 = vrot.lane.b32.xlu0 %v4485, 16
        %v4842 = vpop.permute.xlu0 %4841
        %4843 = vrot.lane.b32.xlu0 %v4488, 16
        %v4844 = vpop.permute.xlu0 %4843
        %4845 = vrot.lane.b32.xlu0 %v4489, 16
        %v4846 = vpop.permute.xlu0 %4845
        %4847 = vrot.lane.b32.xlu0 %v4492, 16
        %v4848 = vpop.permute.xlu0 %4847
        %4849 = vrot.lane.b32.xlu0 %v4493, 16
        %v4850 = vpop.permute.xlu0 %4849
        %4851 = vrot.lane.b32.xlu0 %v4496, 16
        %v4852 = vpop.permute.xlu0 %4851
        %4853 = vrot.lane.b32.xlu0 %v4497, 16
        %v4854 = vpop.permute.xlu0 %4853
        %4855 = vrot.lane.b32.xlu0 %v4500, 16
        %v4856 = vpop.permute.xlu0 %4855
        %4857 = vrot.lane.b32.xlu0 %v4501, 16
        %v4858 = vpop.permute.xlu0 %4857
        %4859 = vrot.lane.b32.xlu0 %v4504, 16
        %v4860 = vpop.permute.xlu0 %4859
        %4861 = vrot.lane.b32.xlu0 %v4505, 16
        %v4862 = vpop.permute.xlu0 %4861
        %4863 = vrot.lane.b32.xlu0 %v4508, 16
        %v4864 = vpop.permute.xlu0 %4863
        %4865 = vrot.lane.b32.xlu0 %v4509, 16
        %v4866 = vpop.permute.xlu0 %4865
        %4867 = vrot.lane.b32.xlu0 %v4512, 16
        %v4868 = vpop.permute.xlu0 %4867
        %4869 = vrot.lane.b32.xlu0 %v4513, 16
        %v4870 = vpop.permute.xlu0 %4869
        %4903 = vrot.lane.b32.xlu0 %v4701, 32
        %v4904 = vpop.permute.xlu0 %4903
        %4905 = vrot.lane.b32.xlu0 %v4703, 32
        %v4906 = vpop.permute.xlu0 %4905
        %4907 = vrot.lane.b32.xlu0 %v4706, 32
        %v4908 = vpop.permute.xlu0 %4907
        %4909 = vrot.lane.b32.xlu0 %v4708, 32
        %v4910 = vpop.permute.xlu0 %4909
        %4911 = vrot.lane.b32.xlu0 %v4711, 32
        %v4912 = vpop.permute.xlu0 %4911
        %4913 = vrot.lane.b32.xlu0 %v4713, 32
        %v4914 = vpop.permute.xlu0 %4913
        %4915 = vrot.lane.b32.xlu0 %v4716, 32
        %v4916 = vpop.permute.xlu0 %4915
        %4917 = vrot.lane.b32.xlu0 %v4718, 32
        %v4918 = vpop.permute.xlu0 %4917
        %4919 = vrot.lane.b32.xlu0 %v4721, 32
        %v4920 = vpop.permute.xlu0 %4919
        %4921 = vrot.lane.b32.xlu0 %v4723, 32
        %v4922 = vpop.permute.xlu0 %4921
        %4923 = vrot.lane.b32.xlu0 %v4726, 32
        %v4924 = vpop.permute.xlu0 %4923
        %4925 = vrot.lane.b32.xlu0 %v4728, 32
        %v4926 = vpop.permute.xlu0 %4925
        %4927 = vrot.lane.b32.xlu0 %v4731, 32
        %v4928 = vpop.permute.xlu0 %4927
        %4929 = vrot.lane.b32.xlu0 %v4733, 32
        %v4930 = vpop.permute.xlu0 %4929
        %4931 = vrot.lane.b32.xlu0 %v4736, 32
        %v4932 = vpop.permute.xlu0 %4931
        %4933 = vrot.lane.b32.xlu0 %v4738, 32
        %v4934 = vpop.permute.xlu0 %4933
        %4935 = vrot.lane.b32.xlu0 %v4741, 32
        %v4936 = vpop.permute.xlu0 %4935
        %4937 = vrot.lane.b32.xlu0 %v4743, 32
        %v4938 = vpop.permute.xlu0 %4937
        %4939 = vrot.lane.b32.xlu0 %v4746, 32
        %v4940 = vpop.permute.xlu0 %4939
        %4941 = vrot.lane.b32.xlu0 %v4748, 32
        %v4942 = vpop.permute.xlu0 %4941
        %4943 = vrot.lane.b32.xlu0 %v4751, 32
        %v4944 = vpop.permute.xlu0 %4943
        %4945 = vrot.lane.b32.xlu0 %v4753, 32
        %v4946 = vpop.permute.xlu0 %4945
        %4947 = vrot.lane.b32.xlu0 %v4756, 32
        %v4948 = vpop.permute.xlu0 %4947
        %4949 = vrot.lane.b32.xlu0 %v4758, 32
        %v4950 = vpop.permute.xlu0 %4949
        %4951 = vrot.lane.b32.xlu0 %v4761, 32
        %v4952 = vpop.permute.xlu0 %4951
        %4953 = vrot.lane.b32.xlu0 %v4763, 32
        %v4954 = vpop.permute.xlu0 %4953
        %4955 = vrot.lane.b32.xlu0 %v4766, 32
        %v4956 = vpop.permute.xlu0 %4955
        %4957 = vrot.lane.b32.xlu0 %v4768, 32
        %v4958 = vpop.permute.xlu0 %4957
        %4959 = vrot.lane.b32.xlu0 %v4771, 32
        %v4960 = vpop.permute.xlu0 %4959
        %4961 = vrot.lane.b32.xlu0 %v4773, 32
        %v4962 = vpop.permute.xlu0 %4961
        %4963 = vrot.lane.b32.xlu0 %v4776, 32
        %v4964 = vpop.permute.xlu0 %4963
        %4965 = vrot.lane.b32.xlu0 %v4778, 32
        %v4966 = vpop.permute.xlu0 %4965
        %4999 = vrot.lane.b32.xlu0 %v4578, 48
        %v5000 = vpop.permute.xlu0 %4999
        %5001 = vrot.lane.b32.xlu0 %v4580, 48
        %v5002 = vpop.permute.xlu0 %5001
        %5003 = vrot.lane.b32.xlu0 %v4583, 48
        %v5004 = vpop.permute.xlu0 %5003
        %5005 = vrot.lane.b32.xlu0 %v4585, 48
        %v5006 = vpop.permute.xlu0 %5005
        %5007 = vrot.lane.b32.xlu0 %v4588, 48
        %v5008 = vpop.permute.xlu0 %5007
        %5009 = vrot.lane.b32.xlu0 %v4590, 48
        %v5010 = vpop.permute.xlu0 %5009
        %5011 = vrot.lane.b32.xlu0 %v4593, 48
        %v5012 = vpop.permute.xlu0 %5011
        %5013 = vrot.lane.b32.xlu0 %v4595, 48
        %v5014 = vpop.permute.xlu0 %5013
        %5015 = vrot.lane.b32.xlu0 %v4598, 48
        %v5016 = vpop.permute.xlu0 %5015
        %5017 = vrot.lane.b32.xlu0 %v4600, 48
        %v5018 = vpop.permute.xlu0 %5017
        %5019 = vrot.lane.b32.xlu0 %v4603, 48
        %v5020 = vpop.permute.xlu0 %5019
        %5021 = vrot.lane.b32.xlu0 %v4605, 48
        %v5022 = vpop.permute.xlu0 %5021
        %5023 = vrot.lane.b32.xlu0 %v4608, 48
        %v5024 = vpop.permute.xlu0 %5023
        %5025 = vrot.lane.b32.xlu0 %v4610, 48
        %v5026 = vpop.permute.xlu0 %5025
        %5027 = vrot.lane.b32.xlu0 %v4613, 48
        %v5028 = vpop.permute.xlu0 %5027
        %5029 = vrot.lane.b32.xlu0 %v4615, 48
        %v5030 = vpop.permute.xlu0 %5029
        %5031 = vrot.lane.b32.xlu0 %v4618, 48
        %v5032 = vpop.permute.xlu0 %5031
        %5033 = vrot.lane.b32.xlu0 %v4620, 48
        %v5034 = vpop.permute.xlu0 %5033
        %5035 = vrot.lane.b32.xlu0 %v4623, 48
        %v5036 = vpop.permute.xlu0 %5035
        %5037 = vrot.lane.b32.xlu0 %v4625, 48
        %v5038 = vpop.permute.xlu0 %5037
        %5039 = vrot.lane.b32.xlu0 %v4628, 48
        %v5040 = vpop.permute.xlu0 %5039
        %5041 = vrot.lane.b32.xlu0 %v4630, 48
        %v5042 = vpop.permute.xlu0 %5041
        %5043 = vrot.lane.b32.xlu0 %v4633, 48
        %v5044 = vpop.permute.xlu0 %5043
        %5045 = vrot.lane.b32.xlu0 %v4635, 48
        %v5046 = vpop.permute.xlu0 %5045
        %5047 = vrot.lane.b32.xlu0 %v4638, 48
        %v5048 = vpop.permute.xlu0 %5047
        %5049 = vrot.lane.b32.xlu0 %v4640, 48
        %v5050 = vpop.permute.xlu0 %5049
        %5051 = vrot.lane.b32.xlu0 %v4643, 48
        %v5052 = vpop.permute.xlu0 %5051
        %5053 = vrot.lane.b32.xlu0 %v4645, 48
        %v5054 = vpop.permute.xlu0 %5053
        %5055 = vrot.lane.b32.xlu0 %v4648, 48
        %v5056 = vpop.permute.xlu0 %5055
        %5057 = vrot.lane.b32.xlu0 %v4650, 48
        %v5058 = vpop.permute.xlu0 %5057
        %5059 = vrot.lane.b32.xlu0 %v4784, 48
        %v5060 = vpop.permute.xlu0 %5059
        %5061 = vrot.lane.b32.xlu0 %v4786, 48
        %v5062 = vpop.permute.xlu0 %5061
        %5095 = vrot.lane.b32.xlu0 %v4456, 64
        %v5096 = vpop.permute.xlu0 %5095
        %5097 = vrot.lane.b32.xlu0 %v4457, 64
        %v5098 = vpop.permute.xlu0 %5097
        %5099 = vrot.lane.b32.xlu0 %v4460, 64
        %v5100 = vpop.permute.xlu0 %5099
        %5101 = vrot.lane.b32.xlu0 %v4461, 64
        %v5102 = vpop.permute.xlu0 %5101
        %5103 = vrot.lane.b32.xlu0 %v4464, 64
        %v5104 = vpop.permute.xlu0 %5103
        %5105 = vrot.lane.b32.xlu0 %v4465, 64
        %v5106 = vpop.permute.xlu0 %5105
        %5107 = vrot.lane.b32.xlu0 %v4468, 64
        %v5108 = vpop.permute.xlu0 %5107
        %5109 = vrot.lane.b32.xlu0 %v4469, 64
        %v5110 = vpop.permute.xlu0 %5109
        %5111 = vrot.lane.b32.xlu0 %v4472, 64
        %v5112 = vpop.permute.xlu0 %5111
        %5113 = vrot.lane.b32.xlu0 %v4473, 64
        %v5114 = vpop.permute.xlu0 %5113
        %5115 = vrot.lane.b32.xlu0 %v4476, 64
        %v5116 = vpop.permute.xlu0 %5115
        %5117 = vrot.lane.b32.xlu0 %v4477, 64
        %v5118 = vpop.permute.xlu0 %5117
        %5119 = vrot.lane.b32.xlu0 %v4480, 64
        %v5120 = vpop.permute.xlu0 %5119
        %5121 = vrot.lane.b32.xlu0 %v4481, 64
        %v5122 = vpop.permute.xlu0 %5121
        %5123 = vrot.lane.b32.xlu0 %v4484, 64
        %v5124 = vpop.permute.xlu0 %5123
        %5125 = vrot.lane.b32.xlu0 %v4485, 64
        %v5126 = vpop.permute.xlu0 %5125
        %5127 = vrot.lane.b32.xlu0 %v4488, 64
        %v5128 = vpop.permute.xlu0 %5127
        %5129 = vrot.lane.b32.xlu0 %v4489, 64
        %v5130 = vpop.permute.xlu0 %5129
        %5131 = vrot.lane.b32.xlu0 %v4492, 64
        %v5132 = vpop.permute.xlu0 %5131
        %5133 = vrot.lane.b32.xlu0 %v4493, 64
        %v5134 = vpop.permute.xlu0 %5133
        %5135 = vrot.lane.b32.xlu0 %v4496, 64
        %v5136 = vpop.permute.xlu0 %5135
        %5137 = vrot.lane.b32.xlu0 %v4497, 64
        %v5138 = vpop.permute.xlu0 %5137
        %5139 = vrot.lane.b32.xlu0 %v4500, 64
        %v5140 = vpop.permute.xlu0 %5139
        %5141 = vrot.lane.b32.xlu0 %v4501, 64
        %v5142 = vpop.permute.xlu0 %5141
        %5143 = vrot.lane.b32.xlu0 %v4504, 64
        %v5144 = vpop.permute.xlu0 %5143
        %5145 = vrot.lane.b32.xlu0 %v4505, 64
        %v5146 = vpop.permute.xlu0 %5145
        %5147 = vrot.lane.b32.xlu0 %v4508, 64
        %v5148 = vpop.permute.xlu0 %5147
        %5149 = vrot.lane.b32.xlu0 %v4509, 64
        %v5150 = vpop.permute.xlu0 %5149
        %5151 = vrot.lane.b32.xlu0 %v4512, 64
        %v5152 = vpop.permute.xlu0 %5151
        %5153 = vrot.lane.b32.xlu0 %v4513, 64
        %v5154 = vpop.permute.xlu0 %5153
        %5155 = vrot.lane.b32.xlu0 %v4516, 64
        %v5156 = vpop.permute.xlu0 %5155
        %5157 = vrot.lane.b32.xlu0 %v4517, 64
        %v5158 = vpop.permute.xlu0 %5157
        %5191 = vrot.lane.b32.xlu0 %v4706, 80
        %v5192 = vpop.permute.xlu0 %5191
        %5193 = vrot.lane.b32.xlu0 %v4708, 80
        %v5194 = vpop.permute.xlu0 %5193
        %5195 = vrot.lane.b32.xlu0 %v4711, 80
        %v5196 = vpop.permute.xlu0 %5195
        %5197 = vrot.lane.b32.xlu0 %v4713, 80
        %v5198 = vpop.permute.xlu0 %5197
        %5199 = vrot.lane.b32.xlu0 %v4716, 80
        %v5200 = vpop.permute.xlu0 %5199
        %5201 = vrot.lane.b32.xlu0 %v4718, 80
        %v5202 = vpop.permute.xlu0 %5201
        %5203 = vrot.lane.b32.xlu0 %v4721, 80
        %v5204 = vpop.permute.xlu0 %5203
        %5205 = vrot.lane.b32.xlu0 %v4723, 80
        %v5206 = vpop.permute.xlu0 %5205
        %5207 = vrot.lane.b32.xlu0 %v4726, 80
        %v5208 = vpop.permute.xlu0 %5207
        %5209 = vrot.lane.b32.xlu0 %v4728, 80
        %v5210 = vpop.permute.xlu0 %5209
        %5211 = vrot.lane.b32.xlu0 %v4731, 80
        %v5212 = vpop.permute.xlu0 %5211
        %5213 = vrot.lane.b32.xlu0 %v4733, 80
        %v5214 = vpop.permute.xlu0 %5213
        %5215 = vrot.lane.b32.xlu0 %v4736, 80
        %v5216 = vpop.permute.xlu0 %5215
        %5217 = vrot.lane.b32.xlu0 %v4738, 80
        %v5218 = vpop.permute.xlu0 %5217
        %5219 = vrot.lane.b32.xlu0 %v4741, 80
        %v5220 = vpop.permute.xlu0 %5219
        %5221 = vrot.lane.b32.xlu0 %v4743, 80
        %v5222 = vpop.permute.xlu0 %5221
        %5223 = vrot.lane.b32.xlu0 %v4746, 80
        %v5224 = vpop.permute.xlu0 %5223
        %5225 = vrot.lane.b32.xlu0 %v4748, 80
        %v5226 = vpop.permute.xlu0 %5225
        %5227 = vrot.lane.b32.xlu0 %v4751, 80
        %v5228 = vpop.permute.xlu0 %5227
        %5229 = vrot.lane.b32.xlu0 %v4753, 80
        %v5230 = vpop.permute.xlu0 %5229
        %5231 = vrot.lane.b32.xlu0 %v4756, 80
        %v5232 = vpop.permute.xlu0 %5231
        %5233 = vrot.lane.b32.xlu0 %v4758, 80
        %v5234 = vpop.permute.xlu0 %5233
        %5235 = vrot.lane.b32.xlu0 %v4761, 80
        %v5236 = vpop.permute.xlu0 %5235
        %5237 = vrot.lane.b32.xlu0 %v4763, 80
        %v5238 = vpop.permute.xlu0 %5237
        %5239 = vrot.lane.b32.xlu0 %v4766, 80
        %v5240 = vpop.permute.xlu0 %5239
        %5241 = vrot.lane.b32.xlu0 %v4768, 80
        %v5242 = vpop.permute.xlu0 %5241
        %5243 = vrot.lane.b32.xlu0 %v4771, 80
        %v5244 = vpop.permute.xlu0 %5243
        %5245 = vrot.lane.b32.xlu0 %v4773, 80
        %v5246 = vpop.permute.xlu0 %5245
        %5247 = vrot.lane.b32.xlu0 %v4776, 80
        %v5248 = vpop.permute.xlu0 %5247
        %5249 = vrot.lane.b32.xlu0 %v4778, 80
        %v5250 = vpop.permute.xlu0 %5249
        %5251 = vrot.lane.b32.xlu0 %v4790, 80
        %v5252 = vpop.permute.xlu0 %5251
        %5253 = vrot.lane.b32.xlu0 %v4792, 80
        %v5254 = vpop.permute.xlu0 %5253
        %5287 = vrot.lane.b32.xlu0 %v4583, 96
        %v5288 = vpop.permute.xlu0 %5287
        %5289 = vrot.lane.b32.xlu0 %v4585, 96
        %v5290 = vpop.permute.xlu0 %5289
        %5291 = vrot.lane.b32.xlu0 %v4588, 96
        %v5292 = vpop.permute.xlu0 %5291
        %5293 = vrot.lane.b32.xlu0 %v4590, 96
        %v5294 = vpop.permute.xlu0 %5293
        %5295 = vrot.lane.b32.xlu0 %v4593, 96
        %v5296 = vpop.permute.xlu0 %5295
        %5297 = vrot.lane.b32.xlu0 %v4595, 96
        %v5298 = vpop.permute.xlu0 %5297
        %5299 = vrot.lane.b32.xlu0 %v4598, 96
        %v5300 = vpop.permute.xlu0 %5299
        %5301 = vrot.lane.b32.xlu0 %v4600, 96
        %v5302 = vpop.permute.xlu0 %5301
        %5303 = vrot.lane.b32.xlu0 %v4603, 96
        %v5304 = vpop.permute.xlu0 %5303
        %5305 = vrot.lane.b32.xlu0 %v4605, 96
        %v5306 = vpop.permute.xlu0 %5305
        %5307 = vrot.lane.b32.xlu0 %v4608, 96
        %v5308 = vpop.permute.xlu0 %5307
        %5309 = vrot.lane.b32.xlu0 %v4610, 96
        %v5310 = vpop.permute.xlu0 %5309
        %5311 = vrot.lane.b32.xlu0 %v4613, 96
        %v5312 = vpop.permute.xlu0 %5311
        %5313 = vrot.lane.b32.xlu0 %v4615, 96
        %v5314 = vpop.permute.xlu0 %5313
        %5315 = vrot.lane.b32.xlu0 %v4618, 96
        %v5316 = vpop.permute.xlu0 %5315
        %5317 = vrot.lane.b32.xlu0 %v4620, 96
        %v5318 = vpop.permute.xlu0 %5317
        %5319 = vrot.lane.b32.xlu0 %v4623, 96
        %v5320 = vpop.permute.xlu0 %5319
        %5321 = vrot.lane.b32.xlu0 %v4625, 96
        %v5322 = vpop.permute.xlu0 %5321
        %5323 = vrot.lane.b32.xlu0 %v4628, 96
        %v5324 = vpop.permute.xlu0 %5323
        %5325 = vrot.lane.b32.xlu0 %v4630, 96
        %v5326 = vpop.permute.xlu0 %5325
        %5327 = vrot.lane.b32.xlu0 %v4633, 96
        %v5328 = vpop.permute.xlu0 %5327
        %5329 = vrot.lane.b32.xlu0 %v4635, 96
        %v5330 = vpop.permute.xlu0 %5329
        %5331 = vrot.lane.b32.xlu0 %v4638, 96
        %v5332 = vpop.permute.xlu0 %5331
        %5333 = vrot.lane.b32.xlu0 %v4640, 96
        %v5334 = vpop.permute.xlu0 %5333
        %5335 = vrot.lane.b32.xlu0 %v4643, 96
        %v5336 = vpop.permute.xlu0 %5335
        %5337 = vrot.lane.b32.xlu0 %v4645, 96
        %v5338 = vpop.permute.xlu0 %5337
        %5339 = vrot.lane.b32.xlu0 %v4648, 96
        %v5340 = vpop.permute.xlu0 %5339
        %5341 = vrot.lane.b32.xlu0 %v4650, 96
        %v5342 = vpop.permute.xlu0 %5341
        %5343 = vrot.lane.b32.xlu0 %v4784, 96
        %v5344 = vpop.permute.xlu0 %5343
        %5345 = vrot.lane.b32.xlu0 %v4786, 96
        %v5346 = vpop.permute.xlu0 %5345
        %5347 = vrot.lane.b32.xlu0 %v4798, 96
        %v5348 = vpop.permute.xlu0 %5347
        %5349 = vrot.lane.b32.xlu0 %v4800, 96
        %v5350 = vpop.permute.xlu0 %5349
        %5383 = vrot.lane.b32.xlu0 %v4460, 112
        %v5384 = vpop.permute.xlu0 %5383
        %5385 = vrot.lane.b32.xlu0 %v4461, 112
        %v5386 = vpop.permute.xlu0 %5385
        %5387 = vrot.lane.b32.xlu0 %v4464, 112
        %v5388 = vpop.permute.xlu0 %5387
        %5389 = vrot.lane.b32.xlu0 %v4465, 112
        %v5390 = vpop.permute.xlu0 %5389
        %5391 = vrot.lane.b32.xlu0 %v4468, 112
        %v5392 = vpop.permute.xlu0 %5391
        %5393 = vrot.lane.b32.xlu0 %v4469, 112
        %v5394 = vpop.permute.xlu0 %5393
        %5395 = vrot.lane.b32.xlu0 %v4472, 112
        %v5396 = vpop.permute.xlu0 %5395
        %5397 = vrot.lane.b32.xlu0 %v4473, 112
        %v5398 = vpop.permute.xlu0 %5397
        %5399 = vrot.lane.b32.xlu0 %v4476, 112
        %v5400 = vpop.permute.xlu0 %5399
        %5401 = vrot.lane.b32.xlu0 %v4477, 112
        %v5402 = vpop.permute.xlu0 %5401
        %5403 = vrot.lane.b32.xlu0 %v4480, 112
        %v5404 = vpop.permute.xlu0 %5403
        %5405 = vrot.lane.b32.xlu0 %v4481, 112
        %v5406 = vpop.permute.xlu0 %5405
        %5407 = vrot.lane.b32.xlu0 %v4484, 112
        %v5408 = vpop.permute.xlu0 %5407
        %5409 = vrot.lane.b32.xlu0 %v4485, 112
        %v5410 = vpop.permute.xlu0 %5409
        %5411 = vrot.lane.b32.xlu0 %v4488, 112
        %v5412 = vpop.permute.xlu0 %5411
        %5413 = vrot.lane.b32.xlu0 %v4489, 112
        %v5414 = vpop.permute.xlu0 %5413
        %5415 = vrot.lane.b32.xlu0 %v4492, 112
        %v5416 = vpop.permute.xlu0 %5415
        %5417 = vrot.lane.b32.xlu0 %v4493, 112
        %v5418 = vpop.permute.xlu0 %5417
        %5419 = vrot.lane.b32.xlu0 %v4496, 112
        %v5420 = vpop.permute.xlu0 %5419
        %5421 = vrot.lane.b32.xlu0 %v4497, 112
        %v5422 = vpop.permute.xlu0 %5421
        %5423 = vrot.lane.b32.xlu0 %v4500, 112
        %v5424 = vpop.permute.xlu0 %5423
        %5425 = vrot.lane.b32.xlu0 %v4501, 112
        %v5426 = vpop.permute.xlu0 %5425
        %5427 = vrot.lane.b32.xlu0 %v4504, 112
        %v5428 = vpop.permute.xlu0 %5427
        %5429 = vrot.lane.b32.xlu0 %v4505, 112
        %v5430 = vpop.permute.xlu0 %5429
        %5431 = vrot.lane.b32.xlu0 %v4508, 112
        %v5432 = vpop.permute.xlu0 %5431
        %5433 = vrot.lane.b32.xlu0 %v4509, 112
        %v5434 = vpop.permute.xlu0 %5433
        %5435 = vrot.lane.b32.xlu0 %v4512, 112
        %v5436 = vpop.permute.xlu0 %5435
        %5437 = vrot.lane.b32.xlu0 %v4513, 112
        %v5438 = vpop.permute.xlu0 %5437
        %5439 = vrot.lane.b32.xlu0 %v4516, 112
        %v5440 = vpop.permute.xlu0 %5439
        %5441 = vrot.lane.b32.xlu0 %v4517, 112
        %v5442 = vpop.permute.xlu0 %5441
        %5443 = vrot.lane.b32.xlu0 %v4520, 112
        %v5444 = vpop.permute.xlu0 %5443
        %5445 = vrot.lane.b32.xlu0 %v4521, 112
        %v5446 = vpop.permute.xlu0 %5445
        %v5479 = vsel %vm613, %v4573, %v4808
        %v5480 = vsel %vm613, %v4575, %v4810
        %v5481 = vsel %vm613, %v4578, %v4812
        %v5482 = vsel %vm613, %v4580, %v4814
        %v5483 = vsel %vm613, %v4583, %v4816
        %v5484 = vsel %vm613, %v4585, %v4818
        %v5485 = vsel %vm613, %v4588, %v4820
        %v5486 = vsel %vm613, %v4590, %v4822
        %v5487 = vsel %vm613, %v4593, %v4824
        %v5488 = vsel %vm613, %v4595, %v4826
        %v5489 = vsel %vm613, %v4598, %v4828
        %v5490 = vsel %vm613, %v4600, %v4830
        %v5491 = vsel %vm613, %v4603, %v4832
        %v5492 = vsel %vm613, %v4605, %v4834
        %v5493 = vsel %vm613, %v4608, %v4836
        %v5494 = vsel %vm613, %v4610, %v4838
        %v5495 = vsel %vm613, %v4613, %v4840
        %v5496 = vsel %vm613, %v4615, %v4842
        %v5497 = vsel %vm613, %v4618, %v4844
        %v5498 = vsel %vm613, %v4620, %v4846
        %v5499 = vsel %vm613, %v4623, %v4848
        %v5500 = vsel %vm613, %v4625, %v4850
        %v5501 = vsel %vm613, %v4628, %v4852
        %v5502 = vsel %vm613, %v4630, %v4854
        %v5503 = vsel %vm613, %v4633, %v4856
        %v5504 = vsel %vm613, %v4635, %v4858
        %v5505 = vsel %vm613, %v4638, %v4860
        %v5506 = vsel %vm613, %v4640, %v4862
        %v5507 = vsel %vm613, %v4643, %v4864
        %v5508 = vsel %vm613, %v4645, %v4866
        %v5509 = vsel %vm613, %v4648, %v4868
        %v5510 = vsel %vm613, %v4650, %v4870
        %v5511 = vsel %vm566, %v5479, %v4904
        %v5512 = vsel %vm566, %v5480, %v4906
        %v5513 = vsel %vm566, %v5481, %v4908
        %v5514 = vsel %vm566, %v5482, %v4910
        %v5515 = vsel %vm566, %v5483, %v4912
        %v5516 = vsel %vm566, %v5484, %v4914
        %v5517 = vsel %vm566, %v5485, %v4916
        %v5518 = vsel %vm566, %v5486, %v4918
        %v5519 = vsel %vm566, %v5487, %v4920
        %v5520 = vsel %vm566, %v5488, %v4922
        %v5521 = vsel %vm566, %v5489, %v4924
        %v5522 = vsel %vm566, %v5490, %v4926
        %v5523 = vsel %vm566, %v5491, %v4928
        %v5524 = vsel %vm566, %v5492, %v4930
        %v5525 = vsel %vm566, %v5493, %v4932
        %v5526 = vsel %vm566, %v5494, %v4934
        %v5527 = vsel %vm566, %v5495, %v4936
        %v5528 = vsel %vm566, %v5496, %v4938
        %v5529 = vsel %vm566, %v5497, %v4940
        %v5530 = vsel %vm566, %v5498, %v4942
        %v5531 = vsel %vm566, %v5499, %v4944
        %v5532 = vsel %vm566, %v5500, %v4946
        %v5533 = vsel %vm566, %v5501, %v4948
        %v5534 = vsel %vm566, %v5502, %v4950
        %v5535 = vsel %vm566, %v5503, %v4952
        %v5536 = vsel %vm566, %v5504, %v4954
        %v5537 = vsel %vm566, %v5505, %v4956
        %v5538 = vsel %vm566, %v5506, %v4958
        %v5539 = vsel %vm566, %v5507, %v4960
        %v5540 = vsel %vm566, %v5508, %v4962
        %v5541 = vsel %vm566, %v5509, %v4964
        %v5542 = vsel %vm566, %v5510, %v4966
        %vm5543 = vcmask 392192
        %v5544 = vsel %vm5543, %v5511, %v5000
        %v5545 = vsel %vm5543, %v5512, %v5002
        %v5546 = vsel %vm5543, %v5513, %v5004
        %v5547 = vsel %vm5543, %v5514, %v5006
        %v5548 = vsel %vm5543, %v5515, %v5008
        %v5549 = vsel %vm5543, %v5516, %v5010
        %v5550 = vsel %vm5543, %v5517, %v5012
        %v5551 = vsel %vm5543, %v5518, %v5014
        %v5552 = vsel %vm5543, %v5519, %v5016
        %v5553 = vsel %vm5543, %v5520, %v5018
        %v5554 = vsel %vm5543, %v5521, %v5020
        %v5555 = vsel %vm5543, %v5522, %v5022
        %v5556 = vsel %vm5543, %v5523, %v5024
        %v5557 = vsel %vm5543, %v5524, %v5026
        %v5558 = vsel %vm5543, %v5525, %v5028
        %v5559 = vsel %vm5543, %v5526, %v5030
        %v5560 = vsel %vm5543, %v5527, %v5032
        %v5561 = vsel %vm5543, %v5528, %v5034
        %v5562 = vsel %vm5543, %v5529, %v5036
        %v5563 = vsel %vm5543, %v5530, %v5038
        %v5564 = vsel %vm5543, %v5531, %v5040
        %v5565 = vsel %vm5543, %v5532, %v5042
        %v5566 = vsel %vm5543, %v5533, %v5044
        %v5567 = vsel %vm5543, %v5534, %v5046
        %v5568 = vsel %vm5543, %v5535, %v5048
        %v5569 = vsel %vm5543, %v5536, %v5050
        %v5570 = vsel %vm5543, %v5537, %v5052
        %v5571 = vsel %vm5543, %v5538, %v5054
        %v5572 = vsel %vm5543, %v5539, %v5056
        %v5573 = vsel %vm5543, %v5540, %v5058
        %v5574 = vsel %vm5543, %v5541, %v5060
        %v5575 = vsel %vm5543, %v5542, %v5062
        %v5576 = vsel %vm3596, %v5544, %v5096
        %v5577 = vsel %vm3596, %v5545, %v5098
        %v5578 = vsel %vm3596, %v5546, %v5100
        %v5579 = vsel %vm3596, %v5547, %v5102
        %v5580 = vsel %vm3596, %v5548, %v5104
        %v5581 = vsel %vm3596, %v5549, %v5106
        %v5582 = vsel %vm3596, %v5550, %v5108
        %v5583 = vsel %vm3596, %v5551, %v5110
        %v5584 = vsel %vm3596, %v5552, %v5112
        %v5585 = vsel %vm3596, %v5553, %v5114
        %v5586 = vsel %vm3596, %v5554, %v5116
        %v5587 = vsel %vm3596, %v5555, %v5118
        %v5588 = vsel %vm3596, %v5556, %v5120
        %v5589 = vsel %vm3596, %v5557, %v5122
        %v5590 = vsel %vm3596, %v5558, %v5124
        %v5591 = vsel %vm3596, %v5559, %v5126
        %v5592 = vsel %vm3596, %v5560, %v5128
        %v5593 = vsel %vm3596, %v5561, %v5130
        %v5594 = vsel %vm3596, %v5562, %v5132
        %v5595 = vsel %vm3596, %v5563, %v5134
        %v5596 = vsel %vm3596, %v5564, %v5136
        %v5597 = vsel %vm3596, %v5565, %v5138
        %v5598 = vsel %vm3596, %v5566, %v5140
        %v5599 = vsel %vm3596, %v5567, %v5142
        %v5600 = vsel %vm3596, %v5568, %v5144
        %v5601 = vsel %vm3596, %v5569, %v5146
        %v5602 = vsel %vm3596, %v5570, %v5148
        %v5603 = vsel %vm3596, %v5571, %v5150
        %v5604 = vsel %vm3596, %v5572, %v5152
        %v5605 = vsel %vm3596, %v5573, %v5154
        %v5606 = vsel %vm3596, %v5574, %v5156
        %v5607 = vsel %vm3596, %v5575, %v5158
        %vm5608 = vcmask 654336
        %v5609 = vsel %vm5608, %v5576, %v5192
        %v5610 = vsel %vm5608, %v5577, %v5194
        %v5611 = vsel %vm5608, %v5578, %v5196
        %v5612 = vsel %vm5608, %v5579, %v5198
        %v5613 = vsel %vm5608, %v5580, %v5200
        %v5614 = vsel %vm5608, %v5581, %v5202
        %v5615 = vsel %vm5608, %v5582, %v5204
        %v5616 = vsel %vm5608, %v5583, %v5206
        %v5617 = vsel %vm5608, %v5584, %v5208
        %v5618 = vsel %vm5608, %v5585, %v5210
        %v5619 = vsel %vm5608, %v5586, %v5212
        %v5620 = vsel %vm5608, %v5587, %v5214
        %v5621 = vsel %vm5608, %v5588, %v5216
        %v5622 = vsel %vm5608, %v5589, %v5218
        %v5623 = vsel %vm5608, %v5590, %v5220
        %v5624 = vsel %vm5608, %v5591, %v5222
        %v5625 = vsel %vm5608, %v5592, %v5224
        %v5626 = vsel %vm5608, %v5593, %v5226
        %v5627 = vsel %vm5608, %v5594, %v5228
        %v5628 = vsel %vm5608, %v5595, %v5230
        %v5629 = vsel %vm5608, %v5596, %v5232
        %v5630 = vsel %vm5608, %v5597, %v5234
        %v5631 = vsel %vm5608, %v5598, %v5236
        %v5632 = vsel %vm5608, %v5599, %v5238
        %v5633 = vsel %vm5608, %v5600, %v5240
        %v5634 = vsel %vm5608, %v5601, %v5242
        %v5635 = vsel %vm5608, %v5602, %v5244
        %v5636 = vsel %vm5608, %v5603, %v5246
        %v5637 = vsel %vm5608, %v5604, %v5248
        %v5638 = vsel %vm5608, %v5605, %v5250
        %v5639 = vsel %vm5608, %v5606, %v5252
        %v5640 = vsel %vm5608, %v5607, %v5254
        %v5641 = vsel %vm3629, %v5609, %v5288
        %v5642 = vsel %vm3629, %v5610, %v5290
        %v5643 = vsel %vm3629, %v5611, %v5292
        %v5644 = vsel %vm3629, %v5612, %v5294
        %v5645 = vsel %vm3629, %v5613, %v5296
        %v5646 = vsel %vm3629, %v5614, %v5298
        %v5647 = vsel %vm3629, %v5615, %v5300
        %v5648 = vsel %vm3629, %v5616, %v5302
        %v5649 = vsel %vm3629, %v5617, %v5304
        %v5650 = vsel %vm3629, %v5618, %v5306
        %v5651 = vsel %vm3629, %v5619, %v5308
        %v5652 = vsel %vm3629, %v5620, %v5310
        %v5653 = vsel %vm3629, %v5621, %v5312
        %v5654 = vsel %vm3629, %v5622, %v5314
        %v5655 = vsel %vm3629, %v5623, %v5316
        %v5656 = vsel %vm3629, %v5624, %v5318
        %v5657 = vsel %vm3629, %v5625, %v5320
        %v5658 = vsel %vm3629, %v5626, %v5322
        %v5659 = vsel %vm3629, %v5627, %v5324
        %v5660 = vsel %vm3629, %v5628, %v5326
        %v5661 = vsel %vm3629, %v5629, %v5328
        %v5662 = vsel %vm3629, %v5630, %v5330
        %v5663 = vsel %vm3629, %v5631, %v5332
        %v5664 = vsel %vm3629, %v5632, %v5334
        %v5665 = vsel %vm3629, %v5633, %v5336
        %v5666 = vsel %vm3629, %v5634, %v5338
        %v5667 = vsel %vm3629, %v5635, %v5340
        %v5668 = vsel %vm3629, %v5636, %v5342
        %v5669 = vsel %vm3629, %v5637, %v5344
        %v5670 = vsel %vm3629, %v5638, %v5346
        %v5671 = vsel %vm3629, %v5639, %v5348
        %v5672 = vsel %vm3629, %v5640, %v5350
        %vm5673 = vcmask 916480
        %v5674 = vsel %vm5673, %v5641, %v5384
        %v5675 = vsel %vm5673, %v5642, %v5386
        %v5676 = vsel %vm5673, %v5643, %v5388
        %v5677 = vsel %vm5673, %v5644, %v5390
        %v5678 = vsel %vm5673, %v5645, %v5392
        %v5679 = vsel %vm5673, %v5646, %v5394
        %v5680 = vsel %vm5673, %v5647, %v5396
        %v5681 = vsel %vm5673, %v5648, %v5398
        %v5682 = vsel %vm5673, %v5649, %v5400
        %v5683 = vsel %vm5673, %v5650, %v5402
        %v5684 = vsel %vm5673, %v5651, %v5404
        %v5685 = vsel %vm5673, %v5652, %v5406
        %v5686 = vsel %vm5673, %v5653, %v5408
        %v5687 = vsel %vm5673, %v5654, %v5410
        %v5688 = vsel %vm5673, %v5655, %v5412
        %v5689 = vsel %vm5673, %v5656, %v5414
        %v5690 = vsel %vm5673, %v5657, %v5416
        %v5691 = vsel %vm5673, %v5658, %v5418
        %v5692 = vsel %vm5673, %v5659, %v5420
        %v5693 = vsel %vm5673, %v5660, %v5422
        %v5694 = vsel %vm5673, %v5661, %v5424
        %v5695 = vsel %vm5673, %v5662, %v5426
        %v5696 = vsel %vm5673, %v5663, %v5428
        %v5697 = vsel %vm5673, %v5664, %v5430
        %v5698 = vsel %vm5673, %v5665, %v5432
        %v5699 = vsel %vm5673, %v5666, %v5434
        %v5700 = vsel %vm5673, %v5667, %v5436
        %v5701 = vsel %vm5673, %v5668, %v5438
        %v5702 = vsel %vm5673, %v5669, %v5440
        %v5703 = vsel %vm5673, %v5670, %v5442
        %v5704 = vsel %vm5673, %v5671, %v5444
        %v5705 = vsel %vm5673, %v5672, %v5446
        %v5706 = vld [vmem:[%s7] sm:$0xff]
        %v5707 = vld [vmem:[%s7 + $0x8] sm:$0xff]
        %v5708 = vld [vmem:[%s7 + $0x10] sm:$0xff]
        %v5709 = vld [vmem:[%s7 + $0x18] sm:$0xff]
        %v5710 = vld [vmem:[%s7 + $0x20] sm:$0xff]
        %v5711 = vld [vmem:[%s7 + $0x28] sm:$0xff]
        %v5712 = vld [vmem:[%s7 + $0x30] sm:$0xff]
        %v5713 = vld [vmem:[%s7 + $0x38] sm:$0xff]
        %v5714 = vld [vmem:[%s7 + $0x40] sm:$0xff]
        %v5715 = vld [vmem:[%s7 + $0x48] sm:$0xff]
        %v5716 = vld [vmem:[%s7 + $0x50] sm:$0xff]
        %v5717 = vld [vmem:[%s7 + $0x58] sm:$0xff]
        %v5718 = vld [vmem:[%s7 + $0x60] sm:$0xff]
        %v5719 = vld [vmem:[%s7 + $0x68] sm:$0xff]
        %v5720 = vld [vmem:[%s7 + $0x70] sm:$0xff]
        %v5721 = vld [vmem:[%s7 + $0x78] sm:$0xff]
        %v5722 = vld [vmem:[%s7 + $0x80] sm:$0xff]
        %v5723 = vld [vmem:[%s7 + $0x88] sm:$0xff]
        %v5724 = vsel %vm613, %v4711, 0
        %v5726 = vsel %vm613, %v4713, 0
        %v5728 = vsel %vm613, %v4716, 0
        %v5730 = vsel %vm613, %v4718, 0
        %v5732 = vsel %vm613, %v4721, 0
        %v5734 = vsel %vm613, %v4723, 0
        %v5736 = vsel %vm613, %v4726, 0
        %v5738 = vsel %vm613, %v4728, 0
        %v5740 = vsel %vm613, %v4731, 0
        %v5742 = vsel %vm613, %v4733, 0
        %v5744 = vsel %vm613, %v4736, 0
        %v5746 = vsel %vm613, %v4738, 0
        %v5748 = vsel %vm613, %v4741, 0
        %v5750 = vsel %vm613, %v4743, 0
        %v5752 = vsel %vm613, %v4746, 0
        %v5754 = vsel %vm613, %v4748, 0
        %v5756 = vsel %vm613, %v4751, 0
        %v5758 = vsel %vm613, %v4753, 0
        %v5760 = vsel %vm613, %v4756, 0
        %v5762 = vsel %vm613, %v4758, 0
        %v5764 = vsel %vm613, %v4761, 0
        %v5766 = vsel %vm613, %v4763, 0
        %v5768 = vsel %vm613, %v4766, 0
        %v5770 = vsel %vm613, %v4768, 0
        %v5772 = vsel %vm613, %v4771, 0
        %v5774 = vsel %vm613, %v4773, 0
        %v5776 = vsel %vm613, %v4776, 0
        %v5778 = vsel %vm613, %v4778, 0
        %v5780 = vsel %vm613, %v4790, 0
        %v5782 = vsel %vm613, %v4792, 0
        %v5784 = vsel %vm613, %v4804, 0
        %v5786 = vsel %vm613, %v4806, 0
        %5788 = vmatprep.subr.mxu0 0.0
        %5789 = vmatpush1.msra.mxu0 %v5706
        %5790 = vmatprep.subr.mxu0 0.0
        %5791 = vmatpush1.msra.mxu0 %v5707
        %5792 = vmatprep.subr.mxu0 0.0
        %5793 = vmatpush1.msra.mxu0 %v5708
        %5794 = vmatprep.subr.mxu0 0.0
        %5795 = vmatpush1.msra.mxu0 %v5709
        %5796 = vmatprep.subr.mxu0 0.0
        %5797 = vmatpush1.msra.mxu0 %v5710
        %5798 = vmatprep.subr.mxu0 0.0
        %5799 = vmatpush1.msra.mxu0 %v5711
        %5800 = vmatprep.subr.mxu0 0.0
        %5801 = vmatpush1.msra.mxu0 %v5712
        %5802 = vmatprep.subr.mxu0 0.0
        %5803 = vmatpush1.msra.mxu0 %v5713
        %5804 = vmatprep.subr.mxu0 0.0
        %5805 = vmatpush1.msra.mxu0 %v5714
        %5806 = vmatprep.subr.mxu0 0.0
        %5807 = vmatpush1.msra.mxu0 %v5715
        %5808 = vmatprep.subr.mxu0 0.0
        %5809 = vmatpush1.msra.mxu0 %v5716
        %5810 = vmatprep.subr.mxu0 0.0
        %5811 = vmatpush1.msra.mxu0 %v5717
        %5812 = vmatprep.subr.mxu0 0.0
        %5813 = vmatpush1.msra.mxu0 %v5718
        %5814 = vmatprep.subr.mxu0 0.0
        %5815 = vmatpush1.msra.mxu0 %v5719
        %5816 = vmatprep.subr.mxu0 0.0
        %5817 = vmatpush1.msra.mxu0 %v5720
        %5818 = vmatprep.subr.mxu0 0.0
        %5819 = vmatpush1.msra.mxu0 %v5721
        %5820 = vmatprep.subr.mxu0 0.0
        %5821 = vmatpush1.msra.mxu0 %v5722
        %5822 = vmatprep.subr.mxu0 0.0
        %5823 = vmatpush1.msra.mxu0 %v5723
        %5824 = vmatprep.subr.mxu0 0.0
        %5825 = vmatpush1.msra.mxu0 0.0
        %5826 = vmatprep.subr.mxu0 0.0
        %5827 = vmatpush1.msra.mxu0 0.0
        %5828 = vmatprep.subr.mxu0 0.0
        %5829 = vmatpush1.msra.mxu0 0.0
        %5830 = vmatprep.subr.mxu0 0.0
        %5831 = vmatpush1.msra.mxu0 0.0
        %5832 = vmatprep.subr.mxu0 0.0
        %5833 = vmatpush1.msra.mxu0 0.0
        %5834 = vmatprep.subr.mxu0 0.0
        %5835 = vmatpush1.msra.mxu0 0.0
        %5836 = vmatprep.subr.mxu0 0.0
        %5837 = vmatpush1.msra.mxu0 0.0
        %5838 = vmatprep.subr.mxu0 0.0
        %5839 = vmatpush1.msra.mxu0 0.0
        %5840 = vmatprep.subr.mxu0 0.0
        %5841 = vmatpush1.msra.mxu0 0.0
        %5842 = vmatprep.subr.mxu0 0.0
        %5843 = vmatpush1.msra.mxu0 0.0
        %5844 = vmatprep.subr.mxu0 0.0
        %5845 = vmatpush1.msra.mxu0 0.0
        %5846 = vmatprep.subr.mxu0 0.0
        %5847 = vmatpush1.msra.mxu0 0.0
        %5848 = vmatprep.subr.mxu0 0.0
        %5849 = vmatpush1.msra.mxu0 0.0
        %5850 = vmatprep.subr.mxu0 0.0
        %5851 = vmatpush1.msra.mxu0 0.0
        %5852 = vmatprep.mubr.f32.mxu0 %v5724
        %5853 = vmatmul.mubr.f32.gmra.mrb[0].mxu0 %v5674
        %v5854 = vpop.f32.mrb[0].mxu0
        %v5855 = vadd.f32 0.0, %v5854
        %v5856 = vpop.f32.mrb[0].mxu0
        %5857 = vmatprep.mubr.f32.mxu0 %v5726
        %5858 = vmatmul.mubr.f32.gmra.mrb[0].mxu0 %v5675
        %v5859 = vpop.f32.mrb[0].mxu0
        %v5860 = vadd.f32 0.0, %v5859
        %v5861 = vpop.f32.mrb[0].mxu0
        %5862 = vmatprep.mubr.f32.mxu0 %v5728
        %5863 = vmatmul.mubr.f32.gmra.mrb[0].mxu0 %v5676
        %v5864 = vpop.f32.mrb[0].mxu0
        %v5865 = vadd.f32 0.0, %v5864
        %v5866 = vpop.f32.mrb[0].mxu0
        %5867 = vmatprep.mubr.f32.mxu0 %v5730
        %5868 = vmatmul.mubr.f32.gmra.mrb[0].mxu0 %v5677
        %v5869 = vpop.f32.mrb[0].mxu0
        %v5870 = vadd.f32 0.0, %v5869
        %v5871 = vpop.f32.mrb[0].mxu0
        %5872 = vmatprep.mubr.f32.mxu0 %v5732
        %5873 = vmatmul.mubr.f32.gmra.mrb[0].mxu0 %v5678
        %v5874 = vpop.f32.mrb[0].mxu0
        %v5875 = vadd.f32 0.0, %v5874
        %v5876 = vpop.f32.mrb[0].mxu0
        %5877 = vmatprep.mubr.f32.mxu0 %v5734
        %5878 = vmatmul.mubr.f32.gmra.mrb[0].mxu0 %v5679
        %v5879 = vpop.f32.mrb[0].mxu0
        %v5880 = vadd.f32 0.0, %v5879
        %v5881 = vpop.f32.mrb[0].mxu0
        %5882 = vmatprep.mubr.f32.mxu0 %v5736
        %5883 = vmatmul.mubr.f32.gmra.mrb[0].mxu0 %v5680
        %v5884 = vpop.f32.mrb[0].mxu0
        %v5885 = vadd.f32 0.0, %v5884
        %v5886 = vpop.f32.mrb[0].mxu0
        %5887 = vmatprep.mubr.f32.mxu0 %v5738
        %5888 = vmatmul.mubr.f32.gmra.mrb[0].mxu0 %v5681
        %v5889 = vpop.f32.mrb[0].mxu0
        %v5890 = vadd.f32 0.0, %v5889
        %v5891 = vpop.f32.mrb[0].mxu0
        %5892 = vmatprep.mubr.f32.mxu0 %v5740
        %5893 = vmatmul.mubr.f32.gmra.mrb[0].mxu0 %v5682
        %v5894 = vpop.f32.mrb[0].mxu0
        %v5895 = vadd.f32 0.0, %v5894
        %v5896 = vpop.f32.mrb[0].mxu0
        %5897 = vmatprep.mubr.f32.mxu0 %v5742
        %5898 = vmatmul.mubr.f32.gmra.mrb[0].mxu0 %v5683
        %v5899 = vpop.f32.mrb[0].mxu0
        %v5900 = vadd.f32 0.0, %v5899
        %v5901 = vpop.f32.mrb[0].mxu0
        %5902 = vmatprep.mubr.f32.mxu0 %v5744
        %5903 = vmatmul.mubr.f32.gmra.mrb[0].mxu0 %v5684
        %v5904 = vpop.f32.mrb[0].mxu0
        %v5905 = vadd.f32 0.0, %v5904
        %v5906 = vpop.f32.mrb[0].mxu0
        %5907 = vmatprep.mubr.f32.mxu0 %v5746
        %5908 = vmatmul.mubr.f32.gmra.mrb[0].mxu0 %v5685
        %v5909 = vpop.f32.mrb[0].mxu0
        %v5910 = vadd.f32 0.0, %v5909
        %v5911 = vpop.f32.mrb[0].mxu0
        %5912 = vmatprep.mubr.f32.mxu0 %v5748
        %5913 = vmatmul.mubr.f32.gmra.mrb[0].mxu0 %v5686
        %v5914 = vpop.f32.mrb[0].mxu0
        %v5915 = vadd.f32 0.0, %v5914
        %v5916 = vpop.f32.mrb[0].mxu0
        %5917 = vmatprep.mubr.f32.mxu0 %v5750
        %5918 = vmatmul.mubr.f32.gmra.mrb[0].mxu0 %v5687
        %v5919 = vpop.f32.mrb[0].mxu0
        %v5920 = vadd.f32 0.0, %v5919
        %v5921 = vpop.f32.mrb[0].mxu0
        %5922 = vmatprep.mubr.f32.mxu0 %v5752
        %5923 = vmatmul.mubr.f32.gmra.mrb[0].mxu0 %v5688
        %v5924 = vpop.f32.mrb[0].mxu0
        %v5925 = vadd.f32 0.0, %v5924
        %v5926 = vpop.f32.mrb[0].mxu0
        %5927 = vmatprep.mubr.f32.mxu0 %v5754
        %5928 = vmatmul.mubr.f32.gmra.mrb[0].mxu0 %v5689
        %v5929 = vpop.f32.mrb[0].mxu0
        %v5930 = vadd.f32 0.0, %v5929
        %v5931 = vpop.f32.mrb[0].mxu0
        %5932 = vmatprep.mubr.f32.mxu0 %v5756
        %5933 = vmatmul.mubr.f32.gmra.mrb[0].mxu0 %v5690
        %v5934 = vpop.f32.mrb[0].mxu0
        %v5935 = vadd.f32 0.0, %v5934
        %v5936 = vpop.f32.mrb[0].mxu0
        %5937 = vmatprep.mubr.f32.mxu0 %v5758
        %5938 = vmatmul.mubr.f32.gmra.mrb[0].mxu0 %v5691
        %v5939 = vpop.f32.mrb[0].mxu0
        %v5940 = vadd.f32 0.0, %v5939
        %v5941 = vpop.f32.mrb[0].mxu0
        %5942 = vmatprep.mubr.f32.mxu0 %v5760
        %5943 = vmatmul.mubr.f32.gmra.mrb[0].mxu0 %v5692
        %v5944 = vpop.f32.mrb[0].mxu0
        %v5945 = vadd.f32 0.0, %v5944
        %v5946 = vpop.f32.mrb[0].mxu0
        %5947 = vmatprep.mubr.f32.mxu0 %v5762
        %5948 = vmatmul.mubr.f32.gmra.mrb[0].mxu0 %v5693
        %v5949 = vpop.f32.mrb[0].mxu0
        %v5950 = vadd.f32 0.0, %v5949
        %v5951 = vpop.f32.mrb[0].mxu0
        %5952 = vmatprep.mubr.f32.mxu0 %v5764
        %5953 = vmatmul.mubr.f32.gmra.mrb[0].mxu0 %v5694
        %v5954 = vpop.f32.mrb[0].mxu0
        %v5955 = vadd.f32 0.0, %v5954
        %v5956 = vpop.f32.mrb[0].mxu0
        %5957 = vmatprep.mubr.f32.mxu0 %v5766
        %5958 = vmatmul.mubr.f32.gmra.mrb[0].mxu0 %v5695
        %v5959 = vpop.f32.mrb[0].mxu0
        %v5960 = vadd.f32 0.0, %v5959
        %v5961 = vpop.f32.mrb[0].mxu0
        %5962 = vmatprep.mubr.f32.mxu0 %v5768
        %5963 = vmatmul.mubr.f32.gmra.mrb[0].mxu0 %v5696
        %v5964 = vpop.f32.mrb[0].mxu0
        %v5965 = vadd.f32 0.0, %v5964
        %v5966 = vpop.f32.mrb[0].mxu0
        %5967 = vmatprep.mubr.f32.mxu0 %v5770
        %5968 = vmatmul.mubr.f32.gmra.mrb[0].mxu0 %v5697
        %v5969 = vpop.f32.mrb[0].mxu0
        %v5970 = vadd.f32 0.0, %v5969
        %v5971 = vpop.f32.mrb[0].mxu0
        %5972 = vmatprep.mubr.f32.mxu0 %v5772
        %5973 = vmatmul.mubr.f32.gmra.mrb[0].mxu0 %v5698
        %v5974 = vpop.f32.mrb[0].mxu0
        %v5975 = vadd.f32 0.0, %v5974
        %v5976 = vpop.f32.mrb[0].mxu0
        %5977 = vmatprep.mubr.f32.mxu0 %v5774
        %5978 = vmatmul.mubr.f32.gmra.mrb[0].mxu0 %v5699
        %v5979 = vpop.f32.mrb[0].mxu0
        %v5980 = vadd.f32 0.0, %v5979
        %v5981 = vpop.f32.mrb[0].mxu0
        %5982 = vmatprep.mubr.f32.mxu0 %v5776
        %5983 = vmatmul.mubr.f32.gmra.mrb[0].mxu0 %v5700
        %v5984 = vpop.f32.mrb[0].mxu0
        %v5985 = vadd.f32 0.0, %v5984
        %v5986 = vpop.f32.mrb[0].mxu0
        %5987 = vmatprep.mubr.f32.mxu0 %v5778
        %5988 = vmatmul.mubr.f32.gmra.mrb[0].mxu0 %v5701
        %v5989 = vpop.f32.mrb[0].mxu0
        %v5990 = vadd.f32 0.0, %v5989
        %v5991 = vpop.f32.mrb[0].mxu0
        %5992 = vmatprep.mubr.f32.mxu0 %v5780
        %5993 = vmatmul.mubr.f32.gmra.mrb[0].mxu0 %v5702
        %v5994 = vpop.f32.mrb[0].mxu0
        %v5995 = vadd.f32 0.0, %v5994
        %v5996 = vpop.f32.mrb[0].mxu0
        %5997 = vmatprep.mubr.f32.mxu0 %v5782
        %5998 = vmatmul.mubr.f32.gmra.mrb[0].mxu0 %v5703
        %v5999 = vpop.f32.mrb[0].mxu0
        %v6000 = vadd.f32 0.0, %v5999
        %v6001 = vpop.f32.mrb[0].mxu0
        %6002 = vmatprep.mubr.f32.mxu0 %v5784
        %6003 = vmatmul.mubr.f32.gmra.mrb[0].mxu0 %v5704
        %v6004 = vpop.f32.mrb[0].mxu0
        %v6005 = vadd.f32 0.0, %v6004
        %v6006 = vpop.f32.mrb[0].mxu0
        %6007 = vmatprep.mubr.f32.mxu0 %v5786
        %6008 = vmatmul.mubr.f32.gmra.mrb[0].mxu0 %v5705
        %v6009 = vpop.f32.mrb[0].mxu0
        %v6010 = vadd.f32 0.0, %v6009
        %v6011 = vpop.f32.mrb[0].mxu0
        %6012 = vdwg.mxu0
        %v6013 = vld [vmem:[%s8] sm:$0x1]
        %v6015 = vlaneseq
        %v6016 = vshrl.u32 %v6015, 7
        %v6017 = vsub.s32 0, %v6016
        %v6018 = vrot.slane %v6013, %v6017
        %v6020 = vmul.f32 %v5855, %v6018
        %v6021 = vmul.f32 %v5860, %v6018
        %v6022 = vmul.f32 %v5865, %v6018
        %v6023 = vmul.f32 %v5870, %v6018
        %v6024 = vmul.f32 %v5875, %v6018
        %v6025 = vmul.f32 %v5880, %v6018
        %v6026 = vmul.f32 %v5885, %v6018
        %v6027 = vmul.f32 %v5890, %v6018
        %v6028 = vmul.f32 %v5895, %v6018
        %v6029 = vmul.f32 %v5900, %v6018
        %v6030 = vmul.f32 %v5905, %v6018
        %v6031 = vmul.f32 %v5910, %v6018
        %v6032 = vmul.f32 %v5915, %v6018
        %v6033 = vmul.f32 %v5920, %v6018
        %v6034 = vmul.f32 %v5925, %v6018
        %v6035 = vmul.f32 %v5930, %v6018
        %v6036 = vmul.f32 %v5935, %v6018
        %v6037 = vmul.f32 %v5940, %v6018
        %v6038 = vmul.f32 %v5945, %v6018
        %v6039 = vmul.f32 %v5950, %v6018
        %v6040 = vmul.f32 %v5955, %v6018
        %v6041 = vmul.f32 %v5960, %v6018
        %v6042 = vmul.f32 %v5965, %v6018
        %v6043 = vmul.f32 %v5970, %v6018
        %v6044 = vmul.f32 %v5975, %v6018
        %v6045 = vmul.f32 %v5980, %v6018
        %v6046 = vmul.f32 %v5985, %v6018
        %v6047 = vmul.f32 %v5990, %v6018
        %v6048 = vmul.f32 %v5995, %v6018
        %v6049 = vmul.f32 %v6000, %v6018
        %v6050 = vmul.f32 %v6005, %v6018
        %v6051 = vmul.f32 %v6010, %v6018
        %v6052 = vld [vmem:[%s9] sm:$0x1]
        %v6054 = vlaneseq
        %v6055 = vshrl.u32 %v6054, 7
        %v6056 = vsub.s32 0, %v6055
        %v6057 = vrot.slane %v6052, %v6056
        %v6059 = vadd.f32 %v6020, %v6057
        %v6060 = vadd.f32 %v6021, %v6057
        %v6061 = vadd.f32 %v6022, %v6057
        %v6062 = vadd.f32 %v6023, %v6057
        %v6063 = vadd.f32 %v6024, %v6057
        %v6064 = vadd.f32 %v6025, %v6057
        %v6065 = vadd.f32 %v6026, %v6057
        %v6066 = vadd.f32 %v6027, %v6057
        %v6067 = vadd.f32 %v6028, %v6057
        %v6068 = vadd.f32 %v6029, %v6057
        %v6069 = vadd.f32 %v6030, %v6057
        %v6070 = vadd.f32 %v6031, %v6057
        %v6071 = vadd.f32 %v6032, %v6057
        %v6072 = vadd.f32 %v6033, %v6057
        %v6073 = vadd.f32 %v6034, %v6057
        %v6074 = vadd.f32 %v6035, %v6057
        %v6075 = vadd.f32 %v6036, %v6057
        %v6076 = vadd.f32 %v6037, %v6057
        %v6077 = vadd.f32 %v6038, %v6057
        %v6078 = vadd.f32 %v6039, %v6057
        %v6079 = vadd.f32 %v6040, %v6057
        %v6080 = vadd.f32 %v6041, %v6057
        %v6081 = vadd.f32 %v6042, %v6057
        %v6082 = vadd.f32 %v6043, %v6057
        %v6083 = vadd.f32 %v6044, %v6057
        %v6084 = vadd.f32 %v6045, %v6057
        %v6085 = vadd.f32 %v6046, %v6057
        %v6086 = vadd.f32 %v6047, %v6057
        %v6087 = vadd.f32 %v6048, %v6057
        %v6088 = vadd.f32 %v6049, %v6057
        %v6089 = vadd.f32 %v6050, %v6057
        %v6090 = vadd.f32 %v6051, %v6057
        %v6091 = vmax.f32 %v6059, 0.0
        %v6092 = vmax.f32 %v6060, 0.0
        %v6093 = vmax.f32 %v6061, 0.0
        %v6094 = vmax.f32 %v6062, 0.0
        %v6095 = vmax.f32 %v6063, 0.0
        %v6096 = vmax.f32 %v6064, 0.0
        %v6097 = vmax.f32 %v6065, 0.0
        %v6098 = vmax.f32 %v6066, 0.0
        %v6099 = vmax.f32 %v6067, 0.0
        %v6100 = vmax.f32 %v6068, 0.0
        %v6101 = vmax.f32 %v6069, 0.0
        %v6102 = vmax.f32 %v6070, 0.0
        %v6103 = vmax.f32 %v6071, 0.0
        %v6104 = vmax.f32 %v6072, 0.0
        %v6105 = vmax.f32 %v6073, 0.0
        %v6106 = vmax.f32 %v6074, 0.0
        %v6107 = vmax.f32 %v6075, 0.0
        %v6108 = vmax.f32 %v6076, 0.0
        %v6109 = vmax.f32 %v6077, 0.0
        %v6110 = vmax.f32 %v6078, 0.0
        %v6111 = vmax.f32 %v6079, 0.0
        %v6112 = vmax.f32 %v6080, 0.0
        %v6113 = vmax.f32 %v6081, 0.0
        %v6114 = vmax.f32 %v6082, 0.0
        %v6115 = vmax.f32 %v6083, 0.0
        %v6116 = vmax.f32 %v6084, 0.0
        %v6117 = vmax.f32 %v6085, 0.0
        %v6118 = vmax.f32 %v6086, 0.0
        %v6119 = vmax.f32 %v6087, 0.0
        %v6120 = vmax.f32 %v6088, 0.0
        %v6121 = vmax.f32 %v6089, 0.0
        %v6122 = vmax.f32 %v6090, 0.0
        %s6123 = scalar_lea.vmem [#allocation5], 32
        %6124 = vst.msk [vmem:[%s6123 + $0x8] sm:$0xff] %vm660, %v6091
        %6125 = vst.msk [vmem:[%s6123 + $0x10] sm:$0xff] %vm660, %v6092
        %6126 = vst.msk [vmem:[%s6123 + $0x28] sm:$0xff] %vm660, %v6093
        %6127 = vst.msk [vmem:[%s6123 + $0x30] sm:$0xff] %vm660, %v6094
        %6128 = vst.msk [vmem:[%s6123 + $0x48] sm:$0xff] %vm660, %v6095
        %6129 = vst.msk [vmem:[%s6123 + $0x50] sm:$0xff] %vm660, %v6096
        %6130 = vst.msk [vmem:[%s6123 + $0x68] sm:$0xff] %vm660, %v6097
        %6131 = vst.msk [vmem:[%s6123 + $0x70] sm:$0xff] %vm660, %v6098
        %6132 = vst.msk [vmem:[%s6123 + $0x88] sm:$0xff] %vm660, %v6099
        %6133 = vst.msk [vmem:[%s6123 + $0x90] sm:$0xff] %vm660, %v6100
        %6134 = vst.msk [vmem:[%s6123 + $0xa8] sm:$0xff] %vm660, %v6101
        %6135 = vst.msk [vmem:[%s6123 + $0xb0] sm:$0xff] %vm660, %v6102
        %6136 = vst.msk [vmem:[%s6123 + $0xc8] sm:$0xff] %vm660, %v6103
        %6137 = vst.msk [vmem:[%s6123 + $0xd0] sm:$0xff] %vm660, %v6104
        %6138 = vst.msk [vmem:[%s6123 + $0xe8] sm:$0xff] %vm660, %v6105
        %6139 = vst.msk [vmem:[%s6123 + $0xf0] sm:$0xff] %vm660, %v6106
        %6140 = vst.msk [vmem:[%s6123 + $0x108] sm:$0xff] %vm660, %v6107
        %6141 = vst.msk [vmem:[%s6123 + $0x110] sm:$0xff] %vm660, %v6108
        %6142 = vst.msk [vmem:[%s6123 + $0x128] sm:$0xff] %vm660, %v6109
        %6143 = vst.msk [vmem:[%s6123 + $0x130] sm:$0xff] %vm660, %v6110
        %6144 = vst.msk [vmem:[%s6123 + $0x148] sm:$0xff] %vm660, %v6111
        %6145 = vst.msk [vmem:[%s6123 + $0x150] sm:$0xff] %vm660, %v6112
        %6146 = vst.msk [vmem:[%s6123 + $0x168] sm:$0xff] %vm660, %v6113
        %6147 = vst.msk [vmem:[%s6123 + $0x170] sm:$0xff] %vm660, %v6114
        %6148 = vst.msk [vmem:[%s6123 + $0x188] sm:$0xff] %vm660, %v6115
        %6149 = vst.msk [vmem:[%s6123 + $0x190] sm:$0xff] %vm660, %v6116
        %6150 = vst.msk [vmem:[%s6123 + $0x1a8] sm:$0xff] %vm660, %v6117
        %6151 = vst.msk [vmem:[%s6123 + $0x1b0] sm:$0xff] %vm660, %v6118
        %6152 = vst.msk [vmem:[%s6123 + $0x1c8] sm:$0xff] %vm660, %v6119
        %6153 = vst.msk [vmem:[%s6123 + $0x1d0] sm:$0xff] %vm660, %v6120
        %6154 = vst.msk [vmem:[%s6123 + $0x1e8] sm:$0xff] %vm660, %v6121
        %6155 = vst.msk [vmem:[%s6123 + $0x1f0] sm:$0xff] %vm660, %v6122
        %v6156 = vld [vmem:[#allocation5] sm:$0xff]
        %v6157 = vld [vmem:[#allocation5 + $0x8] sm:$0xff]
        %v6158 = vld [vmem:[#allocation5 + $0x10] sm:$0xff]
        %v6159 = vld [vmem:[#allocation5 + $0x18] sm:$0x1]
        %v6160 = vld [vmem:[#allocation5 + $0x20] sm:$0xff]
        %v6161 = vld [vmem:[#allocation5 + $0x28] sm:$0xff]
        %v6162 = vld [vmem:[#allocation5 + $0x30] sm:$0xff]
        %v6163 = vld [vmem:[#allocation5 + $0x38] sm:$0x1]
        %v6164 = vld [vmem:[#allocation5 + $0x40] sm:$0xff]
        %v6165 = vld [vmem:[#allocation5 + $0x48] sm:$0xff]
        %v6166 = vld [vmem:[#allocation5 + $0x50] sm:$0xff]
        %v6167 = vld [vmem:[#allocation5 + $0x58] sm:$0x1]
        %v6168 = vld [vmem:[#allocation5 + $0x60] sm:$0xff]
        %v6169 = vld [vmem:[#allocation5 + $0x68] sm:$0xff]
        %v6170 = vld [vmem:[#allocation5 + $0x70] sm:$0xff]
        %v6171 = vld [vmem:[#allocation5 + $0x78] sm:$0x1]
        %v6172 = vld [vmem:[#allocation5 + $0x80] sm:$0xff]
        %v6173 = vld [vmem:[#allocation5 + $0x88] sm:$0xff]
        %v6174 = vld [vmem:[#allocation5 + $0x90] sm:$0xff]
        %v6175 = vld [vmem:[#allocation5 + $0x98] sm:$0x1]
        %v6176 = vld [vmem:[#allocation5 + $0xa0] sm:$0xff]
        %v6177 = vld [vmem:[#allocation5 + $0xa8] sm:$0xff]
        %v6178 = vld [vmem:[#allocation5 + $0xb0] sm:$0xff]
        %v6179 = vld [vmem:[#allocation5 + $0xb8] sm:$0x1]
        %v6180 = vld [vmem:[#allocation5 + $0xc0] sm:$0xff]
        %v6181 = vld [vmem:[#allocation5 + $0xc8] sm:$0xff]
        %v6182 = vld [vmem:[#allocation5 + $0xd0] sm:$0xff]
        %v6183 = vld [vmem:[#allocation5 + $0xd8] sm:$0x1]
        %v6184 = vld [vmem:[#allocation5 + $0xe0] sm:$0xff]
        %v6185 = vld [vmem:[#allocation5 + $0xe8] sm:$0xff]
        %v6186 = vld [vmem:[#allocation5 + $0xf0] sm:$0xff]
        %v6187 = vld [vmem:[#allocation5 + $0xf8] sm:$0x1]
        %v6188 = vld [vmem:[#allocation5 + $0x100] sm:$0xff]
        %v6189 = vld [vmem:[#allocation5 + $0x108] sm:$0xff]
        %v6190 = vld [vmem:[#allocation5 + $0x110] sm:$0xff]
        %v6191 = vld [vmem:[#allocation5 + $0x118] sm:$0x1]
        %v6192 = vld [vmem:[#allocation5 + $0x120] sm:$0xff]
        %v6193 = vld [vmem:[#allocation5 + $0x128] sm:$0xff]
        %v6194 = vld [vmem:[#allocation5 + $0x130] sm:$0xff]
        %v6195 = vld [vmem:[#allocation5 + $0x138] sm:$0x1]
        %v6196 = vld [vmem:[#allocation5 + $0x140] sm:$0xff]
        %v6197 = vld [vmem:[#allocation5 + $0x148] sm:$0xff]
        %v6198 = vld [vmem:[#allocation5 + $0x150] sm:$0xff]
        %v6199 = vld [vmem:[#allocation5 + $0x158] sm:$0x1]
        %v6200 = vld [vmem:[#allocation5 + $0x160] sm:$0xff]
        %v6201 = vld [vmem:[#allocation5 + $0x168] sm:$0xff]
        %v6202 = vld [vmem:[#allocation5 + $0x170] sm:$0xff]
        %v6203 = vld [vmem:[#allocation5 + $0x178] sm:$0x1]
        %v6204 = vld [vmem:[#allocation5 + $0x180] sm:$0xff]
        %v6205 = vld [vmem:[#allocation5 + $0x188] sm:$0xff]
        %v6206 = vld [vmem:[#allocation5 + $0x190] sm:$0xff]
        %v6207 = vld [vmem:[#allocation5 + $0x198] sm:$0x1]
        %v6208 = vld [vmem:[#allocation5 + $0x1a0] sm:$0xff]
        %v6209 = vld [vmem:[#allocation5 + $0x1a8] sm:$0xff]
        %v6210 = vld [vmem:[#allocation5 + $0x1b0] sm:$0xff]
        %v6211 = vld [vmem:[#allocation5 + $0x1b8] sm:$0x1]
        %v6212 = vld [vmem:[#allocation5 + $0x1c0] sm:$0xff]
        %v6213 = vld [vmem:[#allocation5 + $0x1c8] sm:$0xff]
        %v6214 = vld [vmem:[#allocation5 + $0x1d0] sm:$0xff]
        %v6215 = vld [vmem:[#allocation5 + $0x1d8] sm:$0x1]
        %v6216 = vld [vmem:[#allocation5 + $0x1e0] sm:$0xff]
        %v6217 = vld [vmem:[#allocation5 + $0x1e8] sm:$0xff]
        %v6218 = vld [vmem:[#allocation5 + $0x1f0] sm:$0xff]
        %v6219 = vld [vmem:[#allocation5 + $0x1f8] sm:$0x1]
        %v6220 = vld [vmem:[#allocation5 + $0x200] sm:$0xff]
        %v6221 = vld [vmem:[#allocation5 + $0x208] sm:$0xff]
        %v6222 = vld [vmem:[#allocation5 + $0x210] sm:$0xff]
        %v6223 = vld [vmem:[#allocation5 + $0x218] sm:$0x1]
        %v6224 = vld [vmem:[#allocation5 + $0x220] sm:$0xff]
        %v6225 = vld [vmem:[#allocation5 + $0x228] sm:$0xff]
        %v6226 = vld [vmem:[#allocation5 + $0x230] sm:$0xff]
        %v6227 = vld [vmem:[#allocation5 + $0x238] sm:$0x1]
        %v6276 = vrot.slane %v6156, 7
        %v6277 = vrot.slane %v6157, 7
        %v6278 = vsel %vm892, %v6276, %v6277
        %v6279 = vrot.slane %v6158, 7
        %v6280 = vsel %vm892, %v6277, %v6279
        %v6281 = vrot.slane %v6160, 7
        %v6282 = vrot.slane %v6161, 7
        %v6283 = vsel %vm892, %v6281, %v6282
        %v6284 = vrot.slane %v6162, 7
        %v6285 = vsel %vm892, %v6282, %v6284
        %v6286 = vrot.slane %v6164, 7
        %v6287 = vrot.slane %v6165, 7
        %v6288 = vsel %vm892, %v6286, %v6287
        %v6289 = vrot.slane %v6166, 7
        %v6290 = vsel %vm892, %v6287, %v6289
        %v6291 = vrot.slane %v6168, 7
        %v6292 = vrot.slane %v6169, 7
        %v6293 = vsel %vm892, %v6291, %v6292
        %v6294 = vrot.slane %v6170, 7
        %v6295 = vsel %vm892, %v6292, %v6294
        %v6296 = vrot.slane %v6172, 7
        %v6297 = vrot.slane %v6173, 7
        %v6298 = vsel %vm892, %v6296, %v6297
        %v6299 = vrot.slane %v6174, 7
        %v6300 = vsel %vm892, %v6297, %v6299
        %v6301 = vrot.slane %v6176, 7
        %v6302 = vrot.slane %v6177, 7
        %v6303 = vsel %vm892, %v6301, %v6302
        %v6304 = vrot.slane %v6178, 7
        %v6305 = vsel %vm892, %v6302, %v6304
        %v6306 = vrot.slane %v6180, 7
        %v6307 = vrot.slane %v6181, 7
        %v6308 = vsel %vm892, %v6306, %v6307
        %v6309 = vrot.slane %v6182, 7
        %v6310 = vsel %vm892, %v6307, %v6309
        %v6311 = vrot.slane %v6184, 7
        %v6312 = vrot.slane %v6185, 7
        %v6313 = vsel %vm892, %v6311, %v6312
        %v6314 = vrot.slane %v6186, 7
        %v6315 = vsel %vm892, %v6312, %v6314
        %v6316 = vrot.slane %v6188, 7
        %v6317 = vrot.slane %v6189, 7
        %v6318 = vsel %vm892, %v6316, %v6317
        %v6319 = vrot.slane %v6190, 7
        %v6320 = vsel %vm892, %v6317, %v6319
        %v6321 = vrot.slane %v6192, 7
        %v6322 = vrot.slane %v6193, 7
        %v6323 = vsel %vm892, %v6321, %v6322
        %v6324 = vrot.slane %v6194, 7
        %v6325 = vsel %vm892, %v6322, %v6324
        %v6326 = vrot.slane %v6196, 7
        %v6327 = vrot.slane %v6197, 7
        %v6328 = vsel %vm892, %v6326, %v6327
        %v6329 = vrot.slane %v6198, 7
        %v6330 = vsel %vm892, %v6327, %v6329
        %v6331 = vrot.slane %v6200, 7
        %v6332 = vrot.slane %v6201, 7
        %v6333 = vsel %vm892, %v6331, %v6332
        %v6334 = vrot.slane %v6202, 7
        %v6335 = vsel %vm892, %v6332, %v6334
        %v6336 = vrot.slane %v6204, 7
        %v6337 = vrot.slane %v6205, 7
        %v6338 = vsel %vm892, %v6336, %v6337
        %v6339 = vrot.slane %v6206, 7
        %v6340 = vsel %vm892, %v6337, %v6339
        %v6341 = vrot.slane %v6208, 7
        %v6342 = vrot.slane %v6209, 7
        %v6343 = vsel %vm892, %v6341, %v6342
        %v6344 = vrot.slane %v6210, 7
        %v6345 = vsel %vm892, %v6342, %v6344
        %v6346 = vrot.slane %v6212, 7
        %v6347 = vrot.slane %v6213, 7
        %v6348 = vsel %vm892, %v6346, %v6347
        %v6349 = vrot.slane %v6214, 7
        %v6350 = vsel %vm892, %v6347, %v6349
        %v6351 = vrot.slane %v6216, 7
        %v6352 = vrot.slane %v6217, 7
        %v6353 = vsel %vm892, %v6351, %v6352
        %v6354 = vrot.slane %v6218, 7
        %v6355 = vsel %vm892, %v6352, %v6354
        %v6404 = vrot.slane %v6157, 1
        %v6405 = vrot.slane %v6158, 1
        %v6406 = vsel %vm1021, %v6404, %v6405
        %v6407 = vrot.slane %v6159, 1
        %v6408 = vsel %vm1021, %v6405, %v6407
        %v6409 = vrot.slane %v6161, 1
        %v6410 = vrot.slane %v6162, 1
        %v6411 = vsel %vm1021, %v6409, %v6410
        %v6412 = vrot.slane %v6163, 1
        %v6413 = vsel %vm1021, %v6410, %v6412
        %v6414 = vrot.slane %v6165, 1
        %v6415 = vrot.slane %v6166, 1
        %v6416 = vsel %vm1021, %v6414, %v6415
        %v6417 = vrot.slane %v6167, 1
        %v6418 = vsel %vm1021, %v6415, %v6417
        %v6419 = vrot.slane %v6169, 1
        %v6420 = vrot.slane %v6170, 1
        %v6421 = vsel %vm1021, %v6419, %v6420
        %v6422 = vrot.slane %v6171, 1
        %v6423 = vsel %vm1021, %v6420, %v6422
        %v6424 = vrot.slane %v6173, 1
        %v6425 = vrot.slane %v6174, 1
        %v6426 = vsel %vm1021, %v6424, %v6425
        %v6427 = vrot.slane %v6175, 1
        %v6428 = vsel %vm1021, %v6425, %v6427
        %v6429 = vrot.slane %v6177, 1
        %v6430 = vrot.slane %v6178, 1
        %v6431 = vsel %vm1021, %v6429, %v6430
        %v6432 = vrot.slane %v6179, 1
        %v6433 = vsel %vm1021, %v6430, %v6432
        %v6434 = vrot.slane %v6181, 1
        %v6435 = vrot.slane %v6182, 1
        %v6436 = vsel %vm1021, %v6434, %v6435
        %v6437 = vrot.slane %v6183, 1
        %v6438 = vsel %vm1021, %v6435, %v6437
        %v6439 = vrot.slane %v6185, 1
        %v6440 = vrot.slane %v6186, 1
        %v6441 = vsel %vm1021, %v6439, %v6440
        %v6442 = vrot.slane %v6187, 1
        %v6443 = vsel %vm1021, %v6440, %v6442
        %v6444 = vrot.slane %v6189, 1
        %v6445 = vrot.slane %v6190, 1
        %v6446 = vsel %vm1021, %v6444, %v6445
        %v6447 = vrot.slane %v6191, 1
        %v6448 = vsel %vm1021, %v6445, %v6447
        %v6449 = vrot.slane %v6193, 1
        %v6450 = vrot.slane %v6194, 1
        %v6451 = vsel %vm1021, %v6449, %v6450
        %v6452 = vrot.slane %v6195, 1
        %v6453 = vsel %vm1021, %v6450, %v6452
        %v6454 = vrot.slane %v6197, 1
        %v6455 = vrot.slane %v6198, 1
        %v6456 = vsel %vm1021, %v6454, %v6455
        %v6457 = vrot.slane %v6199, 1
        %v6458 = vsel %vm1021, %v6455, %v6457
        %v6459 = vrot.slane %v6201, 1
        %v6460 = vrot.slane %v6202, 1
        %v6461 = vsel %vm1021, %v6459, %v6460
        %v6462 = vrot.slane %v6203, 1
        %v6463 = vsel %vm1021, %v6460, %v6462
        %v6464 = vrot.slane %v6205, 1
        %v6465 = vrot.slane %v6206, 1
        %v6466 = vsel %vm1021, %v6464, %v6465
        %v6467 = vrot.slane %v6207, 1
        %v6468 = vsel %vm1021, %v6465, %v6467
        %v6469 = vrot.slane %v6209, 1
        %v6470 = vrot.slane %v6210, 1
        %v6471 = vsel %vm1021, %v6469, %v6470
        %v6472 = vrot.slane %v6211, 1
        %v6473 = vsel %vm1021, %v6470, %v6472
        %v6474 = vrot.slane %v6213, 1
        %v6475 = vrot.slane %v6214, 1
        %v6476 = vsel %vm1021, %v6474, %v6475
        %v6477 = vrot.slane %v6215, 1
        %v6478 = vsel %vm1021, %v6475, %v6477
        %v6479 = vrot.slane %v6217, 1
        %v6480 = vrot.slane %v6218, 1
        %v6481 = vsel %vm1021, %v6479, %v6480
        %v6482 = vrot.slane %v6219, 1
        %v6483 = vsel %vm1021, %v6480, %v6482
        %v6487 = vrot.slane %v6220, 7
        %v6488 = vrot.slane %v6221, 7
        %v6489 = vsel %vm892, %v6487, %v6488
        %v6490 = vrot.slane %v6222, 7
        %v6491 = vsel %vm892, %v6488, %v6490
        %v6493 = vrot.slane %v6221, 1
        %v6494 = vrot.slane %v6222, 1
        %v6495 = vsel %vm1021, %v6493, %v6494
        %v6496 = vrot.slane %v6223, 1
        %v6497 = vsel %vm1021, %v6494, %v6496
        %v6501 = vrot.slane %v6224, 7
        %v6502 = vrot.slane %v6225, 7
        %v6503 = vsel %vm892, %v6501, %v6502
        %v6504 = vrot.slane %v6226, 7
        %v6505 = vsel %vm892, %v6502, %v6504
        %v6507 = vrot.slane %v6225, 1
        %v6508 = vrot.slane %v6226, 1
        %v6509 = vsel %vm1021, %v6507, %v6508
        %v6510 = vrot.slane %v6227, 1
        %v6511 = vsel %vm1021, %v6508, %v6510
        %6512 = vrot.lane.b32.xlu0 %v6157, 8
        %v6513 = vpop.permute.xlu0 %6512
        %6514 = vrot.lane.b32.xlu0 %v6158, 8
        %v6515 = vpop.permute.xlu0 %6514
        %6516 = vrot.lane.b32.xlu0 %v6161, 8
        %v6517 = vpop.permute.xlu0 %6516
        %6518 = vrot.lane.b32.xlu0 %v6162, 8
        %v6519 = vpop.permute.xlu0 %6518
        %6520 = vrot.lane.b32.xlu0 %v6165, 8
        %v6521 = vpop.permute.xlu0 %6520
        %6522 = vrot.lane.b32.xlu0 %v6166, 8
        %v6523 = vpop.permute.xlu0 %6522
        %6524 = vrot.lane.b32.xlu0 %v6169, 8
        %v6525 = vpop.permute.xlu0 %6524
        %6526 = vrot.lane.b32.xlu0 %v6170, 8
        %v6527 = vpop.permute.xlu0 %6526
        %6528 = vrot.lane.b32.xlu0 %v6173, 8
        %v6529 = vpop.permute.xlu0 %6528
        %6530 = vrot.lane.b32.xlu0 %v6174, 8
        %v6531 = vpop.permute.xlu0 %6530
        %6532 = vrot.lane.b32.xlu0 %v6177, 8
        %v6533 = vpop.permute.xlu0 %6532
        %6534 = vrot.lane.b32.xlu0 %v6178, 8
        %v6535 = vpop.permute.xlu0 %6534
        %6536 = vrot.lane.b32.xlu0 %v6181, 8
        %v6537 = vpop.permute.xlu0 %6536
        %6538 = vrot.lane.b32.xlu0 %v6182, 8
        %v6539 = vpop.permute.xlu0 %6538
        %6540 = vrot.lane.b32.xlu0 %v6185, 8
        %v6541 = vpop.permute.xlu0 %6540
        %6542 = vrot.lane.b32.xlu0 %v6186, 8
        %v6543 = vpop.permute.xlu0 %6542
        %6544 = vrot.lane.b32.xlu0 %v6189, 8
        %v6545 = vpop.permute.xlu0 %6544
        %6546 = vrot.lane.b32.xlu0 %v6190, 8
        %v6547 = vpop.permute.xlu0 %6546
        %6548 = vrot.lane.b32.xlu0 %v6193, 8
        %v6549 = vpop.permute.xlu0 %6548
        %6550 = vrot.lane.b32.xlu0 %v6194, 8
        %v6551 = vpop.permute.xlu0 %6550
        %6552 = vrot.lane.b32.xlu0 %v6197, 8
        %v6553 = vpop.permute.xlu0 %6552
        %6554 = vrot.lane.b32.xlu0 %v6198, 8
        %v6555 = vpop.permute.xlu0 %6554
        %6556 = vrot.lane.b32.xlu0 %v6201, 8
        %v6557 = vpop.permute.xlu0 %6556
        %6558 = vrot.lane.b32.xlu0 %v6202, 8
        %v6559 = vpop.permute.xlu0 %6558
        %6560 = vrot.lane.b32.xlu0 %v6205, 8
        %v6561 = vpop.permute.xlu0 %6560
        %6562 = vrot.lane.b32.xlu0 %v6206, 8
        %v6563 = vpop.permute.xlu0 %6562
        %6564 = vrot.lane.b32.xlu0 %v6209, 8
        %v6565 = vpop.permute.xlu0 %6564
        %6566 = vrot.lane.b32.xlu0 %v6210, 8
        %v6567 = vpop.permute.xlu0 %6566
        %6568 = vrot.lane.b32.xlu0 %v6213, 8
        %v6569 = vpop.permute.xlu0 %6568
        %6570 = vrot.lane.b32.xlu0 %v6214, 8
        %v6571 = vpop.permute.xlu0 %6570
        %6572 = vrot.lane.b32.xlu0 %v6217, 8
        %v6573 = vpop.permute.xlu0 %6572
        %6574 = vrot.lane.b32.xlu0 %v6218, 8
        %v6575 = vpop.permute.xlu0 %6574
        %6608 = vrot.lane.b32.xlu0 %v6406, 16
        %v6609 = vpop.permute.xlu0 %6608
        %6610 = vrot.lane.b32.xlu0 %v6408, 16
        %v6611 = vpop.permute.xlu0 %6610
        %6612 = vrot.lane.b32.xlu0 %v6411, 16
        %v6613 = vpop.permute.xlu0 %6612
        %6614 = vrot.lane.b32.xlu0 %v6413, 16
        %v6615 = vpop.permute.xlu0 %6614
        %6616 = vrot.lane.b32.xlu0 %v6416, 16
        %v6617 = vpop.permute.xlu0 %6616
        %6618 = vrot.lane.b32.xlu0 %v6418, 16
        %v6619 = vpop.permute.xlu0 %6618
        %6620 = vrot.lane.b32.xlu0 %v6421, 16
        %v6621 = vpop.permute.xlu0 %6620
        %6622 = vrot.lane.b32.xlu0 %v6423, 16
        %v6623 = vpop.permute.xlu0 %6622
        %6624 = vrot.lane.b32.xlu0 %v6426, 16
        %v6625 = vpop.permute.xlu0 %6624
        %6626 = vrot.lane.b32.xlu0 %v6428, 16
        %v6627 = vpop.permute.xlu0 %6626
        %6628 = vrot.lane.b32.xlu0 %v6431, 16
        %v6629 = vpop.permute.xlu0 %6628
        %6630 = vrot.lane.b32.xlu0 %v6433, 16
        %v6631 = vpop.permute.xlu0 %6630
        %6632 = vrot.lane.b32.xlu0 %v6436, 16
        %v6633 = vpop.permute.xlu0 %6632
        %6634 = vrot.lane.b32.xlu0 %v6438, 16
        %v6635 = vpop.permute.xlu0 %6634
        %6636 = vrot.lane.b32.xlu0 %v6441, 16
        %v6637 = vpop.permute.xlu0 %6636
        %6638 = vrot.lane.b32.xlu0 %v6443, 16
        %v6639 = vpop.permute.xlu0 %6638
        %6640 = vrot.lane.b32.xlu0 %v6446, 16
        %v6641 = vpop.permute.xlu0 %6640
        %6642 = vrot.lane.b32.xlu0 %v6448, 16
        %v6643 = vpop.permute.xlu0 %6642
        %6644 = vrot.lane.b32.xlu0 %v6451, 16
        %v6645 = vpop.permute.xlu0 %6644
        %6646 = vrot.lane.b32.xlu0 %v6453, 16
        %v6647 = vpop.permute.xlu0 %6646
        %6648 = vrot.lane.b32.xlu0 %v6456, 16
        %v6649 = vpop.permute.xlu0 %6648
        %6650 = vrot.lane.b32.xlu0 %v6458, 16
        %v6651 = vpop.permute.xlu0 %6650
        %6652 = vrot.lane.b32.xlu0 %v6461, 16
        %v6653 = vpop.permute.xlu0 %6652
        %6654 = vrot.lane.b32.xlu0 %v6463, 16
        %v6655 = vpop.permute.xlu0 %6654
        %6656 = vrot.lane.b32.xlu0 %v6466, 16
        %v6657 = vpop.permute.xlu0 %6656
        %6658 = vrot.lane.b32.xlu0 %v6468, 16
        %v6659 = vpop.permute.xlu0 %6658
        %6660 = vrot.lane.b32.xlu0 %v6471, 16
        %v6661 = vpop.permute.xlu0 %6660
        %6662 = vrot.lane.b32.xlu0 %v6473, 16
        %v6663 = vpop.permute.xlu0 %6662
        %6664 = vrot.lane.b32.xlu0 %v6476, 16
        %v6665 = vpop.permute.xlu0 %6664
        %6666 = vrot.lane.b32.xlu0 %v6478, 16
        %v6667 = vpop.permute.xlu0 %6666
        %6668 = vrot.lane.b32.xlu0 %v6481, 16
        %v6669 = vpop.permute.xlu0 %6668
        %6670 = vrot.lane.b32.xlu0 %v6483, 16
        %v6671 = vpop.permute.xlu0 %6670
        %6704 = vrot.lane.b32.xlu0 %v6283, 24
        %v6705 = vpop.permute.xlu0 %6704
        %6706 = vrot.lane.b32.xlu0 %v6285, 24
        %v6707 = vpop.permute.xlu0 %6706
        %6708 = vrot.lane.b32.xlu0 %v6288, 24
        %v6709 = vpop.permute.xlu0 %6708
        %6710 = vrot.lane.b32.xlu0 %v6290, 24
        %v6711 = vpop.permute.xlu0 %6710
        %6712 = vrot.lane.b32.xlu0 %v6293, 24
        %v6713 = vpop.permute.xlu0 %6712
        %6714 = vrot.lane.b32.xlu0 %v6295, 24
        %v6715 = vpop.permute.xlu0 %6714
        %6716 = vrot.lane.b32.xlu0 %v6298, 24
        %v6717 = vpop.permute.xlu0 %6716
        %6718 = vrot.lane.b32.xlu0 %v6300, 24
        %v6719 = vpop.permute.xlu0 %6718
        %6720 = vrot.lane.b32.xlu0 %v6303, 24
        %v6721 = vpop.permute.xlu0 %6720
        %6722 = vrot.lane.b32.xlu0 %v6305, 24
        %v6723 = vpop.permute.xlu0 %6722
        %6724 = vrot.lane.b32.xlu0 %v6308, 24
        %v6725 = vpop.permute.xlu0 %6724
        %6726 = vrot.lane.b32.xlu0 %v6310, 24
        %v6727 = vpop.permute.xlu0 %6726
        %6728 = vrot.lane.b32.xlu0 %v6313, 24
        %v6729 = vpop.permute.xlu0 %6728
        %6730 = vrot.lane.b32.xlu0 %v6315, 24
        %v6731 = vpop.permute.xlu0 %6730
        %6732 = vrot.lane.b32.xlu0 %v6318, 24
        %v6733 = vpop.permute.xlu0 %6732
        %6734 = vrot.lane.b32.xlu0 %v6320, 24
        %v6735 = vpop.permute.xlu0 %6734
        %6736 = vrot.lane.b32.xlu0 %v6323, 24
        %v6737 = vpop.permute.xlu0 %6736
        %6738 = vrot.lane.b32.xlu0 %v6325, 24
        %v6739 = vpop.permute.xlu0 %6738
        %6740 = vrot.lane.b32.xlu0 %v6328, 24
        %v6741 = vpop.permute.xlu0 %6740
        %6742 = vrot.lane.b32.xlu0 %v6330, 24
        %v6743 = vpop.permute.xlu0 %6742
        %6744 = vrot.lane.b32.xlu0 %v6333, 24
        %v6745 = vpop.permute.xlu0 %6744
        %6746 = vrot.lane.b32.xlu0 %v6335, 24
        %v6747 = vpop.permute.xlu0 %6746
        %6748 = vrot.lane.b32.xlu0 %v6338, 24
        %v6749 = vpop.permute.xlu0 %6748
        %6750 = vrot.lane.b32.xlu0 %v6340, 24
        %v6751 = vpop.permute.xlu0 %6750
        %6752 = vrot.lane.b32.xlu0 %v6343, 24
        %v6753 = vpop.permute.xlu0 %6752
        %6754 = vrot.lane.b32.xlu0 %v6345, 24
        %v6755 = vpop.permute.xlu0 %6754
        %6756 = vrot.lane.b32.xlu0 %v6348, 24
        %v6757 = vpop.permute.xlu0 %6756
        %6758 = vrot.lane.b32.xlu0 %v6350, 24
        %v6759 = vpop.permute.xlu0 %6758
        %6760 = vrot.lane.b32.xlu0 %v6353, 24
        %v6761 = vpop.permute.xlu0 %6760
        %6762 = vrot.lane.b32.xlu0 %v6355, 24
        %v6763 = vpop.permute.xlu0 %6762
        %6764 = vrot.lane.b32.xlu0 %v6489, 24
        %v6765 = vpop.permute.xlu0 %6764
        %6766 = vrot.lane.b32.xlu0 %v6491, 24
        %v6767 = vpop.permute.xlu0 %6766
        %6800 = vrot.lane.b32.xlu0 %v6161, 32
        %v6801 = vpop.permute.xlu0 %6800
        %6802 = vrot.lane.b32.xlu0 %v6162, 32
        %v6803 = vpop.permute.xlu0 %6802
        %6804 = vrot.lane.b32.xlu0 %v6165, 32
        %v6805 = vpop.permute.xlu0 %6804
        %6806 = vrot.lane.b32.xlu0 %v6166, 32
        %v6807 = vpop.permute.xlu0 %6806
        %6808 = vrot.lane.b32.xlu0 %v6169, 32
        %v6809 = vpop.permute.xlu0 %6808
        %6810 = vrot.lane.b32.xlu0 %v6170, 32
        %v6811 = vpop.permute.xlu0 %6810
        %6812 = vrot.lane.b32.xlu0 %v6173, 32
        %v6813 = vpop.permute.xlu0 %6812
        %6814 = vrot.lane.b32.xlu0 %v6174, 32
        %v6815 = vpop.permute.xlu0 %6814
        %6816 = vrot.lane.b32.xlu0 %v6177, 32
        %v6817 = vpop.permute.xlu0 %6816
        %6818 = vrot.lane.b32.xlu0 %v6178, 32
        %v6819 = vpop.permute.xlu0 %6818
        %6820 = vrot.lane.b32.xlu0 %v6181, 32
        %v6821 = vpop.permute.xlu0 %6820
        %6822 = vrot.lane.b32.xlu0 %v6182, 32
        %v6823 = vpop.permute.xlu0 %6822
        %6824 = vrot.lane.b32.xlu0 %v6185, 32
        %v6825 = vpop.permute.xlu0 %6824
        %6826 = vrot.lane.b32.xlu0 %v6186, 32
        %v6827 = vpop.permute.xlu0 %6826
        %6828 = vrot.lane.b32.xlu0 %v6189, 32
        %v6829 = vpop.permute.xlu0 %6828
        %6830 = vrot.lane.b32.xlu0 %v6190, 32
        %v6831 = vpop.permute.xlu0 %6830
        %6832 = vrot.lane.b32.xlu0 %v6193, 32
        %v6833 = vpop.permute.xlu0 %6832
        %6834 = vrot.lane.b32.xlu0 %v6194, 32
        %v6835 = vpop.permute.xlu0 %6834
        %6836 = vrot.lane.b32.xlu0 %v6197, 32
        %v6837 = vpop.permute.xlu0 %6836
        %6838 = vrot.lane.b32.xlu0 %v6198, 32
        %v6839 = vpop.permute.xlu0 %6838
        %6840 = vrot.lane.b32.xlu0 %v6201, 32
        %v6841 = vpop.permute.xlu0 %6840
        %6842 = vrot.lane.b32.xlu0 %v6202, 32
        %v6843 = vpop.permute.xlu0 %6842
        %6844 = vrot.lane.b32.xlu0 %v6205, 32
        %v6845 = vpop.permute.xlu0 %6844
        %6846 = vrot.lane.b32.xlu0 %v6206, 32
        %v6847 = vpop.permute.xlu0 %6846
        %6848 = vrot.lane.b32.xlu0 %v6209, 32
        %v6849 = vpop.permute.xlu0 %6848
        %6850 = vrot.lane.b32.xlu0 %v6210, 32
        %v6851 = vpop.permute.xlu0 %6850
        %6852 = vrot.lane.b32.xlu0 %v6213, 32
        %v6853 = vpop.permute.xlu0 %6852
        %6854 = vrot.lane.b32.xlu0 %v6214, 32
        %v6855 = vpop.permute.xlu0 %6854
        %6856 = vrot.lane.b32.xlu0 %v6217, 32
        %v6857 = vpop.permute.xlu0 %6856
        %6858 = vrot.lane.b32.xlu0 %v6218, 32
        %v6859 = vpop.permute.xlu0 %6858
        %6860 = vrot.lane.b32.xlu0 %v6221, 32
        %v6861 = vpop.permute.xlu0 %6860
        %6862 = vrot.lane.b32.xlu0 %v6222, 32
        %v6863 = vpop.permute.xlu0 %6862
        %6896 = vrot.lane.b32.xlu0 %v6411, 40
        %v6897 = vpop.permute.xlu0 %6896
        %6898 = vrot.lane.b32.xlu0 %v6413, 40
        %v6899 = vpop.permute.xlu0 %6898
        %6900 = vrot.lane.b32.xlu0 %v6416, 40
        %v6901 = vpop.permute.xlu0 %6900
        %6902 = vrot.lane.b32.xlu0 %v6418, 40
        %v6903 = vpop.permute.xlu0 %6902
        %6904 = vrot.lane.b32.xlu0 %v6421, 40
        %v6905 = vpop.permute.xlu0 %6904
        %6906 = vrot.lane.b32.xlu0 %v6423, 40
        %v6907 = vpop.permute.xlu0 %6906
        %6908 = vrot.lane.b32.xlu0 %v6426, 40
        %v6909 = vpop.permute.xlu0 %6908
        %6910 = vrot.lane.b32.xlu0 %v6428, 40
        %v6911 = vpop.permute.xlu0 %6910
        %6912 = vrot.lane.b32.xlu0 %v6431, 40
        %v6913 = vpop.permute.xlu0 %6912
        %6914 = vrot.lane.b32.xlu0 %v6433, 40
        %v6915 = vpop.permute.xlu0 %6914
        %6916 = vrot.lane.b32.xlu0 %v6436, 40
        %v6917 = vpop.permute.xlu0 %6916
        %6918 = vrot.lane.b32.xlu0 %v6438, 40
        %v6919 = vpop.permute.xlu0 %6918
        %6920 = vrot.lane.b32.xlu0 %v6441, 40
        %v6921 = vpop.permute.xlu0 %6920
        %6922 = vrot.lane.b32.xlu0 %v6443, 40
        %v6923 = vpop.permute.xlu0 %6922
        %6924 = vrot.lane.b32.xlu0 %v6446, 40
        %v6925 = vpop.permute.xlu0 %6924
        %6926 = vrot.lane.b32.xlu0 %v6448, 40
        %v6927 = vpop.permute.xlu0 %6926
        %6928 = vrot.lane.b32.xlu0 %v6451, 40
        %v6929 = vpop.permute.xlu0 %6928
        %6930 = vrot.lane.b32.xlu0 %v6453, 40
        %v6931 = vpop.permute.xlu0 %6930
        %6932 = vrot.lane.b32.xlu0 %v6456, 40
        %v6933 = vpop.permute.xlu0 %6932
        %6934 = vrot.lane.b32.xlu0 %v6458, 40
        %v6935 = vpop.permute.xlu0 %6934
        %6936 = vrot.lane.b32.xlu0 %v6461, 40
        %v6937 = vpop.permute.xlu0 %6936
        %6938 = vrot.lane.b32.xlu0 %v6463, 40
        %v6939 = vpop.permute.xlu0 %6938
        %6940 = vrot.lane.b32.xlu0 %v6466, 40
        %v6941 = vpop.permute.xlu0 %6940
        %6942 = vrot.lane.b32.xlu0 %v6468, 40
        %v6943 = vpop.permute.xlu0 %6942
        %6944 = vrot.lane.b32.xlu0 %v6471, 40
        %v6945 = vpop.permute.xlu0 %6944
        %6946 = vrot.lane.b32.xlu0 %v6473, 40
        %v6947 = vpop.permute.xlu0 %6946
        %6948 = vrot.lane.b32.xlu0 %v6476, 40
        %v6949 = vpop.permute.xlu0 %6948
        %6950 = vrot.lane.b32.xlu0 %v6478, 40
        %v6951 = vpop.permute.xlu0 %6950
        %6952 = vrot.lane.b32.xlu0 %v6481, 40
        %v6953 = vpop.permute.xlu0 %6952
        %6954 = vrot.lane.b32.xlu0 %v6483, 40
        %v6955 = vpop.permute.xlu0 %6954
        %6956 = vrot.lane.b32.xlu0 %v6495, 40
        %v6957 = vpop.permute.xlu0 %6956
        %6958 = vrot.lane.b32.xlu0 %v6497, 40
        %v6959 = vpop.permute.xlu0 %6958
        %6992 = vrot.lane.b32.xlu0 %v6288, 48
        %v6993 = vpop.permute.xlu0 %6992
        %6994 = vrot.lane.b32.xlu0 %v6290, 48
        %v6995 = vpop.permute.xlu0 %6994
        %6996 = vrot.lane.b32.xlu0 %v6293, 48
        %v6997 = vpop.permute.xlu0 %6996
        %6998 = vrot.lane.b32.xlu0 %v6295, 48
        %v6999 = vpop.permute.xlu0 %6998
        %7000 = vrot.lane.b32.xlu0 %v6298, 48
        %v7001 = vpop.permute.xlu0 %7000
        %7002 = vrot.lane.b32.xlu0 %v6300, 48
        %v7003 = vpop.permute.xlu0 %7002
        %7004 = vrot.lane.b32.xlu0 %v6303, 48
        %v7005 = vpop.permute.xlu0 %7004
        %7006 = vrot.lane.b32.xlu0 %v6305, 48
        %v7007 = vpop.permute.xlu0 %7006
        %7008 = vrot.lane.b32.xlu0 %v6308, 48
        %v7009 = vpop.permute.xlu0 %7008
        %7010 = vrot.lane.b32.xlu0 %v6310, 48
        %v7011 = vpop.permute.xlu0 %7010
        %7012 = vrot.lane.b32.xlu0 %v6313, 48
        %v7013 = vpop.permute.xlu0 %7012
        %7014 = vrot.lane.b32.xlu0 %v6315, 48
        %v7015 = vpop.permute.xlu0 %7014
        %7016 = vrot.lane.b32.xlu0 %v6318, 48
        %v7017 = vpop.permute.xlu0 %7016
        %7018 = vrot.lane.b32.xlu0 %v6320, 48
        %v7019 = vpop.permute.xlu0 %7018
        %7020 = vrot.lane.b32.xlu0 %v6323, 48
        %v7021 = vpop.permute.xlu0 %7020
        %7022 = vrot.lane.b32.xlu0 %v6325, 48
        %v7023 = vpop.permute.xlu0 %7022
        %7024 = vrot.lane.b32.xlu0 %v6328, 48
        %v7025 = vpop.permute.xlu0 %7024
        %7026 = vrot.lane.b32.xlu0 %v6330, 48
        %v7027 = vpop.permute.xlu0 %7026
        %7028 = vrot.lane.b32.xlu0 %v6333, 48
        %v7029 = vpop.permute.xlu0 %7028
        %7030 = vrot.lane.b32.xlu0 %v6335, 48
        %v7031 = vpop.permute.xlu0 %7030
        %7032 = vrot.lane.b32.xlu0 %v6338, 48
        %v7033 = vpop.permute.xlu0 %7032
        %7034 = vrot.lane.b32.xlu0 %v6340, 48
        %v7035 = vpop.permute.xlu0 %7034
        %7036 = vrot.lane.b32.xlu0 %v6343, 48
        %v7037 = vpop.permute.xlu0 %7036
        %7038 = vrot.lane.b32.xlu0 %v6345, 48
        %v7039 = vpop.permute.xlu0 %7038
        %7040 = vrot.lane.b32.xlu0 %v6348, 48
        %v7041 = vpop.permute.xlu0 %7040
        %7042 = vrot.lane.b32.xlu0 %v6350, 48
        %v7043 = vpop.permute.xlu0 %7042
        %7044 = vrot.lane.b32.xlu0 %v6353, 48
        %v7045 = vpop.permute.xlu0 %7044
        %7046 = vrot.lane.b32.xlu0 %v6355, 48
        %v7047 = vpop.permute.xlu0 %7046
        %7048 = vrot.lane.b32.xlu0 %v6489, 48
        %v7049 = vpop.permute.xlu0 %7048
        %7050 = vrot.lane.b32.xlu0 %v6491, 48
        %v7051 = vpop.permute.xlu0 %7050
        %7052 = vrot.lane.b32.xlu0 %v6503, 48
        %v7053 = vpop.permute.xlu0 %7052
        %7054 = vrot.lane.b32.xlu0 %v6505, 48
        %v7055 = vpop.permute.xlu0 %7054
        %7088 = vrot.lane.b32.xlu0 %v6165, 56
        %v7089 = vpop.permute.xlu0 %7088
        %7090 = vrot.lane.b32.xlu0 %v6166, 56
        %v7091 = vpop.permute.xlu0 %7090
        %7092 = vrot.lane.b32.xlu0 %v6169, 56
        %v7093 = vpop.permute.xlu0 %7092
        %7094 = vrot.lane.b32.xlu0 %v6170, 56
        %v7095 = vpop.permute.xlu0 %7094
        %7096 = vrot.lane.b32.xlu0 %v6173, 56
        %v7097 = vpop.permute.xlu0 %7096
        %7098 = vrot.lane.b32.xlu0 %v6174, 56
        %v7099 = vpop.permute.xlu0 %7098
        %7100 = vrot.lane.b32.xlu0 %v6177, 56
        %v7101 = vpop.permute.xlu0 %7100
        %7102 = vrot.lane.b32.xlu0 %v6178, 56
        %v7103 = vpop.permute.xlu0 %7102
        %7104 = vrot.lane.b32.xlu0 %v6181, 56
        %v7105 = vpop.permute.xlu0 %7104
        %7106 = vrot.lane.b32.xlu0 %v6182, 56
        %v7107 = vpop.permute.xlu0 %7106
        %7108 = vrot.lane.b32.xlu0 %v6185, 56
        %v7109 = vpop.permute.xlu0 %7108
        %7110 = vrot.lane.b32.xlu0 %v6186, 56
        %v7111 = vpop.permute.xlu0 %7110
        %7112 = vrot.lane.b32.xlu0 %v6189, 56
        %v7113 = vpop.permute.xlu0 %7112
        %7114 = vrot.lane.b32.xlu0 %v6190, 56
        %v7115 = vpop.permute.xlu0 %7114
        %7116 = vrot.lane.b32.xlu0 %v6193, 56
        %v7117 = vpop.permute.xlu0 %7116
        %7118 = vrot.lane.b32.xlu0 %v6194, 56
        %v7119 = vpop.permute.xlu0 %7118
        %7120 = vrot.lane.b32.xlu0 %v6197, 56
        %v7121 = vpop.permute.xlu0 %7120
        %7122 = vrot.lane.b32.xlu0 %v6198, 56
        %v7123 = vpop.permute.xlu0 %7122
        %7124 = vrot.lane.b32.xlu0 %v6201, 56
        %v7125 = vpop.permute.xlu0 %7124
        %7126 = vrot.lane.b32.xlu0 %v6202, 56
        %v7127 = vpop.permute.xlu0 %7126
        %7128 = vrot.lane.b32.xlu0 %v6205, 56
        %v7129 = vpop.permute.xlu0 %7128
        %7130 = vrot.lane.b32.xlu0 %v6206, 56
        %v7131 = vpop.permute.xlu0 %7130
        %7132 = vrot.lane.b32.xlu0 %v6209, 56
        %v7133 = vpop.permute.xlu0 %7132
        %7134 = vrot.lane.b32.xlu0 %v6210, 56
        %v7135 = vpop.permute.xlu0 %7134
        %7136 = vrot.lane.b32.xlu0 %v6213, 56
        %v7137 = vpop.permute.xlu0 %7136
        %7138 = vrot.lane.b32.xlu0 %v6214, 56
        %v7139 = vpop.permute.xlu0 %7138
        %7140 = vrot.lane.b32.xlu0 %v6217, 56
        %v7141 = vpop.permute.xlu0 %7140
        %7142 = vrot.lane.b32.xlu0 %v6218, 56
        %v7143 = vpop.permute.xlu0 %7142
        %7144 = vrot.lane.b32.xlu0 %v6221, 56
        %v7145 = vpop.permute.xlu0 %7144
        %7146 = vrot.lane.b32.xlu0 %v6222, 56
        %v7147 = vpop.permute.xlu0 %7146
        %7148 = vrot.lane.b32.xlu0 %v6225, 56
        %v7149 = vpop.permute.xlu0 %7148
        %7150 = vrot.lane.b32.xlu0 %v6226, 56
        %v7151 = vpop.permute.xlu0 %7150
        %7184 = vrot.lane.b32.xlu0 %v6416, 64
        %v7185 = vpop.permute.xlu0 %7184
        %7186 = vrot.lane.b32.xlu0 %v6418, 64
        %v7187 = vpop.permute.xlu0 %7186
        %7188 = vrot.lane.b32.xlu0 %v6421, 64
        %v7189 = vpop.permute.xlu0 %7188
        %7190 = vrot.lane.b32.xlu0 %v6423, 64
        %v7191 = vpop.permute.xlu0 %7190
        %7192 = vrot.lane.b32.xlu0 %v6426, 64
        %v7193 = vpop.permute.xlu0 %7192
        %7194 = vrot.lane.b32.xlu0 %v6428, 64
        %v7195 = vpop.permute.xlu0 %7194
        %7196 = vrot.lane.b32.xlu0 %v6431, 64
        %v7197 = vpop.permute.xlu0 %7196
        %7198 = vrot.lane.b32.xlu0 %v6433, 64
        %v7199 = vpop.permute.xlu0 %7198
        %7200 = vrot.lane.b32.xlu0 %v6436, 64
        %v7201 = vpop.permute.xlu0 %7200
        %7202 = vrot.lane.b32.xlu0 %v6438, 64
        %v7203 = vpop.permute.xlu0 %7202
        %7204 = vrot.lane.b32.xlu0 %v6441, 64
        %v7205 = vpop.permute.xlu0 %7204
        %7206 = vrot.lane.b32.xlu0 %v6443, 64
        %v7207 = vpop.permute.xlu0 %7206
        %7208 = vrot.lane.b32.xlu0 %v6446, 64
        %v7209 = vpop.permute.xlu0 %7208
        %7210 = vrot.lane.b32.xlu0 %v6448, 64
        %v7211 = vpop.permute.xlu0 %7210
        %7212 = vrot.lane.b32.xlu0 %v6451, 64
        %v7213 = vpop.permute.xlu0 %7212
        %7214 = vrot.lane.b32.xlu0 %v6453, 64
        %v7215 = vpop.permute.xlu0 %7214
        %7216 = vrot.lane.b32.xlu0 %v6456, 64
        %v7217 = vpop.permute.xlu0 %7216
        %7218 = vrot.lane.b32.xlu0 %v6458, 64
        %v7219 = vpop.permute.xlu0 %7218
        %7220 = vrot.lane.b32.xlu0 %v6461, 64
        %v7221 = vpop.permute.xlu0 %7220
        %7222 = vrot.lane.b32.xlu0 %v6463, 64
        %v7223 = vpop.permute.xlu0 %7222
        %7224 = vrot.lane.b32.xlu0 %v6466, 64
        %v7225 = vpop.permute.xlu0 %7224
        %7226 = vrot.lane.b32.xlu0 %v6468, 64
        %v7227 = vpop.permute.xlu0 %7226
        %7228 = vrot.lane.b32.xlu0 %v6471, 64
        %v7229 = vpop.permute.xlu0 %7228
        %7230 = vrot.lane.b32.xlu0 %v6473, 64
        %v7231 = vpop.permute.xlu0 %7230
        %7232 = vrot.lane.b32.xlu0 %v6476, 64
        %v7233 = vpop.permute.xlu0 %7232
        %7234 = vrot.lane.b32.xlu0 %v6478, 64
        %v7235 = vpop.permute.xlu0 %7234
        %7236 = vrot.lane.b32.xlu0 %v6481, 64
        %v7237 = vpop.permute.xlu0 %7236
        %7238 = vrot.lane.b32.xlu0 %v6483, 64
        %v7239 = vpop.permute.xlu0 %7238
        %7240 = vrot.lane.b32.xlu0 %v6495, 64
        %v7241 = vpop.permute.xlu0 %7240
        %7242 = vrot.lane.b32.xlu0 %v6497, 64
        %v7243 = vpop.permute.xlu0 %7242
        %7244 = vrot.lane.b32.xlu0 %v6509, 64
        %v7245 = vpop.permute.xlu0 %7244
        %7246 = vrot.lane.b32.xlu0 %v6511, 64
        %v7247 = vpop.permute.xlu0 %7246
        %v7280 = vsel %vm660, %v6278, %v6513
        %v7281 = vsel %vm660, %v6280, %v6515
        %v7282 = vsel %vm660, %v6283, %v6517
        %v7283 = vsel %vm660, %v6285, %v6519
        %v7284 = vsel %vm660, %v6288, %v6521
        %v7285 = vsel %vm660, %v6290, %v6523
        %v7286 = vsel %vm660, %v6293, %v6525
        %v7287 = vsel %vm660, %v6295, %v6527
        %v7288 = vsel %vm660, %v6298, %v6529
        %v7289 = vsel %vm660, %v6300, %v6531
        %v7290 = vsel %vm660, %v6303, %v6533
        %v7291 = vsel %vm660, %v6305, %v6535
        %v7292 = vsel %vm660, %v6308, %v6537
        %v7293 = vsel %vm660, %v6310, %v6539
        %v7294 = vsel %vm660, %v6313, %v6541
        %v7295 = vsel %vm660, %v6315, %v6543
        %v7296 = vsel %vm660, %v6318, %v6545
        %v7297 = vsel %vm660, %v6320, %v6547
        %v7298 = vsel %vm660, %v6323, %v6549
        %v7299 = vsel %vm660, %v6325, %v6551
        %v7300 = vsel %vm660, %v6328, %v6553
        %v7301 = vsel %vm660, %v6330, %v6555
        %v7302 = vsel %vm660, %v6333, %v6557
        %v7303 = vsel %vm660, %v6335, %v6559
        %v7304 = vsel %vm660, %v6338, %v6561
        %v7305 = vsel %vm660, %v6340, %v6563
        %v7306 = vsel %vm660, %v6343, %v6565
        %v7307 = vsel %vm660, %v6345, %v6567
        %v7308 = vsel %vm660, %v6348, %v6569
        %v7309 = vsel %vm660, %v6350, %v6571
        %v7310 = vsel %vm660, %v6353, %v6573
        %v7311 = vsel %vm660, %v6355, %v6575
        %v7312 = vsel %vm613, %v7280, %v6609
        %v7313 = vsel %vm613, %v7281, %v6611
        %v7314 = vsel %vm613, %v7282, %v6613
        %v7315 = vsel %vm613, %v7283, %v6615
        %v7316 = vsel %vm613, %v7284, %v6617
        %v7317 = vsel %vm613, %v7285, %v6619
        %v7318 = vsel %vm613, %v7286, %v6621
        %v7319 = vsel %vm613, %v7287, %v6623
        %v7320 = vsel %vm613, %v7288, %v6625
        %v7321 = vsel %vm613, %v7289, %v6627
        %v7322 = vsel %vm613, %v7290, %v6629
        %v7323 = vsel %vm613, %v7291, %v6631
        %v7324 = vsel %vm613, %v7292, %v6633
        %v7325 = vsel %vm613, %v7293, %v6635
        %v7326 = vsel %vm613, %v7294, %v6637
        %v7327 = vsel %vm613, %v7295, %v6639
        %v7328 = vsel %vm613, %v7296, %v6641
        %v7329 = vsel %vm613, %v7297, %v6643
        %v7330 = vsel %vm613, %v7298, %v6645
        %v7331 = vsel %vm613, %v7299, %v6647
        %v7332 = vsel %vm613, %v7300, %v6649
        %v7333 = vsel %vm613, %v7301, %v6651
        %v7334 = vsel %vm613, %v7302, %v6653
        %v7335 = vsel %vm613, %v7303, %v6655
        %v7336 = vsel %vm613, %v7304, %v6657
        %v7337 = vsel %vm613, %v7305, %v6659
        %v7338 = vsel %vm613, %v7306, %v6661
        %v7339 = vsel %vm613, %v7307, %v6663
        %v7340 = vsel %vm613, %v7308, %v6665
        %v7341 = vsel %vm613, %v7309, %v6667
        %v7342 = vsel %vm613, %v7310, %v6669
        %v7343 = vsel %vm613, %v7311, %v6671
        %v7344 = vsel %vm2060, %v7312, %v6705
        %v7345 = vsel %vm2060, %v7313, %v6707
        %v7346 = vsel %vm2060, %v7314, %v6709
        %v7347 = vsel %vm2060, %v7315, %v6711
        %v7348 = vsel %vm2060, %v7316, %v6713
        %v7349 = vsel %vm2060, %v7317, %v6715
        %v7350 = vsel %vm2060, %v7318, %v6717
        %v7351 = vsel %vm2060, %v7319, %v6719
        %v7352 = vsel %vm2060, %v7320, %v6721
        %v7353 = vsel %vm2060, %v7321, %v6723
        %v7354 = vsel %vm2060, %v7322, %v6725
        %v7355 = vsel %vm2060, %v7323, %v6727
        %v7356 = vsel %vm2060, %v7324, %v6729
        %v7357 = vsel %vm2060, %v7325, %v6731
        %v7358 = vsel %vm2060, %v7326, %v6733
        %v7359 = vsel %vm2060, %v7327, %v6735
        %v7360 = vsel %vm2060, %v7328, %v6737
        %v7361 = vsel %vm2060, %v7329, %v6739
        %v7362 = vsel %vm2060, %v7330, %v6741
        %v7363 = vsel %vm2060, %v7331, %v6743
        %v7364 = vsel %vm2060, %v7332, %v6745
        %v7365 = vsel %vm2060, %v7333, %v6747
        %v7366 = vsel %vm2060, %v7334, %v6749
        %v7367 = vsel %vm2060, %v7335, %v6751
        %v7368 = vsel %vm2060, %v7336, %v6753
        %v7369 = vsel %vm2060, %v7337, %v6755
        %v7370 = vsel %vm2060, %v7338, %v6757
        %v7371 = vsel %vm2060, %v7339, %v6759
        %v7372 = vsel %vm2060, %v7340, %v6761
        %v7373 = vsel %vm2060, %v7341, %v6763
        %v7374 = vsel %vm2060, %v7342, %v6765
        %v7375 = vsel %vm2060, %v7343, %v6767
        %v7376 = vsel %vm566, %v7344, %v6801
        %v7377 = vsel %vm566, %v7345, %v6803
        %v7378 = vsel %vm566, %v7346, %v6805
        %v7379 = vsel %vm566, %v7347, %v6807
        %v7380 = vsel %vm566, %v7348, %v6809
        %v7381 = vsel %vm566, %v7349, %v6811
        %v7382 = vsel %vm566, %v7350, %v6813
        %v7383 = vsel %vm566, %v7351, %v6815
        %v7384 = vsel %vm566, %v7352, %v6817
        %v7385 = vsel %vm566, %v7353, %v6819
        %v7386 = vsel %vm566, %v7354, %v6821
        %v7387 = vsel %vm566, %v7355, %v6823
        %v7388 = vsel %vm566, %v7356, %v6825
        %v7389 = vsel %vm566, %v7357, %v6827
        %v7390 = vsel %vm566, %v7358, %v6829
        %v7391 = vsel %vm566, %v7359, %v6831
        %v7392 = vsel %vm566, %v7360, %v6833
        %v7393 = vsel %vm566, %v7361, %v6835
        %v7394 = vsel %vm566, %v7362, %v6837
        %v7395 = vsel %vm566, %v7363, %v6839
        %v7396 = vsel %vm566, %v7364, %v6841
        %v7397 = vsel %vm566, %v7365, %v6843
        %v7398 = vsel %vm566, %v7366, %v6845
        %v7399 = vsel %vm566, %v7367, %v6847
        %v7400 = vsel %vm566, %v7368, %v6849
        %v7401 = vsel %vm566, %v7369, %v6851
        %v7402 = vsel %vm566, %v7370, %v6853
        %v7403 = vsel %vm566, %v7371, %v6855
        %v7404 = vsel %vm566, %v7372, %v6857
        %v7405 = vsel %vm566, %v7373, %v6859
        %v7406 = vsel %vm566, %v7374, %v6861
        %v7407 = vsel %vm566, %v7375, %v6863
        %vm7408 = vcmask 326656
        %v7409 = vsel %vm7408, %v7376, %v6897
        %v7410 = vsel %vm7408, %v7377, %v6899
        %v7411 = vsel %vm7408, %v7378, %v6901
        %v7412 = vsel %vm7408, %v7379, %v6903
        %v7413 = vsel %vm7408, %v7380, %v6905
        %v7414 = vsel %vm7408, %v7381, %v6907
        %v7415 = vsel %vm7408, %v7382, %v6909
        %v7416 = vsel %vm7408, %v7383, %v6911
        %v7417 = vsel %vm7408, %v7384, %v6913
        %v7418 = vsel %vm7408, %v7385, %v6915
        %v7419 = vsel %vm7408, %v7386, %v6917
        %v7420 = vsel %vm7408, %v7387, %v6919
        %v7421 = vsel %vm7408, %v7388, %v6921
        %v7422 = vsel %vm7408, %v7389, %v6923
        %v7423 = vsel %vm7408, %v7390, %v6925
        %v7424 = vsel %vm7408, %v7391, %v6927
        %v7425 = vsel %vm7408, %v7392, %v6929
        %v7426 = vsel %vm7408, %v7393, %v6931
        %v7427 = vsel %vm7408, %v7394, %v6933
        %v7428 = vsel %vm7408, %v7395, %v6935
        %v7429 = vsel %vm7408, %v7396, %v6937
        %v7430 = vsel %vm7408, %v7397, %v6939
        %v7431 = vsel %vm7408, %v7398, %v6941
        %v7432 = vsel %vm7408, %v7399, %v6943
        %v7433 = vsel %vm7408, %v7400, %v6945
        %v7434 = vsel %vm7408, %v7401, %v6947
        %v7435 = vsel %vm7408, %v7402, %v6949
        %v7436 = vsel %vm7408, %v7403, %v6951
        %v7437 = vsel %vm7408, %v7404, %v6953
        %v7438 = vsel %vm7408, %v7405, %v6955
        %v7439 = vsel %vm7408, %v7406, %v6957
        %v7440 = vsel %vm7408, %v7407, %v6959
        %v7441 = vsel %vm5543, %v7409, %v6993
        %v7442 = vsel %vm5543, %v7410, %v6995
        %v7443 = vsel %vm5543, %v7411, %v6997
        %v7444 = vsel %vm5543, %v7412, %v6999
        %v7445 = vsel %vm5543, %v7413, %v7001
        %v7446 = vsel %vm5543, %v7414, %v7003
        %v7447 = vsel %vm5543, %v7415, %v7005
        %v7448 = vsel %vm5543, %v7416, %v7007
        %v7449 = vsel %vm5543, %v7417, %v7009
        %v7450 = vsel %vm5543, %v7418, %v7011
        %v7451 = vsel %vm5543, %v7419, %v7013
        %v7452 = vsel %vm5543, %v7420, %v7015
        %v7453 = vsel %vm5543, %v7421, %v7017
        %v7454 = vsel %vm5543, %v7422, %v7019
        %v7455 = vsel %vm5543, %v7423, %v7021
        %v7456 = vsel %vm5543, %v7424, %v7023
        %v7457 = vsel %vm5543, %v7425, %v7025
        %v7458 = vsel %vm5543, %v7426, %v7027
        %v7459 = vsel %vm5543, %v7427, %v7029
        %v7460 = vsel %vm5543, %v7428, %v7031
        %v7461 = vsel %vm5543, %v7429, %v7033
        %v7462 = vsel %vm5543, %v7430, %v7035
        %v7463 = vsel %vm5543, %v7431, %v7037
        %v7464 = vsel %vm5543, %v7432, %v7039
        %v7465 = vsel %vm5543, %v7433, %v7041
        %v7466 = vsel %vm5543, %v7434, %v7043
        %v7467 = vsel %vm5543, %v7435, %v7045
        %v7468 = vsel %vm5543, %v7436, %v7047
        %v7469 = vsel %vm5543, %v7437, %v7049
        %v7470 = vsel %vm5543, %v7438, %v7051
        %v7471 = vsel %vm5543, %v7439, %v7053
        %v7472 = vsel %vm5543, %v7440, %v7055
        %vm7473 = vcmask 457728
        %v7474 = vsel %vm7473, %v7441, %v7089
        %v7475 = vsel %vm7473, %v7442, %v7091
        %v7476 = vsel %vm7473, %v7443, %v7093
        %v7477 = vsel %vm7473, %v7444, %v7095
        %v7478 = vsel %vm7473, %v7445, %v7097
        %v7479 = vsel %vm7473, %v7446, %v7099
        %v7480 = vsel %vm7473, %v7447, %v7101
        %v7481 = vsel %vm7473, %v7448, %v7103
        %v7482 = vsel %vm7473, %v7449, %v7105
        %v7483 = vsel %vm7473, %v7450, %v7107
        %v7484 = vsel %vm7473, %v7451, %v7109
        %v7485 = vsel %vm7473, %v7452, %v7111
        %v7486 = vsel %vm7473, %v7453, %v7113
        %v7487 = vsel %vm7473, %v7454, %v7115
        %v7488 = vsel %vm7473, %v7455, %v7117
        %v7489 = vsel %vm7473, %v7456, %v7119
        %v7490 = vsel %vm7473, %v7457, %v7121
        %v7491 = vsel %vm7473, %v7458, %v7123
        %v7492 = vsel %vm7473, %v7459, %v7125
        %v7493 = vsel %vm7473, %v7460, %v7127
        %v7494 = vsel %vm7473, %v7461, %v7129
        %v7495 = vsel %vm7473, %v7462, %v7131
        %v7496 = vsel %vm7473, %v7463, %v7133
        %v7497 = vsel %vm7473, %v7464, %v7135
        %v7498 = vsel %vm7473, %v7465, %v7137
        %v7499 = vsel %vm7473, %v7466, %v7139
        %v7500 = vsel %vm7473, %v7467, %v7141
        %v7501 = vsel %vm7473, %v7468, %v7143
        %v7502 = vsel %vm7473, %v7469, %v7145
        %v7503 = vsel %vm7473, %v7470, %v7147
        %v7504 = vsel %vm7473, %v7471, %v7149
        %v7505 = vsel %vm7473, %v7472, %v7151
        %v7506 = vsel %vm3596, %v7474, %v7185
        %v7507 = vsel %vm3596, %v7475, %v7187
        %v7508 = vsel %vm3596, %v7476, %v7189
        %v7509 = vsel %vm3596, %v7477, %v7191
        %v7510 = vsel %vm3596, %v7478, %v7193
        %v7511 = vsel %vm3596, %v7479, %v7195
        %v7512 = vsel %vm3596, %v7480, %v7197
        %v7513 = vsel %vm3596, %v7481, %v7199
        %v7514 = vsel %vm3596, %v7482, %v7201
        %v7515 = vsel %vm3596, %v7483, %v7203
        %v7516 = vsel %vm3596, %v7484, %v7205
        %v7517 = vsel %vm3596, %v7485, %v7207
        %v7518 = vsel %vm3596, %v7486, %v7209
        %v7519 = vsel %vm3596, %v7487, %v7211
        %v7520 = vsel %vm3596, %v7488, %v7213
        %v7521 = vsel %vm3596, %v7489, %v7215
        %v7522 = vsel %vm3596, %v7490, %v7217
        %v7523 = vsel %vm3596, %v7491, %v7219
        %v7524 = vsel %vm3596, %v7492, %v7221
        %v7525 = vsel %vm3596, %v7493, %v7223
        %v7526 = vsel %vm3596, %v7494, %v7225
        %v7527 = vsel %vm3596, %v7495, %v7227
        %v7528 = vsel %vm3596, %v7496, %v7229
        %v7529 = vsel %vm3596, %v7497, %v7231
        %v7530 = vsel %vm3596, %v7498, %v7233
        %v7531 = vsel %vm3596, %v7499, %v7235
        %v7532 = vsel %vm3596, %v7500, %v7237
        %v7533 = vsel %vm3596, %v7501, %v7239
        %v7534 = vsel %vm3596, %v7502, %v7241
        %v7535 = vsel %vm3596, %v7503, %v7243
        %v7536 = vsel %vm3596, %v7504, %v7245
        %v7537 = vsel %vm3596, %v7505, %v7247
        %v7538 = vld [vmem:[%s10] sm:$0xff]
        %v7539 = vld [vmem:[%s10 + $0x8] sm:$0xff]
        %v7540 = vld [vmem:[%s10 + $0x10] sm:$0xff]
        %v7541 = vld [vmem:[%s10 + $0x18] sm:$0xff]
        %v7542 = vld [vmem:[%s10 + $0x20] sm:$0xff]
        %v7543 = vld [vmem:[%s10 + $0x28] sm:$0xff]
        %v7544 = vld [vmem:[%s10 + $0x30] sm:$0xff]
        %v7545 = vld [vmem:[%s10 + $0x38] sm:$0xff]
        %v7546 = vld [vmem:[%s10 + $0x40] sm:$0xff]
        %vm7547 = vcmask 588800
        %v7549 = vsel %vm7547, %v7506, 0
        %v7552 = vsel %vm7547, %v7507, 0
        %v7555 = vsel %vm7547, %v7508, 0
        %v7558 = vsel %vm7547, %v7509, 0
        %v7561 = vsel %vm7547, %v7510, 0
        %v7564 = vsel %vm7547, %v7511, 0
        %v7567 = vsel %vm7547, %v7512, 0
        %v7570 = vsel %vm7547, %v7513, 0
        %v7573 = vsel %vm7547, %v7514, 0
        %v7576 = vsel %vm7547, %v7515, 0
        %v7579 = vsel %vm7547, %v7516, 0
        %v7582 = vsel %vm7547, %v7517, 0
        %v7585 = vsel %vm7547, %v7518, 0
        %v7588 = vsel %vm7547, %v7519, 0
        %v7591 = vsel %vm7547, %v7520, 0
        %v7594 = vsel %vm7547, %v7521, 0
        %v7597 = vsel %vm7547, %v7522, 0
        %v7600 = vsel %vm7547, %v7523, 0
        %v7603 = vsel %vm7547, %v7524, 0
        %v7606 = vsel %vm7547, %v7525, 0
        %v7609 = vsel %vm7547, %v7526, 0
        %v7612 = vsel %vm7547, %v7527, 0
        %v7615 = vsel %vm7547, %v7528, 0
        %v7618 = vsel %vm7547, %v7529, 0
        %v7621 = vsel %vm7547, %v7530, 0
        %v7624 = vsel %vm7547, %v7531, 0
        %v7627 = vsel %vm7547, %v7532, 0
        %v7630 = vsel %vm7547, %v7533, 0
        %v7633 = vsel %vm7547, %v7534, 0
        %v7636 = vsel %vm7547, %v7535, 0
        %v7639 = vsel %vm7547, %v7536, 0
        %v7642 = vsel %vm7547, %v7537, 0
        %7644 = vmatprep.subr.mxu0 0.0
        %7645 = vmatpush1.msra.mxu0 %v7538
        %7646 = vmatprep.subr.mxu0 0.0
        %7647 = vmatpush1.msra.mxu0 %v7539
        %7648 = vmatprep.subr.mxu0 0.0
        %7649 = vmatpush1.msra.mxu0 %v7540
        %7650 = vmatprep.subr.mxu0 0.0
        %7651 = vmatpush1.msra.mxu0 %v7541
        %7652 = vmatprep.subr.mxu0 0.0
        %7653 = vmatpush1.msra.mxu0 %v7542
        %7654 = vmatprep.subr.mxu0 0.0
        %7655 = vmatpush1.msra.mxu0 %v7543
        %7656 = vmatprep.subr.mxu0 0.0
        %7657 = vmatpush1.msra.mxu0 %v7544
        %7658 = vmatprep.subr.mxu0 0.0
        %7659 = vmatpush1.msra.mxu0 %v7545
        %7660 = vmatprep.subr.mxu0 0.0
        %7661 = vmatpush1.msra.mxu0 %v7546
        %7662 = vmatprep.subr.mxu0 0.0
        %7663 = vmatpush1.msra.mxu0 0.0
        %7664 = vmatprep.subr.mxu0 0.0
        %7665 = vmatpush1.msra.mxu0 0.0
        %7666 = vmatprep.subr.mxu0 0.0
        %7667 = vmatpush1.msra.mxu0 0.0
        %7668 = vmatprep.subr.mxu0 0.0
        %7669 = vmatpush1.msra.mxu0 0.0
        %7670 = vmatprep.subr.mxu0 0.0
        %7671 = vmatpush1.msra.mxu0 0.0
        %7672 = vmatprep.subr.mxu0 0.0
        %7673 = vmatpush1.msra.mxu0 0.0
        %7674 = vmatprep.subr.mxu0 0.0
        %7675 = vmatpush1.msra.mxu0 0.0
        %7676 = vmatprep.subr.mxu0 0.0
        %7677 = vmatpush1.msra.mxu0 0.0
        %7678 = vmatprep.subr.mxu0 0.0
        %7679 = vmatpush1.msra.mxu0 0.0
        %7680 = vmatprep.subr.mxu0 0.0
        %7681 = vmatpush1.msra.mxu0 0.0
        %7682 = vmatprep.subr.mxu0 0.0
        %7683 = vmatpush1.msra.mxu0 0.0
        %7684 = vmatprep.subr.mxu0 0.0
        %7685 = vmatpush1.msra.mxu0 0.0
        %7686 = vmatprep.subr.mxu0 0.0
        %7687 = vmatpush1.msra.mxu0 0.0
        %7688 = vmatprep.subr.mxu0 0.0
        %7689 = vmatpush1.msra.mxu0 0.0
        %7690 = vmatprep.subr.mxu0 0.0
        %7691 = vmatpush1.msra.mxu0 0.0
        %7692 = vmatprep.subr.mxu0 0.0
        %7693 = vmatpush1.msra.mxu0 0.0
        %7694 = vmatprep.subr.mxu0 0.0
        %7695 = vmatpush1.msra.mxu0 0.0
        %7696 = vmatprep.subr.mxu0 0.0
        %7697 = vmatpush1.msra.mxu0 0.0
        %7698 = vmatprep.subr.mxu0 0.0
        %7699 = vmatpush1.msra.mxu0 0.0
        %7700 = vmatprep.subr.mxu0 0.0
        %7701 = vmatpush1.msra.mxu0 0.0
        %7702 = vmatprep.subr.mxu0 0.0
        %7703 = vmatpush1.msra.mxu0 0.0
        %7704 = vmatprep.subr.mxu0 0.0
        %7705 = vmatpush1.msra.mxu0 0.0
        %7706 = vmatprep.subr.mxu0 0.0
        %7707 = vmatpush1.msra.mxu0 0.0
        %7708 = vmatprep.mubr.f32.mxu0 0.0
        %7709 = vmatmul.mubr.f32.gmra.mrb[0].mxu0 %v7549
        %v7710 = vpop.f32.mrb[0].mxu0
        %v7711 = vadd.f32 0.0, %v7710
        %v7712 = vpop.f32.mrb[0].mxu0
        %7713 = vmatprep.mubr.f32.mxu0 0.0
        %7714 = vmatmul.mubr.f32.gmra.mrb[0].mxu0 %v7552
        %v7715 = vpop.f32.mrb[0].mxu0
        %v7716 = vadd.f32 0.0, %v7715
        %v7717 = vpop.f32.mrb[0].mxu0
        %7718 = vmatprep.mubr.f32.mxu0 0.0
        %7719 = vmatmul.mubr.f32.gmra.mrb[0].mxu0 %v7555
        %v7720 = vpop.f32.mrb[0].mxu0
        %v7721 = vadd.f32 0.0, %v7720
        %v7722 = vpop.f32.mrb[0].mxu0
        %7723 = vmatprep.mubr.f32.mxu0 0.0
        %7724 = vmatmul.mubr.f32.gmra.mrb[0].mxu0 %v7558
        %v7725 = vpop.f32.mrb[0].mxu0
        %v7726 = vadd.f32 0.0, %v7725
        %v7727 = vpop.f32.mrb[0].mxu0
        %7728 = vmatprep.mubr.f32.mxu0 0.0
        %7729 = vmatmul.mubr.f32.gmra.mrb[0].mxu0 %v7561
        %v7730 = vpop.f32.mrb[0].mxu0
        %v7731 = vadd.f32 0.0, %v7730
        %v7732 = vpop.f32.mrb[0].mxu0
        %7733 = vmatprep.mubr.f32.mxu0 0.0
        %7734 = vmatmul.mubr.f32.gmra.mrb[0].mxu0 %v7564
        %v7735 = vpop.f32.mrb[0].mxu0
        %v7736 = vadd.f32 0.0, %v7735
        %v7737 = vpop.f32.mrb[0].mxu0
        %7738 = vmatprep.mubr.f32.mxu0 0.0
        %7739 = vmatmul.mubr.f32.gmra.mrb[0].mxu0 %v7567
        %v7740 = vpop.f32.mrb[0].mxu0
        %v7741 = vadd.f32 0.0, %v7740
        %v7742 = vpop.f32.mrb[0].mxu0
        %7743 = vmatprep.mubr.f32.mxu0 0.0
        %7744 = vmatmul.mubr.f32.gmra.mrb[0].mxu0 %v7570
        %v7745 = vpop.f32.mrb[0].mxu0
        %v7746 = vadd.f32 0.0, %v7745
        %v7747 = vpop.f32.mrb[0].mxu0
        %7748 = vmatprep.mubr.f32.mxu0 0.0
        %7749 = vmatmul.mubr.f32.gmra.mrb[0].mxu0 %v7573
        %v7750 = vpop.f32.mrb[0].mxu0
        %v7751 = vadd.f32 0.0, %v7750
        %v7752 = vpop.f32.mrb[0].mxu0
        %7753 = vmatprep.mubr.f32.mxu0 0.0
        %7754 = vmatmul.mubr.f32.gmra.mrb[0].mxu0 %v7576
        %v7755 = vpop.f32.mrb[0].mxu0
        %v7756 = vadd.f32 0.0, %v7755
        %v7757 = vpop.f32.mrb[0].mxu0
        %7758 = vmatprep.mubr.f32.mxu0 0.0
        %7759 = vmatmul.mubr.f32.gmra.mrb[0].mxu0 %v7579
        %v7760 = vpop.f32.mrb[0].mxu0
        %v7761 = vadd.f32 0.0, %v7760
        %v7762 = vpop.f32.mrb[0].mxu0
        %7763 = vmatprep.mubr.f32.mxu0 0.0
        %7764 = vmatmul.mubr.f32.gmra.mrb[0].mxu0 %v7582
        %v7765 = vpop.f32.mrb[0].mxu0
        %v7766 = vadd.f32 0.0, %v7765
        %v7767 = vpop.f32.mrb[0].mxu0
        %7768 = vmatprep.mubr.f32.mxu0 0.0
        %7769 = vmatmul.mubr.f32.gmra.mrb[0].mxu0 %v7585
        %v7770 = vpop.f32.mrb[0].mxu0
        %v7771 = vadd.f32 0.0, %v7770
        %v7772 = vpop.f32.mrb[0].mxu0
        %7773 = vmatprep.mubr.f32.mxu0 0.0
        %7774 = vmatmul.mubr.f32.gmra.mrb[0].mxu0 %v7588
        %v7775 = vpop.f32.mrb[0].mxu0
        %v7776 = vadd.f32 0.0, %v7775
        %v7777 = vpop.f32.mrb[0].mxu0
        %7778 = vmatprep.mubr.f32.mxu0 0.0
        %7779 = vmatmul.mubr.f32.gmra.mrb[0].mxu0 %v7591
        %v7780 = vpop.f32.mrb[0].mxu0
        %v7781 = vadd.f32 0.0, %v7780
        %v7782 = vpop.f32.mrb[0].mxu0
        %7783 = vmatprep.mubr.f32.mxu0 0.0
        %7784 = vmatmul.mubr.f32.gmra.mrb[0].mxu0 %v7594
        %v7785 = vpop.f32.mrb[0].mxu0
        %v7786 = vadd.f32 0.0, %v7785
        %v7787 = vpop.f32.mrb[0].mxu0
        %7788 = vmatprep.mubr.f32.mxu0 0.0
        %7789 = vmatmul.mubr.f32.gmra.mrb[0].mxu0 %v7597
        %v7790 = vpop.f32.mrb[0].mxu0
        %v7791 = vadd.f32 0.0, %v7790
        %v7792 = vpop.f32.mrb[0].mxu0
        %7793 = vmatprep.mubr.f32.mxu0 0.0
        %7794 = vmatmul.mubr.f32.gmra.mrb[0].mxu0 %v7600
        %v7795 = vpop.f32.mrb[0].mxu0
        %v7796 = vadd.f32 0.0, %v7795
        %v7797 = vpop.f32.mrb[0].mxu0
        %7798 = vmatprep.mubr.f32.mxu0 0.0
        %7799 = vmatmul.mubr.f32.gmra.mrb[0].mxu0 %v7603
        %v7800 = vpop.f32.mrb[0].mxu0
        %v7801 = vadd.f32 0.0, %v7800
        %v7802 = vpop.f32.mrb[0].mxu0
        %7803 = vmatprep.mubr.f32.mxu0 0.0
        %7804 = vmatmul.mubr.f32.gmra.mrb[0].mxu0 %v7606
        %v7805 = vpop.f32.mrb[0].mxu0
        %v7806 = vadd.f32 0.0, %v7805
        %v7807 = vpop.f32.mrb[0].mxu0
        %7808 = vmatprep.mubr.f32.mxu0 0.0
        %7809 = vmatmul.mubr.f32.gmra.mrb[0].mxu0 %v7609
        %v7810 = vpop.f32.mrb[0].mxu0
        %v7811 = vadd.f32 0.0, %v7810
        %v7812 = vpop.f32.mrb[0].mxu0
        %7813 = vmatprep.mubr.f32.mxu0 0.0
        %7814 = vmatmul.mubr.f32.gmra.mrb[0].mxu0 %v7612
        %v7815 = vpop.f32.mrb[0].mxu0
        %v7816 = vadd.f32 0.0, %v7815
        %v7817 = vpop.f32.mrb[0].mxu0
        %7818 = vmatprep.mubr.f32.mxu0 0.0
        %7819 = vmatmul.mubr.f32.gmra.mrb[0].mxu0 %v7615
        %v7820 = vpop.f32.mrb[0].mxu0
        %v7821 = vadd.f32 0.0, %v7820
        %v7822 = vpop.f32.mrb[0].mxu0
        %7823 = vmatprep.mubr.f32.mxu0 0.0
        %7824 = vmatmul.mubr.f32.gmra.mrb[0].mxu0 %v7618
        %v7825 = vpop.f32.mrb[0].mxu0
        %v7826 = vadd.f32 0.0, %v7825
        %v7827 = vpop.f32.mrb[0].mxu0
        %7828 = vmatprep.mubr.f32.mxu0 0.0
        %7829 = vmatmul.mubr.f32.gmra.mrb[0].mxu0 %v7621
        %v7830 = vpop.f32.mrb[0].mxu0
        %v7831 = vadd.f32 0.0, %v7830
        %v7832 = vpop.f32.mrb[0].mxu0
        %7833 = vmatprep.mubr.f32.mxu0 0.0
        %7834 = vmatmul.mubr.f32.gmra.mrb[0].mxu0 %v7624
        %v7835 = vpop.f32.mrb[0].mxu0
        %v7836 = vadd.f32 0.0, %v7835
        %v7837 = vpop.f32.mrb[0].mxu0
        %7838 = vmatprep.mubr.f32.mxu0 0.0
        %7839 = vmatmul.mubr.f32.gmra.mrb[0].mxu0 %v7627
        %v7840 = vpop.f32.mrb[0].mxu0
        %v7841 = vadd.f32 0.0, %v7840
        %v7842 = vpop.f32.mrb[0].mxu0
        %7843 = vmatprep.mubr.f32.mxu0 0.0
        %7844 = vmatmul.mubr.f32.gmra.mrb[0].mxu0 %v7630
        %v7845 = vpop.f32.mrb[0].mxu0
        %v7846 = vadd.f32 0.0, %v7845
        %v7847 = vpop.f32.mrb[0].mxu0
        %7848 = vmatprep.mubr.f32.mxu0 0.0
        %7849 = vmatmul.mubr.f32.gmra.mrb[0].mxu0 %v7633
        %v7850 = vpop.f32.mrb[0].mxu0
        %v7851 = vadd.f32 0.0, %v7850
        %v7852 = vpop.f32.mrb[0].mxu0
        %7853 = vmatprep.mubr.f32.mxu0 0.0
        %7854 = vmatmul.mubr.f32.gmra.mrb[0].mxu0 %v7636
        %v7855 = vpop.f32.mrb[0].mxu0
        %v7856 = vadd.f32 0.0, %v7855
        %v7857 = vpop.f32.mrb[0].mxu0
        %7858 = vmatprep.mubr.f32.mxu0 0.0
        %7859 = vmatmul.mubr.f32.gmra.mrb[0].mxu0 %v7639
        %v7860 = vpop.f32.mrb[0].mxu0
        %v7861 = vadd.f32 0.0, %v7860
        %v7862 = vpop.f32.mrb[0].mxu0
        %7863 = vmatprep.mubr.f32.mxu0 0.0
        %7864 = vmatmul.mubr.f32.gmra.mrb[0].mxu0 %v7642
        %v7865 = vpop.f32.mrb[0].mxu0
        %v7866 = vadd.f32 0.0, %v7865
        %v7867 = vpop.f32.mrb[0].mxu0
        %7868 = vdwg.mxu0
        %v7869 = vld [vmem:[%s11] sm:$0x1]
        %v7871 = vlaneseq
        %v7872 = vshrl.u32 %v7871, 7
        %v7873 = vsub.s32 0, %v7872
        %v7874 = vrot.slane %v7869, %v7873
        %v7876 = vmul.f32 %v7711, %v7874
        %v7877 = vmul.f32 %v7716, %v7874
        %v7878 = vmul.f32 %v7721, %v7874
        %v7879 = vmul.f32 %v7726, %v7874
        %v7880 = vmul.f32 %v7731, %v7874
        %v7881 = vmul.f32 %v7736, %v7874
        %v7882 = vmul.f32 %v7741, %v7874
        %v7883 = vmul.f32 %v7746, %v7874
        %v7884 = vmul.f32 %v7751, %v7874
        %v7885 = vmul.f32 %v7756, %v7874
        %v7886 = vmul.f32 %v7761, %v7874
        %v7887 = vmul.f32 %v7766, %v7874
        %v7888 = vmul.f32 %v7771, %v7874
        %v7889 = vmul.f32 %v7776, %v7874
        %v7890 = vmul.f32 %v7781, %v7874
        %v7891 = vmul.f32 %v7786, %v7874
        %v7892 = vmul.f32 %v7791, %v7874
        %v7893 = vmul.f32 %v7796, %v7874
        %v7894 = vmul.f32 %v7801, %v7874
        %v7895 = vmul.f32 %v7806, %v7874
        %v7896 = vmul.f32 %v7811, %v7874
        %v7897 = vmul.f32 %v7816, %v7874
        %v7898 = vmul.f32 %v7821, %v7874
        %v7899 = vmul.f32 %v7826, %v7874
        %v7900 = vmul.f32 %v7831, %v7874
        %v7901 = vmul.f32 %v7836, %v7874
        %v7902 = vmul.f32 %v7841, %v7874
        %v7903 = vmul.f32 %v7846, %v7874
        %v7904 = vmul.f32 %v7851, %v7874
        %v7905 = vmul.f32 %v7856, %v7874
        %v7906 = vmul.f32 %v7861, %v7874
        %v7907 = vmul.f32 %v7866, %v7874
        %v7908 = vld [vmem:[%s12] sm:$0x1]
        %v7910 = vlaneseq
        %v7911 = vshrl.u32 %v7910, 7
        %v7912 = vsub.s32 0, %v7911
        %v7913 = vrot.slane %v7908, %v7912
        %v7915 = vadd.f32 %v7876, %v7913
        %v7916 = vadd.f32 %v7877, %v7913
        %v7917 = vadd.f32 %v7878, %v7913
        %v7918 = vadd.f32 %v7879, %v7913
        %v7919 = vadd.f32 %v7880, %v7913
        %v7920 = vadd.f32 %v7881, %v7913
        %v7921 = vadd.f32 %v7882, %v7913
        %v7922 = vadd.f32 %v7883, %v7913
        %v7923 = vadd.f32 %v7884, %v7913
        %v7924 = vadd.f32 %v7885, %v7913
        %v7925 = vadd.f32 %v7886, %v7913
        %v7926 = vadd.f32 %v7887, %v7913
        %v7927 = vadd.f32 %v7888, %v7913
        %v7928 = vadd.f32 %v7889, %v7913
        %v7929 = vadd.f32 %v7890, %v7913
        %v7930 = vadd.f32 %v7891, %v7913
        %v7931 = vadd.f32 %v7892, %v7913
        %v7932 = vadd.f32 %v7893, %v7913
        %v7933 = vadd.f32 %v7894, %v7913
        %v7934 = vadd.f32 %v7895, %v7913
        %v7935 = vadd.f32 %v7896, %v7913
        %v7936 = vadd.f32 %v7897, %v7913
        %v7937 = vadd.f32 %v7898, %v7913
        %v7938 = vadd.f32 %v7899, %v7913
        %v7939 = vadd.f32 %v7900, %v7913
        %v7940 = vadd.f32 %v7901, %v7913
        %v7941 = vadd.f32 %v7902, %v7913
        %v7942 = vadd.f32 %v7903, %v7913
        %v7943 = vadd.f32 %v7904, %v7913
        %v7944 = vadd.f32 %v7905, %v7913
        %v7945 = vadd.f32 %v7906, %v7913
        %v7946 = vadd.f32 %v7907, %v7913
        %v7947 = vmax.f32 %v7915, 0.0
        %v7948 = vmax.f32 %v7916, 0.0
        %v7949 = vmax.f32 %v7917, 0.0
        %v7950 = vmax.f32 %v7918, 0.0
        %v7951 = vmax.f32 %v7919, 0.0
        %v7952 = vmax.f32 %v7920, 0.0
        %v7953 = vmax.f32 %v7921, 0.0
        %v7954 = vmax.f32 %v7922, 0.0
        %v7955 = vmax.f32 %v7923, 0.0
        %v7956 = vmax.f32 %v7924, 0.0
        %v7957 = vmax.f32 %v7925, 0.0
        %v7958 = vmax.f32 %v7926, 0.0
        %v7959 = vmax.f32 %v7927, 0.0
        %v7960 = vmax.f32 %v7928, 0.0
        %v7961 = vmax.f32 %v7929, 0.0
        %v7962 = vmax.f32 %v7930, 0.0
        %v7963 = vmax.f32 %v7931, 0.0
        %v7964 = vmax.f32 %v7932, 0.0
        %v7965 = vmax.f32 %v7933, 0.0
        %v7966 = vmax.f32 %v7934, 0.0
        %v7967 = vmax.f32 %v7935, 0.0
        %v7968 = vmax.f32 %v7936, 0.0
        %v7969 = vmax.f32 %v7937, 0.0
        %v7970 = vmax.f32 %v7938, 0.0
        %v7971 = vmax.f32 %v7939, 0.0
        %v7972 = vmax.f32 %v7940, 0.0
        %v7973 = vmax.f32 %v7941, 0.0
        %v7974 = vmax.f32 %v7942, 0.0
        %v7975 = vmax.f32 %v7943, 0.0
        %v7976 = vmax.f32 %v7944, 0.0
        %v7977 = vmax.f32 %v7945, 0.0
        %v7978 = vmax.f32 %v7946, 0.0
        %v7979 = vld [vmem:[%s13] sm:$0x3]
        %v7980 = vld [vmem:[%s14] sm:$0x3]
        %7982 = vset.pattern.permute.xlu0 0
        %7983 = vperm.xlu0 %7982, %v7980
        %v7984 = vpop.permute.xlu0 %7983
        %v7987 = vsel %vm519, %v7979, 0
        %v7990 = vsel %vm519, %v7947, 0
        %v7993 = vsel %vm519, %v7948, 0
        %v7996 = vsel %vm519, %v7949, 0
        %v7999 = vsel %vm519, %v7950, 0
        %v8002 = vsel %vm519, %v7951, 0
        %v8005 = vsel %vm519, %v7952, 0
        %v8008 = vsel %vm519, %v7953, 0
        %v8011 = vsel %vm519, %v7954, 0
        %v8014 = vsel %vm519, %v7955, 0
        %v8017 = vsel %vm519, %v7956, 0
        %v8020 = vsel %vm519, %v7957, 0
        %v8023 = vsel %vm519, %v7958, 0
        %v8026 = vsel %vm519, %v7959, 0
        %v8029 = vsel %vm519, %v7960, 0
        %v8032 = vsel %vm519, %v7961, 0
        %v8035 = vsel %vm519, %v7962, 0
        %v8038 = vsel %vm519, %v7963, 0
        %v8041 = vsel %vm519, %v7964, 0
        %v8044 = vsel %vm519, %v7965, 0
        %v8047 = vsel %vm519, %v7966, 0
        %v8050 = vsel %vm519, %v7967, 0
        %v8053 = vsel %vm519, %v7968, 0
        %v8056 = vsel %vm519, %v7969, 0
        %v8059 = vsel %vm519, %v7970, 0
        %v8062 = vsel %vm519, %v7971, 0
        %v8065 = vsel %vm519, %v7972, 0
        %v8068 = vsel %vm519, %v7973, 0
        %v8071 = vsel %vm519, %v7974, 0
        %v8074 = vsel %vm519, %v7975, 0
        %v8077 = vsel %vm519, %v7976, 0
        %v8080 = vsel %vm519, %v7977, 0
        %v8083 = vsel %vm519, %v7978, 0
        %8085 = vmatprep.subr.mxu0 0.0
        %8086 = vmatpush1.xpose.msra.mxu0 %v7990
        %8087 = vmatprep.subr.mxu0 0.0
        %8088 = vmatpush1.xpose.msra.mxu0 %v7993
        %8089 = vmatprep.subr.mxu0 0.0
        %8090 = vmatpush1.xpose.msra.mxu0 %v7996
        %8091 = vmatprep.subr.mxu0 0.0
        %8092 = vmatpush1.xpose.msra.mxu0 %v7999
        %8093 = vmatprep.subr.mxu0 0.0
        %8094 = vmatpush1.xpose.msra.mxu0 %v8002
        %8095 = vmatprep.subr.mxu0 0.0
        %8096 = vmatpush1.xpose.msra.mxu0 %v8005
        %8097 = vmatprep.subr.mxu0 0.0
        %8098 = vmatpush1.xpose.msra.mxu0 %v8008
        %8099 = vmatprep.subr.mxu0 0.0
        %8100 = vmatpush1.xpose.msra.mxu0 %v8011
        %8101 = vmatprep.subr.mxu0 0.0
        %8102 = vmatpush1.xpose.msra.mxu0 %v8014
        %8103 = vmatprep.subr.mxu0 0.0
        %8104 = vmatpush1.xpose.msra.mxu0 %v8017
        %8105 = vmatprep.subr.mxu0 0.0
        %8106 = vmatpush1.xpose.msra.mxu0 %v8020
        %8107 = vmatprep.subr.mxu0 0.0
        %8108 = vmatpush1.xpose.msra.mxu0 %v8023
        %8109 = vmatprep.subr.mxu0 0.0
        %8110 = vmatpush1.xpose.msra.mxu0 %v8026
        %8111 = vmatprep.subr.mxu0 0.0
        %8112 = vmatpush1.xpose.msra.mxu0 %v8029
        %8113 = vmatprep.subr.mxu0 0.0
        %8114 = vmatpush1.xpose.msra.mxu0 %v8032
        %8115 = vmatprep.subr.mxu0 0.0
        %8116 = vmatpush1.xpose.msra.mxu0 %v8035
        %8117 = vmatprep.subr.mxu0 0.0
        %8118 = vmatpush1.xpose.msra.mxu0 %v8038
        %8119 = vmatprep.subr.mxu0 0.0
        %8120 = vmatpush1.xpose.msra.mxu0 %v8041
        %8121 = vmatprep.subr.mxu0 0.0
        %8122 = vmatpush1.xpose.msra.mxu0 %v8044
        %8123 = vmatprep.subr.mxu0 0.0
        %8124 = vmatpush1.xpose.msra.mxu0 %v8047
        %8125 = vmatprep.subr.mxu0 0.0
        %8126 = vmatpush1.xpose.msra.mxu0 %v8050
        %8127 = vmatprep.subr.mxu0 0.0
        %8128 = vmatpush1.xpose.msra.mxu0 %v8053
        %8129 = vmatprep.subr.mxu0 0.0
        %8130 = vmatpush1.xpose.msra.mxu0 %v8056
        %8131 = vmatprep.subr.mxu0 0.0
        %8132 = vmatpush1.xpose.msra.mxu0 %v8059
        %8133 = vmatprep.subr.mxu0 0.0
        %8134 = vmatpush1.xpose.msra.mxu0 %v8062
        %8135 = vmatprep.subr.mxu0 0.0
        %8136 = vmatpush1.xpose.msra.mxu0 %v8065
        %8137 = vmatprep.subr.mxu0 0.0
        %8138 = vmatpush1.xpose.msra.mxu0 %v8068
        %8139 = vmatprep.subr.mxu0 0.0
        %8140 = vmatpush1.xpose.msra.mxu0 %v8071
        %8141 = vmatprep.subr.mxu0 0.0
        %8142 = vmatpush1.xpose.msra.mxu0 %v8074
        %8143 = vmatprep.subr.mxu0 0.0
        %8144 = vmatpush1.xpose.msra.mxu0 %v8077
        %8145 = vmatprep.subr.mxu0 0.0
        %8146 = vmatpush1.xpose.msra.mxu0 %v8080
        %8147 = vmatprep.subr.mxu0 0.0
        %8148 = vmatpush1.xpose.msra.mxu0 %v8083
        %8149 = vmatprep.mubr.f32.mxu0 0.0
        %8150 = vmatmul.mubr.f32.gmra.mrb[0].mxu0 %v7987
        %v8151 = vpop.f32.mrb[0].mxu0
        %v8152 = vadd.f32 %v7984, %v8151
        %v8153 = vpop.f32.mrb[0].mxu0
        %v8154 = vadd.f32 %v7984, %v8153
        %8155 = vdwg.mxu0
        %vm8156 = vcmask 1041408
        %v8157 = vsel %vm8156, %v8152, -inf
        %v8158 = vsel %vm8156, %v8154, -inf
        %v8159 = vmax.f32 %v8157, %v8158
        %8160 = vmax.xlane.f32.xlu0 %v8159
        %v8161 = vpop.xlane.xlu0 %8160
        %v8162 = vsub.f32 %v8152, %v8161
        %v8163 = vsub.f32 %v8154, %v8161
        %v8164 = vmul.f32 %v8162, 1.442695
        %v8165 = vpow.pop %v8164
        %v8166 = vmul.f32 %v8163, 1.442695
        %v8167 = vpow.pop %v8166
        %v8168 = vsel %vm8156, %v8165, 0.0
        %v8169 = vsel %vm8156, %v8167, 0.0
        %v8170 = vadd.f32 %v8168, %v8169
        %8171 = vadd.xlane.f32.xlu0 %v8170
        %v8172 = vpop.xlane.xlu0 %8171
        %v8173 = vrcp.pop %v8172
        %v8174 = vmul.f32 %v8165, %v8173
        %v8175 = vmul.f32 %v8167, %v8173
        %v8176 = vld [vmem:[%s15] sm:$0xff]
        %v8177 = vld [vmem:[%s15 + $0x8] sm:$0xff]
        %v8178 = vld [vmem:[%s15 + $0x10] sm:$0xff]
        %v8179 = vld [vmem:[%s15 + $0x18] sm:$0xff]
        %v8180 = vld [vmem:[%s15 + $0x20] sm:$0xff]
        %v8181 = vld [vmem:[%s15 + $0x28] sm:$0xff]
        %v8182 = vld [vmem:[%s15 + $0x30] sm:$0xff]
        %v8183 = vld [vmem:[%s15 + $0x38] sm:$0xff]
        %v8184 = vld [vmem:[%s15 + $0x40] sm:$0xff]
        %v8185 = vld [vmem:[%s15 + $0x48] sm:$0xff]
        %v8186 = vld [vmem:[%s15 + $0x50] sm:$0xff]
        %v8187 = vld [vmem:[%s15 + $0x58] sm:$0xff]
        %v8188 = vld [vmem:[%s15 + $0x60] sm:$0xff]
        %v8189 = vld [vmem:[%s15 + $0x68] sm:$0xff]
        %v8190 = vld [vmem:[%s15 + $0x70] sm:$0xff]
        %v8191 = vld [vmem:[%s15 + $0x78] sm:$0xff]
        %v8192 = vld [vmem:[%s15 + $0x80] sm:$0xff]
        %v8193 = vld [vmem:[%s15 + $0x88] sm:$0xff]
        %v8194 = vld [vmem:[%s15 + $0x90] sm:$0xff]
        %v8195 = vld [vmem:[%s15 + $0x98] sm:$0xff]
        %v8196 = vld [vmem:[%s15 + $0xa0] sm:$0xff]
        %v8197 = vld [vmem:[%s15 + $0xa8] sm:$0xff]
        %v8198 = vld [vmem:[%s15 + $0xb0] sm:$0xff]
        %v8199 = vld [vmem:[%s15 + $0xb8] sm:$0xff]
        %v8200 = vld [vmem:[%s15 + $0xc0] sm:$0xff]
        %v8201 = vld [vmem:[%s15 + $0xc8] sm:$0xff]
        %v8202 = vld [vmem:[%s15 + $0xd0] sm:$0xff]
        %v8203 = vld [vmem:[%s15 + $0xd8] sm:$0xff]
        %v8204 = vld [vmem:[%s15 + $0xe0] sm:$0xff]
        %v8205 = vld [vmem:[%s15 + $0xe8] sm:$0xff]
        %v8206 = vld [vmem:[%s15 + $0xf0] sm:$0xff]
        %v8207 = vld [vmem:[%s15 + $0xf8] sm:$0xff]
        %8208 = vmatprep.subr.mxu0 0.0
        %8209 = vmatpush1.msra.mxu0 %v8176
        %8210 = vmatprep.subr.mxu0 0.0
        %8211 = vmatpush1.msra.mxu0 %v8177
        %8212 = vmatprep.subr.mxu0 0.0
        %8213 = vmatpush1.msra.mxu0 %v8178
        %8214 = vmatprep.subr.mxu0 0.0
        %8215 = vmatpush1.msra.mxu0 %v8179
        %8216 = vmatprep.subr.mxu0 0.0
        %8217 = vmatpush1.msra.mxu0 %v8180
        %8218 = vmatprep.subr.mxu0 0.0
        %8219 = vmatpush1.msra.mxu0 %v8181
        %8220 = vmatprep.subr.mxu0 0.0
        %8221 = vmatpush1.msra.mxu0 %v8182
        %8222 = vmatprep.subr.mxu0 0.0
        %8223 = vmatpush1.msra.mxu0 %v8183
        %8224 = vmatprep.subr.mxu0 0.0
        %8225 = vmatpush1.msra.mxu0 %v8184
        %8226 = vmatprep.subr.mxu0 0.0
        %8227 = vmatpush1.msra.mxu0 %v8185
        %8228 = vmatprep.subr.mxu0 0.0
        %8229 = vmatpush1.msra.mxu0 %v8186
        %8230 = vmatprep.subr.mxu0 0.0
        %8231 = vmatpush1.msra.mxu0 %v8187
        %8232 = vmatprep.subr.mxu0 0.0
        %8233 = vmatpush1.msra.mxu0 %v8188
        %8234 = vmatprep.subr.mxu0 0.0
        %8235 = vmatpush1.msra.mxu0 %v8189
        %8236 = vmatprep.subr.mxu0 0.0
        %8237 = vmatpush1.msra.mxu0 %v8190
        %8238 = vmatprep.subr.mxu0 0.0
        %8239 = vmatpush1.msra.mxu0 %v8191
        %8240 = vmatprep.subr.mxu0 0.0
        %8241 = vmatpush1.msra.mxu0 %v8192
        %8242 = vmatprep.subr.mxu0 0.0
        %8243 = vmatpush1.msra.mxu0 %v8193
        %8244 = vmatprep.subr.mxu0 0.0
        %8245 = vmatpush1.msra.mxu0 %v8194
        %8246 = vmatprep.subr.mxu0 0.0
        %8247 = vmatpush1.msra.mxu0 %v8195
        %8248 = vmatprep.subr.mxu0 0.0
        %8249 = vmatpush1.msra.mxu0 %v8196
        %8250 = vmatprep.subr.mxu0 0.0
        %8251 = vmatpush1.msra.mxu0 %v8197
        %8252 = vmatprep.subr.mxu0 0.0
        %8253 = vmatpush1.msra.mxu0 %v8198
        %8254 = vmatprep.subr.mxu0 0.0
        %8255 = vmatpush1.msra.mxu0 %v8199
        %8256 = vmatprep.subr.mxu0 0.0
        %8257 = vmatpush1.msra.mxu0 %v8200
        %8258 = vmatprep.subr.mxu0 0.0
        %8259 = vmatpush1.msra.mxu0 %v8201
        %8260 = vmatprep.subr.mxu0 0.0
        %8261 = vmatpush1.msra.mxu0 %v8202
        %8262 = vmatprep.subr.mxu0 0.0
        %8263 = vmatpush1.msra.mxu0 %v8203
        %8264 = vmatprep.subr.mxu0 0.0
        %8265 = vmatpush1.msra.mxu0 %v8204
        %8266 = vmatprep.subr.mxu0 0.0
        %8267 = vmatpush1.msra.mxu0 %v8205
        %8268 = vmatprep.subr.mxu0 0.0
        %8269 = vmatpush1.msra.mxu0 %v8206
        %8270 = vmatprep.subr.mxu0 0.0
        %8271 = vmatpush1.msra.mxu0 %v8207
        %8272 = vmatprep.mubr.f32.mxu0 %v8175
        %8273 = vmatmul.mubr.f32.gmra.mrb[0].mxu0 %v8174
        %v8274 = vpop.f32.mrb[0].mxu0
        %v8275 = vadd.f32 0.0, %v8274
        %v8276 = vpop.f32.mrb[0].mxu0
        %8277 = vdwg.mxu0
        %v8279 = vrot.slane %v8275, 1
        %8280 = vrot.lane.b32.xlu0 %v8279, 2
        %v8281 = vpop.permute.xlu0 %8280
        %vm8283 = vcmask 15360
        %v8284 = vsel %vm8283, %v8275, %v8281
        %v8285 = vmul.f32 %v8284, 0.00390625
        %8286 = vst.msk [vmem:[%s513] sm:$0x1] %vm523, %v8285
        %s8287 = sand.u32 %s379, 1
        %s8288 = scalar_lea.sflag [#allocation7], %s8287
        %s8289 = sand.u32 %s379, 1
        %s8290 = scalar_lea.vmem [#allocation6], %s8289
        // Predicated region
        $region85: #{corner_predictor_forward.1} parent=83 // pred_check
          %p8291 = pneg %p389
        $region86: #{corner_predictor_forward.1} parent=83 // pred_check_branch
          %8293 = sbr.rel (%p8291) target = $region88
        $region87: #{corner_predictor_forward.1} parent=83 // pred_region
          %s8295 = ssub.s32 16, 16
          %8296 = vsyncadd %s8288, %s8295
          %s8297 = smul.addr %s30, 16
          %s8298 = scalar_lea.hbm %s16, %s8297
          %s8300 = sshll.u32 %s8290, 4
          %s8301 = int_to_ptr.vmem [resolvable:$true] %s8300
          %8303 = dma.vmem_to_hbm [thread:$0]  %s8301, 16, %s8298, %s8288
        $region88: #{corner_predictor_forward.1} parent=83 // pred_fallthru
          _
      $region84: #{corner_predictor_forward.1} parent=5 // pred_fallthru
        _
      %p8304 = scmp.le.s32.totalorder 2, %s25
      // Predicated region
      $region89: #{corner_predictor_forward.1} parent=5 // pred_check
        %p8305 = pneg %p8304
      $region90: #{corner_predictor_forward.1} parent=5 // pred_check_branch
        %8307 = sbr.rel (%p8305) target = $region92
      $region91: #{corner_predictor_forward.1} parent=5 // pred_region
        %s8308 = ssub.s32 %s25, 2
        // Predicated region
        $region93: #{corner_predictor_forward.1} parent=91 // pred_check
          %p8309 = pneg %p395
        $region94: #{corner_predictor_forward.1} parent=91 // pred_check_branch
          %8311 = sbr.rel (%p8309) target = $region96
        $region95: #{corner_predictor_forward.1} parent=91 // pred_region
          %s8312 = sand.u32 %s380, 1
          %s8313 = scalar_lea.sflag [#allocation7], %s8312
          %s8314 = sand.u32 %s380, 1
          %s8315 = scalar_lea.vmem [#allocation6], %s8314
          %8316 = dma.done %s8313, 16
        $region96: #{corner_predictor_forward.1} parent=91 // pred_fallthru
          _
      $region92: #{corner_predictor_forward.1} parent=5 // pred_fallthru
        _
    $region6: #{corner_predictor_forward.1} parent=1 // loop_footer
      %s29 = sadd.s32 1, %s25
    $region7: #{corner_predictor_forward.1} parent=1 // loop_footer_branch
      %24 = sbr.rel target = $region3
    $region8: #{corner_predictor_forward.1} parent=1 // loop_exit
      _
    %8317 = vsyncpa [#allocation7], 1
    %s8318 = scalar_lea.sflag [#allocation7], 1
    %8319 = vsyncpa %s8318, 1

</llo_original>
